<compile_context>
chip_gen: v6e
topology: v6e:2x2x1
jax: 0.10.0
libtpu: 0.0.40
codegen_flags: <defaults>
</compile_context>

<pallas_src>
import functools

import jax
import jax.numpy as jnp
import numpy as np
from jax.experimental import pallas as pl
from jax.experimental.pallas import tpu as pltpu


def _round_up(x, m):
    return (x + m - 1) // m * m


def _vmem_capacity_bytes():
    """Per-TensorCore VMEM capacity; conservative 64 MiB (v7x) fallback."""
    try:
        info = pltpu.get_tpu_info()
        cap = int(getattr(info, "vmem_capacity_bytes", 0) or 0)
        if cap > 0:
            return cap
    except Exception:
        pass
    return 64 << 20


def _tile_bytes(lead, sub, lane, itemsize):
    # minor two dims padded to the (8, 128) vreg tile
    return lead * _round_up(max(sub, 1), 8) * _round_up(max(lane, 1), 128) * itemsize


def _vmem_estimate(tile_h, w, cin, cout_p, c_isz, o_isz):
    wp = w + 2
    m = tile_h * wp
    in_b = _tile_bytes(tile_h + 2, wp, cin, c_isz)        # streamed input block
    w_b = _tile_bytes(3, cin, 3 * cout_p, c_isz)          # resident packed weights
    b_b = _tile_bytes(1, 1, cout_p, 4)                    # resident bias
    out_b = _tile_bytes(1, m, cout_p, o_isz)              # streamed output block
    acc_b = _tile_bytes(1, m + 8, 3 * cout_p, 4)          # f32 accumulator scratch
    # streaming blocks are double-buffered; weights/bias counted twice to be safe
    return 2 * in_b + 2 * out_b + 2 * (w_b + b_b) + acc_b


def _pick_tile_h(h, n, fits, min_steps=4):
    """Largest divisor of h whose VMEM footprint fits, preferring tilings that
    give >= min_steps grid steps (keeps both v7x TensorCores busy and gives the
    Pallas pipeline enough steps to overlap DMA with MXU compute)."""
    divs = [d for d in range(1, h + 1) if h % d == 0 and fits(d)]
    if not divs:
        # TODO(synk): pathologically wide rows (w*cin too big for VMEM) would
        # need a W split as well; fall back to single-row tiles.
        return 1
    deep = [d for d in divs if n * (h // d) >= min_steps]
    return max(deep) if deep else max(divs)


def _conv3x3_kernel(x_ref, w_ref, b_ref, o_ref, acc_ref, *,
                    tile_h, wp, cout_p, precision):
    """One grid step = one (batch, row-tile) of the 3x3 SAME conv.

    x_ref   : (1, tile_h+2, wp, Cin)      zero-padded NHWC window (compute dtype)
              (or (1, 1, tile_h+2, wp, Cin) on the stacked-tile fallback path)
    w_ref   : (3, Cin, 3*cout_p)          dy-major weights, dx packed into N
    b_ref   : (1, cout_p)                 f32 bias
    o_ref   : (1, 1, tile_h*wp, cout_p)   output tile (lane-dense)
    acc_ref : (tile_h*wp + 8, 3*cout_p)   f32 VMEM accumulator
    """
    cin = x_ref.shape[-1]
    m = tile_h * wp
    cp = cout_p

    # Rows [m, m+8) are never written by the matmuls below but are read by the
    # shifted combine (they only feed the 2 discarded right-padding output
    # columns of the last row) - zero them so everything stays finite.
    acc_ref[pl.ds(m, 8), :] = jnp.zeros((8, 3 * cp), jnp.float32)

    x = x_ref[...].reshape(tile_h + 2, wp, cin)
    for dy in range(3):
        band = x[dy:dy + tile_h].reshape(m, cin)          # leading-dim slice
        part = jnp.dot(band, w_ref[dy],
                       preferred_element_type=jnp.float32,
                       precision=precision)               # (m, 3*cout_p)
        if dy == 0:
            acc_ref[pl.ds(0, m), :] = part
        else:
            acc_ref[pl.ds(0, m), :] += part

    # Combine the three dx groups with +0/+1/+2 row shifts (padded-width
    # coordinates), add bias once, cast once, store once (lane-dense).
    acc = acc_ref[...]
    out = (acc[0:m, 0:cp]
           + acc[1:m + 1, cp:2 * cp]
           + acc[2:m + 2, 2 * cp:3 * cp]) + b_ref[...]
    o_ref[...] = out[None, None].astype(o_ref.dtype)


def key_projection_conv3x3(x_nchw, w_oihw, b, *, compute_dtype=jnp.bfloat16,
                           out_dtype=None, tile_h=None):
    """3x3 SAME conv (stride 1, padding 1) with PyTorch nn.Conv2d layouts.

    x is NCHW, weight is OIHW.  compute_dtype sets the MXU input dtype (bf16
    default; pass jnp.float32 for exact parity with torch's f32 Conv2d).
    out_dtype defaults to compute_dtype (bf16 output halves HBM writeback).
    """
    n, cin, h, w = x_nchw.shape
    cout = w_oihw.shape[0]
    if compute_dtype is None:
        compute_dtype = x_nchw.dtype
    if out_dtype is None:
        out_dtype = compute_dtype
    cout_p = _round_up(cout, 128)
    wp = w + 2

    c_isz = jnp.dtype(compute_dtype).itemsize
    o_isz = jnp.dtype(out_dtype).itemsize
    cap = _vmem_capacity_bytes()
    budget = int(0.8 * cap)

    if tile_h is None:
        fits = lambda d: _vmem_estimate(d, w, cin, cout_p, c_isz, o_isz) <= budget
        tile_h = _pick_tile_h(h, n, fits)
    assert h % tile_h == 0, "tile_h must divide H"
    n_t = h // tile_h
    m = tile_h * wp

    # ---- layout glue (single fused copy: NCHW -> NHWC, cast, SAME zero-pad) --
    x = jnp.transpose(x_nchw, (0, 2, 3, 1)).astype(compute_dtype)
    xp = jnp.pad(x, ((0, 0), (1, 1), (1, 1), (0, 0)))       # (N, H+2, W+2, Cin)

    # OIHW -> (dy, Cin, dx*Cout_p): dx taps packed into the matmul N dimension,
    # Cout lane-padded to a multiple of 128 for unmasked stores.
    w_t = jnp.transpose(w_oihw, (2, 3, 1, 0))                # (3, 3, Cin, Cout)
    w_t = jnp.pad(w_t, ((0, 0), (0, 0), (0, 0), (0, cout_p - cout)))
    w_packed = jnp.transpose(w_t, (0, 2, 1, 3)).reshape(3, cin, 3 * cout_p)
    w_packed = w_packed.astype(compute_dtype)
    b_p = jnp.pad(b.astype(jnp.float32), (0, cout_p - cout)).reshape(1, cout_p)

    est = _vmem_estimate(tile_h, w, cin, cout_p, c_isz, o_isz)
    vmem_limit = int(min(max(est + (8 << 20), 32 << 20), int(0.85 * cap)))

    precision = (jax.lax.Precision.HIGHEST
                 if jnp.dtype(compute_dtype) == jnp.dtype(jnp.float32) else None)
    kernel = functools.partial(_conv3x3_kernel, tile_h=tile_h, wp=wp,
                               cout_p=cout_p, precision=precision)

    out_shape = jax.ShapeDtypeStruct((n, n_t, m, cout_p), out_dtype)
    out_spec = pl.BlockSpec((1, 1, m, cout_p), lambda bi, ti: (bi, ti, 0, 0))
    w_spec = pl.BlockSpec((3, cin, 3 * cout_p), lambda bi, ti: (0, 0, 0))
    b_spec = pl.BlockSpec((1, cout_p), lambda bi, ti: (0, 0))
    scratch = [pltpu.VMEM((m + 8, 3 * cout_p), jnp.float32)]
    cparams = pltpu.CompilerParams(
        dimension_semantics=("parallel", "parallel"),
        vmem_limit_bytes=vmem_limit)

    def _run(use_element_halo):
        if use_element_halo:
            # Overlapping (tile_h+2)-row windows fetched straight from the
            # padded activation: no host-side halo duplication / extra HBM trip.
            x_in = xp
            x_spec = pl.BlockSpec(
                (1, pl.Element(tile_h + 2), wp, cin),
                lambda bi, ti: (bi, ti * tile_h, 0, 0))
        else:
            # Fallback: materialize overlapping row tiles on the host
            # (~(tile_h+2)/tile_h duplication) with plain blocked indexing.
            x_in = jnp.stack(
                [xp[:, t * tile_h: t * tile_h + tile_h + 2] for t in range(n_t)],
                axis=1)                                      # (N, n_t, TH+2, wp, Cin)
            x_spec = pl.BlockSpec((1, 1, tile_h + 2, wp, cin),
                                  lambda bi, ti: (bi, ti, 0, 0, 0))
        return pl.pallas_call(
            kernel,
            out_shape=out_shape,
            grid=(n, n_t),
            in_specs=[x_spec, w_spec, b_spec],
            out_specs=out_spec,
            scratch_shapes=scratch,
            compiler_params=cparams,
        )(x_in, w_packed, b_p)

    try:
        out = _run(True)
    except Exception:
        out = _run(False)

    # (N, n_t, TH*(W+2), Cout_p) -> (N, H, W+2, Cout_p) -> crop pad/Cout -> NCHW.
    out = out.reshape(n, h, wp, cout_p)[:, :, :w, :cout]
    return jnp.transpose(out, (0, 3, 1, 2))


class KeyProjection:
    """Pallas port of the PyTorch KeyProjection (3x3 conv, padding=1)."""

    def __init__(self, indim, keydim, *, key):
        # nn.init.orthogonal_ on the (keydim, indim*3*3)-flattened weight,
        # nn.init.zeros_ on the bias (init-time only; forward is the conv).
        w2d = jax.nn.initializers.orthogonal()(key, (keydim, indim * 9),
                                               jnp.float32)
        self.weight = w2d.reshape(keydim, indim, 3, 3)      # OIHW, like nn.Conv2d
        self.bias = jnp.zeros((keydim,), jnp.float32)
        self.indim, self.keydim = indim, keydim

    def __call__(self, x_nchw, *, compute_dtype=jnp.bfloat16, out_dtype=None,
                 tile_h=None):
        return key_projection_conv3x3(x_nchw, self.weight, self.bias,
                                      compute_dtype=compute_dtype,
                                      out_dtype=out_dtype, tile_h=tile_h)


# ---------------- pure-JAX reference (correctness check only) ----------------
def _ref_keyproj(x_nchw, w_oihw, b, compute_dtype=None):
    xx, ww = x_nchw, w_oihw
    if compute_dtype is not None:
        xx = xx.astype(compute_dtype)
        ww = ww.astype(compute_dtype)
    y = jax.lax.conv_general_dilated(
        xx, ww, window_strides=(1, 1), padding=((1, 1), (1, 1)),
        dimension_numbers=("NCHW", "OIHW", "NCHW"),
        preferred_element_type=jnp.float32,
        precision=jax.lax.Precision.HIGHEST)
    return y + b[None, :, None, None].astype(jnp.float32)


if __name__ == "__main__":
    key = jax.random.PRNGKey(0)
    kx, kw = jax.random.split(key)

    n, indim, h, w = 2, 4, 16, 16
    keydim = 64
    x = jax.random.normal(kx, (n, indim, h, w), jnp.float32)   # NCHW like torch

    proj = KeyProjection(indim, keydim, key=kw)

    # f32 MXU + f32 output: tight check against the f32 XLA conv reference.
    y32 = jax.block_until_ready(
        proj(x, compute_dtype=jnp.float32, out_dtype=jnp.float32))
    ref32 = jax.block_until_ready(_ref_keyproj(x, proj.weight, proj.bias))
    assert y32.shape == (n, keydim, h, w) and y32.dtype == jnp.float32
    np.testing.assert_allclose(np.asarray(y32), np.asarray(ref32),
                               rtol=1e-4, atol=1e-4)

    # Default fast path (bf16 MXU inputs, f32 accumulation/bias, bf16 output):
    # compare against a reference fed the same bf16 inputs.
    y16 = jax.block_until_ready(proj(x))
    assert y16.dtype == jnp.bfloat16
    ref16 = _ref_keyproj(x, proj.weight, proj.bias,
                         jnp.bfloat16).astype(jnp.bfloat16)
    np.testing.assert_allclose(np.asarray(y16, dtype=np.float32),
                               np.asarray(ref16, dtype=np.float32),
                               rtol=2e-2, atol=2e-2)

    # Also exercise the single-H-tile configuration (grid = (N, 1)).
    y_full = jax.block_until_ready(
        proj(x, compute_dtype=jnp.float32, out_dtype=jnp.float32, tile_h=16))
    np.testing.assert_allclose(np.asarray(y_full), np.asarray(ref32),
                               rtol=1e-4, atol=1e-4)

    print("KERNEL_OK")
</pallas_src>

<mosaic_0001>
module attributes {stable_mosaic.version = 11 : i64} {
  func.func @_conv3x3_kernel(%arg0: i32, %arg1: i32, %arg2: memref<1x1x10x18x4xf32, #tpu.memory_space<vmem>>, %arg3: memref<3x4x384xf32, #tpu.memory_space<vmem>>, %arg4: memref<1x128xf32, #tpu.memory_space<vmem>>, %arg5: memref<1x1x144x128xf32, #tpu.memory_space<vmem>>, %arg6: memref<152x384xf32, #tpu.memory_space<vmem>>) attributes {dimension_semantics = [#tpu.dimension_semantics<parallel>, #tpu.dimension_semantics<parallel>], iteration_bounds = array<i64: 2, 2>, scalar_prefetch = 0 : i64, scratch_operands = 1 : i64, tpu.core_type = #tpu.core_type<tc>, window_params = [{transform_indices = @transform_0, window_bounds = array<i64: 1, 1, 10, 18, 4>}, {pipeline_mode = #tpu.pipeline_mode<synchronous>, transform_indices = @transform_1, window_bounds = array<i64: 3, 4, 384>}, {pipeline_mode = #tpu.pipeline_mode<synchronous>, transform_indices = @transform_2, window_bounds = array<i64: 1, 128>}, {transform_indices = @transform_3, window_bounds = array<i64: 1, 1, 144, 128>}]} {
    %cst = arith.constant 0.000000e+00 : f32
    %0 = vector.broadcast %cst : f32 to vector<8x384xf32>
    %c144 = arith.constant 144 : index
    %c0 = arith.constant 0 : index
    %1 = vector.load %arg6[%c144, %c0] : memref<152x384xf32, #tpu.memory_space<vmem>>, vector<8x384xf32>
    tpu.vector_store %arg6[%c144, %c0], %0 {strides = array<i32>} : memref<152x384xf32, #tpu.memory_space<vmem>>, vector<8x384xf32>,
    %c0_0 = arith.constant 0 : index
    %c0_1 = arith.constant 0 : index
    %c0_2 = arith.constant 0 : index
    %c0_3 = arith.constant 0 : index
    %c0_4 = arith.constant 0 : index
    %2 = vector.load %arg2[%c0_0, %c0_1, %c0_2, %c0_3, %c0_4] : memref<1x1x10x18x4xf32, #tpu.memory_space<vmem>>, vector<1x1x10x18x4xf32>
    %3 = vector.shape_cast %2 : vector<1x1x10x18x4xf32> to vector<10x18x4xf32>
    %4 = vector.extract_strided_slice %3 {offsets = [0, 0, 0], sizes = [8, 18, 4], strides = [1, 1, 1]} : vector<10x18x4xf32> to vector<8x18x4xf32>
    %5 = vector.shape_cast %4 : vector<8x18x4xf32> to vector<144x4xf32>
    %c0_5 = arith.constant 0 : index
    %c0_6 = arith.constant 0 : index
    %c0_7 = arith.constant 0 : index
    %6 = vector.load %arg3[%c0_5, %c0_6, %c0_7] : memref<3x4x384xf32, #tpu.memory_space<vmem>>, vector<1x4x384xf32>
    %7 = vector.shape_cast %6 : vector<1x4x384xf32> to vector<4x384xf32>
    %cst_8 = arith.constant dense<0.000000e+00> : vector<144x384xf32>
    %8 = tpu.matmul %5, %7, %cst_8 {dimension_numbers = #tpu.dot_dimension_numbers<[1], [0], [0], [1], [0, 0, 1, 1], [], []>, precision = #tpu.contract_precision<fp32>} : vector<144x4xf32>, vector<4x384xf32>, vector<144x384xf32> -> vector<144x384xf32>
    %c0_9 = arith.constant 0 : index
    %c0_10 = arith.constant 0 : index
    %9 = vector.load %arg6[%c0_9, %c0_10] : memref<152x384xf32, #tpu.memory_space<vmem>>, vector<144x384xf32>
    tpu.vector_store %arg6[%c0_9, %c0_10], %8 {strides = array<i32>} : memref<152x384xf32, #tpu.memory_space<vmem>>, vector<144x384xf32>,
    %10 = vector.extract_strided_slice %3 {offsets = [1, 0, 0], sizes = [8, 18, 4], strides = [1, 1, 1]} : vector<10x18x4xf32> to vector<8x18x4xf32>
    %11 = vector.shape_cast %10 : vector<8x18x4xf32> to vector<144x4xf32>
    %c1 = arith.constant 1 : index
    %c0_11 = arith.constant 0 : index
    %c0_12 = arith.constant 0 : index
    %12 = vector.load %arg3[%c1, %c0_11, %c0_12] : memref<3x4x384xf32, #tpu.memory_space<vmem>>, vector<1x4x384xf32>
    %13 = vector.shape_cast %12 : vector<1x4x384xf32> to vector<4x384xf32>
    %cst_13 = arith.constant dense<0.000000e+00> : vector<144x384xf32>
    %14 = tpu.matmul %11, %13, %cst_13 {dimension_numbers = #tpu.dot_dimension_numbers<[1], [0], [0], [1], [0, 0, 1, 1], [], []>, precision = #tpu.contract_precision<fp32>} : vector<144x4xf32>, vector<4x384xf32>, vector<144x384xf32> -> vector<144x384xf32>
    %c0_14 = arith.constant 0 : index
    %c0_15 = arith.constant 0 : index
    %15 = vector.load %arg6[%c0_14, %c0_15] : memref<152x384xf32, #tpu.memory_space<vmem>>, vector<144x384xf32>
    %16 = arith.addf %15, %14 : vector<144x384xf32>
    %c0_16 = arith.constant 0 : index
    %c0_17 = arith.constant 0 : index
    %17 = vector.load %arg6[%c0_16, %c0_17] : memref<152x384xf32, #tpu.memory_space<vmem>>, vector<144x384xf32>
    tpu.vector_store %arg6[%c0_16, %c0_17], %16 {strides = array<i32>} : memref<152x384xf32, #tpu.memory_space<vmem>>, vector<144x384xf32>,
    %18 = vector.extract_strided_slice %3 {offsets = [2, 0, 0], sizes = [8, 18, 4], strides = [1, 1, 1]} : vector<10x18x4xf32> to vector<8x18x4xf32>
    %19 = vector.shape_cast %18 : vector<8x18x4xf32> to vector<144x4xf32>
    %c2 = arith.constant 2 : index
    %c0_18 = arith.constant 0 : index
    %c0_19 = arith.constant 0 : index
    %20 = vector.load %arg3[%c2, %c0_18, %c0_19] : memref<3x4x384xf32, #tpu.memory_space<vmem>>, vector<1x4x384xf32>
    %21 = vector.shape_cast %20 : vector<1x4x384xf32> to vector<4x384xf32>
    %cst_20 = arith.constant dense<0.000000e+00> : vector<144x384xf32>
    %22 = tpu.matmul %19, %21, %cst_20 {dimension_numbers = #tpu.dot_dimension_numbers<[1], [0], [0], [1], [0, 0, 1, 1], [], []>, precision = #tpu.contract_precision<fp32>} : vector<144x4xf32>, vector<4x384xf32>, vector<144x384xf32> -> vector<144x384xf32>
    %c0_21 = arith.constant 0 : index
    %c0_22 = arith.constant 0 : index
    %23 = vector.load %arg6[%c0_21, %c0_22] : memref<152x384xf32, #tpu.memory_space<vmem>>, vector<144x384xf32>
    %24 = arith.addf %23, %22 : vector<144x384xf32>
    %c0_23 = arith.constant 0 : index
    %c0_24 = arith.constant 0 : index
    %25 = vector.load %arg6[%c0_23, %c0_24] : memref<152x384xf32, #tpu.memory_space<vmem>>, vector<144x384xf32>
    tpu.vector_store %arg6[%c0_23, %c0_24], %24 {strides = array<i32>} : memref<152x384xf32, #tpu.memory_space<vmem>>, vector<144x384xf32>,
    %c0_25 = arith.constant 0 : index
    %c0_26 = arith.constant 0 : index
    %26 = vector.load %arg6[%c0_25, %c0_26] : memref<152x384xf32, #tpu.memory_space<vmem>>, vector<152x384xf32>
    %27 = vector.extract_strided_slice %26 {offsets = [0, 0], sizes = [144, 128], strides = [1, 1]} : vector<152x384xf32> to vector<144x128xf32>
    %28 = vector.extract_strided_slice %26 {offsets = [1, 128], sizes = [144, 128], strides = [1, 1]} : vector<152x384xf32> to vector<144x128xf32>
    %29 = arith.addf %27, %28 : vector<144x128xf32>
    %30 = vector.extract_strided_slice %26 {offsets = [2, 256], sizes = [144, 128], strides = [1, 1]} : vector<152x384xf32> to vector<144x128xf32>
    %31 = arith.addf %29, %30 : vector<144x128xf32>
    %c0_27 = arith.constant 0 : index
    %c0_28 = arith.constant 0 : index
    %32 = vector.load %arg4[%c0_27, %c0_28] : memref<1x128xf32, #tpu.memory_space<vmem>>, vector<1x128xf32>
    %33 = vector.broadcast %32 : vector<1x128xf32> to vector<144x128xf32>
    %34 = arith.addf %31, %33 : vector<144x128xf32>
    %35 = vector.shape_cast %34 : vector<144x128xf32> to vector<1x1x144x128xf32>
    %c0_29 = arith.constant 0 : index
    %c0_30 = arith.constant 0 : index
    %c0_31 = arith.constant 0 : index
    %c0_32 = arith.constant 0 : index
    %36 = vector.load %arg5[%c0_29, %c0_30, %c0_31, %c0_32] : memref<1x1x144x128xf32, #tpu.memory_space<vmem>>, vector<1x1x144x128xf32>
    tpu.vector_store %arg5[%c0_29, %c0_30, %c0_31, %c0_32], %35 {strides = array<i32>} : memref<1x1x144x128xf32, #tpu.memory_space<vmem>>, vector<1x1x144x128xf32>,
    return
  }
  func.func @transform_0(%arg0: i32, %arg1: i32) -> (i32, i32, i32, i32, i32) {
    %c0_i32 = arith.constant 0 : i32
    %c0_i32_0 = arith.constant 0 : i32
    %c0_i32_1 = arith.constant 0 : i32
    %c0_i32_2 = arith.constant 0 : i32
    return %arg0, %arg1, %c0_i32, %c0_i32_0, %c0_i32_1 : i32, i32, i32, i32, i32
  }
  func.func @transform_1(%arg0: i32, %arg1: i32) -> (i32, i32, i32) {
    %c0_i32 = arith.constant 0 : i32
    %c0_i32_0 = arith.constant 0 : i32
    %c0_i32_1 = arith.constant 0 : i32
    %c0_i32_2 = arith.constant 0 : i32
    return %c0_i32, %c0_i32_0, %c0_i32_1 : i32, i32, i32
  }
  func.func @transform_2(%arg0: i32, %arg1: i32) -> (i32, i32) {
    %c0_i32 = arith.constant 0 : i32
    %c0_i32_0 = arith.constant 0 : i32
    %c0_i32_1 = arith.constant 0 : i32
    return %c0_i32, %c0_i32_0 : i32, i32
  }
  func.func @transform_3(%arg0: i32, %arg1: i32) -> (i32, i32, i32, i32) {
    %c0_i32 = arith.constant 0 : i32
    %c0_i32_0 = arith.constant 0 : i32
    %c0_i32_1 = arith.constant 0 : i32
    return %arg0, %arg1, %c0_i32, %c0_i32_0 : i32, i32, i32, i32
  }
}

</mosaic_0001>

<llo_original>
// kernel: tpu_custom_call.1
$region0: #{tpu_custom_call.1}
  #allocation0 [shape = 'u32[]', space=smem, size = 0x4, offset = 0x4, fixed_abs, tag = 'smem constant byte address 0x4 - core index']
  #allocation1 [shape = 'u32[144,128]{1,0:T(1,128)}', space=vmem, size = 0x12000, scoped, tag = 'internal scratch']
  #allocation2 [shape = 'f32[152,384]{1,0:T(8,128)}', space=vmem, size = 0x39000, scoped, tag = 'scratch operand']
  %s0 = inlined_call_operand.vmem [shape: f32[2,2,10,18,4], index: 0, kind: input, shape index: {}]
  %s1 = inlined_call_operand.vmem [shape: f32[3,4,384], index: 1, kind: input, shape index: {}]
  %s2 = inlined_call_operand.vmem [shape: f32[1,128], index: 2, kind: input, shape index: {}]
  %s3 = inlined_call_operand.hbm [shape: f32[2,2,144,128], index: 3, kind: output, shape index: {}]
  %s4 = sld [smem:[#allocation0]]
  $region45: #{tpu_custom_call.1} parent=0
    _
  %s6 = ssub.s32 1, %s4
  %s7 = scalar_select 0, %s6, %s4
  $region1: #{tpu_custom_call.1} parent=0
    #allocation3 [shape = 'u8[147456]{0}', space=vmem, size = 0x24000, scoped, tag = 'output window, operand 0']
    #allocation4 [shape = 's32[2]{0}', space=sflag, size = 0x8, scoped, tag = 'scoped memory for tpu_custom_call.1']
    %8 = vsyncpa [#allocation4], 0
    %s9 = scalar_lea.sflag [#allocation4], 1
    %10 = vsyncpa %s9, 0
    loop: start=0, step=1, limit=6
    $region2: #{tpu_custom_call.1} parent=1 // loop_pre_header
      _
    $region3: #{tpu_custom_call.1} parent=1 // loop_header
      %s12 = sphi 0, %s16
      %p13 = scmp.ge.s32.totalorder %s12, 6
      %s19 = sphi 0, %s31
      %s20 = sphi 0, %s27
      %s21 = sphi 0, %s19
      %s22 = sphi 0, %s20
      %s23 = sphi 0, %s21
      %s24 = sphi 0, %s22
      %s36 = sphi 0, %s38
      %s39 = sphi 0, %s36
      %s40 = sphi 0, %s39
      %s56 = sphi 0, %s40
      %s60 = sphi 0, %s60
      %s62 = sphi 0, %s60
      %s63 = sphi 0, %s62
      %s77 = sphi 0, %s63
      %s81 = sphi 0, %s81
      %s83 = sphi 0, %s81
      %s84 = sphi 0, %s83
      %s98 = sphi 0, %s84
      %s106 = sphi 0, %s108
      %s109 = sphi 0, %s106
      %s110 = sphi 0, %s109
      %s126 = sphi 0, %s110
    $region4: #{tpu_custom_call.1} parent=1 // loop_header_branch
      %15 = sbr.rel (%p13) target = $region8
    $region5: #{tpu_custom_call.1} parent=1 // loop_body
      %s17 = ssub.s32 %s12, 1
      %s18 = ssub.s32 %s12, 2
      %s25 = sadd.s32 1, %s20
      %p26 = scmp.ge.s32.totalorder %s25, 2
      %s27 = scalar_select %p26, 0, %s25
      %s28 = sadd.s32 1, %s19
      %s29 = scalar_select %p26, %s28, %s19
      %p30 = scmp.ge.s32.totalorder %s29, 2
      %s31 = scalar_select %p30, 0, %s29
      %s32 = ssub.s32 %s19, %s31
      %s33 = ssub.s32 %s20, %s27
      %s34 = sor.u32 %s32, %s33
      %p35 = scmp.eq.s32.totalorder %s34, 0
      %s37 = sadd.s32 %s36, 1
      %s38 = scalar_select %p35, %s36, %s37
      %p41 = pneg %p35
      %p42 = scmp.eq.s32.totalorder %s12, 3
      %p43 = por %p41, %p42
      %p44 = scmp.ne.s32.totalorder %s36, %s39
      %p45 = scmp.eq.s32.totalorder %s12, 0
      %p46 = por %p44, %p45
      %p47 = scmp.ne.s32.totalorder %s36, %s39
      %p48 = scmp.eq.s32.totalorder %s17, 3
      %p49 = por %p47, %p48
      %p50 = scmp.ne.s32.totalorder %s39, %s40
      %p51 = scmp.eq.s32.totalorder %s17, 0
      %p52 = por %p50, %p51
      %p53 = scmp.ne.s32.totalorder %s39, %s40
      %p54 = scmp.eq.s32.totalorder %s18, 3
      %p55 = por %p53, %p54
      %p57 = scmp.ne.s32.totalorder %s40, %s56
      %p58 = scmp.eq.s32.totalorder %s18, 0
      %p59 = por %p57, %p58
      %s61 = sadd.s32 %s60, 1
      %p64 = scmp.eq.s32.totalorder %s12, 3
      %p65 = scmp.ne.s32.totalorder %s60, %s62
      %p66 = scmp.eq.s32.totalorder %s12, 0
      %p67 = por %p65, %p66
      %p68 = scmp.ne.s32.totalorder %s60, %s62
      %p69 = scmp.eq.s32.totalorder %s17, 3
      %p70 = por %p68, %p69
      %p71 = scmp.ne.s32.totalorder %s62, %s63
      %p72 = scmp.eq.s32.totalorder %s17, 0
      %p73 = por %p71, %p72
      %p74 = scmp.ne.s32.totalorder %s62, %s63
      %p75 = scmp.eq.s32.totalorder %s18, 3
      %p76 = por %p74, %p75
      %p78 = scmp.ne.s32.totalorder %s63, %s77
      %p79 = scmp.eq.s32.totalorder %s18, 0
      %p80 = por %p78, %p79
      %s82 = sadd.s32 %s81, 1
      %p85 = scmp.eq.s32.totalorder %s12, 3
      %p86 = scmp.ne.s32.totalorder %s81, %s83
      %p87 = scmp.eq.s32.totalorder %s12, 0
      %p88 = por %p86, %p87
      %p89 = scmp.ne.s32.totalorder %s81, %s83
      %p90 = scmp.eq.s32.totalorder %s17, 3
      %p91 = por %p89, %p90
      %p92 = scmp.ne.s32.totalorder %s83, %s84
      %p93 = scmp.eq.s32.totalorder %s17, 0
      %p94 = por %p92, %p93
      %p95 = scmp.ne.s32.totalorder %s83, %s84
      %p96 = scmp.eq.s32.totalorder %s18, 3
      %p97 = por %p95, %p96
      %p99 = scmp.ne.s32.totalorder %s84, %s98
      %p100 = scmp.eq.s32.totalorder %s18, 0
      %p101 = por %p99, %p100
      %s102 = ssub.s32 %s19, %s31
      %s103 = ssub.s32 %s20, %s27
      %s104 = sor.u32 %s102, %s103
      %p105 = scmp.eq.s32.totalorder %s104, 0
      %s107 = sadd.s32 %s106, 1
      %s108 = scalar_select %p105, %s106, %s107
      %p111 = pneg %p105
      %p112 = scmp.eq.s32.totalorder %s12, 3
      %p113 = por %p111, %p112
      %p114 = scmp.ne.s32.totalorder %s106, %s109
      %p115 = scmp.eq.s32.totalorder %s12, 0
      %p116 = por %p114, %p115
      %p117 = scmp.ne.s32.totalorder %s106, %s109
      %p118 = scmp.eq.s32.totalorder %s17, 3
      %p119 = por %p117, %p118
      %p120 = scmp.ne.s32.totalorder %s109, %s110
      %p121 = scmp.eq.s32.totalorder %s17, 0
      %p122 = por %p120, %p121
      %p123 = scmp.ne.s32.totalorder %s109, %s110
      %p124 = scmp.eq.s32.totalorder %s18, 3
      %p125 = por %p123, %p124
      %p127 = scmp.ne.s32.totalorder %s110, %s126
      %p128 = scmp.eq.s32.totalorder %s18, 0
      %p129 = por %p127, %p128
      %p130 = scmp.le.s32.totalorder 1, %s12
      %p131 = scmp.lt.s32.totalorder %s12, 5
      %p132 = pnand %p130, %p131
      %p133 = pneg %p132
      // Predicated region
      $region9: #{tpu_custom_call.1} parent=5 // pred_check
        _
      $region10: #{tpu_custom_call.1} parent=5 // pred_check_branch
        %135 = sbr.rel (%p132) target = $region12
      $region11: #{tpu_custom_call.1} parent=5 // pred_region
        %s136 = ssub.s32 %s12, 1
        // Predicated region
        $region13: #{tpu_custom_call.1} parent=11 // pred_check
          %p137 = pneg %p73
        $region14: #{tpu_custom_call.1} parent=11 // pred_check_branch
          %139 = sbr.rel (%p137) target = $region16
        $region15: #{tpu_custom_call.1} parent=11 // pred_region
          _
        $region16: #{tpu_custom_call.1} parent=11 // pred_fallthru
          _
        // Predicated region
        $region17: #{tpu_custom_call.1} parent=11 // pred_check
          %p140 = pneg %p94
        $region18: #{tpu_custom_call.1} parent=11 // pred_check_branch
          %142 = sbr.rel (%p140) target = $region20
        $region19: #{tpu_custom_call.1} parent=11 // pred_region
          _
        $region20: #{tpu_custom_call.1} parent=11 // pred_fallthru
          _
      $region12: #{tpu_custom_call.1} parent=5 // pred_fallthru
        _
      %p143 = scmp.lt.s32.totalorder %s12, 4
      // Predicated region
      $region21: #{tpu_custom_call.1} parent=5 // pred_check
        %p144 = pneg %p143
      $region22: #{tpu_custom_call.1} parent=5 // pred_check_branch
        %146 = sbr.rel (%p144) target = $region24
      $region23: #{tpu_custom_call.1} parent=5 // pred_region
        // Predicated region
        $region25: #{tpu_custom_call.1} parent=23 // pred_check
          %p147 = pneg %p46
        $region26: #{tpu_custom_call.1} parent=23 // pred_check_branch
          %149 = sbr.rel (%p147) target = $region28
        $region27: #{tpu_custom_call.1} parent=23 // pred_region
          %p150 = scmp.lt.s32.totalorder %s19, 1
          %s151 = scalar_select %p150, %s19, 1
          %p152 = scmp.lt.s32.totalorder %s20, 1
          %s153 = scalar_select %p152, %s20, 1
          %s154 = smul.addr %s153, 30
          %s155 = smul.addr %s151, 60
          %s156 = sadd.s32 %s154, %s155
          %s157 = smul.addr %s156, 8
          %s158 = scalar_lea.vmem %s0, %s157
        $region28: #{tpu_custom_call.1} parent=23 // pred_fallthru
          _
      $region24: #{tpu_custom_call.1} parent=5 // pred_fallthru
        _
      %p159 = scmp.le.s32.totalorder 1, %s12
      %p160 = scmp.lt.s32.totalorder %s12, 5
      %p161 = pnand %p159, %p160
      %p162 = pneg %p161
      // Predicated region
      $region29: #{tpu_custom_call.1} parent=5 // pred_check
        _
      $region30: #{tpu_custom_call.1} parent=5 // pred_check_branch
        %164 = sbr.rel (%p161) target = $region32
      $region31: #{tpu_custom_call.1} parent=5 // pred_region
        %s165 = ssub.s32 %s12, 1
        %p166 = scmp.lt.s32.totalorder %s21, 1
        %s167 = scalar_select %p166, %s21, 1
        %p168 = scmp.lt.s32.totalorder %s22, 1
        %s169 = scalar_select %p168, %s22, 1
        %s170 = smul.addr %s169, 30
        %s171 = smul.addr %s167, 60
        %s172 = sadd.s32 %s170, %s171
        %s173 = smul.addr %s172, 8
        %s174 = scalar_lea.vmem %s0, %s173
        %p175 = pneg %p52
        %p176 = pneg %p49
        %p177 = pneg %p73
        %p178 = pneg %p70
        %p179 = pneg %p94
        %p180 = pneg %p91
        %p181 = pneg %p122
        %p182 = pneg %p119
        %s183 = sand.u32 %s109, 1
        %s184 = scalar_lea.sflag [#allocation4], %s183
        %s185 = sand.u32 %s109, 1
        %s186 = smul.addr %s185, 144
        %s187 = scalar_lea.vmem [#allocation3], %s186
        %p188 = scmp.lt.s32.totalorder %s21, 1
        %s189 = scalar_select %p188, %s21, 1
        %p190 = scmp.lt.s32.totalorder %s22, 1
        %s191 = scalar_select %p190, %s22, 1
        %s192 = smul.addr %s191, 30
        %s193 = smul.addr %s189, 60
        %s194 = sadd.s32 %s192, %s193
        %s195 = smul.addr %s194, 8
        %s196 = scalar_lea.vmem %s0, %s195
        %197 = vst [vmem:[#allocation2 + $0x1b0] sm:$0xff] 0.0
        %198 = vst [vmem:[#allocation2 + $0x1b8] sm:$0xff] 0.0
        %199 = vst [vmem:[#allocation2 + $0x1c0] sm:$0xff] 0.0
        %v200 = vld [vmem:[%s196] sm:$0xff]
        %v201 = vld [vmem:[%s196 + $0x8] sm:$0xff]
        %v202 = vld [vmem:[%s196 + $0x10] sm:$0x3]
        %v203 = vld [vmem:[%s196 + $0x18] sm:$0xff]
        %v204 = vld [vmem:[%s196 + $0x20] sm:$0xff]
        %v205 = vld [vmem:[%s196 + $0x28] sm:$0x3]
        %v206 = vld [vmem:[%s196 + $0x30] sm:$0xff]
        %v207 = vld [vmem:[%s196 + $0x38] sm:$0xff]
        %v208 = vld [vmem:[%s196 + $0x40] sm:$0x3]
        %v209 = vld [vmem:[%s196 + $0x48] sm:$0xff]
        %v210 = vld [vmem:[%s196 + $0x50] sm:$0xff]
        %v211 = vld [vmem:[%s196 + $0x58] sm:$0x3]
        %v212 = vld [vmem:[%s196 + $0x60] sm:$0xff]
        %v213 = vld [vmem:[%s196 + $0x68] sm:$0xff]
        %v214 = vld [vmem:[%s196 + $0x70] sm:$0x3]
        %v215 = vld [vmem:[%s196 + $0x78] sm:$0xff]
        %v216 = vld [vmem:[%s196 + $0x80] sm:$0xff]
        %v217 = vld [vmem:[%s196 + $0x88] sm:$0x3]
        %v218 = vld [vmem:[%s196 + $0x90] sm:$0xff]
        %v219 = vld [vmem:[%s196 + $0x98] sm:$0xff]
        %v220 = vld [vmem:[%s196 + $0xa0] sm:$0x3]
        %v221 = vld [vmem:[%s196 + $0xa8] sm:$0xff]
        %v222 = vld [vmem:[%s196 + $0xb0] sm:$0xff]
        %v223 = vld [vmem:[%s196 + $0xb8] sm:$0x3]
        %v224 = vld [vmem:[%s196 + $0xc0] sm:$0xff]
        %v225 = vld [vmem:[%s196 + $0xc8] sm:$0xff]
        %v226 = vld [vmem:[%s196 + $0xd0] sm:$0x3]
        %v227 = vld [vmem:[%s196 + $0xd8] sm:$0xff]
        %v228 = vld [vmem:[%s196 + $0xe0] sm:$0xff]
        %v229 = vld [vmem:[%s196 + $0xe8] sm:$0x3]
        %v254 = vcombine.high %v200, %v200
        %v256 = vunpack.c.l.s4 1983009808
        %v257 = vunpack.c.0.s8 %v256
        %v258 = vlaneseq
        %v259 = vshrl.u32 %v258, 7
        %v260 = vsub.s32 %v257, %v259
        %v261 = vrot.slane %v200, %v260
        %v263 = vunpack.c.l.s4 1983009808
        %v264 = vunpack.c.0.s8 %v263
        %v265 = vlaneseq
        %v266 = vshrl.u32 %v265, 7
        %v267 = vsub.s32 %v264, %v266
        %v268 = vrot.slane %v254, %v267
        %v269 = vcombine.high %v261, %v261
        %v270 = vcombine.high %v268, %v268
        %v271 = vcombine.high %v201, %v201
        %v273 = vunpack.c.l.s4 1983009808
        %v274 = vunpack.c.0.s8 %v273
        %v275 = vlaneseq
        %v276 = vshrl.u32 %v275, 7
        %v277 = vsub.s32 %v274, %v276
        %v278 = vrot.slane %v201, %v277
        %v280 = vunpack.c.l.s4 1983009808
        %v281 = vunpack.c.0.s8 %v280
        %v282 = vlaneseq
        %v283 = vshrl.u32 %v282, 7
        %v284 = vsub.s32 %v281, %v283
        %v285 = vrot.slane %v271, %v284
        %v286 = vcombine.high %v278, %v278
        %v287 = vcombine.high %v285, %v285
        %v289 = vunpack.c.l.s4 1983009808
        %v290 = vunpack.c.0.s8 %v289
        %v291 = vlaneseq
        %v292 = vshrl.u32 %v291, 7
        %v293 = vsub.s32 %v290, %v292
        %v294 = vrot.slane %v202, %v293
        %v295 = vcombine.high %v203, %v203
        %v297 = vunpack.c.l.s4 1983009808
        %v298 = vunpack.c.0.s8 %v297
        %v299 = vlaneseq
        %v300 = vshrl.u32 %v299, 7
        %v301 = vsub.s32 %v298, %v300
        %v302 = vrot.slane %v203, %v301
        %v304 = vunpack.c.l.s4 1983009808
        %v305 = vunpack.c.0.s8 %v304
        %v306 = vlaneseq
        %v307 = vshrl.u32 %v306, 7
        %v308 = vsub.s32 %v305, %v307
        %v309 = vrot.slane %v295, %v308
        %v310 = vcombine.high %v302, %v302
        %v311 = vcombine.high %v309, %v309
        %v312 = vcombine.high %v204, %v204
        %v314 = vunpack.c.l.s4 1983009808
        %v315 = vunpack.c.0.s8 %v314
        %v316 = vlaneseq
        %v317 = vshrl.u32 %v316, 7
        %v318 = vsub.s32 %v315, %v317
        %v319 = vrot.slane %v204, %v318
        %v321 = vunpack.c.l.s4 1983009808
        %v322 = vunpack.c.0.s8 %v321
        %v323 = vlaneseq
        %v324 = vshrl.u32 %v323, 7
        %v325 = vsub.s32 %v322, %v324
        %v326 = vrot.slane %v312, %v325
        %v327 = vcombine.high %v319, %v319
        %v328 = vcombine.high %v326, %v326
        %v330 = vunpack.c.l.s4 1983009808
        %v331 = vunpack.c.0.s8 %v330
        %v332 = vlaneseq
        %v333 = vshrl.u32 %v332, 7
        %v334 = vsub.s32 %v331, %v333
        %v335 = vrot.slane %v205, %v334
        %v336 = vcombine.high %v206, %v206
        %v338 = vunpack.c.l.s4 1983009808
        %v339 = vunpack.c.0.s8 %v338
        %v340 = vlaneseq
        %v341 = vshrl.u32 %v340, 7
        %v342 = vsub.s32 %v339, %v341
        %v343 = vrot.slane %v206, %v342
        %v345 = vunpack.c.l.s4 1983009808
        %v346 = vunpack.c.0.s8 %v345
        %v347 = vlaneseq
        %v348 = vshrl.u32 %v347, 7
        %v349 = vsub.s32 %v346, %v348
        %v350 = vrot.slane %v336, %v349
        %v351 = vcombine.high %v343, %v343
        %v352 = vcombine.high %v350, %v350
        %v353 = vcombine.high %v207, %v207
        %v355 = vunpack.c.l.s4 1983009808
        %v356 = vunpack.c.0.s8 %v355
        %v357 = vlaneseq
        %v358 = vshrl.u32 %v357, 7
        %v359 = vsub.s32 %v356, %v358
        %v360 = vrot.slane %v207, %v359
        %v362 = vunpack.c.l.s4 1983009808
        %v363 = vunpack.c.0.s8 %v362
        %v364 = vlaneseq
        %v365 = vshrl.u32 %v364, 7
        %v366 = vsub.s32 %v363, %v365
        %v367 = vrot.slane %v353, %v366
        %v368 = vcombine.high %v360, %v360
        %v369 = vcombine.high %v367, %v367
        %v371 = vunpack.c.l.s4 1983009808
        %v372 = vunpack.c.0.s8 %v371
        %v373 = vlaneseq
        %v374 = vshrl.u32 %v373, 7
        %v375 = vsub.s32 %v372, %v374
        %v376 = vrot.slane %v208, %v375
        %v377 = vcombine.high %v209, %v209
        %v379 = vunpack.c.l.s4 1983009808
        %v380 = vunpack.c.0.s8 %v379
        %v381 = vlaneseq
        %v382 = vshrl.u32 %v381, 7
        %v383 = vsub.s32 %v380, %v382
        %v384 = vrot.slane %v209, %v383
        %v386 = vunpack.c.l.s4 1983009808
        %v387 = vunpack.c.0.s8 %v386
        %v388 = vlaneseq
        %v389 = vshrl.u32 %v388, 7
        %v390 = vsub.s32 %v387, %v389
        %v391 = vrot.slane %v377, %v390
        %v392 = vcombine.high %v384, %v384
        %v393 = vcombine.high %v391, %v391
        %v394 = vcombine.high %v210, %v210
        %v396 = vunpack.c.l.s4 1983009808
        %v397 = vunpack.c.0.s8 %v396
        %v398 = vlaneseq
        %v399 = vshrl.u32 %v398, 7
        %v400 = vsub.s32 %v397, %v399
        %v401 = vrot.slane %v210, %v400
        %v403 = vunpack.c.l.s4 1983009808
        %v404 = vunpack.c.0.s8 %v403
        %v405 = vlaneseq
        %v406 = vshrl.u32 %v405, 7
        %v407 = vsub.s32 %v404, %v406
        %v408 = vrot.slane %v394, %v407
        %v409 = vcombine.high %v401, %v401
        %v410 = vcombine.high %v408, %v408
        %v412 = vunpack.c.l.s4 1983009808
        %v413 = vunpack.c.0.s8 %v412
        %v414 = vlaneseq
        %v415 = vshrl.u32 %v414, 7
        %v416 = vsub.s32 %v413, %v415
        %v417 = vrot.slane %v211, %v416
        %v418 = vcombine.high %v212, %v212
        %v420 = vunpack.c.l.s4 1983009808
        %v421 = vunpack.c.0.s8 %v420
        %v422 = vlaneseq
        %v423 = vshrl.u32 %v422, 7
        %v424 = vsub.s32 %v421, %v423
        %v425 = vrot.slane %v212, %v424
        %v427 = vunpack.c.l.s4 1983009808
        %v428 = vunpack.c.0.s8 %v427
        %v429 = vlaneseq
        %v430 = vshrl.u32 %v429, 7
        %v431 = vsub.s32 %v428, %v430
        %v432 = vrot.slane %v418, %v431
        %v433 = vcombine.high %v425, %v425
        %v434 = vcombine.high %v432, %v432
        %v435 = vcombine.high %v213, %v213
        %v437 = vunpack.c.l.s4 1983009808
        %v438 = vunpack.c.0.s8 %v437
        %v439 = vlaneseq
        %v440 = vshrl.u32 %v439, 7
        %v441 = vsub.s32 %v438, %v440
        %v442 = vrot.slane %v213, %v441
        %v444 = vunpack.c.l.s4 1983009808
        %v445 = vunpack.c.0.s8 %v444
        %v446 = vlaneseq
        %v447 = vshrl.u32 %v446, 7
        %v448 = vsub.s32 %v445, %v447
        %v449 = vrot.slane %v435, %v448
        %v450 = vcombine.high %v442, %v442
        %v451 = vcombine.high %v449, %v449
        %v453 = vunpack.c.l.s4 1983009808
        %v454 = vunpack.c.0.s8 %v453
        %v455 = vlaneseq
        %v456 = vshrl.u32 %v455, 7
        %v457 = vsub.s32 %v454, %v456
        %v458 = vrot.slane %v214, %v457
        %v459 = vcombine.high %v215, %v215
        %v461 = vunpack.c.l.s4 1983009808
        %v462 = vunpack.c.0.s8 %v461
        %v463 = vlaneseq
        %v464 = vshrl.u32 %v463, 7
        %v465 = vsub.s32 %v462, %v464
        %v466 = vrot.slane %v215, %v465
        %v468 = vunpack.c.l.s4 1983009808
        %v469 = vunpack.c.0.s8 %v468
        %v470 = vlaneseq
        %v471 = vshrl.u32 %v470, 7
        %v472 = vsub.s32 %v469, %v471
        %v473 = vrot.slane %v459, %v472
        %v474 = vcombine.high %v466, %v466
        %v475 = vcombine.high %v473, %v473
        %v476 = vcombine.high %v216, %v216
        %v478 = vunpack.c.l.s4 1983009808
        %v479 = vunpack.c.0.s8 %v478
        %v480 = vlaneseq
        %v481 = vshrl.u32 %v480, 7
        %v482 = vsub.s32 %v479, %v481
        %v483 = vrot.slane %v216, %v482
        %v485 = vunpack.c.l.s4 1983009808
        %v486 = vunpack.c.0.s8 %v485
        %v487 = vlaneseq
        %v488 = vshrl.u32 %v487, 7
        %v489 = vsub.s32 %v486, %v488
        %v490 = vrot.slane %v476, %v489
        %v491 = vcombine.high %v483, %v483
        %v492 = vcombine.high %v490, %v490
        %v494 = vunpack.c.l.s4 1983009808
        %v495 = vunpack.c.0.s8 %v494
        %v496 = vlaneseq
        %v497 = vshrl.u32 %v496, 7
        %v498 = vsub.s32 %v495, %v497
        %v499 = vrot.slane %v217, %v498
        %v500 = vcombine.high %v218, %v218
        %v502 = vunpack.c.l.s4 1983009808
        %v503 = vunpack.c.0.s8 %v502
        %v504 = vlaneseq
        %v505 = vshrl.u32 %v504, 7
        %v506 = vsub.s32 %v503, %v505
        %v507 = vrot.slane %v218, %v506
        %v509 = vunpack.c.l.s4 1983009808
        %v510 = vunpack.c.0.s8 %v509
        %v511 = vlaneseq
        %v512 = vshrl.u32 %v511, 7
        %v513 = vsub.s32 %v510, %v512
        %v514 = vrot.slane %v500, %v513
        %v515 = vcombine.high %v507, %v507
        %v516 = vcombine.high %v514, %v514
        %v517 = vcombine.high %v219, %v219
        %v519 = vunpack.c.l.s4 1983009808
        %v520 = vunpack.c.0.s8 %v519
        %v521 = vlaneseq
        %v522 = vshrl.u32 %v521, 7
        %v523 = vsub.s32 %v520, %v522
        %v524 = vrot.slane %v219, %v523
        %v526 = vunpack.c.l.s4 1983009808
        %v527 = vunpack.c.0.s8 %v526
        %v528 = vlaneseq
        %v529 = vshrl.u32 %v528, 7
        %v530 = vsub.s32 %v527, %v529
        %v531 = vrot.slane %v517, %v530
        %v532 = vcombine.high %v524, %v524
        %v533 = vcombine.high %v531, %v531
        %v535 = vunpack.c.l.s4 1983009808
        %v536 = vunpack.c.0.s8 %v535
        %v537 = vlaneseq
        %v538 = vshrl.u32 %v537, 7
        %v539 = vsub.s32 %v536, %v538
        %v540 = vrot.slane %v220, %v539
        %v541 = vcombine.high %v221, %v221
        %v543 = vunpack.c.l.s4 1983009808
        %v544 = vunpack.c.0.s8 %v543
        %v545 = vlaneseq
        %v546 = vshrl.u32 %v545, 7
        %v547 = vsub.s32 %v544, %v546
        %v548 = vrot.slane %v221, %v547
        %v550 = vunpack.c.l.s4 1983009808
        %v551 = vunpack.c.0.s8 %v550
        %v552 = vlaneseq
        %v553 = vshrl.u32 %v552, 7
        %v554 = vsub.s32 %v551, %v553
        %v555 = vrot.slane %v541, %v554
        %v556 = vcombine.high %v548, %v548
        %v557 = vcombine.high %v555, %v555
        %v558 = vcombine.high %v222, %v222
        %v560 = vunpack.c.l.s4 1983009808
        %v561 = vunpack.c.0.s8 %v560
        %v562 = vlaneseq
        %v563 = vshrl.u32 %v562, 7
        %v564 = vsub.s32 %v561, %v563
        %v565 = vrot.slane %v222, %v564
        %v567 = vunpack.c.l.s4 1983009808
        %v568 = vunpack.c.0.s8 %v567
        %v569 = vlaneseq
        %v570 = vshrl.u32 %v569, 7
        %v571 = vsub.s32 %v568, %v570
        %v572 = vrot.slane %v558, %v571
        %v573 = vcombine.high %v565, %v565
        %v574 = vcombine.high %v572, %v572
        %v576 = vunpack.c.l.s4 1983009808
        %v577 = vunpack.c.0.s8 %v576
        %v578 = vlaneseq
        %v579 = vshrl.u32 %v578, 7
        %v580 = vsub.s32 %v577, %v579
        %v581 = vrot.slane %v223, %v580
        %v582 = vld [vmem:[%s1] sm:$0xff]
        %v583 = vld [vmem:[%s1 + $0x8] sm:$0xf]
        %v584 = vcombine.low %v261, %v269
        %v585 = vcombine.low %v268, %v270
        %v587 = vunpack.c.l.s4 1983009808
        %v588 = vunpack.c.0.s8 %v587
        %v589 = vlaneseq
        %v590 = vshrl.u32 %v589, 7
        %v591 = vsub.s32 %v588, %v590
        %v592 = vrot.slane %v584, %v591
        %v594 = vunpack.c.l.s4 1983009808
        %v595 = vunpack.c.0.s8 %v594
        %v596 = vlaneseq
        %v597 = vshrl.u32 %v596, 7
        %v598 = vsub.s32 %v595, %v597
        %v599 = vrot.slane %v585, %v598
        %v600 = vcombine.low %v592, %v599
        %v601 = vcombine.low %v278, %v286
        %v602 = vcombine.low %v285, %v287
        %v604 = vunpack.c.l.s4 1983009808
        %v605 = vunpack.c.0.s8 %v604
        %v606 = vlaneseq
        %v607 = vshrl.u32 %v606, 7
        %v608 = vsub.s32 %v605, %v607
        %v609 = vrot.slane %v601, %v608
        %v611 = vunpack.c.l.s4 1983009808
        %v612 = vunpack.c.0.s8 %v611
        %v613 = vlaneseq
        %v614 = vshrl.u32 %v613, 7
        %v615 = vsub.s32 %v612, %v614
        %v616 = vrot.slane %v602, %v615
        %v617 = vcombine.low %v609, %v616
        %v618 = vcombine.low %v294, %v302
        %v619 = vcombine.low %v310, %v309
        %v621 = vunpack.c.l.s4 1983009808
        %v622 = vunpack.c.0.s8 %v621
        %v623 = vlaneseq
        %v624 = vshrl.u32 %v623, 7
        %v625 = vsub.s32 %v622, %v624
        %v626 = vrot.slane %v618, %v625
        %v628 = vunpack.c.l.s4 1983009808
        %v629 = vunpack.c.0.s8 %v628
        %v630 = vlaneseq
        %v631 = vshrl.u32 %v630, 7
        %v632 = vsub.s32 %v629, %v631
        %v633 = vrot.slane %v619, %v632
        %v634 = vcombine.low %v626, %v633
        %v635 = vcombine.low %v311, %v319
        %v636 = vcombine.low %v327, %v326
        %v638 = vunpack.c.l.s4 1983009808
        %v639 = vunpack.c.0.s8 %v638
        %v640 = vlaneseq
        %v641 = vshrl.u32 %v640, 7
        %v642 = vsub.s32 %v639, %v641
        %v643 = vrot.slane %v635, %v642
        %v645 = vunpack.c.l.s4 1983009808
        %v646 = vunpack.c.0.s8 %v645
        %v647 = vlaneseq
        %v648 = vshrl.u32 %v647, 7
        %v649 = vsub.s32 %v646, %v648
        %v650 = vrot.slane %v636, %v649
        %v651 = vcombine.low %v643, %v650
        %v652 = vcombine.low %v328, %v335
        %v653 = vcombine.low %v343, %v351
        %v655 = vunpack.c.l.s4 1983009808
        %v656 = vunpack.c.0.s8 %v655
        %v657 = vlaneseq
        %v658 = vshrl.u32 %v657, 7
        %v659 = vsub.s32 %v656, %v658
        %v660 = vrot.slane %v652, %v659
        %v662 = vunpack.c.l.s4 1983009808
        %v663 = vunpack.c.0.s8 %v662
        %v664 = vlaneseq
        %v665 = vshrl.u32 %v664, 7
        %v666 = vsub.s32 %v663, %v665
        %v667 = vrot.slane %v653, %v666
        %v668 = vcombine.low %v660, %v667
        %v669 = vcombine.low %v350, %v352
        %v670 = vcombine.low %v360, %v368
        %v672 = vunpack.c.l.s4 1983009808
        %v673 = vunpack.c.0.s8 %v672
        %v674 = vlaneseq
        %v675 = vshrl.u32 %v674, 7
        %v676 = vsub.s32 %v673, %v675
        %v677 = vrot.slane %v669, %v676
        %v679 = vunpack.c.l.s4 1983009808
        %v680 = vunpack.c.0.s8 %v679
        %v681 = vlaneseq
        %v682 = vshrl.u32 %v681, 7
        %v683 = vsub.s32 %v680, %v682
        %v684 = vrot.slane %v670, %v683
        %v685 = vcombine.low %v677, %v684
        %v686 = vcombine.low %v367, %v369
        %v687 = vcombine.low %v376, %v384
        %v689 = vunpack.c.l.s4 1983009808
        %v690 = vunpack.c.0.s8 %v689
        %v691 = vlaneseq
        %v692 = vshrl.u32 %v691, 7
        %v693 = vsub.s32 %v690, %v692
        %v694 = vrot.slane %v686, %v693
        %v696 = vunpack.c.l.s4 1983009808
        %v697 = vunpack.c.0.s8 %v696
        %v698 = vlaneseq
        %v699 = vshrl.u32 %v698, 7
        %v700 = vsub.s32 %v697, %v699
        %v701 = vrot.slane %v687, %v700
        %v702 = vcombine.low %v694, %v701
        %v703 = vcombine.low %v392, %v391
        %v704 = vcombine.low %v393, %v401
        %v706 = vunpack.c.l.s4 1983009808
        %v707 = vunpack.c.0.s8 %v706
        %v708 = vlaneseq
        %v709 = vshrl.u32 %v708, 7
        %v710 = vsub.s32 %v707, %v709
        %v711 = vrot.slane %v703, %v710
        %v713 = vunpack.c.l.s4 1983009808
        %v714 = vunpack.c.0.s8 %v713
        %v715 = vlaneseq
        %v716 = vshrl.u32 %v715, 7
        %v717 = vsub.s32 %v714, %v716
        %v718 = vrot.slane %v704, %v717
        %v719 = vcombine.low %v711, %v718
        %v720 = vcombine.low %v409, %v408
        %v721 = vcombine.low %v410, %v417
        %v723 = vunpack.c.l.s4 1983009808
        %v724 = vunpack.c.0.s8 %v723
        %v725 = vlaneseq
        %v726 = vshrl.u32 %v725, 7
        %v727 = vsub.s32 %v724, %v726
        %v728 = vrot.slane %v720, %v727
        %v730 = vunpack.c.l.s4 1983009808
        %v731 = vunpack.c.0.s8 %v730
        %v732 = vlaneseq
        %v733 = vshrl.u32 %v732, 7
        %v734 = vsub.s32 %v731, %v733
        %v735 = vrot.slane %v721, %v734
        %v736 = vcombine.low %v728, %v735
        %v737 = vcombine.low %v425, %v433
        %v738 = vcombine.low %v432, %v434
        %v740 = vunpack.c.l.s4 1983009808
        %v741 = vunpack.c.0.s8 %v740
        %v742 = vlaneseq
        %v743 = vshrl.u32 %v742, 7
        %v744 = vsub.s32 %v741, %v743
        %v745 = vrot.slane %v737, %v744
        %v747 = vunpack.c.l.s4 1983009808
        %v748 = vunpack.c.0.s8 %v747
        %v749 = vlaneseq
        %v750 = vshrl.u32 %v749, 7
        %v751 = vsub.s32 %v748, %v750
        %v752 = vrot.slane %v738, %v751
        %v753 = vcombine.low %v745, %v752
        %v754 = vcombine.low %v442, %v450
        %v755 = vcombine.low %v449, %v451
        %v757 = vunpack.c.l.s4 1983009808
        %v758 = vunpack.c.0.s8 %v757
        %v759 = vlaneseq
        %v760 = vshrl.u32 %v759, 7
        %v761 = vsub.s32 %v758, %v760
        %v762 = vrot.slane %v754, %v761
        %v764 = vunpack.c.l.s4 1983009808
        %v765 = vunpack.c.0.s8 %v764
        %v766 = vlaneseq
        %v767 = vshrl.u32 %v766, 7
        %v768 = vsub.s32 %v765, %v767
        %v769 = vrot.slane %v755, %v768
        %v770 = vcombine.low %v762, %v769
        %v771 = vcombine.low %v458, %v466
        %v772 = vcombine.low %v474, %v473
        %v774 = vunpack.c.l.s4 1983009808
        %v775 = vunpack.c.0.s8 %v774
        %v776 = vlaneseq
        %v777 = vshrl.u32 %v776, 7
        %v778 = vsub.s32 %v775, %v777
        %v779 = vrot.slane %v771, %v778
        %v781 = vunpack.c.l.s4 1983009808
        %v782 = vunpack.c.0.s8 %v781
        %v783 = vlaneseq
        %v784 = vshrl.u32 %v783, 7
        %v785 = vsub.s32 %v782, %v784
        %v786 = vrot.slane %v772, %v785
        %v787 = vcombine.low %v779, %v786
        %v788 = vcombine.low %v475, %v483
        %v789 = vcombine.low %v491, %v490
        %v791 = vunpack.c.l.s4 1983009808
        %v792 = vunpack.c.0.s8 %v791
        %v793 = vlaneseq
        %v794 = vshrl.u32 %v793, 7
        %v795 = vsub.s32 %v792, %v794
        %v796 = vrot.slane %v788, %v795
        %v798 = vunpack.c.l.s4 1983009808
        %v799 = vunpack.c.0.s8 %v798
        %v800 = vlaneseq
        %v801 = vshrl.u32 %v800, 7
        %v802 = vsub.s32 %v799, %v801
        %v803 = vrot.slane %v789, %v802
        %v804 = vcombine.low %v796, %v803
        %v805 = vcombine.low %v492, %v499
        %v806 = vcombine.low %v507, %v515
        %v808 = vunpack.c.l.s4 1983009808
        %v809 = vunpack.c.0.s8 %v808
        %v810 = vlaneseq
        %v811 = vshrl.u32 %v810, 7
        %v812 = vsub.s32 %v809, %v811
        %v813 = vrot.slane %v805, %v812
        %v815 = vunpack.c.l.s4 1983009808
        %v816 = vunpack.c.0.s8 %v815
        %v817 = vlaneseq
        %v818 = vshrl.u32 %v817, 7
        %v819 = vsub.s32 %v816, %v818
        %v820 = vrot.slane %v806, %v819
        %v821 = vcombine.low %v813, %v820
        %v822 = vcombine.low %v514, %v516
        %v823 = vcombine.low %v524, %v532
        %v825 = vunpack.c.l.s4 1983009808
        %v826 = vunpack.c.0.s8 %v825
        %v827 = vlaneseq
        %v828 = vshrl.u32 %v827, 7
        %v829 = vsub.s32 %v826, %v828
        %v830 = vrot.slane %v822, %v829
        %v832 = vunpack.c.l.s4 1983009808
        %v833 = vunpack.c.0.s8 %v832
        %v834 = vlaneseq
        %v835 = vshrl.u32 %v834, 7
        %v836 = vsub.s32 %v833, %v835
        %v837 = vrot.slane %v823, %v836
        %v838 = vcombine.low %v830, %v837
        %v839 = vcombine.low %v531, %v533
        %v840 = vcombine.low %v540, %v548
        %v842 = vunpack.c.l.s4 1983009808
        %v843 = vunpack.c.0.s8 %v842
        %v844 = vlaneseq
        %v845 = vshrl.u32 %v844, 7
        %v846 = vsub.s32 %v843, %v845
        %v847 = vrot.slane %v839, %v846
        %v849 = vunpack.c.l.s4 1983009808
        %v850 = vunpack.c.0.s8 %v849
        %v851 = vlaneseq
        %v852 = vshrl.u32 %v851, 7
        %v853 = vsub.s32 %v850, %v852
        %v854 = vrot.slane %v840, %v853
        %v855 = vcombine.low %v847, %v854
        %v856 = vcombine.low %v556, %v555
        %v857 = vcombine.low %v557, %v565
        %v859 = vunpack.c.l.s4 1983009808
        %v860 = vunpack.c.0.s8 %v859
        %v861 = vlaneseq
        %v862 = vshrl.u32 %v861, 7
        %v863 = vsub.s32 %v860, %v862
        %v864 = vrot.slane %v856, %v863
        %v866 = vunpack.c.l.s4 1983009808
        %v867 = vunpack.c.0.s8 %v866
        %v868 = vlaneseq
        %v869 = vshrl.u32 %v868, 7
        %v870 = vsub.s32 %v867, %v869
        %v871 = vrot.slane %v857, %v870
        %v872 = vcombine.low %v864, %v871
        %v873 = vcombine.low %v573, %v572
        %v874 = vcombine.low %v574, %v581
        %v876 = vunpack.c.l.s4 1983009808
        %v877 = vunpack.c.0.s8 %v876
        %v878 = vlaneseq
        %v879 = vshrl.u32 %v878, 7
        %v880 = vsub.s32 %v877, %v879
        %v881 = vrot.slane %v873, %v880
        %v883 = vunpack.c.l.s4 1983009808
        %v884 = vunpack.c.0.s8 %v883
        %v885 = vlaneseq
        %v886 = vshrl.u32 %v885, 7
        %v887 = vsub.s32 %v884, %v886
        %v888 = vrot.slane %v874, %v887
        %v889 = vcombine.low %v881, %v888
        %v892 = vcombine.high %v582, %v582
        %vm893 = vcmask 31744
        %v894 = vsel %vm893, %v600, 0
        %v896 = vsel %vm893, %v617, 0
        %v898 = vsel %vm893, %v634, 0
        %v900 = vsel %vm893, %v651, 0
        %v902 = vsel %vm893, %v668, 0
        %v904 = vsel %vm893, %v685, 0
        %v906 = vsel %vm893, %v702, 0
        %v908 = vsel %vm893, %v719, 0
        %v910 = vsel %vm893, %v736, 0
        %v912 = vsel %vm893, %v753, 0
        %v914 = vsel %vm893, %v770, 0
        %v916 = vsel %vm893, %v787, 0
        %v918 = vsel %vm893, %v804, 0
        %v920 = vsel %vm893, %v821, 0
        %v922 = vsel %vm893, %v838, 0
        %v924 = vsel %vm893, %v855, 0
        %v926 = vsel %vm893, %v872, 0
        %v928 = vsel %vm893, %v889, 0
        %vm930 = vcmask 1043456
        %v931 = vsel %vm930, %v582, 0
        %v933 = vsel %vm930, %v892, 0
        %v935 = vsel %vm930, %v583, 0
        %937 = vmatprep.subr.mxu0 0.0
        %938 = vmatpush1.msra.mxu0 0.0
        %939 = vmatprep.subr.mxu0 0.0
        %940 = vmatpush1.msra.mxu0 0.0
        %941 = vmatprep.subr.mxu0 0.0
        %942 = vmatpush1.msra.mxu0 0.0
        %943 = vmatprep.subr.mxu0 0.0
        %944 = vmatpush1.msra.mxu0 0.0
        %945 = vmatprep.subr.mxu0 0.0
        %946 = vmatpush1.msra.mxu0 0.0
        %947 = vmatprep.subr.mxu0 0.0
        %948 = vmatpush1.msra.mxu0 0.0
        %949 = vmatprep.subr.mxu0 0.0
        %950 = vmatpush1.msra.mxu0 0.0
        %951 = vmatprep.subr.mxu0 0.0
        %952 = vmatpush1.msra.mxu0 0.0
        %953 = vmatprep.subr.mxu0 0.0
        %954 = vmatpush1.msra.mxu0 0.0
        %955 = vmatprep.subr.mxu0 0.0
        %956 = vmatpush1.msra.mxu0 0.0
        %957 = vmatprep.subr.mxu0 0.0
        %958 = vmatpush1.msra.mxu0 0.0
        %959 = vmatprep.subr.mxu0 0.0
        %960 = vmatpush1.msra.mxu0 0.0
        %961 = vmatprep.subr.mxu0 0.0
        %962 = vmatpush1.msra.mxu0 0.0
        %963 = vmatprep.subr.mxu0 0.0
        %964 = vmatpush1.msra.mxu0 0.0
        %965 = vmatprep.subr.mxu0 0.0
        %966 = vmatpush1.msra.mxu0 0.0
        %v967 = vand.u32 %v933, 4294901760
        %968 = vmatprep.subr.mxu0 %v967
        %v969 = vand.u32 %v931, 4294901760
        %970 = vmatpush1.msra.mxu0 %v969
        %971 = vmatprep.subr.mxu0 0.0
        %972 = vmatpush2.msra.mxu0 0.0
        %973 = vmatprep.subr.mxu0 0.0
        %974 = vmatpush2.msra.mxu0 0.0
        %975 = vmatprep.subr.mxu0 0.0
        %976 = vmatpush2.msra.mxu0 0.0
        %977 = vmatprep.subr.mxu0 0.0
        %978 = vmatpush2.msra.mxu0 0.0
        %979 = vmatprep.subr.mxu0 0.0
        %980 = vmatpush2.msra.mxu0 0.0
        %981 = vmatprep.subr.mxu0 0.0
        %982 = vmatpush2.msra.mxu0 0.0
        %983 = vmatprep.subr.mxu0 0.0
        %984 = vmatpush2.msra.mxu0 0.0
        %985 = vmatprep.subr.mxu0 0.0
        %986 = vmatpush2.msra.mxu0 0.0
        %987 = vmatprep.subr.mxu0 0.0
        %988 = vmatpush2.msra.mxu0 0.0
        %989 = vmatprep.subr.mxu0 0.0
        %990 = vmatpush2.msra.mxu0 0.0
        %991 = vmatprep.subr.mxu0 0.0
        %992 = vmatpush2.msra.mxu0 0.0
        %993 = vmatprep.subr.mxu0 0.0
        %994 = vmatpush2.msra.mxu0 0.0
        %995 = vmatprep.subr.mxu0 0.0
        %996 = vmatpush2.msra.mxu0 0.0
        %997 = vmatprep.subr.mxu0 0.0
        %998 = vmatpush2.msra.mxu0 0.0
        %999 = vmatprep.subr.mxu0 0.0
        %1000 = vmatpush2.msra.mxu0 0.0
        %1001 = vmatprep.subr.mxu0 0.0
        %1002 = vmatpush2.msra.mxu0 0.0
        %1003 = vmatprep.mubr.f32.mxu0 0.0
        %v1004 = vand.u32 %v894, 4294901760
        %v1005 = vsub.f32 %v894, %v1004
        %v1006 = vand.u32 %v1005, 4294901760
        %v1007 = vsub.f32 %v1005, %v1006
        %v1008 = vand.u32 %v1007, 4294901760
        %1009 = vmatmul.mubr.f32.gmra.mxu0 %v1008
        %v1010 = vpop.f32.mrf.mxu0
        %v1011 = vadd.f32 0.0, %v1010
        %v1012 = vpop.f32.mrf.mxu0
        %v1013 = vadd.f32 0.0, %v1012
        %1014 = vmatprep.mubr.f32.mxu0 0.0
        %v1015 = vand.u32 %v896, 4294901760
        %v1016 = vsub.f32 %v896, %v1015
        %v1017 = vand.u32 %v1016, 4294901760
        %v1018 = vsub.f32 %v1016, %v1017
        %v1019 = vand.u32 %v1018, 4294901760
        %1020 = vmatmul.mubr.f32.gmra.mxu0 %v1019
        %v1021 = vpop.f32.mrf.mxu0
        %v1022 = vadd.f32 0.0, %v1021
        %v1023 = vpop.f32.mrf.mxu0
        %v1024 = vadd.f32 0.0, %v1023
        %1025 = vmatprep.mubr.f32.mxu0 0.0
        %v1026 = vand.u32 %v898, 4294901760
        %v1027 = vsub.f32 %v898, %v1026
        %v1028 = vand.u32 %v1027, 4294901760
        %v1029 = vsub.f32 %v1027, %v1028
        %v1030 = vand.u32 %v1029, 4294901760
        %1031 = vmatmul.mubr.f32.gmra.mxu0 %v1030
        %v1032 = vpop.f32.mrf.mxu0
        %v1033 = vadd.f32 0.0, %v1032
        %v1034 = vpop.f32.mrf.mxu0
        %v1035 = vadd.f32 0.0, %v1034
        %1036 = vmatprep.mubr.f32.mxu0 0.0
        %v1037 = vand.u32 %v900, 4294901760
        %v1038 = vsub.f32 %v900, %v1037
        %v1039 = vand.u32 %v1038, 4294901760
        %v1040 = vsub.f32 %v1038, %v1039
        %v1041 = vand.u32 %v1040, 4294901760
        %1042 = vmatmul.mubr.f32.gmra.mxu0 %v1041
        %v1043 = vpop.f32.mrf.mxu0
        %v1044 = vadd.f32 0.0, %v1043
        %v1045 = vpop.f32.mrf.mxu0
        %v1046 = vadd.f32 0.0, %v1045
        %1047 = vmatprep.mubr.f32.mxu0 0.0
        %v1048 = vand.u32 %v902, 4294901760
        %v1049 = vsub.f32 %v902, %v1048
        %v1050 = vand.u32 %v1049, 4294901760
        %v1051 = vsub.f32 %v1049, %v1050
        %v1052 = vand.u32 %v1051, 4294901760
        %1053 = vmatmul.mubr.f32.gmra.mxu0 %v1052
        %v1054 = vpop.f32.mrf.mxu0
        %v1055 = vadd.f32 0.0, %v1054
        %v1056 = vpop.f32.mrf.mxu0
        %v1057 = vadd.f32 0.0, %v1056
        %1058 = vmatprep.mubr.f32.mxu0 0.0
        %v1059 = vand.u32 %v904, 4294901760
        %v1060 = vsub.f32 %v904, %v1059
        %v1061 = vand.u32 %v1060, 4294901760
        %v1062 = vsub.f32 %v1060, %v1061
        %v1063 = vand.u32 %v1062, 4294901760
        %1064 = vmatmul.mubr.f32.gmra.mxu0 %v1063
        %v1065 = vpop.f32.mrf.mxu0
        %v1066 = vadd.f32 0.0, %v1065
        %v1067 = vpop.f32.mrf.mxu0
        %v1068 = vadd.f32 0.0, %v1067
        %1069 = vmatprep.mubr.f32.mxu0 0.0
        %v1070 = vand.u32 %v906, 4294901760
        %v1071 = vsub.f32 %v906, %v1070
        %v1072 = vand.u32 %v1071, 4294901760
        %v1073 = vsub.f32 %v1071, %v1072
        %v1074 = vand.u32 %v1073, 4294901760
        %1075 = vmatmul.mubr.f32.gmra.mxu0 %v1074
        %v1076 = vpop.f32.mrf.mxu0
        %v1077 = vadd.f32 0.0, %v1076
        %v1078 = vpop.f32.mrf.mxu0
        %v1079 = vadd.f32 0.0, %v1078
        %1080 = vmatprep.mubr.f32.mxu0 0.0
        %v1081 = vand.u32 %v908, 4294901760
        %v1082 = vsub.f32 %v908, %v1081
        %v1083 = vand.u32 %v1082, 4294901760
        %v1084 = vsub.f32 %v1082, %v1083
        %v1085 = vand.u32 %v1084, 4294901760
        %1086 = vmatmul.mubr.f32.gmra.mxu0 %v1085
        %v1087 = vpop.f32.mrf.mxu0
        %v1088 = vadd.f32 0.0, %v1087
        %v1089 = vpop.f32.mrf.mxu0
        %v1090 = vadd.f32 0.0, %v1089
        %1091 = vmatprep.mubr.f32.mxu0 0.0
        %v1092 = vand.u32 %v910, 4294901760
        %v1093 = vsub.f32 %v910, %v1092
        %v1094 = vand.u32 %v1093, 4294901760
        %v1095 = vsub.f32 %v1093, %v1094
        %v1096 = vand.u32 %v1095, 4294901760
        %1097 = vmatmul.mubr.f32.gmra.mxu0 %v1096
        %v1098 = vpop.f32.mrf.mxu0
        %v1099 = vadd.f32 0.0, %v1098
        %v1100 = vpop.f32.mrf.mxu0
        %v1101 = vadd.f32 0.0, %v1100
        %1102 = vmatprep.mubr.f32.mxu0 0.0
        %v1103 = vand.u32 %v912, 4294901760
        %v1104 = vsub.f32 %v912, %v1103
        %v1105 = vand.u32 %v1104, 4294901760
        %v1106 = vsub.f32 %v1104, %v1105
        %v1107 = vand.u32 %v1106, 4294901760
        %1108 = vmatmul.mubr.f32.gmra.mxu0 %v1107
        %v1109 = vpop.f32.mrf.mxu0
        %v1110 = vadd.f32 0.0, %v1109
        %v1111 = vpop.f32.mrf.mxu0
        %v1112 = vadd.f32 0.0, %v1111
        %1113 = vmatprep.mubr.f32.mxu0 0.0
        %v1114 = vand.u32 %v914, 4294901760
        %v1115 = vsub.f32 %v914, %v1114
        %v1116 = vand.u32 %v1115, 4294901760
        %v1117 = vsub.f32 %v1115, %v1116
        %v1118 = vand.u32 %v1117, 4294901760
        %1119 = vmatmul.mubr.f32.gmra.mxu0 %v1118
        %v1120 = vpop.f32.mrf.mxu0
        %v1121 = vadd.f32 0.0, %v1120
        %v1122 = vpop.f32.mrf.mxu0
        %v1123 = vadd.f32 0.0, %v1122
        %1124 = vmatprep.mubr.f32.mxu0 0.0
        %v1125 = vand.u32 %v916, 4294901760
        %v1126 = vsub.f32 %v916, %v1125
        %v1127 = vand.u32 %v1126, 4294901760
        %v1128 = vsub.f32 %v1126, %v1127
        %v1129 = vand.u32 %v1128, 4294901760
        %1130 = vmatmul.mubr.f32.gmra.mxu0 %v1129
        %v1131 = vpop.f32.mrf.mxu0
        %v1132 = vadd.f32 0.0, %v1131
        %v1133 = vpop.f32.mrf.mxu0
        %v1134 = vadd.f32 0.0, %v1133
        %1135 = vmatprep.mubr.f32.mxu0 0.0
        %v1136 = vand.u32 %v918, 4294901760
        %v1137 = vsub.f32 %v918, %v1136
        %v1138 = vand.u32 %v1137, 4294901760
        %v1139 = vsub.f32 %v1137, %v1138
        %v1140 = vand.u32 %v1139, 4294901760
        %1141 = vmatmul.mubr.f32.gmra.mxu0 %v1140
        %v1142 = vpop.f32.mrf.mxu0
        %v1143 = vadd.f32 0.0, %v1142
        %v1144 = vpop.f32.mrf.mxu0
        %v1145 = vadd.f32 0.0, %v1144
        %1146 = vmatprep.mubr.f32.mxu0 0.0
        %v1147 = vand.u32 %v920, 4294901760
        %v1148 = vsub.f32 %v920, %v1147
        %v1149 = vand.u32 %v1148, 4294901760
        %v1150 = vsub.f32 %v1148, %v1149
        %v1151 = vand.u32 %v1150, 4294901760
        %1152 = vmatmul.mubr.f32.gmra.mxu0 %v1151
        %v1153 = vpop.f32.mrf.mxu0
        %v1154 = vadd.f32 0.0, %v1153
        %v1155 = vpop.f32.mrf.mxu0
        %v1156 = vadd.f32 0.0, %v1155
        %1157 = vmatprep.mubr.f32.mxu0 0.0
        %v1158 = vand.u32 %v922, 4294901760
        %v1159 = vsub.f32 %v922, %v1158
        %v1160 = vand.u32 %v1159, 4294901760
        %v1161 = vsub.f32 %v1159, %v1160
        %v1162 = vand.u32 %v1161, 4294901760
        %1163 = vmatmul.mubr.f32.gmra.mxu0 %v1162
        %v1164 = vpop.f32.mrf.mxu0
        %v1165 = vadd.f32 0.0, %v1164
        %v1166 = vpop.f32.mrf.mxu0
        %v1167 = vadd.f32 0.0, %v1166
        %1168 = vmatprep.mubr.f32.mxu0 0.0
        %v1169 = vand.u32 %v924, 4294901760
        %v1170 = vsub.f32 %v924, %v1169
        %v1171 = vand.u32 %v1170, 4294901760
        %v1172 = vsub.f32 %v1170, %v1171
        %v1173 = vand.u32 %v1172, 4294901760
        %1174 = vmatmul.mubr.f32.gmra.mxu0 %v1173
        %v1175 = vpop.f32.mrf.mxu0
        %v1176 = vadd.f32 0.0, %v1175
        %v1177 = vpop.f32.mrf.mxu0
        %v1178 = vadd.f32 0.0, %v1177
        %1179 = vmatprep.mubr.f32.mxu0 0.0
        %v1180 = vand.u32 %v926, 4294901760
        %v1181 = vsub.f32 %v926, %v1180
        %v1182 = vand.u32 %v1181, 4294901760
        %v1183 = vsub.f32 %v1181, %v1182
        %v1184 = vand.u32 %v1183, 4294901760
        %1185 = vmatmul.mubr.f32.gmra.mxu0 %v1184
        %v1186 = vpop.f32.mrf.mxu0
        %v1187 = vadd.f32 0.0, %v1186
        %v1188 = vpop.f32.mrf.mxu0
        %v1189 = vadd.f32 0.0, %v1188
        %1190 = vmatprep.mubr.f32.mxu0 0.0
        %v1191 = vand.u32 %v928, 4294901760
        %v1192 = vsub.f32 %v928, %v1191
        %v1193 = vand.u32 %v1192, 4294901760
        %v1194 = vsub.f32 %v1192, %v1193
        %v1195 = vand.u32 %v1194, 4294901760
        %1196 = vmatmul.mubr.f32.gmra.mxu0 %v1195
        %v1197 = vpop.f32.mrf.mxu0
        %v1198 = vadd.f32 0.0, %v1197
        %v1199 = vpop.f32.mrf.mxu0
        %v1200 = vadd.f32 0.0, %v1199
        %1201 = vdwg.mxu0
        %1202 = vmatprep.subr.mxu0 0.0
        %1203 = vmatpush1.msra.mxu0 0.0
        %1204 = vmatprep.subr.mxu0 0.0
        %1205 = vmatpush1.msra.mxu0 0.0
        %1206 = vmatprep.subr.mxu0 0.0
        %1207 = vmatpush1.msra.mxu0 0.0
        %1208 = vmatprep.subr.mxu0 0.0
        %1209 = vmatpush1.msra.mxu0 0.0
        %1210 = vmatprep.subr.mxu0 0.0
        %1211 = vmatpush1.msra.mxu0 0.0
        %1212 = vmatprep.subr.mxu0 0.0
        %1213 = vmatpush1.msra.mxu0 0.0
        %1214 = vmatprep.subr.mxu0 0.0
        %1215 = vmatpush1.msra.mxu0 0.0
        %1216 = vmatprep.subr.mxu0 0.0
        %1217 = vmatpush1.msra.mxu0 0.0
        %1218 = vmatprep.subr.mxu0 0.0
        %1219 = vmatpush1.msra.mxu0 0.0
        %1220 = vmatprep.subr.mxu0 0.0
        %1221 = vmatpush1.msra.mxu0 0.0
        %1222 = vmatprep.subr.mxu0 0.0
        %1223 = vmatpush1.msra.mxu0 0.0
        %1224 = vmatprep.subr.mxu0 0.0
        %1225 = vmatpush1.msra.mxu0 0.0
        %1226 = vmatprep.subr.mxu0 0.0
        %1227 = vmatpush1.msra.mxu0 0.0
        %1228 = vmatprep.subr.mxu0 0.0
        %1229 = vmatpush1.msra.mxu0 0.0
        %1230 = vmatprep.subr.mxu0 0.0
        %1231 = vmatpush1.msra.mxu0 0.0
        %v1232 = vand.u32 %v933, 4294901760
        %v1233 = vsub.f32 %v933, %v1232
        %v1234 = vand.u32 %v1233, 4294901760
        %v1235 = vsub.f32 %v1233, %v1234
        %v1236 = vand.u32 %v1235, 4294901760
        %1237 = vmatprep.subr.mxu0 %v1236
        %v1238 = vand.u32 %v931, 4294901760
        %v1239 = vsub.f32 %v931, %v1238
        %v1240 = vand.u32 %v1239, 4294901760
        %v1241 = vsub.f32 %v1239, %v1240
        %v1242 = vand.u32 %v1241, 4294901760
        %1243 = vmatpush1.msra.mxu0 %v1242
        %1244 = vmatprep.subr.mxu0 0.0
        %1245 = vmatpush2.msra.mxu0 0.0
        %1246 = vmatprep.subr.mxu0 0.0
        %1247 = vmatpush2.msra.mxu0 0.0
        %1248 = vmatprep.subr.mxu0 0.0
        %1249 = vmatpush2.msra.mxu0 0.0
        %1250 = vmatprep.subr.mxu0 0.0
        %1251 = vmatpush2.msra.mxu0 0.0
        %1252 = vmatprep.subr.mxu0 0.0
        %1253 = vmatpush2.msra.mxu0 0.0
        %1254 = vmatprep.subr.mxu0 0.0
        %1255 = vmatpush2.msra.mxu0 0.0
        %1256 = vmatprep.subr.mxu0 0.0
        %1257 = vmatpush2.msra.mxu0 0.0
        %1258 = vmatprep.subr.mxu0 0.0
        %1259 = vmatpush2.msra.mxu0 0.0
        %1260 = vmatprep.subr.mxu0 0.0
        %1261 = vmatpush2.msra.mxu0 0.0
        %1262 = vmatprep.subr.mxu0 0.0
        %1263 = vmatpush2.msra.mxu0 0.0
        %1264 = vmatprep.subr.mxu0 0.0
        %1265 = vmatpush2.msra.mxu0 0.0
        %1266 = vmatprep.subr.mxu0 0.0
        %1267 = vmatpush2.msra.mxu0 0.0
        %1268 = vmatprep.subr.mxu0 0.0
        %1269 = vmatpush2.msra.mxu0 0.0
        %1270 = vmatprep.subr.mxu0 0.0
        %1271 = vmatpush2.msra.mxu0 0.0
        %1272 = vmatprep.subr.mxu0 0.0
        %1273 = vmatpush2.msra.mxu0 0.0
        %1274 = vmatprep.subr.mxu0 0.0
        %1275 = vmatpush2.msra.mxu0 0.0
        %1276 = vmatprep.mubr.f32.mxu0 0.0
        %v1277 = vand.u32 %v894, 4294901760
        %1278 = vmatmul.mubr.f32.gmra.mxu0 %v1277
        %v1279 = vpop.f32.mrf.mxu0
        %v1280 = vadd.f32 %v1011, %v1279
        %v1281 = vpop.f32.mrf.mxu0
        %v1282 = vadd.f32 %v1013, %v1281
        %1283 = vmatprep.mubr.f32.mxu0 0.0
        %v1284 = vand.u32 %v896, 4294901760
        %1285 = vmatmul.mubr.f32.gmra.mxu0 %v1284
        %v1286 = vpop.f32.mrf.mxu0
        %v1287 = vadd.f32 %v1022, %v1286
        %v1288 = vpop.f32.mrf.mxu0
        %v1289 = vadd.f32 %v1024, %v1288
        %1290 = vmatprep.mubr.f32.mxu0 0.0
        %v1291 = vand.u32 %v898, 4294901760
        %1292 = vmatmul.mubr.f32.gmra.mxu0 %v1291
        %v1293 = vpop.f32.mrf.mxu0
        %v1294 = vadd.f32 %v1033, %v1293
        %v1295 = vpop.f32.mrf.mxu0
        %v1296 = vadd.f32 %v1035, %v1295
        %1297 = vmatprep.mubr.f32.mxu0 0.0
        %v1298 = vand.u32 %v900, 4294901760
        %1299 = vmatmul.mubr.f32.gmra.mxu0 %v1298
        %v1300 = vpop.f32.mrf.mxu0
        %v1301 = vadd.f32 %v1044, %v1300
        %v1302 = vpop.f32.mrf.mxu0
        %v1303 = vadd.f32 %v1046, %v1302
        %1304 = vmatprep.mubr.f32.mxu0 0.0
        %v1305 = vand.u32 %v902, 4294901760
        %1306 = vmatmul.mubr.f32.gmra.mxu0 %v1305
        %v1307 = vpop.f32.mrf.mxu0
        %v1308 = vadd.f32 %v1055, %v1307
        %v1309 = vpop.f32.mrf.mxu0
        %v1310 = vadd.f32 %v1057, %v1309
        %1311 = vmatprep.mubr.f32.mxu0 0.0
        %v1312 = vand.u32 %v904, 4294901760
        %1313 = vmatmul.mubr.f32.gmra.mxu0 %v1312
        %v1314 = vpop.f32.mrf.mxu0
        %v1315 = vadd.f32 %v1066, %v1314
        %v1316 = vpop.f32.mrf.mxu0
        %v1317 = vadd.f32 %v1068, %v1316
        %1318 = vmatprep.mubr.f32.mxu0 0.0
        %v1319 = vand.u32 %v906, 4294901760
        %1320 = vmatmul.mubr.f32.gmra.mxu0 %v1319
        %v1321 = vpop.f32.mrf.mxu0
        %v1322 = vadd.f32 %v1077, %v1321
        %v1323 = vpop.f32.mrf.mxu0
        %v1324 = vadd.f32 %v1079, %v1323
        %1325 = vmatprep.mubr.f32.mxu0 0.0
        %v1326 = vand.u32 %v908, 4294901760
        %1327 = vmatmul.mubr.f32.gmra.mxu0 %v1326
        %v1328 = vpop.f32.mrf.mxu0
        %v1329 = vadd.f32 %v1088, %v1328
        %v1330 = vpop.f32.mrf.mxu0
        %v1331 = vadd.f32 %v1090, %v1330
        %1332 = vmatprep.mubr.f32.mxu0 0.0
        %v1333 = vand.u32 %v910, 4294901760
        %1334 = vmatmul.mubr.f32.gmra.mxu0 %v1333
        %v1335 = vpop.f32.mrf.mxu0
        %v1336 = vadd.f32 %v1099, %v1335
        %v1337 = vpop.f32.mrf.mxu0
        %v1338 = vadd.f32 %v1101, %v1337
        %1339 = vmatprep.mubr.f32.mxu0 0.0
        %v1340 = vand.u32 %v912, 4294901760
        %1341 = vmatmul.mubr.f32.gmra.mxu0 %v1340
        %v1342 = vpop.f32.mrf.mxu0
        %v1343 = vadd.f32 %v1110, %v1342
        %v1344 = vpop.f32.mrf.mxu0
        %v1345 = vadd.f32 %v1112, %v1344
        %1346 = vmatprep.mubr.f32.mxu0 0.0
        %v1347 = vand.u32 %v914, 4294901760
        %1348 = vmatmul.mubr.f32.gmra.mxu0 %v1347
        %v1349 = vpop.f32.mrf.mxu0
        %v1350 = vadd.f32 %v1121, %v1349
        %v1351 = vpop.f32.mrf.mxu0
        %v1352 = vadd.f32 %v1123, %v1351
        %1353 = vmatprep.mubr.f32.mxu0 0.0
        %v1354 = vand.u32 %v916, 4294901760
        %1355 = vmatmul.mubr.f32.gmra.mxu0 %v1354
        %v1356 = vpop.f32.mrf.mxu0
        %v1357 = vadd.f32 %v1132, %v1356
        %v1358 = vpop.f32.mrf.mxu0
        %v1359 = vadd.f32 %v1134, %v1358
        %1360 = vmatprep.mubr.f32.mxu0 0.0
        %v1361 = vand.u32 %v918, 4294901760
        %1362 = vmatmul.mubr.f32.gmra.mxu0 %v1361
        %v1363 = vpop.f32.mrf.mxu0
        %v1364 = vadd.f32 %v1143, %v1363
        %v1365 = vpop.f32.mrf.mxu0
        %v1366 = vadd.f32 %v1145, %v1365
        %1367 = vmatprep.mubr.f32.mxu0 0.0
        %v1368 = vand.u32 %v920, 4294901760
        %1369 = vmatmul.mubr.f32.gmra.mxu0 %v1368
        %v1370 = vpop.f32.mrf.mxu0
        %v1371 = vadd.f32 %v1154, %v1370
        %v1372 = vpop.f32.mrf.mxu0
        %v1373 = vadd.f32 %v1156, %v1372
        %1374 = vmatprep.mubr.f32.mxu0 0.0
        %v1375 = vand.u32 %v922, 4294901760
        %1376 = vmatmul.mubr.f32.gmra.mxu0 %v1375
        %v1377 = vpop.f32.mrf.mxu0
        %v1378 = vadd.f32 %v1165, %v1377
        %v1379 = vpop.f32.mrf.mxu0
        %v1380 = vadd.f32 %v1167, %v1379
        %1381 = vmatprep.mubr.f32.mxu0 0.0
        %v1382 = vand.u32 %v924, 4294901760
        %1383 = vmatmul.mubr.f32.gmra.mxu0 %v1382
        %v1384 = vpop.f32.mrf.mxu0
        %v1385 = vadd.f32 %v1176, %v1384
        %v1386 = vpop.f32.mrf.mxu0
        %v1387 = vadd.f32 %v1178, %v1386
        %1388 = vmatprep.mubr.f32.mxu0 0.0
        %v1389 = vand.u32 %v926, 4294901760
        %1390 = vmatmul.mubr.f32.gmra.mxu0 %v1389
        %v1391 = vpop.f32.mrf.mxu0
        %v1392 = vadd.f32 %v1187, %v1391
        %v1393 = vpop.f32.mrf.mxu0
        %v1394 = vadd.f32 %v1189, %v1393
        %1395 = vmatprep.mubr.f32.mxu0 0.0
        %v1396 = vand.u32 %v928, 4294901760
        %1397 = vmatmul.mubr.f32.gmra.mxu0 %v1396
        %v1398 = vpop.f32.mrf.mxu0
        %v1399 = vadd.f32 %v1198, %v1398
        %v1400 = vpop.f32.mrf.mxu0
        %v1401 = vadd.f32 %v1200, %v1400
        %1402 = vdwg.mxu0
        %1403 = vmatprep.subr.mxu0 0.0
        %1404 = vmatpush1.msra.mxu0 0.0
        %1405 = vmatprep.subr.mxu0 0.0
        %1406 = vmatpush1.msra.mxu0 0.0
        %1407 = vmatprep.subr.mxu0 0.0
        %1408 = vmatpush1.msra.mxu0 0.0
        %1409 = vmatprep.subr.mxu0 0.0
        %1410 = vmatpush1.msra.mxu0 0.0
        %1411 = vmatprep.subr.mxu0 0.0
        %1412 = vmatpush1.msra.mxu0 0.0
        %1413 = vmatprep.subr.mxu0 0.0
        %1414 = vmatpush1.msra.mxu0 0.0
        %1415 = vmatprep.subr.mxu0 0.0
        %1416 = vmatpush1.msra.mxu0 0.0
        %1417 = vmatprep.subr.mxu0 0.0
        %1418 = vmatpush1.msra.mxu0 0.0
        %1419 = vmatprep.subr.mxu0 0.0
        %1420 = vmatpush1.msra.mxu0 0.0
        %1421 = vmatprep.subr.mxu0 0.0
        %1422 = vmatpush1.msra.mxu0 0.0
        %1423 = vmatprep.subr.mxu0 0.0
        %1424 = vmatpush1.msra.mxu0 0.0
        %1425 = vmatprep.subr.mxu0 0.0
        %1426 = vmatpush1.msra.mxu0 0.0
        %1427 = vmatprep.subr.mxu0 0.0
        %1428 = vmatpush1.msra.mxu0 0.0
        %1429 = vmatprep.subr.mxu0 0.0
        %1430 = vmatpush1.msra.mxu0 0.0
        %1431 = vmatprep.subr.mxu0 0.0
        %1432 = vmatpush1.msra.mxu0 0.0
        %v1433 = vand.u32 %v933, 4294901760
        %v1434 = vsub.f32 %v933, %v1433
        %1435 = vmatprep.subr.mxu0 %v1434
        %v1436 = vand.u32 %v931, 4294901760
        %v1437 = vsub.f32 %v931, %v1436
        %1438 = vmatpush1.msra.mxu0 %v1437
        %1439 = vmatprep.subr.mxu0 0.0
        %1440 = vmatpush2.msra.mxu0 0.0
        %1441 = vmatprep.subr.mxu0 0.0
        %1442 = vmatpush2.msra.mxu0 0.0
        %1443 = vmatprep.subr.mxu0 0.0
        %1444 = vmatpush2.msra.mxu0 0.0
        %1445 = vmatprep.subr.mxu0 0.0
        %1446 = vmatpush2.msra.mxu0 0.0
        %1447 = vmatprep.subr.mxu0 0.0
        %1448 = vmatpush2.msra.mxu0 0.0
        %1449 = vmatprep.subr.mxu0 0.0
        %1450 = vmatpush2.msra.mxu0 0.0
        %1451 = vmatprep.subr.mxu0 0.0
        %1452 = vmatpush2.msra.mxu0 0.0
        %1453 = vmatprep.subr.mxu0 0.0
        %1454 = vmatpush2.msra.mxu0 0.0
        %1455 = vmatprep.subr.mxu0 0.0
        %1456 = vmatpush2.msra.mxu0 0.0
        %1457 = vmatprep.subr.mxu0 0.0
        %1458 = vmatpush2.msra.mxu0 0.0
        %1459 = vmatprep.subr.mxu0 0.0
        %1460 = vmatpush2.msra.mxu0 0.0
        %1461 = vmatprep.subr.mxu0 0.0
        %1462 = vmatpush2.msra.mxu0 0.0
        %1463 = vmatprep.subr.mxu0 0.0
        %1464 = vmatpush2.msra.mxu0 0.0
        %1465 = vmatprep.subr.mxu0 0.0
        %1466 = vmatpush2.msra.mxu0 0.0
        %1467 = vmatprep.subr.mxu0 0.0
        %1468 = vmatpush2.msra.mxu0 0.0
        %1469 = vmatprep.subr.mxu0 0.0
        %1470 = vmatpush2.msra.mxu0 0.0
        %1471 = vmatprep.mubr.f32.mxu0 0.0
        %v1472 = vand.u32 %v894, 4294901760
        %v1473 = vsub.f32 %v894, %v1472
        %1474 = vmatmul.mubr.f32.gmra.mxu0 %v1473
        %v1475 = vpop.f32.mrf.mxu0
        %v1476 = vadd.f32 %v1280, %v1475
        %v1477 = vpop.f32.mrf.mxu0
        %v1478 = vadd.f32 %v1282, %v1477
        %1479 = vmatprep.mubr.f32.mxu0 0.0
        %v1480 = vand.u32 %v896, 4294901760
        %v1481 = vsub.f32 %v896, %v1480
        %1482 = vmatmul.mubr.f32.gmra.mxu0 %v1481
        %v1483 = vpop.f32.mrf.mxu0
        %v1484 = vadd.f32 %v1287, %v1483
        %v1485 = vpop.f32.mrf.mxu0
        %v1486 = vadd.f32 %v1289, %v1485
        %1487 = vmatprep.mubr.f32.mxu0 0.0
        %v1488 = vand.u32 %v898, 4294901760
        %v1489 = vsub.f32 %v898, %v1488
        %1490 = vmatmul.mubr.f32.gmra.mxu0 %v1489
        %v1491 = vpop.f32.mrf.mxu0
        %v1492 = vadd.f32 %v1294, %v1491
        %v1493 = vpop.f32.mrf.mxu0
        %v1494 = vadd.f32 %v1296, %v1493
        %1495 = vmatprep.mubr.f32.mxu0 0.0
        %v1496 = vand.u32 %v900, 4294901760
        %v1497 = vsub.f32 %v900, %v1496
        %1498 = vmatmul.mubr.f32.gmra.mxu0 %v1497
        %v1499 = vpop.f32.mrf.mxu0
        %v1500 = vadd.f32 %v1301, %v1499
        %v1501 = vpop.f32.mrf.mxu0
        %v1502 = vadd.f32 %v1303, %v1501
        %1503 = vmatprep.mubr.f32.mxu0 0.0
        %v1504 = vand.u32 %v902, 4294901760
        %v1505 = vsub.f32 %v902, %v1504
        %1506 = vmatmul.mubr.f32.gmra.mxu0 %v1505
        %v1507 = vpop.f32.mrf.mxu0
        %v1508 = vadd.f32 %v1308, %v1507
        %v1509 = vpop.f32.mrf.mxu0
        %v1510 = vadd.f32 %v1310, %v1509
        %1511 = vmatprep.mubr.f32.mxu0 0.0
        %v1512 = vand.u32 %v904, 4294901760
        %v1513 = vsub.f32 %v904, %v1512
        %1514 = vmatmul.mubr.f32.gmra.mxu0 %v1513
        %v1515 = vpop.f32.mrf.mxu0
        %v1516 = vadd.f32 %v1315, %v1515
        %v1517 = vpop.f32.mrf.mxu0
        %v1518 = vadd.f32 %v1317, %v1517
        %1519 = vmatprep.mubr.f32.mxu0 0.0
        %v1520 = vand.u32 %v906, 4294901760
        %v1521 = vsub.f32 %v906, %v1520
        %1522 = vmatmul.mubr.f32.gmra.mxu0 %v1521
        %v1523 = vpop.f32.mrf.mxu0
        %v1524 = vadd.f32 %v1322, %v1523
        %v1525 = vpop.f32.mrf.mxu0
        %v1526 = vadd.f32 %v1324, %v1525
        %1527 = vmatprep.mubr.f32.mxu0 0.0
        %v1528 = vand.u32 %v908, 4294901760
        %v1529 = vsub.f32 %v908, %v1528
        %1530 = vmatmul.mubr.f32.gmra.mxu0 %v1529
        %v1531 = vpop.f32.mrf.mxu0
        %v1532 = vadd.f32 %v1329, %v1531
        %v1533 = vpop.f32.mrf.mxu0
        %v1534 = vadd.f32 %v1331, %v1533
        %1535 = vmatprep.mubr.f32.mxu0 0.0
        %v1536 = vand.u32 %v910, 4294901760
        %v1537 = vsub.f32 %v910, %v1536
        %1538 = vmatmul.mubr.f32.gmra.mxu0 %v1537
        %v1539 = vpop.f32.mrf.mxu0
        %v1540 = vadd.f32 %v1336, %v1539
        %v1541 = vpop.f32.mrf.mxu0
        %v1542 = vadd.f32 %v1338, %v1541
        %1543 = vmatprep.mubr.f32.mxu0 0.0
        %v1544 = vand.u32 %v912, 4294901760
        %v1545 = vsub.f32 %v912, %v1544
        %1546 = vmatmul.mubr.f32.gmra.mxu0 %v1545
        %v1547 = vpop.f32.mrf.mxu0
        %v1548 = vadd.f32 %v1343, %v1547
        %v1549 = vpop.f32.mrf.mxu0
        %v1550 = vadd.f32 %v1345, %v1549
        %1551 = vmatprep.mubr.f32.mxu0 0.0
        %v1552 = vand.u32 %v914, 4294901760
        %v1553 = vsub.f32 %v914, %v1552
        %1554 = vmatmul.mubr.f32.gmra.mxu0 %v1553
        %v1555 = vpop.f32.mrf.mxu0
        %v1556 = vadd.f32 %v1350, %v1555
        %v1557 = vpop.f32.mrf.mxu0
        %v1558 = vadd.f32 %v1352, %v1557
        %1559 = vmatprep.mubr.f32.mxu0 0.0
        %v1560 = vand.u32 %v916, 4294901760
        %v1561 = vsub.f32 %v916, %v1560
        %1562 = vmatmul.mubr.f32.gmra.mxu0 %v1561
        %v1563 = vpop.f32.mrf.mxu0
        %v1564 = vadd.f32 %v1357, %v1563
        %v1565 = vpop.f32.mrf.mxu0
        %v1566 = vadd.f32 %v1359, %v1565
        %1567 = vmatprep.mubr.f32.mxu0 0.0
        %v1568 = vand.u32 %v918, 4294901760
        %v1569 = vsub.f32 %v918, %v1568
        %1570 = vmatmul.mubr.f32.gmra.mxu0 %v1569
        %v1571 = vpop.f32.mrf.mxu0
        %v1572 = vadd.f32 %v1364, %v1571
        %v1573 = vpop.f32.mrf.mxu0
        %v1574 = vadd.f32 %v1366, %v1573
        %1575 = vmatprep.mubr.f32.mxu0 0.0
        %v1576 = vand.u32 %v920, 4294901760
        %v1577 = vsub.f32 %v920, %v1576
        %1578 = vmatmul.mubr.f32.gmra.mxu0 %v1577
        %v1579 = vpop.f32.mrf.mxu0
        %v1580 = vadd.f32 %v1371, %v1579
        %v1581 = vpop.f32.mrf.mxu0
        %v1582 = vadd.f32 %v1373, %v1581
        %1583 = vmatprep.mubr.f32.mxu0 0.0
        %v1584 = vand.u32 %v922, 4294901760
        %v1585 = vsub.f32 %v922, %v1584
        %1586 = vmatmul.mubr.f32.gmra.mxu0 %v1585
        %v1587 = vpop.f32.mrf.mxu0
        %v1588 = vadd.f32 %v1378, %v1587
        %v1589 = vpop.f32.mrf.mxu0
        %v1590 = vadd.f32 %v1380, %v1589
        %1591 = vmatprep.mubr.f32.mxu0 0.0
        %v1592 = vand.u32 %v924, 4294901760
        %v1593 = vsub.f32 %v924, %v1592
        %1594 = vmatmul.mubr.f32.gmra.mxu0 %v1593
        %v1595 = vpop.f32.mrf.mxu0
        %v1596 = vadd.f32 %v1385, %v1595
        %v1597 = vpop.f32.mrf.mxu0
        %v1598 = vadd.f32 %v1387, %v1597
        %1599 = vmatprep.mubr.f32.mxu0 0.0
        %v1600 = vand.u32 %v926, 4294901760
        %v1601 = vsub.f32 %v926, %v1600
        %1602 = vmatmul.mubr.f32.gmra.mxu0 %v1601
        %v1603 = vpop.f32.mrf.mxu0
        %v1604 = vadd.f32 %v1392, %v1603
        %v1605 = vpop.f32.mrf.mxu0
        %v1606 = vadd.f32 %v1394, %v1605
        %1607 = vmatprep.mubr.f32.mxu0 0.0
        %v1608 = vand.u32 %v928, 4294901760
        %v1609 = vsub.f32 %v928, %v1608
        %1610 = vmatmul.mubr.f32.gmra.mxu0 %v1609
        %v1611 = vpop.f32.mrf.mxu0
        %v1612 = vadd.f32 %v1399, %v1611
        %v1613 = vpop.f32.mrf.mxu0
        %v1614 = vadd.f32 %v1401, %v1613
        %1615 = vdwg.mxu0
        %1616 = vmatprep.subr.mxu0 0.0
        %1617 = vmatpush1.msra.mxu0 0.0
        %1618 = vmatprep.subr.mxu0 0.0
        %1619 = vmatpush1.msra.mxu0 0.0
        %1620 = vmatprep.subr.mxu0 0.0
        %1621 = vmatpush1.msra.mxu0 0.0
        %1622 = vmatprep.subr.mxu0 0.0
        %1623 = vmatpush1.msra.mxu0 0.0
        %1624 = vmatprep.subr.mxu0 0.0
        %1625 = vmatpush1.msra.mxu0 0.0
        %1626 = vmatprep.subr.mxu0 0.0
        %1627 = vmatpush1.msra.mxu0 0.0
        %1628 = vmatprep.subr.mxu0 0.0
        %1629 = vmatpush1.msra.mxu0 0.0
        %1630 = vmatprep.subr.mxu0 0.0
        %1631 = vmatpush1.msra.mxu0 0.0
        %1632 = vmatprep.subr.mxu0 0.0
        %1633 = vmatpush1.msra.mxu0 0.0
        %1634 = vmatprep.subr.mxu0 0.0
        %1635 = vmatpush1.msra.mxu0 0.0
        %1636 = vmatprep.subr.mxu0 0.0
        %1637 = vmatpush1.msra.mxu0 0.0
        %1638 = vmatprep.subr.mxu0 0.0
        %1639 = vmatpush1.msra.mxu0 0.0
        %1640 = vmatprep.subr.mxu0 0.0
        %1641 = vmatpush1.msra.mxu0 0.0
        %1642 = vmatprep.subr.mxu0 0.0
        %1643 = vmatpush1.msra.mxu0 0.0
        %1644 = vmatprep.subr.mxu0 0.0
        %1645 = vmatpush1.msra.mxu0 0.0
        %v1646 = vand.u32 %v933, 4294901760
        %1647 = vmatprep.subr.mxu0 %v1646
        %v1648 = vand.u32 %v931, 4294901760
        %1649 = vmatpush1.msra.mxu0 %v1648
        %1650 = vmatprep.subr.mxu0 0.0
        %1651 = vmatpush2.msra.mxu0 0.0
        %1652 = vmatprep.subr.mxu0 0.0
        %1653 = vmatpush2.msra.mxu0 0.0
        %1654 = vmatprep.subr.mxu0 0.0
        %1655 = vmatpush2.msra.mxu0 0.0
        %1656 = vmatprep.subr.mxu0 0.0
        %1657 = vmatpush2.msra.mxu0 0.0
        %1658 = vmatprep.subr.mxu0 0.0
        %1659 = vmatpush2.msra.mxu0 0.0
        %1660 = vmatprep.subr.mxu0 0.0
        %1661 = vmatpush2.msra.mxu0 0.0
        %1662 = vmatprep.subr.mxu0 0.0
        %1663 = vmatpush2.msra.mxu0 0.0
        %1664 = vmatprep.subr.mxu0 0.0
        %1665 = vmatpush2.msra.mxu0 0.0
        %1666 = vmatprep.subr.mxu0 0.0
        %1667 = vmatpush2.msra.mxu0 0.0
        %1668 = vmatprep.subr.mxu0 0.0
        %1669 = vmatpush2.msra.mxu0 0.0
        %1670 = vmatprep.subr.mxu0 0.0
        %1671 = vmatpush2.msra.mxu0 0.0
        %1672 = vmatprep.subr.mxu0 0.0
        %1673 = vmatpush2.msra.mxu0 0.0
        %1674 = vmatprep.subr.mxu0 0.0
        %1675 = vmatpush2.msra.mxu0 0.0
        %1676 = vmatprep.subr.mxu0 0.0
        %1677 = vmatpush2.msra.mxu0 0.0
        %1678 = vmatprep.subr.mxu0 0.0
        %1679 = vmatpush2.msra.mxu0 0.0
        %1680 = vmatprep.subr.mxu0 0.0
        %1681 = vmatpush2.msra.mxu0 0.0
        %1682 = vmatprep.mubr.f32.mxu0 0.0
        %v1683 = vand.u32 %v894, 4294901760
        %v1684 = vsub.f32 %v894, %v1683
        %v1685 = vand.u32 %v1684, 4294901760
        %1686 = vmatmul.mubr.f32.gmra.mxu0 %v1685
        %v1687 = vpop.f32.mrf.mxu0
        %v1688 = vadd.f32 %v1476, %v1687
        %v1689 = vpop.f32.mrf.mxu0
        %v1690 = vadd.f32 %v1478, %v1689
        %1691 = vmatprep.mubr.f32.mxu0 0.0
        %v1692 = vand.u32 %v896, 4294901760
        %v1693 = vsub.f32 %v896, %v1692
        %v1694 = vand.u32 %v1693, 4294901760
        %1695 = vmatmul.mubr.f32.gmra.mxu0 %v1694
        %v1696 = vpop.f32.mrf.mxu0
        %v1697 = vadd.f32 %v1484, %v1696
        %v1698 = vpop.f32.mrf.mxu0
        %v1699 = vadd.f32 %v1486, %v1698
        %1700 = vmatprep.mubr.f32.mxu0 0.0
        %v1701 = vand.u32 %v898, 4294901760
        %v1702 = vsub.f32 %v898, %v1701
        %v1703 = vand.u32 %v1702, 4294901760
        %1704 = vmatmul.mubr.f32.gmra.mxu0 %v1703
        %v1705 = vpop.f32.mrf.mxu0
        %v1706 = vadd.f32 %v1492, %v1705
        %v1707 = vpop.f32.mrf.mxu0
        %v1708 = vadd.f32 %v1494, %v1707
        %1709 = vmatprep.mubr.f32.mxu0 0.0
        %v1710 = vand.u32 %v900, 4294901760
        %v1711 = vsub.f32 %v900, %v1710
        %v1712 = vand.u32 %v1711, 4294901760
        %1713 = vmatmul.mubr.f32.gmra.mxu0 %v1712
        %v1714 = vpop.f32.mrf.mxu0
        %v1715 = vadd.f32 %v1500, %v1714
        %v1716 = vpop.f32.mrf.mxu0
        %v1717 = vadd.f32 %v1502, %v1716
        %1718 = vmatprep.mubr.f32.mxu0 0.0
        %v1719 = vand.u32 %v902, 4294901760
        %v1720 = vsub.f32 %v902, %v1719
        %v1721 = vand.u32 %v1720, 4294901760
        %1722 = vmatmul.mubr.f32.gmra.mxu0 %v1721
        %v1723 = vpop.f32.mrf.mxu0
        %v1724 = vadd.f32 %v1508, %v1723
        %v1725 = vpop.f32.mrf.mxu0
        %v1726 = vadd.f32 %v1510, %v1725
        %1727 = vmatprep.mubr.f32.mxu0 0.0
        %v1728 = vand.u32 %v904, 4294901760
        %v1729 = vsub.f32 %v904, %v1728
        %v1730 = vand.u32 %v1729, 4294901760
        %1731 = vmatmul.mubr.f32.gmra.mxu0 %v1730
        %v1732 = vpop.f32.mrf.mxu0
        %v1733 = vadd.f32 %v1516, %v1732
        %v1734 = vpop.f32.mrf.mxu0
        %v1735 = vadd.f32 %v1518, %v1734
        %1736 = vmatprep.mubr.f32.mxu0 0.0
        %v1737 = vand.u32 %v906, 4294901760
        %v1738 = vsub.f32 %v906, %v1737
        %v1739 = vand.u32 %v1738, 4294901760
        %1740 = vmatmul.mubr.f32.gmra.mxu0 %v1739
        %v1741 = vpop.f32.mrf.mxu0
        %v1742 = vadd.f32 %v1524, %v1741
        %v1743 = vpop.f32.mrf.mxu0
        %v1744 = vadd.f32 %v1526, %v1743
        %1745 = vmatprep.mubr.f32.mxu0 0.0
        %v1746 = vand.u32 %v908, 4294901760
        %v1747 = vsub.f32 %v908, %v1746
        %v1748 = vand.u32 %v1747, 4294901760
        %1749 = vmatmul.mubr.f32.gmra.mxu0 %v1748
        %v1750 = vpop.f32.mrf.mxu0
        %v1751 = vadd.f32 %v1532, %v1750
        %v1752 = vpop.f32.mrf.mxu0
        %v1753 = vadd.f32 %v1534, %v1752
        %1754 = vmatprep.mubr.f32.mxu0 0.0
        %v1755 = vand.u32 %v910, 4294901760
        %v1756 = vsub.f32 %v910, %v1755
        %v1757 = vand.u32 %v1756, 4294901760
        %1758 = vmatmul.mubr.f32.gmra.mxu0 %v1757
        %v1759 = vpop.f32.mrf.mxu0
        %v1760 = vadd.f32 %v1540, %v1759
        %v1761 = vpop.f32.mrf.mxu0
        %v1762 = vadd.f32 %v1542, %v1761
        %1763 = vmatprep.mubr.f32.mxu0 0.0
        %v1764 = vand.u32 %v912, 4294901760
        %v1765 = vsub.f32 %v912, %v1764
        %v1766 = vand.u32 %v1765, 4294901760
        %1767 = vmatmul.mubr.f32.gmra.mxu0 %v1766
        %v1768 = vpop.f32.mrf.mxu0
        %v1769 = vadd.f32 %v1548, %v1768
        %v1770 = vpop.f32.mrf.mxu0
        %v1771 = vadd.f32 %v1550, %v1770
        %1772 = vmatprep.mubr.f32.mxu0 0.0
        %v1773 = vand.u32 %v914, 4294901760
        %v1774 = vsub.f32 %v914, %v1773
        %v1775 = vand.u32 %v1774, 4294901760
        %1776 = vmatmul.mubr.f32.gmra.mxu0 %v1775
        %v1777 = vpop.f32.mrf.mxu0
        %v1778 = vadd.f32 %v1556, %v1777
        %v1779 = vpop.f32.mrf.mxu0
        %v1780 = vadd.f32 %v1558, %v1779
        %1781 = vmatprep.mubr.f32.mxu0 0.0
        %v1782 = vand.u32 %v916, 4294901760
        %v1783 = vsub.f32 %v916, %v1782
        %v1784 = vand.u32 %v1783, 4294901760
        %1785 = vmatmul.mubr.f32.gmra.mxu0 %v1784
        %v1786 = vpop.f32.mrf.mxu0
        %v1787 = vadd.f32 %v1564, %v1786
        %v1788 = vpop.f32.mrf.mxu0
        %v1789 = vadd.f32 %v1566, %v1788
        %1790 = vmatprep.mubr.f32.mxu0 0.0
        %v1791 = vand.u32 %v918, 4294901760
        %v1792 = vsub.f32 %v918, %v1791
        %v1793 = vand.u32 %v1792, 4294901760
        %1794 = vmatmul.mubr.f32.gmra.mxu0 %v1793
        %v1795 = vpop.f32.mrf.mxu0
        %v1796 = vadd.f32 %v1572, %v1795
        %v1797 = vpop.f32.mrf.mxu0
        %v1798 = vadd.f32 %v1574, %v1797
        %1799 = vmatprep.mubr.f32.mxu0 0.0
        %v1800 = vand.u32 %v920, 4294901760
        %v1801 = vsub.f32 %v920, %v1800
        %v1802 = vand.u32 %v1801, 4294901760
        %1803 = vmatmul.mubr.f32.gmra.mxu0 %v1802
        %v1804 = vpop.f32.mrf.mxu0
        %v1805 = vadd.f32 %v1580, %v1804
        %v1806 = vpop.f32.mrf.mxu0
        %v1807 = vadd.f32 %v1582, %v1806
        %1808 = vmatprep.mubr.f32.mxu0 0.0
        %v1809 = vand.u32 %v922, 4294901760
        %v1810 = vsub.f32 %v922, %v1809
        %v1811 = vand.u32 %v1810, 4294901760
        %1812 = vmatmul.mubr.f32.gmra.mxu0 %v1811
        %v1813 = vpop.f32.mrf.mxu0
        %v1814 = vadd.f32 %v1588, %v1813
        %v1815 = vpop.f32.mrf.mxu0
        %v1816 = vadd.f32 %v1590, %v1815
        %1817 = vmatprep.mubr.f32.mxu0 0.0
        %v1818 = vand.u32 %v924, 4294901760
        %v1819 = vsub.f32 %v924, %v1818
        %v1820 = vand.u32 %v1819, 4294901760
        %1821 = vmatmul.mubr.f32.gmra.mxu0 %v1820
        %v1822 = vpop.f32.mrf.mxu0
        %v1823 = vadd.f32 %v1596, %v1822
        %v1824 = vpop.f32.mrf.mxu0
        %v1825 = vadd.f32 %v1598, %v1824
        %1826 = vmatprep.mubr.f32.mxu0 0.0
        %v1827 = vand.u32 %v926, 4294901760
        %v1828 = vsub.f32 %v926, %v1827
        %v1829 = vand.u32 %v1828, 4294901760
        %1830 = vmatmul.mubr.f32.gmra.mxu0 %v1829
        %v1831 = vpop.f32.mrf.mxu0
        %v1832 = vadd.f32 %v1604, %v1831
        %v1833 = vpop.f32.mrf.mxu0
        %v1834 = vadd.f32 %v1606, %v1833
        %1835 = vmatprep.mubr.f32.mxu0 0.0
        %v1836 = vand.u32 %v928, 4294901760
        %v1837 = vsub.f32 %v928, %v1836
        %v1838 = vand.u32 %v1837, 4294901760
        %1839 = vmatmul.mubr.f32.gmra.mxu0 %v1838
        %v1840 = vpop.f32.mrf.mxu0
        %v1841 = vadd.f32 %v1612, %v1840
        %v1842 = vpop.f32.mrf.mxu0
        %v1843 = vadd.f32 %v1614, %v1842
        %1844 = vdwg.mxu0
        %1845 = vmatprep.subr.mxu0 0.0
        %1846 = vmatpush1.msra.mxu0 0.0
        %1847 = vmatprep.subr.mxu0 0.0
        %1848 = vmatpush1.msra.mxu0 0.0
        %1849 = vmatprep.subr.mxu0 0.0
        %1850 = vmatpush1.msra.mxu0 0.0
        %1851 = vmatprep.subr.mxu0 0.0
        %1852 = vmatpush1.msra.mxu0 0.0
        %1853 = vmatprep.subr.mxu0 0.0
        %1854 = vmatpush1.msra.mxu0 0.0
        %1855 = vmatprep.subr.mxu0 0.0
        %1856 = vmatpush1.msra.mxu0 0.0
        %1857 = vmatprep.subr.mxu0 0.0
        %1858 = vmatpush1.msra.mxu0 0.0
        %1859 = vmatprep.subr.mxu0 0.0
        %1860 = vmatpush1.msra.mxu0 0.0
        %1861 = vmatprep.subr.mxu0 0.0
        %1862 = vmatpush1.msra.mxu0 0.0
        %1863 = vmatprep.subr.mxu0 0.0
        %1864 = vmatpush1.msra.mxu0 0.0
        %1865 = vmatprep.subr.mxu0 0.0
        %1866 = vmatpush1.msra.mxu0 0.0
        %1867 = vmatprep.subr.mxu0 0.0
        %1868 = vmatpush1.msra.mxu0 0.0
        %1869 = vmatprep.subr.mxu0 0.0
        %1870 = vmatpush1.msra.mxu0 0.0
        %1871 = vmatprep.subr.mxu0 0.0
        %1872 = vmatpush1.msra.mxu0 0.0
        %1873 = vmatprep.subr.mxu0 0.0
        %1874 = vmatpush1.msra.mxu0 0.0
        %v1875 = vand.u32 %v933, 4294901760
        %v1876 = vsub.f32 %v933, %v1875
        %v1877 = vand.u32 %v1876, 4294901760
        %1878 = vmatprep.subr.mxu0 %v1877
        %v1879 = vand.u32 %v931, 4294901760
        %v1880 = vsub.f32 %v931, %v1879
        %v1881 = vand.u32 %v1880, 4294901760
        %1882 = vmatpush1.msra.mxu0 %v1881
        %1883 = vmatprep.subr.mxu0 0.0
        %1884 = vmatpush2.msra.mxu0 0.0
        %1885 = vmatprep.subr.mxu0 0.0
        %1886 = vmatpush2.msra.mxu0 0.0
        %1887 = vmatprep.subr.mxu0 0.0
        %1888 = vmatpush2.msra.mxu0 0.0
        %1889 = vmatprep.subr.mxu0 0.0
        %1890 = vmatpush2.msra.mxu0 0.0
        %1891 = vmatprep.subr.mxu0 0.0
        %1892 = vmatpush2.msra.mxu0 0.0
        %1893 = vmatprep.subr.mxu0 0.0
        %1894 = vmatpush2.msra.mxu0 0.0
        %1895 = vmatprep.subr.mxu0 0.0
        %1896 = vmatpush2.msra.mxu0 0.0
        %1897 = vmatprep.subr.mxu0 0.0
        %1898 = vmatpush2.msra.mxu0 0.0
        %1899 = vmatprep.subr.mxu0 0.0
        %1900 = vmatpush2.msra.mxu0 0.0
        %1901 = vmatprep.subr.mxu0 0.0
        %1902 = vmatpush2.msra.mxu0 0.0
        %1903 = vmatprep.subr.mxu0 0.0
        %1904 = vmatpush2.msra.mxu0 0.0
        %1905 = vmatprep.subr.mxu0 0.0
        %1906 = vmatpush2.msra.mxu0 0.0
        %1907 = vmatprep.subr.mxu0 0.0
        %1908 = vmatpush2.msra.mxu0 0.0
        %1909 = vmatprep.subr.mxu0 0.0
        %1910 = vmatpush2.msra.mxu0 0.0
        %1911 = vmatprep.subr.mxu0 0.0
        %1912 = vmatpush2.msra.mxu0 0.0
        %1913 = vmatprep.subr.mxu0 0.0
        %1914 = vmatpush2.msra.mxu0 0.0
        %1915 = vmatprep.mubr.f32.mxu0 0.0
        %v1916 = vand.u32 %v894, 4294901760
        %1917 = vmatmul.mubr.f32.gmra.mxu0 %v1916
        %v1918 = vpop.f32.mrf.mxu0
        %v1919 = vadd.f32 %v1688, %v1918
        %v1920 = vpop.f32.mrf.mxu0
        %v1921 = vadd.f32 %v1690, %v1920
        %1922 = vmatprep.mubr.f32.mxu0 0.0
        %v1923 = vand.u32 %v896, 4294901760
        %1924 = vmatmul.mubr.f32.gmra.mxu0 %v1923
        %v1925 = vpop.f32.mrf.mxu0
        %v1926 = vadd.f32 %v1697, %v1925
        %v1927 = vpop.f32.mrf.mxu0
        %v1928 = vadd.f32 %v1699, %v1927
        %1929 = vmatprep.mubr.f32.mxu0 0.0
        %v1930 = vand.u32 %v898, 4294901760
        %1931 = vmatmul.mubr.f32.gmra.mxu0 %v1930
        %v1932 = vpop.f32.mrf.mxu0
        %v1933 = vadd.f32 %v1706, %v1932
        %v1934 = vpop.f32.mrf.mxu0
        %v1935 = vadd.f32 %v1708, %v1934
        %1936 = vmatprep.mubr.f32.mxu0 0.0
        %v1937 = vand.u32 %v900, 4294901760
        %1938 = vmatmul.mubr.f32.gmra.mxu0 %v1937
        %v1939 = vpop.f32.mrf.mxu0
        %v1940 = vadd.f32 %v1715, %v1939
        %v1941 = vpop.f32.mrf.mxu0
        %v1942 = vadd.f32 %v1717, %v1941
        %1943 = vmatprep.mubr.f32.mxu0 0.0
        %v1944 = vand.u32 %v902, 4294901760
        %1945 = vmatmul.mubr.f32.gmra.mxu0 %v1944
        %v1946 = vpop.f32.mrf.mxu0
        %v1947 = vadd.f32 %v1724, %v1946
        %v1948 = vpop.f32.mrf.mxu0
        %v1949 = vadd.f32 %v1726, %v1948
        %1950 = vmatprep.mubr.f32.mxu0 0.0
        %v1951 = vand.u32 %v904, 4294901760
        %1952 = vmatmul.mubr.f32.gmra.mxu0 %v1951
        %v1953 = vpop.f32.mrf.mxu0
        %v1954 = vadd.f32 %v1733, %v1953
        %v1955 = vpop.f32.mrf.mxu0
        %v1956 = vadd.f32 %v1735, %v1955
        %1957 = vmatprep.mubr.f32.mxu0 0.0
        %v1958 = vand.u32 %v906, 4294901760
        %1959 = vmatmul.mubr.f32.gmra.mxu0 %v1958
        %v1960 = vpop.f32.mrf.mxu0
        %v1961 = vadd.f32 %v1742, %v1960
        %v1962 = vpop.f32.mrf.mxu0
        %v1963 = vadd.f32 %v1744, %v1962
        %1964 = vmatprep.mubr.f32.mxu0 0.0
        %v1965 = vand.u32 %v908, 4294901760
        %1966 = vmatmul.mubr.f32.gmra.mxu0 %v1965
        %v1967 = vpop.f32.mrf.mxu0
        %v1968 = vadd.f32 %v1751, %v1967
        %v1969 = vpop.f32.mrf.mxu0
        %v1970 = vadd.f32 %v1753, %v1969
        %1971 = vmatprep.mubr.f32.mxu0 0.0
        %v1972 = vand.u32 %v910, 4294901760
        %1973 = vmatmul.mubr.f32.gmra.mxu0 %v1972
        %v1974 = vpop.f32.mrf.mxu0
        %v1975 = vadd.f32 %v1760, %v1974
        %v1976 = vpop.f32.mrf.mxu0
        %v1977 = vadd.f32 %v1762, %v1976
        %1978 = vmatprep.mubr.f32.mxu0 0.0
        %v1979 = vand.u32 %v912, 4294901760
        %1980 = vmatmul.mubr.f32.gmra.mxu0 %v1979
        %v1981 = vpop.f32.mrf.mxu0
        %v1982 = vadd.f32 %v1769, %v1981
        %v1983 = vpop.f32.mrf.mxu0
        %v1984 = vadd.f32 %v1771, %v1983
        %1985 = vmatprep.mubr.f32.mxu0 0.0
        %v1986 = vand.u32 %v914, 4294901760
        %1987 = vmatmul.mubr.f32.gmra.mxu0 %v1986
        %v1988 = vpop.f32.mrf.mxu0
        %v1989 = vadd.f32 %v1778, %v1988
        %v1990 = vpop.f32.mrf.mxu0
        %v1991 = vadd.f32 %v1780, %v1990
        %1992 = vmatprep.mubr.f32.mxu0 0.0
        %v1993 = vand.u32 %v916, 4294901760
        %1994 = vmatmul.mubr.f32.gmra.mxu0 %v1993
        %v1995 = vpop.f32.mrf.mxu0
        %v1996 = vadd.f32 %v1787, %v1995
        %v1997 = vpop.f32.mrf.mxu0
        %v1998 = vadd.f32 %v1789, %v1997
        %1999 = vmatprep.mubr.f32.mxu0 0.0
        %v2000 = vand.u32 %v918, 4294901760
        %2001 = vmatmul.mubr.f32.gmra.mxu0 %v2000
        %v2002 = vpop.f32.mrf.mxu0
        %v2003 = vadd.f32 %v1796, %v2002
        %v2004 = vpop.f32.mrf.mxu0
        %v2005 = vadd.f32 %v1798, %v2004
        %2006 = vmatprep.mubr.f32.mxu0 0.0
        %v2007 = vand.u32 %v920, 4294901760
        %2008 = vmatmul.mubr.f32.gmra.mxu0 %v2007
        %v2009 = vpop.f32.mrf.mxu0
        %v2010 = vadd.f32 %v1805, %v2009
        %v2011 = vpop.f32.mrf.mxu0
        %v2012 = vadd.f32 %v1807, %v2011
        %2013 = vmatprep.mubr.f32.mxu0 0.0
        %v2014 = vand.u32 %v922, 4294901760
        %2015 = vmatmul.mubr.f32.gmra.mxu0 %v2014
        %v2016 = vpop.f32.mrf.mxu0
        %v2017 = vadd.f32 %v1814, %v2016
        %v2018 = vpop.f32.mrf.mxu0
        %v2019 = vadd.f32 %v1816, %v2018
        %2020 = vmatprep.mubr.f32.mxu0 0.0
        %v2021 = vand.u32 %v924, 4294901760
        %2022 = vmatmul.mubr.f32.gmra.mxu0 %v2021
        %v2023 = vpop.f32.mrf.mxu0
        %v2024 = vadd.f32 %v1823, %v2023
        %v2025 = vpop.f32.mrf.mxu0
        %v2026 = vadd.f32 %v1825, %v2025
        %2027 = vmatprep.mubr.f32.mxu0 0.0
        %v2028 = vand.u32 %v926, 4294901760
        %2029 = vmatmul.mubr.f32.gmra.mxu0 %v2028
        %v2030 = vpop.f32.mrf.mxu0
        %v2031 = vadd.f32 %v1832, %v2030
        %v2032 = vpop.f32.mrf.mxu0
        %v2033 = vadd.f32 %v1834, %v2032
        %2034 = vmatprep.mubr.f32.mxu0 0.0
        %v2035 = vand.u32 %v928, 4294901760
        %2036 = vmatmul.mubr.f32.gmra.mxu0 %v2035
        %v2037 = vpop.f32.mrf.mxu0
        %v2038 = vadd.f32 %v1841, %v2037
        %v2039 = vpop.f32.mrf.mxu0
        %v2040 = vadd.f32 %v1843, %v2039
        %2041 = vdwg.mxu0
        %2042 = vmatprep.subr.mxu0 0.0
        %2043 = vmatpush1.msra.mxu0 0.0
        %2044 = vmatprep.subr.mxu0 0.0
        %2045 = vmatpush1.msra.mxu0 0.0
        %2046 = vmatprep.subr.mxu0 0.0
        %2047 = vmatpush1.msra.mxu0 0.0
        %2048 = vmatprep.subr.mxu0 0.0
        %2049 = vmatpush1.msra.mxu0 0.0
        %2050 = vmatprep.subr.mxu0 0.0
        %2051 = vmatpush1.msra.mxu0 0.0
        %2052 = vmatprep.subr.mxu0 0.0
        %2053 = vmatpush1.msra.mxu0 0.0
        %2054 = vmatprep.subr.mxu0 0.0
        %2055 = vmatpush1.msra.mxu0 0.0
        %2056 = vmatprep.subr.mxu0 0.0
        %2057 = vmatpush1.msra.mxu0 0.0
        %2058 = vmatprep.subr.mxu0 0.0
        %2059 = vmatpush1.msra.mxu0 0.0
        %2060 = vmatprep.subr.mxu0 0.0
        %2061 = vmatpush1.msra.mxu0 0.0
        %2062 = vmatprep.subr.mxu0 0.0
        %2063 = vmatpush1.msra.mxu0 0.0
        %2064 = vmatprep.subr.mxu0 0.0
        %2065 = vmatpush1.msra.mxu0 0.0
        %2066 = vmatprep.subr.mxu0 0.0
        %2067 = vmatpush1.msra.mxu0 0.0
        %2068 = vmatprep.subr.mxu0 0.0
        %2069 = vmatpush1.msra.mxu0 0.0
        %2070 = vmatprep.subr.mxu0 0.0
        %2071 = vmatpush1.msra.mxu0 0.0
        %v2072 = vand.u32 %v933, 4294901760
        %2073 = vmatprep.subr.mxu0 %v2072
        %v2074 = vand.u32 %v931, 4294901760
        %2075 = vmatpush1.msra.mxu0 %v2074
        %2076 = vmatprep.subr.mxu0 0.0
        %2077 = vmatpush2.msra.mxu0 0.0
        %2078 = vmatprep.subr.mxu0 0.0
        %2079 = vmatpush2.msra.mxu0 0.0
        %2080 = vmatprep.subr.mxu0 0.0
        %2081 = vmatpush2.msra.mxu0 0.0
        %2082 = vmatprep.subr.mxu0 0.0
        %2083 = vmatpush2.msra.mxu0 0.0
        %2084 = vmatprep.subr.mxu0 0.0
        %2085 = vmatpush2.msra.mxu0 0.0
        %2086 = vmatprep.subr.mxu0 0.0
        %2087 = vmatpush2.msra.mxu0 0.0
        %2088 = vmatprep.subr.mxu0 0.0
        %2089 = vmatpush2.msra.mxu0 0.0
        %2090 = vmatprep.subr.mxu0 0.0
        %2091 = vmatpush2.msra.mxu0 0.0
        %2092 = vmatprep.subr.mxu0 0.0
        %2093 = vmatpush2.msra.mxu0 0.0
        %2094 = vmatprep.subr.mxu0 0.0
        %2095 = vmatpush2.msra.mxu0 0.0
        %2096 = vmatprep.subr.mxu0 0.0
        %2097 = vmatpush2.msra.mxu0 0.0
        %2098 = vmatprep.subr.mxu0 0.0
        %2099 = vmatpush2.msra.mxu0 0.0
        %2100 = vmatprep.subr.mxu0 0.0
        %2101 = vmatpush2.msra.mxu0 0.0
        %2102 = vmatprep.subr.mxu0 0.0
        %2103 = vmatpush2.msra.mxu0 0.0
        %2104 = vmatprep.subr.mxu0 0.0
        %2105 = vmatpush2.msra.mxu0 0.0
        %2106 = vmatprep.subr.mxu0 0.0
        %2107 = vmatpush2.msra.mxu0 0.0
        %2108 = vmatprep.mubr.f32.mxu0 0.0
        %v2109 = vand.u32 %v894, 4294901760
        %2110 = vmatmul.mubr.f32.gmra.mxu0 %v2109
        %v2111 = vpop.f32.mrf.mxu0
        %v2112 = vadd.f32 %v1919, %v2111
        %v2113 = vpop.f32.mrf.mxu0
        %v2114 = vadd.f32 %v1921, %v2113
        %2115 = vmatprep.mubr.f32.mxu0 0.0
        %v2116 = vand.u32 %v896, 4294901760
        %2117 = vmatmul.mubr.f32.gmra.mxu0 %v2116
        %v2118 = vpop.f32.mrf.mxu0
        %v2119 = vadd.f32 %v1926, %v2118
        %v2120 = vpop.f32.mrf.mxu0
        %v2121 = vadd.f32 %v1928, %v2120
        %2122 = vmatprep.mubr.f32.mxu0 0.0
        %v2123 = vand.u32 %v898, 4294901760
        %2124 = vmatmul.mubr.f32.gmra.mxu0 %v2123
        %v2125 = vpop.f32.mrf.mxu0
        %v2126 = vadd.f32 %v1933, %v2125
        %v2127 = vpop.f32.mrf.mxu0
        %v2128 = vadd.f32 %v1935, %v2127
        %2129 = vmatprep.mubr.f32.mxu0 0.0
        %v2130 = vand.u32 %v900, 4294901760
        %2131 = vmatmul.mubr.f32.gmra.mxu0 %v2130
        %v2132 = vpop.f32.mrf.mxu0
        %v2133 = vadd.f32 %v1940, %v2132
        %v2134 = vpop.f32.mrf.mxu0
        %v2135 = vadd.f32 %v1942, %v2134
        %2136 = vmatprep.mubr.f32.mxu0 0.0
        %v2137 = vand.u32 %v902, 4294901760
        %2138 = vmatmul.mubr.f32.gmra.mxu0 %v2137
        %v2139 = vpop.f32.mrf.mxu0
        %v2140 = vadd.f32 %v1947, %v2139
        %v2141 = vpop.f32.mrf.mxu0
        %v2142 = vadd.f32 %v1949, %v2141
        %2143 = vmatprep.mubr.f32.mxu0 0.0
        %v2144 = vand.u32 %v904, 4294901760
        %2145 = vmatmul.mubr.f32.gmra.mxu0 %v2144
        %v2146 = vpop.f32.mrf.mxu0
        %v2147 = vadd.f32 %v1954, %v2146
        %v2148 = vpop.f32.mrf.mxu0
        %v2149 = vadd.f32 %v1956, %v2148
        %2150 = vmatprep.mubr.f32.mxu0 0.0
        %v2151 = vand.u32 %v906, 4294901760
        %2152 = vmatmul.mubr.f32.gmra.mxu0 %v2151
        %v2153 = vpop.f32.mrf.mxu0
        %v2154 = vadd.f32 %v1961, %v2153
        %v2155 = vpop.f32.mrf.mxu0
        %v2156 = vadd.f32 %v1963, %v2155
        %2157 = vmatprep.mubr.f32.mxu0 0.0
        %v2158 = vand.u32 %v908, 4294901760
        %2159 = vmatmul.mubr.f32.gmra.mxu0 %v2158
        %v2160 = vpop.f32.mrf.mxu0
        %v2161 = vadd.f32 %v1968, %v2160
        %v2162 = vpop.f32.mrf.mxu0
        %v2163 = vadd.f32 %v1970, %v2162
        %2164 = vmatprep.mubr.f32.mxu0 0.0
        %v2165 = vand.u32 %v910, 4294901760
        %2166 = vmatmul.mubr.f32.gmra.mxu0 %v2165
        %v2167 = vpop.f32.mrf.mxu0
        %v2168 = vadd.f32 %v1975, %v2167
        %v2169 = vpop.f32.mrf.mxu0
        %v2170 = vadd.f32 %v1977, %v2169
        %2171 = vmatprep.mubr.f32.mxu0 0.0
        %v2172 = vand.u32 %v912, 4294901760
        %2173 = vmatmul.mubr.f32.gmra.mxu0 %v2172
        %v2174 = vpop.f32.mrf.mxu0
        %v2175 = vadd.f32 %v1982, %v2174
        %v2176 = vpop.f32.mrf.mxu0
        %v2177 = vadd.f32 %v1984, %v2176
        %2178 = vmatprep.mubr.f32.mxu0 0.0
        %v2179 = vand.u32 %v914, 4294901760
        %2180 = vmatmul.mubr.f32.gmra.mxu0 %v2179
        %v2181 = vpop.f32.mrf.mxu0
        %v2182 = vadd.f32 %v1989, %v2181
        %v2183 = vpop.f32.mrf.mxu0
        %v2184 = vadd.f32 %v1991, %v2183
        %2185 = vmatprep.mubr.f32.mxu0 0.0
        %v2186 = vand.u32 %v916, 4294901760
        %2187 = vmatmul.mubr.f32.gmra.mxu0 %v2186
        %v2188 = vpop.f32.mrf.mxu0
        %v2189 = vadd.f32 %v1996, %v2188
        %v2190 = vpop.f32.mrf.mxu0
        %v2191 = vadd.f32 %v1998, %v2190
        %2192 = vmatprep.mubr.f32.mxu0 0.0
        %v2193 = vand.u32 %v918, 4294901760
        %2194 = vmatmul.mubr.f32.gmra.mxu0 %v2193
        %v2195 = vpop.f32.mrf.mxu0
        %v2196 = vadd.f32 %v2003, %v2195
        %v2197 = vpop.f32.mrf.mxu0
        %v2198 = vadd.f32 %v2005, %v2197
        %2199 = vmatprep.mubr.f32.mxu0 0.0
        %v2200 = vand.u32 %v920, 4294901760
        %2201 = vmatmul.mubr.f32.gmra.mxu0 %v2200
        %v2202 = vpop.f32.mrf.mxu0
        %v2203 = vadd.f32 %v2010, %v2202
        %v2204 = vpop.f32.mrf.mxu0
        %v2205 = vadd.f32 %v2012, %v2204
        %2206 = vmatprep.mubr.f32.mxu0 0.0
        %v2207 = vand.u32 %v922, 4294901760
        %2208 = vmatmul.mubr.f32.gmra.mxu0 %v2207
        %v2209 = vpop.f32.mrf.mxu0
        %v2210 = vadd.f32 %v2017, %v2209
        %v2211 = vpop.f32.mrf.mxu0
        %v2212 = vadd.f32 %v2019, %v2211
        %2213 = vmatprep.mubr.f32.mxu0 0.0
        %v2214 = vand.u32 %v924, 4294901760
        %2215 = vmatmul.mubr.f32.gmra.mxu0 %v2214
        %v2216 = vpop.f32.mrf.mxu0
        %v2217 = vadd.f32 %v2024, %v2216
        %v2218 = vpop.f32.mrf.mxu0
        %v2219 = vadd.f32 %v2026, %v2218
        %2220 = vmatprep.mubr.f32.mxu0 0.0
        %v2221 = vand.u32 %v926, 4294901760
        %2222 = vmatmul.mubr.f32.gmra.mxu0 %v2221
        %v2223 = vpop.f32.mrf.mxu0
        %v2224 = vadd.f32 %v2031, %v2223
        %v2225 = vpop.f32.mrf.mxu0
        %v2226 = vadd.f32 %v2033, %v2225
        %2227 = vmatprep.mubr.f32.mxu0 0.0
        %v2228 = vand.u32 %v928, 4294901760
        %2229 = vmatmul.mubr.f32.gmra.mxu0 %v2228
        %v2230 = vpop.f32.mrf.mxu0
        %v2231 = vadd.f32 %v2038, %v2230
        %v2232 = vpop.f32.mrf.mxu0
        %v2233 = vadd.f32 %v2040, %v2232
        %2234 = vdwg.mxu0
        %2235 = vmatprep.subr.mxu0 0.0
        %2236 = vmatpush1.msra.mxu0 0.0
        %2237 = vmatprep.subr.mxu0 0.0
        %2238 = vmatpush1.msra.mxu0 0.0
        %2239 = vmatprep.subr.mxu0 0.0
        %2240 = vmatpush1.msra.mxu0 0.0
        %2241 = vmatprep.subr.mxu0 0.0
        %2242 = vmatpush1.msra.mxu0 0.0
        %2243 = vmatprep.subr.mxu0 0.0
        %2244 = vmatpush1.msra.mxu0 0.0
        %2245 = vmatprep.subr.mxu0 0.0
        %2246 = vmatpush1.msra.mxu0 0.0
        %2247 = vmatprep.subr.mxu0 0.0
        %2248 = vmatpush1.msra.mxu0 0.0
        %2249 = vmatprep.subr.mxu0 0.0
        %2250 = vmatpush1.msra.mxu0 0.0
        %2251 = vmatprep.subr.mxu0 0.0
        %2252 = vmatpush1.msra.mxu0 0.0
        %2253 = vmatprep.subr.mxu0 0.0
        %2254 = vmatpush1.msra.mxu0 0.0
        %2255 = vmatprep.subr.mxu0 0.0
        %2256 = vmatpush1.msra.mxu0 0.0
        %2257 = vmatprep.subr.mxu0 0.0
        %2258 = vmatpush1.msra.mxu0 0.0
        %2259 = vmatprep.subr.mxu0 0.0
        %2260 = vmatpush1.msra.mxu0 0.0
        %2261 = vmatprep.subr.mxu0 0.0
        %2262 = vmatpush1.msra.mxu0 0.0
        %2263 = vmatprep.subr.mxu0 0.0
        %2264 = vmatpush1.msra.mxu0 0.0
        %2265 = vmatprep.subr.mxu0 0.0
        %v2266 = vand.u32 %v935, 4294901760
        %2267 = vmatpush1.msra.mxu0 %v2266
        %2268 = vmatprep.subr.mxu0 0.0
        %2269 = vmatpush2.msra.mxu0 0.0
        %2270 = vmatprep.subr.mxu0 0.0
        %2271 = vmatpush2.msra.mxu0 0.0
        %2272 = vmatprep.subr.mxu0 0.0
        %2273 = vmatpush2.msra.mxu0 0.0
        %2274 = vmatprep.subr.mxu0 0.0
        %2275 = vmatpush2.msra.mxu0 0.0
        %2276 = vmatprep.subr.mxu0 0.0
        %2277 = vmatpush2.msra.mxu0 0.0
        %2278 = vmatprep.subr.mxu0 0.0
        %2279 = vmatpush2.msra.mxu0 0.0
        %2280 = vmatprep.subr.mxu0 0.0
        %2281 = vmatpush2.msra.mxu0 0.0
        %2282 = vmatprep.subr.mxu0 0.0
        %2283 = vmatpush2.msra.mxu0 0.0
        %2284 = vmatprep.subr.mxu0 0.0
        %2285 = vmatpush2.msra.mxu0 0.0
        %2286 = vmatprep.subr.mxu0 0.0
        %2287 = vmatpush2.msra.mxu0 0.0
        %2288 = vmatprep.subr.mxu0 0.0
        %2289 = vmatpush2.msra.mxu0 0.0
        %2290 = vmatprep.subr.mxu0 0.0
        %2291 = vmatpush2.msra.mxu0 0.0
        %2292 = vmatprep.subr.mxu0 0.0
        %2293 = vmatpush2.msra.mxu0 0.0
        %2294 = vmatprep.subr.mxu0 0.0
        %2295 = vmatpush2.msra.mxu0 0.0
        %2296 = vmatprep.subr.mxu0 0.0
        %2297 = vmatpush2.msra.mxu0 0.0
        %2298 = vmatprep.subr.mxu0 0.0
        %2299 = vmatpush2.msra.mxu0 0.0
        %2300 = vmatprep.mubr.f32.mxu0 0.0
        %v2301 = vand.u32 %v894, 4294901760
        %v2302 = vsub.f32 %v894, %v2301
        %v2303 = vand.u32 %v2302, 4294901760
        %v2304 = vsub.f32 %v2302, %v2303
        %v2305 = vand.u32 %v2304, 4294901760
        %2306 = vmatmul.mubr.f32.gmra.mxu0 %v2305
        %v2307 = vpop.f32.mrf.mxu0
        %v2308 = vadd.f32 0.0, %v2307
        %v2309 = vpop.f32.mrf.mxu0
        %2310 = vmatprep.mubr.f32.mxu0 0.0
        %v2311 = vand.u32 %v896, 4294901760
        %v2312 = vsub.f32 %v896, %v2311
        %v2313 = vand.u32 %v2312, 4294901760
        %v2314 = vsub.f32 %v2312, %v2313
        %v2315 = vand.u32 %v2314, 4294901760
        %2316 = vmatmul.mubr.f32.gmra.mxu0 %v2315
        %v2317 = vpop.f32.mrf.mxu0
        %v2318 = vadd.f32 0.0, %v2317
        %v2319 = vpop.f32.mrf.mxu0
        %2320 = vmatprep.mubr.f32.mxu0 0.0
        %v2321 = vand.u32 %v898, 4294901760
        %v2322 = vsub.f32 %v898, %v2321
        %v2323 = vand.u32 %v2322, 4294901760
        %v2324 = vsub.f32 %v2322, %v2323
        %v2325 = vand.u32 %v2324, 4294901760
        %2326 = vmatmul.mubr.f32.gmra.mxu0 %v2325
        %v2327 = vpop.f32.mrf.mxu0
        %v2328 = vadd.f32 0.0, %v2327
        %v2329 = vpop.f32.mrf.mxu0
        %2330 = vmatprep.mubr.f32.mxu0 0.0
        %v2331 = vand.u32 %v900, 4294901760
        %v2332 = vsub.f32 %v900, %v2331
        %v2333 = vand.u32 %v2332, 4294901760
        %v2334 = vsub.f32 %v2332, %v2333
        %v2335 = vand.u32 %v2334, 4294901760
        %2336 = vmatmul.mubr.f32.gmra.mxu0 %v2335
        %v2337 = vpop.f32.mrf.mxu0
        %v2338 = vadd.f32 0.0, %v2337
        %v2339 = vpop.f32.mrf.mxu0
        %2340 = vmatprep.mubr.f32.mxu0 0.0
        %v2341 = vand.u32 %v902, 4294901760
        %v2342 = vsub.f32 %v902, %v2341
        %v2343 = vand.u32 %v2342, 4294901760
        %v2344 = vsub.f32 %v2342, %v2343
        %v2345 = vand.u32 %v2344, 4294901760
        %2346 = vmatmul.mubr.f32.gmra.mxu0 %v2345
        %v2347 = vpop.f32.mrf.mxu0
        %v2348 = vadd.f32 0.0, %v2347
        %v2349 = vpop.f32.mrf.mxu0
        %2350 = vmatprep.mubr.f32.mxu0 0.0
        %v2351 = vand.u32 %v904, 4294901760
        %v2352 = vsub.f32 %v904, %v2351
        %v2353 = vand.u32 %v2352, 4294901760
        %v2354 = vsub.f32 %v2352, %v2353
        %v2355 = vand.u32 %v2354, 4294901760
        %2356 = vmatmul.mubr.f32.gmra.mxu0 %v2355
        %v2357 = vpop.f32.mrf.mxu0
        %v2358 = vadd.f32 0.0, %v2357
        %v2359 = vpop.f32.mrf.mxu0
        %2360 = vmatprep.mubr.f32.mxu0 0.0
        %v2361 = vand.u32 %v906, 4294901760
        %v2362 = vsub.f32 %v906, %v2361
        %v2363 = vand.u32 %v2362, 4294901760
        %v2364 = vsub.f32 %v2362, %v2363
        %v2365 = vand.u32 %v2364, 4294901760
        %2366 = vmatmul.mubr.f32.gmra.mxu0 %v2365
        %v2367 = vpop.f32.mrf.mxu0
        %v2368 = vadd.f32 0.0, %v2367
        %v2369 = vpop.f32.mrf.mxu0
        %2370 = vmatprep.mubr.f32.mxu0 0.0
        %v2371 = vand.u32 %v908, 4294901760
        %v2372 = vsub.f32 %v908, %v2371
        %v2373 = vand.u32 %v2372, 4294901760
        %v2374 = vsub.f32 %v2372, %v2373
        %v2375 = vand.u32 %v2374, 4294901760
        %2376 = vmatmul.mubr.f32.gmra.mxu0 %v2375
        %v2377 = vpop.f32.mrf.mxu0
        %v2378 = vadd.f32 0.0, %v2377
        %v2379 = vpop.f32.mrf.mxu0
        %2380 = vmatprep.mubr.f32.mxu0 0.0
        %v2381 = vand.u32 %v910, 4294901760
        %v2382 = vsub.f32 %v910, %v2381
        %v2383 = vand.u32 %v2382, 4294901760
        %v2384 = vsub.f32 %v2382, %v2383
        %v2385 = vand.u32 %v2384, 4294901760
        %2386 = vmatmul.mubr.f32.gmra.mxu0 %v2385
        %v2387 = vpop.f32.mrf.mxu0
        %v2388 = vadd.f32 0.0, %v2387
        %v2389 = vpop.f32.mrf.mxu0
        %2390 = vmatprep.mubr.f32.mxu0 0.0
        %v2391 = vand.u32 %v912, 4294901760
        %v2392 = vsub.f32 %v912, %v2391
        %v2393 = vand.u32 %v2392, 4294901760
        %v2394 = vsub.f32 %v2392, %v2393
        %v2395 = vand.u32 %v2394, 4294901760
        %2396 = vmatmul.mubr.f32.gmra.mxu0 %v2395
        %v2397 = vpop.f32.mrf.mxu0
        %v2398 = vadd.f32 0.0, %v2397
        %v2399 = vpop.f32.mrf.mxu0
        %2400 = vmatprep.mubr.f32.mxu0 0.0
        %v2401 = vand.u32 %v914, 4294901760
        %v2402 = vsub.f32 %v914, %v2401
        %v2403 = vand.u32 %v2402, 4294901760
        %v2404 = vsub.f32 %v2402, %v2403
        %v2405 = vand.u32 %v2404, 4294901760
        %2406 = vmatmul.mubr.f32.gmra.mxu0 %v2405
        %v2407 = vpop.f32.mrf.mxu0
        %v2408 = vadd.f32 0.0, %v2407
        %v2409 = vpop.f32.mrf.mxu0
        %2410 = vmatprep.mubr.f32.mxu0 0.0
        %v2411 = vand.u32 %v916, 4294901760
        %v2412 = vsub.f32 %v916, %v2411
        %v2413 = vand.u32 %v2412, 4294901760
        %v2414 = vsub.f32 %v2412, %v2413
        %v2415 = vand.u32 %v2414, 4294901760
        %2416 = vmatmul.mubr.f32.gmra.mxu0 %v2415
        %v2417 = vpop.f32.mrf.mxu0
        %v2418 = vadd.f32 0.0, %v2417
        %v2419 = vpop.f32.mrf.mxu0
        %2420 = vmatprep.mubr.f32.mxu0 0.0
        %v2421 = vand.u32 %v918, 4294901760
        %v2422 = vsub.f32 %v918, %v2421
        %v2423 = vand.u32 %v2422, 4294901760
        %v2424 = vsub.f32 %v2422, %v2423
        %v2425 = vand.u32 %v2424, 4294901760
        %2426 = vmatmul.mubr.f32.gmra.mxu0 %v2425
        %v2427 = vpop.f32.mrf.mxu0
        %v2428 = vadd.f32 0.0, %v2427
        %v2429 = vpop.f32.mrf.mxu0
        %2430 = vmatprep.mubr.f32.mxu0 0.0
        %v2431 = vand.u32 %v920, 4294901760
        %v2432 = vsub.f32 %v920, %v2431
        %v2433 = vand.u32 %v2432, 4294901760
        %v2434 = vsub.f32 %v2432, %v2433
        %v2435 = vand.u32 %v2434, 4294901760
        %2436 = vmatmul.mubr.f32.gmra.mxu0 %v2435
        %v2437 = vpop.f32.mrf.mxu0
        %v2438 = vadd.f32 0.0, %v2437
        %v2439 = vpop.f32.mrf.mxu0
        %2440 = vmatprep.mubr.f32.mxu0 0.0
        %v2441 = vand.u32 %v922, 4294901760
        %v2442 = vsub.f32 %v922, %v2441
        %v2443 = vand.u32 %v2442, 4294901760
        %v2444 = vsub.f32 %v2442, %v2443
        %v2445 = vand.u32 %v2444, 4294901760
        %2446 = vmatmul.mubr.f32.gmra.mxu0 %v2445
        %v2447 = vpop.f32.mrf.mxu0
        %v2448 = vadd.f32 0.0, %v2447
        %v2449 = vpop.f32.mrf.mxu0
        %2450 = vmatprep.mubr.f32.mxu0 0.0
        %v2451 = vand.u32 %v924, 4294901760
        %v2452 = vsub.f32 %v924, %v2451
        %v2453 = vand.u32 %v2452, 4294901760
        %v2454 = vsub.f32 %v2452, %v2453
        %v2455 = vand.u32 %v2454, 4294901760
        %2456 = vmatmul.mubr.f32.gmra.mxu0 %v2455
        %v2457 = vpop.f32.mrf.mxu0
        %v2458 = vadd.f32 0.0, %v2457
        %v2459 = vpop.f32.mrf.mxu0
        %2460 = vmatprep.mubr.f32.mxu0 0.0
        %v2461 = vand.u32 %v926, 4294901760
        %v2462 = vsub.f32 %v926, %v2461
        %v2463 = vand.u32 %v2462, 4294901760
        %v2464 = vsub.f32 %v2462, %v2463
        %v2465 = vand.u32 %v2464, 4294901760
        %2466 = vmatmul.mubr.f32.gmra.mxu0 %v2465
        %v2467 = vpop.f32.mrf.mxu0
        %v2468 = vadd.f32 0.0, %v2467
        %v2469 = vpop.f32.mrf.mxu0
        %2470 = vmatprep.mubr.f32.mxu0 0.0
        %v2471 = vand.u32 %v928, 4294901760
        %v2472 = vsub.f32 %v928, %v2471
        %v2473 = vand.u32 %v2472, 4294901760
        %v2474 = vsub.f32 %v2472, %v2473
        %v2475 = vand.u32 %v2474, 4294901760
        %2476 = vmatmul.mubr.f32.gmra.mxu0 %v2475
        %v2477 = vpop.f32.mrf.mxu0
        %v2478 = vadd.f32 0.0, %v2477
        %v2479 = vpop.f32.mrf.mxu0
        %2480 = vdwg.mxu0
        %2481 = vmatprep.subr.mxu0 0.0
        %2482 = vmatpush1.msra.mxu0 0.0
        %2483 = vmatprep.subr.mxu0 0.0
        %2484 = vmatpush1.msra.mxu0 0.0
        %2485 = vmatprep.subr.mxu0 0.0
        %2486 = vmatpush1.msra.mxu0 0.0
        %2487 = vmatprep.subr.mxu0 0.0
        %2488 = vmatpush1.msra.mxu0 0.0
        %2489 = vmatprep.subr.mxu0 0.0
        %2490 = vmatpush1.msra.mxu0 0.0
        %2491 = vmatprep.subr.mxu0 0.0
        %2492 = vmatpush1.msra.mxu0 0.0
        %2493 = vmatprep.subr.mxu0 0.0
        %2494 = vmatpush1.msra.mxu0 0.0
        %2495 = vmatprep.subr.mxu0 0.0
        %2496 = vmatpush1.msra.mxu0 0.0
        %2497 = vmatprep.subr.mxu0 0.0
        %2498 = vmatpush1.msra.mxu0 0.0
        %2499 = vmatprep.subr.mxu0 0.0
        %2500 = vmatpush1.msra.mxu0 0.0
        %2501 = vmatprep.subr.mxu0 0.0
        %2502 = vmatpush1.msra.mxu0 0.0
        %2503 = vmatprep.subr.mxu0 0.0
        %2504 = vmatpush1.msra.mxu0 0.0
        %2505 = vmatprep.subr.mxu0 0.0
        %2506 = vmatpush1.msra.mxu0 0.0
        %2507 = vmatprep.subr.mxu0 0.0
        %2508 = vmatpush1.msra.mxu0 0.0
        %2509 = vmatprep.subr.mxu0 0.0
        %2510 = vmatpush1.msra.mxu0 0.0
        %2511 = vmatprep.subr.mxu0 0.0
        %v2512 = vand.u32 %v935, 4294901760
        %v2513 = vsub.f32 %v935, %v2512
        %v2514 = vand.u32 %v2513, 4294901760
        %v2515 = vsub.f32 %v2513, %v2514
        %v2516 = vand.u32 %v2515, 4294901760
        %2517 = vmatpush1.msra.mxu0 %v2516
        %2518 = vmatprep.subr.mxu0 0.0
        %2519 = vmatpush2.msra.mxu0 0.0
        %2520 = vmatprep.subr.mxu0 0.0
        %2521 = vmatpush2.msra.mxu0 0.0
        %2522 = vmatprep.subr.mxu0 0.0
        %2523 = vmatpush2.msra.mxu0 0.0
        %2524 = vmatprep.subr.mxu0 0.0
        %2525 = vmatpush2.msra.mxu0 0.0
        %2526 = vmatprep.subr.mxu0 0.0
        %2527 = vmatpush2.msra.mxu0 0.0
        %2528 = vmatprep.subr.mxu0 0.0
        %2529 = vmatpush2.msra.mxu0 0.0
        %2530 = vmatprep.subr.mxu0 0.0
        %2531 = vmatpush2.msra.mxu0 0.0
        %2532 = vmatprep.subr.mxu0 0.0
        %2533 = vmatpush2.msra.mxu0 0.0
        %2534 = vmatprep.subr.mxu0 0.0
        %2535 = vmatpush2.msra.mxu0 0.0
        %2536 = vmatprep.subr.mxu0 0.0
        %2537 = vmatpush2.msra.mxu0 0.0
        %2538 = vmatprep.subr.mxu0 0.0
        %2539 = vmatpush2.msra.mxu0 0.0
        %2540 = vmatprep.subr.mxu0 0.0
        %2541 = vmatpush2.msra.mxu0 0.0
        %2542 = vmatprep.subr.mxu0 0.0
        %2543 = vmatpush2.msra.mxu0 0.0
        %2544 = vmatprep.subr.mxu0 0.0
        %2545 = vmatpush2.msra.mxu0 0.0
        %2546 = vmatprep.subr.mxu0 0.0
        %2547 = vmatpush2.msra.mxu0 0.0
        %2548 = vmatprep.subr.mxu0 0.0
        %2549 = vmatpush2.msra.mxu0 0.0
        %2550 = vmatprep.mubr.f32.mxu0 0.0
        %v2551 = vand.u32 %v894, 4294901760
        %2552 = vmatmul.mubr.f32.gmra.mxu0 %v2551
        %v2553 = vpop.f32.mrf.mxu0
        %v2554 = vadd.f32 %v2308, %v2553
        %v2555 = vpop.f32.mrf.mxu0
        %2556 = vmatprep.mubr.f32.mxu0 0.0
        %v2557 = vand.u32 %v896, 4294901760
        %2558 = vmatmul.mubr.f32.gmra.mxu0 %v2557
        %v2559 = vpop.f32.mrf.mxu0
        %v2560 = vadd.f32 %v2318, %v2559
        %v2561 = vpop.f32.mrf.mxu0
        %2562 = vmatprep.mubr.f32.mxu0 0.0
        %v2563 = vand.u32 %v898, 4294901760
        %2564 = vmatmul.mubr.f32.gmra.mxu0 %v2563
        %v2565 = vpop.f32.mrf.mxu0
        %v2566 = vadd.f32 %v2328, %v2565
        %v2567 = vpop.f32.mrf.mxu0
        %2568 = vmatprep.mubr.f32.mxu0 0.0
        %v2569 = vand.u32 %v900, 4294901760
        %2570 = vmatmul.mubr.f32.gmra.mxu0 %v2569
        %v2571 = vpop.f32.mrf.mxu0
        %v2572 = vadd.f32 %v2338, %v2571
        %v2573 = vpop.f32.mrf.mxu0
        %2574 = vmatprep.mubr.f32.mxu0 0.0
        %v2575 = vand.u32 %v902, 4294901760
        %2576 = vmatmul.mubr.f32.gmra.mxu0 %v2575
        %v2577 = vpop.f32.mrf.mxu0
        %v2578 = vadd.f32 %v2348, %v2577
        %v2579 = vpop.f32.mrf.mxu0
        %2580 = vmatprep.mubr.f32.mxu0 0.0
        %v2581 = vand.u32 %v904, 4294901760
        %2582 = vmatmul.mubr.f32.gmra.mxu0 %v2581
        %v2583 = vpop.f32.mrf.mxu0
        %v2584 = vadd.f32 %v2358, %v2583
        %v2585 = vpop.f32.mrf.mxu0
        %2586 = vmatprep.mubr.f32.mxu0 0.0
        %v2587 = vand.u32 %v906, 4294901760
        %2588 = vmatmul.mubr.f32.gmra.mxu0 %v2587
        %v2589 = vpop.f32.mrf.mxu0
        %v2590 = vadd.f32 %v2368, %v2589
        %v2591 = vpop.f32.mrf.mxu0
        %2592 = vmatprep.mubr.f32.mxu0 0.0
        %v2593 = vand.u32 %v908, 4294901760
        %2594 = vmatmul.mubr.f32.gmra.mxu0 %v2593
        %v2595 = vpop.f32.mrf.mxu0
        %v2596 = vadd.f32 %v2378, %v2595
        %v2597 = vpop.f32.mrf.mxu0
        %2598 = vmatprep.mubr.f32.mxu0 0.0
        %v2599 = vand.u32 %v910, 4294901760
        %2600 = vmatmul.mubr.f32.gmra.mxu0 %v2599
        %v2601 = vpop.f32.mrf.mxu0
        %v2602 = vadd.f32 %v2388, %v2601
        %v2603 = vpop.f32.mrf.mxu0
        %2604 = vmatprep.mubr.f32.mxu0 0.0
        %v2605 = vand.u32 %v912, 4294901760
        %2606 = vmatmul.mubr.f32.gmra.mxu0 %v2605
        %v2607 = vpop.f32.mrf.mxu0
        %v2608 = vadd.f32 %v2398, %v2607
        %v2609 = vpop.f32.mrf.mxu0
        %2610 = vmatprep.mubr.f32.mxu0 0.0
        %v2611 = vand.u32 %v914, 4294901760
        %2612 = vmatmul.mubr.f32.gmra.mxu0 %v2611
        %v2613 = vpop.f32.mrf.mxu0
        %v2614 = vadd.f32 %v2408, %v2613
        %v2615 = vpop.f32.mrf.mxu0
        %2616 = vmatprep.mubr.f32.mxu0 0.0
        %v2617 = vand.u32 %v916, 4294901760
        %2618 = vmatmul.mubr.f32.gmra.mxu0 %v2617
        %v2619 = vpop.f32.mrf.mxu0
        %v2620 = vadd.f32 %v2418, %v2619
        %v2621 = vpop.f32.mrf.mxu0
        %2622 = vmatprep.mubr.f32.mxu0 0.0
        %v2623 = vand.u32 %v918, 4294901760
        %2624 = vmatmul.mubr.f32.gmra.mxu0 %v2623
        %v2625 = vpop.f32.mrf.mxu0
        %v2626 = vadd.f32 %v2428, %v2625
        %v2627 = vpop.f32.mrf.mxu0
        %2628 = vmatprep.mubr.f32.mxu0 0.0
        %v2629 = vand.u32 %v920, 4294901760
        %2630 = vmatmul.mubr.f32.gmra.mxu0 %v2629
        %v2631 = vpop.f32.mrf.mxu0
        %v2632 = vadd.f32 %v2438, %v2631
        %v2633 = vpop.f32.mrf.mxu0
        %2634 = vmatprep.mubr.f32.mxu0 0.0
        %v2635 = vand.u32 %v922, 4294901760
        %2636 = vmatmul.mubr.f32.gmra.mxu0 %v2635
        %v2637 = vpop.f32.mrf.mxu0
        %v2638 = vadd.f32 %v2448, %v2637
        %v2639 = vpop.f32.mrf.mxu0
        %2640 = vmatprep.mubr.f32.mxu0 0.0
        %v2641 = vand.u32 %v924, 4294901760
        %2642 = vmatmul.mubr.f32.gmra.mxu0 %v2641
        %v2643 = vpop.f32.mrf.mxu0
        %v2644 = vadd.f32 %v2458, %v2643
        %v2645 = vpop.f32.mrf.mxu0
        %2646 = vmatprep.mubr.f32.mxu0 0.0
        %v2647 = vand.u32 %v926, 4294901760
        %2648 = vmatmul.mubr.f32.gmra.mxu0 %v2647
        %v2649 = vpop.f32.mrf.mxu0
        %v2650 = vadd.f32 %v2468, %v2649
        %v2651 = vpop.f32.mrf.mxu0
        %2652 = vmatprep.mubr.f32.mxu0 0.0
        %v2653 = vand.u32 %v928, 4294901760
        %2654 = vmatmul.mubr.f32.gmra.mxu0 %v2653
        %v2655 = vpop.f32.mrf.mxu0
        %v2656 = vadd.f32 %v2478, %v2655
        %v2657 = vpop.f32.mrf.mxu0
        %2658 = vdwg.mxu0
        %2659 = vmatprep.subr.mxu0 0.0
        %2660 = vmatpush1.msra.mxu0 0.0
        %2661 = vmatprep.subr.mxu0 0.0
        %2662 = vmatpush1.msra.mxu0 0.0
        %2663 = vmatprep.subr.mxu0 0.0
        %2664 = vmatpush1.msra.mxu0 0.0
        %2665 = vmatprep.subr.mxu0 0.0
        %2666 = vmatpush1.msra.mxu0 0.0
        %2667 = vmatprep.subr.mxu0 0.0
        %2668 = vmatpush1.msra.mxu0 0.0
        %2669 = vmatprep.subr.mxu0 0.0
        %2670 = vmatpush1.msra.mxu0 0.0
        %2671 = vmatprep.subr.mxu0 0.0
        %2672 = vmatpush1.msra.mxu0 0.0
        %2673 = vmatprep.subr.mxu0 0.0
        %2674 = vmatpush1.msra.mxu0 0.0
        %2675 = vmatprep.subr.mxu0 0.0
        %2676 = vmatpush1.msra.mxu0 0.0
        %2677 = vmatprep.subr.mxu0 0.0
        %2678 = vmatpush1.msra.mxu0 0.0
        %2679 = vmatprep.subr.mxu0 0.0
        %2680 = vmatpush1.msra.mxu0 0.0
        %2681 = vmatprep.subr.mxu0 0.0
        %2682 = vmatpush1.msra.mxu0 0.0
        %2683 = vmatprep.subr.mxu0 0.0
        %2684 = vmatpush1.msra.mxu0 0.0
        %2685 = vmatprep.subr.mxu0 0.0
        %2686 = vmatpush1.msra.mxu0 0.0
        %2687 = vmatprep.subr.mxu0 0.0
        %2688 = vmatpush1.msra.mxu0 0.0
        %2689 = vmatprep.subr.mxu0 0.0
        %v2690 = vand.u32 %v935, 4294901760
        %v2691 = vsub.f32 %v935, %v2690
        %2692 = vmatpush1.msra.mxu0 %v2691
        %2693 = vmatprep.subr.mxu0 0.0
        %2694 = vmatpush2.msra.mxu0 0.0
        %2695 = vmatprep.subr.mxu0 0.0
        %2696 = vmatpush2.msra.mxu0 0.0
        %2697 = vmatprep.subr.mxu0 0.0
        %2698 = vmatpush2.msra.mxu0 0.0
        %2699 = vmatprep.subr.mxu0 0.0
        %2700 = vmatpush2.msra.mxu0 0.0
        %2701 = vmatprep.subr.mxu0 0.0
        %2702 = vmatpush2.msra.mxu0 0.0
        %2703 = vmatprep.subr.mxu0 0.0
        %2704 = vmatpush2.msra.mxu0 0.0
        %2705 = vmatprep.subr.mxu0 0.0
        %2706 = vmatpush2.msra.mxu0 0.0
        %2707 = vmatprep.subr.mxu0 0.0
        %2708 = vmatpush2.msra.mxu0 0.0
        %2709 = vmatprep.subr.mxu0 0.0
        %2710 = vmatpush2.msra.mxu0 0.0
        %2711 = vmatprep.subr.mxu0 0.0
        %2712 = vmatpush2.msra.mxu0 0.0
        %2713 = vmatprep.subr.mxu0 0.0
        %2714 = vmatpush2.msra.mxu0 0.0
        %2715 = vmatprep.subr.mxu0 0.0
        %2716 = vmatpush2.msra.mxu0 0.0
        %2717 = vmatprep.subr.mxu0 0.0
        %2718 = vmatpush2.msra.mxu0 0.0
        %2719 = vmatprep.subr.mxu0 0.0
        %2720 = vmatpush2.msra.mxu0 0.0
        %2721 = vmatprep.subr.mxu0 0.0
        %2722 = vmatpush2.msra.mxu0 0.0
        %2723 = vmatprep.subr.mxu0 0.0
        %2724 = vmatpush2.msra.mxu0 0.0
        %2725 = vmatprep.mubr.f32.mxu0 0.0
        %v2726 = vand.u32 %v894, 4294901760
        %v2727 = vsub.f32 %v894, %v2726
        %2728 = vmatmul.mubr.f32.gmra.mxu0 %v2727
        %v2729 = vpop.f32.mrf.mxu0
        %v2730 = vadd.f32 %v2554, %v2729
        %v2731 = vpop.f32.mrf.mxu0
        %2732 = vmatprep.mubr.f32.mxu0 0.0
        %v2733 = vand.u32 %v896, 4294901760
        %v2734 = vsub.f32 %v896, %v2733
        %2735 = vmatmul.mubr.f32.gmra.mxu0 %v2734
        %v2736 = vpop.f32.mrf.mxu0
        %v2737 = vadd.f32 %v2560, %v2736
        %v2738 = vpop.f32.mrf.mxu0
        %2739 = vmatprep.mubr.f32.mxu0 0.0
        %v2740 = vand.u32 %v898, 4294901760
        %v2741 = vsub.f32 %v898, %v2740
        %2742 = vmatmul.mubr.f32.gmra.mxu0 %v2741
        %v2743 = vpop.f32.mrf.mxu0
        %v2744 = vadd.f32 %v2566, %v2743
        %v2745 = vpop.f32.mrf.mxu0
        %2746 = vmatprep.mubr.f32.mxu0 0.0
        %v2747 = vand.u32 %v900, 4294901760
        %v2748 = vsub.f32 %v900, %v2747
        %2749 = vmatmul.mubr.f32.gmra.mxu0 %v2748
        %v2750 = vpop.f32.mrf.mxu0
        %v2751 = vadd.f32 %v2572, %v2750
        %v2752 = vpop.f32.mrf.mxu0
        %2753 = vmatprep.mubr.f32.mxu0 0.0
        %v2754 = vand.u32 %v902, 4294901760
        %v2755 = vsub.f32 %v902, %v2754
        %2756 = vmatmul.mubr.f32.gmra.mxu0 %v2755
        %v2757 = vpop.f32.mrf.mxu0
        %v2758 = vadd.f32 %v2578, %v2757
        %v2759 = vpop.f32.mrf.mxu0
        %2760 = vmatprep.mubr.f32.mxu0 0.0
        %v2761 = vand.u32 %v904, 4294901760
        %v2762 = vsub.f32 %v904, %v2761
        %2763 = vmatmul.mubr.f32.gmra.mxu0 %v2762
        %v2764 = vpop.f32.mrf.mxu0
        %v2765 = vadd.f32 %v2584, %v2764
        %v2766 = vpop.f32.mrf.mxu0
        %2767 = vmatprep.mubr.f32.mxu0 0.0
        %v2768 = vand.u32 %v906, 4294901760
        %v2769 = vsub.f32 %v906, %v2768
        %2770 = vmatmul.mubr.f32.gmra.mxu0 %v2769
        %v2771 = vpop.f32.mrf.mxu0
        %v2772 = vadd.f32 %v2590, %v2771
        %v2773 = vpop.f32.mrf.mxu0
        %2774 = vmatprep.mubr.f32.mxu0 0.0
        %v2775 = vand.u32 %v908, 4294901760
        %v2776 = vsub.f32 %v908, %v2775
        %2777 = vmatmul.mubr.f32.gmra.mxu0 %v2776
        %v2778 = vpop.f32.mrf.mxu0
        %v2779 = vadd.f32 %v2596, %v2778
        %v2780 = vpop.f32.mrf.mxu0
        %2781 = vmatprep.mubr.f32.mxu0 0.0
        %v2782 = vand.u32 %v910, 4294901760
        %v2783 = vsub.f32 %v910, %v2782
        %2784 = vmatmul.mubr.f32.gmra.mxu0 %v2783
        %v2785 = vpop.f32.mrf.mxu0
        %v2786 = vadd.f32 %v2602, %v2785
        %v2787 = vpop.f32.mrf.mxu0
        %2788 = vmatprep.mubr.f32.mxu0 0.0
        %v2789 = vand.u32 %v912, 4294901760
        %v2790 = vsub.f32 %v912, %v2789
        %2791 = vmatmul.mubr.f32.gmra.mxu0 %v2790
        %v2792 = vpop.f32.mrf.mxu0
        %v2793 = vadd.f32 %v2608, %v2792
        %v2794 = vpop.f32.mrf.mxu0
        %2795 = vmatprep.mubr.f32.mxu0 0.0
        %v2796 = vand.u32 %v914, 4294901760
        %v2797 = vsub.f32 %v914, %v2796
        %2798 = vmatmul.mubr.f32.gmra.mxu0 %v2797
        %v2799 = vpop.f32.mrf.mxu0
        %v2800 = vadd.f32 %v2614, %v2799
        %v2801 = vpop.f32.mrf.mxu0
        %2802 = vmatprep.mubr.f32.mxu0 0.0
        %v2803 = vand.u32 %v916, 4294901760
        %v2804 = vsub.f32 %v916, %v2803
        %2805 = vmatmul.mubr.f32.gmra.mxu0 %v2804
        %v2806 = vpop.f32.mrf.mxu0
        %v2807 = vadd.f32 %v2620, %v2806
        %v2808 = vpop.f32.mrf.mxu0
        %2809 = vmatprep.mubr.f32.mxu0 0.0
        %v2810 = vand.u32 %v918, 4294901760
        %v2811 = vsub.f32 %v918, %v2810
        %2812 = vmatmul.mubr.f32.gmra.mxu0 %v2811
        %v2813 = vpop.f32.mrf.mxu0
        %v2814 = vadd.f32 %v2626, %v2813
        %v2815 = vpop.f32.mrf.mxu0
        %2816 = vmatprep.mubr.f32.mxu0 0.0
        %v2817 = vand.u32 %v920, 4294901760
        %v2818 = vsub.f32 %v920, %v2817
        %2819 = vmatmul.mubr.f32.gmra.mxu0 %v2818
        %v2820 = vpop.f32.mrf.mxu0
        %v2821 = vadd.f32 %v2632, %v2820
        %v2822 = vpop.f32.mrf.mxu0
        %2823 = vmatprep.mubr.f32.mxu0 0.0
        %v2824 = vand.u32 %v922, 4294901760
        %v2825 = vsub.f32 %v922, %v2824
        %2826 = vmatmul.mubr.f32.gmra.mxu0 %v2825
        %v2827 = vpop.f32.mrf.mxu0
        %v2828 = vadd.f32 %v2638, %v2827
        %v2829 = vpop.f32.mrf.mxu0
        %2830 = vmatprep.mubr.f32.mxu0 0.0
        %v2831 = vand.u32 %v924, 4294901760
        %v2832 = vsub.f32 %v924, %v2831
        %2833 = vmatmul.mubr.f32.gmra.mxu0 %v2832
        %v2834 = vpop.f32.mrf.mxu0
        %v2835 = vadd.f32 %v2644, %v2834
        %v2836 = vpop.f32.mrf.mxu0
        %2837 = vmatprep.mubr.f32.mxu0 0.0
        %v2838 = vand.u32 %v926, 4294901760
        %v2839 = vsub.f32 %v926, %v2838
        %2840 = vmatmul.mubr.f32.gmra.mxu0 %v2839
        %v2841 = vpop.f32.mrf.mxu0
        %v2842 = vadd.f32 %v2650, %v2841
        %v2843 = vpop.f32.mrf.mxu0
        %2844 = vmatprep.mubr.f32.mxu0 0.0
        %v2845 = vand.u32 %v928, 4294901760
        %v2846 = vsub.f32 %v928, %v2845
        %2847 = vmatmul.mubr.f32.gmra.mxu0 %v2846
        %v2848 = vpop.f32.mrf.mxu0
        %v2849 = vadd.f32 %v2656, %v2848
        %v2850 = vpop.f32.mrf.mxu0
        %2851 = vdwg.mxu0
        %2852 = vmatprep.subr.mxu0 0.0
        %2853 = vmatpush1.msra.mxu0 0.0
        %2854 = vmatprep.subr.mxu0 0.0
        %2855 = vmatpush1.msra.mxu0 0.0
        %2856 = vmatprep.subr.mxu0 0.0
        %2857 = vmatpush1.msra.mxu0 0.0
        %2858 = vmatprep.subr.mxu0 0.0
        %2859 = vmatpush1.msra.mxu0 0.0
        %2860 = vmatprep.subr.mxu0 0.0
        %2861 = vmatpush1.msra.mxu0 0.0
        %2862 = vmatprep.subr.mxu0 0.0
        %2863 = vmatpush1.msra.mxu0 0.0
        %2864 = vmatprep.subr.mxu0 0.0
        %2865 = vmatpush1.msra.mxu0 0.0
        %2866 = vmatprep.subr.mxu0 0.0
        %2867 = vmatpush1.msra.mxu0 0.0
        %2868 = vmatprep.subr.mxu0 0.0
        %2869 = vmatpush1.msra.mxu0 0.0
        %2870 = vmatprep.subr.mxu0 0.0
        %2871 = vmatpush1.msra.mxu0 0.0
        %2872 = vmatprep.subr.mxu0 0.0
        %2873 = vmatpush1.msra.mxu0 0.0
        %2874 = vmatprep.subr.mxu0 0.0
        %2875 = vmatpush1.msra.mxu0 0.0
        %2876 = vmatprep.subr.mxu0 0.0
        %2877 = vmatpush1.msra.mxu0 0.0
        %2878 = vmatprep.subr.mxu0 0.0
        %2879 = vmatpush1.msra.mxu0 0.0
        %2880 = vmatprep.subr.mxu0 0.0
        %2881 = vmatpush1.msra.mxu0 0.0
        %2882 = vmatprep.subr.mxu0 0.0
        %v2883 = vand.u32 %v935, 4294901760
        %2884 = vmatpush1.msra.mxu0 %v2883
        %2885 = vmatprep.subr.mxu0 0.0
        %2886 = vmatpush2.msra.mxu0 0.0
        %2887 = vmatprep.subr.mxu0 0.0
        %2888 = vmatpush2.msra.mxu0 0.0
        %2889 = vmatprep.subr.mxu0 0.0
        %2890 = vmatpush2.msra.mxu0 0.0
        %2891 = vmatprep.subr.mxu0 0.0
        %2892 = vmatpush2.msra.mxu0 0.0
        %2893 = vmatprep.subr.mxu0 0.0
        %2894 = vmatpush2.msra.mxu0 0.0
        %2895 = vmatprep.subr.mxu0 0.0
        %2896 = vmatpush2.msra.mxu0 0.0
        %2897 = vmatprep.subr.mxu0 0.0
        %2898 = vmatpush2.msra.mxu0 0.0
        %2899 = vmatprep.subr.mxu0 0.0
        %2900 = vmatpush2.msra.mxu0 0.0
        %2901 = vmatprep.subr.mxu0 0.0
        %2902 = vmatpush2.msra.mxu0 0.0
        %2903 = vmatprep.subr.mxu0 0.0
        %2904 = vmatpush2.msra.mxu0 0.0
        %2905 = vmatprep.subr.mxu0 0.0
        %2906 = vmatpush2.msra.mxu0 0.0
        %2907 = vmatprep.subr.mxu0 0.0
        %2908 = vmatpush2.msra.mxu0 0.0
        %2909 = vmatprep.subr.mxu0 0.0
        %2910 = vmatpush2.msra.mxu0 0.0
        %2911 = vmatprep.subr.mxu0 0.0
        %2912 = vmatpush2.msra.mxu0 0.0
        %2913 = vmatprep.subr.mxu0 0.0
        %2914 = vmatpush2.msra.mxu0 0.0
        %2915 = vmatprep.subr.mxu0 0.0
        %2916 = vmatpush2.msra.mxu0 0.0
        %2917 = vmatprep.mubr.f32.mxu0 0.0
        %v2918 = vand.u32 %v894, 4294901760
        %v2919 = vsub.f32 %v894, %v2918
        %v2920 = vand.u32 %v2919, 4294901760
        %2921 = vmatmul.mubr.f32.gmra.mxu0 %v2920
        %v2922 = vpop.f32.mrf.mxu0
        %v2923 = vadd.f32 %v2730, %v2922
        %v2924 = vpop.f32.mrf.mxu0
        %2925 = vmatprep.mubr.f32.mxu0 0.0
        %v2926 = vand.u32 %v896, 4294901760
        %v2927 = vsub.f32 %v896, %v2926
        %v2928 = vand.u32 %v2927, 4294901760
        %2929 = vmatmul.mubr.f32.gmra.mxu0 %v2928
        %v2930 = vpop.f32.mrf.mxu0
        %v2931 = vadd.f32 %v2737, %v2930
        %v2932 = vpop.f32.mrf.mxu0
        %2933 = vmatprep.mubr.f32.mxu0 0.0
        %v2934 = vand.u32 %v898, 4294901760
        %v2935 = vsub.f32 %v898, %v2934
        %v2936 = vand.u32 %v2935, 4294901760
        %2937 = vmatmul.mubr.f32.gmra.mxu0 %v2936
        %v2938 = vpop.f32.mrf.mxu0
        %v2939 = vadd.f32 %v2744, %v2938
        %v2940 = vpop.f32.mrf.mxu0
        %2941 = vmatprep.mubr.f32.mxu0 0.0
        %v2942 = vand.u32 %v900, 4294901760
        %v2943 = vsub.f32 %v900, %v2942
        %v2944 = vand.u32 %v2943, 4294901760
        %2945 = vmatmul.mubr.f32.gmra.mxu0 %v2944
        %v2946 = vpop.f32.mrf.mxu0
        %v2947 = vadd.f32 %v2751, %v2946
        %v2948 = vpop.f32.mrf.mxu0
        %2949 = vmatprep.mubr.f32.mxu0 0.0
        %v2950 = vand.u32 %v902, 4294901760
        %v2951 = vsub.f32 %v902, %v2950
        %v2952 = vand.u32 %v2951, 4294901760
        %2953 = vmatmul.mubr.f32.gmra.mxu0 %v2952
        %v2954 = vpop.f32.mrf.mxu0
        %v2955 = vadd.f32 %v2758, %v2954
        %v2956 = vpop.f32.mrf.mxu0
        %2957 = vmatprep.mubr.f32.mxu0 0.0
        %v2958 = vand.u32 %v904, 4294901760
        %v2959 = vsub.f32 %v904, %v2958
        %v2960 = vand.u32 %v2959, 4294901760
        %2961 = vmatmul.mubr.f32.gmra.mxu0 %v2960
        %v2962 = vpop.f32.mrf.mxu0
        %v2963 = vadd.f32 %v2765, %v2962
        %v2964 = vpop.f32.mrf.mxu0
        %2965 = vmatprep.mubr.f32.mxu0 0.0
        %v2966 = vand.u32 %v906, 4294901760
        %v2967 = vsub.f32 %v906, %v2966
        %v2968 = vand.u32 %v2967, 4294901760
        %2969 = vmatmul.mubr.f32.gmra.mxu0 %v2968
        %v2970 = vpop.f32.mrf.mxu0
        %v2971 = vadd.f32 %v2772, %v2970
        %v2972 = vpop.f32.mrf.mxu0
        %2973 = vmatprep.mubr.f32.mxu0 0.0
        %v2974 = vand.u32 %v908, 4294901760
        %v2975 = vsub.f32 %v908, %v2974
        %v2976 = vand.u32 %v2975, 4294901760
        %2977 = vmatmul.mubr.f32.gmra.mxu0 %v2976
        %v2978 = vpop.f32.mrf.mxu0
        %v2979 = vadd.f32 %v2779, %v2978
        %v2980 = vpop.f32.mrf.mxu0
        %2981 = vmatprep.mubr.f32.mxu0 0.0
        %v2982 = vand.u32 %v910, 4294901760
        %v2983 = vsub.f32 %v910, %v2982
        %v2984 = vand.u32 %v2983, 4294901760
        %2985 = vmatmul.mubr.f32.gmra.mxu0 %v2984
        %v2986 = vpop.f32.mrf.mxu0
        %v2987 = vadd.f32 %v2786, %v2986
        %v2988 = vpop.f32.mrf.mxu0
        %2989 = vmatprep.mubr.f32.mxu0 0.0
        %v2990 = vand.u32 %v912, 4294901760
        %v2991 = vsub.f32 %v912, %v2990
        %v2992 = vand.u32 %v2991, 4294901760
        %2993 = vmatmul.mubr.f32.gmra.mxu0 %v2992
        %v2994 = vpop.f32.mrf.mxu0
        %v2995 = vadd.f32 %v2793, %v2994
        %v2996 = vpop.f32.mrf.mxu0
        %2997 = vmatprep.mubr.f32.mxu0 0.0
        %v2998 = vand.u32 %v914, 4294901760
        %v2999 = vsub.f32 %v914, %v2998
        %v3000 = vand.u32 %v2999, 4294901760
        %3001 = vmatmul.mubr.f32.gmra.mxu0 %v3000
        %v3002 = vpop.f32.mrf.mxu0
        %v3003 = vadd.f32 %v2800, %v3002
        %v3004 = vpop.f32.mrf.mxu0
        %3005 = vmatprep.mubr.f32.mxu0 0.0
        %v3006 = vand.u32 %v916, 4294901760
        %v3007 = vsub.f32 %v916, %v3006
        %v3008 = vand.u32 %v3007, 4294901760
        %3009 = vmatmul.mubr.f32.gmra.mxu0 %v3008
        %v3010 = vpop.f32.mrf.mxu0
        %v3011 = vadd.f32 %v2807, %v3010
        %v3012 = vpop.f32.mrf.mxu0
        %3013 = vmatprep.mubr.f32.mxu0 0.0
        %v3014 = vand.u32 %v918, 4294901760
        %v3015 = vsub.f32 %v918, %v3014
        %v3016 = vand.u32 %v3015, 4294901760
        %3017 = vmatmul.mubr.f32.gmra.mxu0 %v3016
        %v3018 = vpop.f32.mrf.mxu0
        %v3019 = vadd.f32 %v2814, %v3018
        %v3020 = vpop.f32.mrf.mxu0
        %3021 = vmatprep.mubr.f32.mxu0 0.0
        %v3022 = vand.u32 %v920, 4294901760
        %v3023 = vsub.f32 %v920, %v3022
        %v3024 = vand.u32 %v3023, 4294901760
        %3025 = vmatmul.mubr.f32.gmra.mxu0 %v3024
        %v3026 = vpop.f32.mrf.mxu0
        %v3027 = vadd.f32 %v2821, %v3026
        %v3028 = vpop.f32.mrf.mxu0
        %3029 = vmatprep.mubr.f32.mxu0 0.0
        %v3030 = vand.u32 %v922, 4294901760
        %v3031 = vsub.f32 %v922, %v3030
        %v3032 = vand.u32 %v3031, 4294901760
        %3033 = vmatmul.mubr.f32.gmra.mxu0 %v3032
        %v3034 = vpop.f32.mrf.mxu0
        %v3035 = vadd.f32 %v2828, %v3034
        %v3036 = vpop.f32.mrf.mxu0
        %3037 = vmatprep.mubr.f32.mxu0 0.0
        %v3038 = vand.u32 %v924, 4294901760
        %v3039 = vsub.f32 %v924, %v3038
        %v3040 = vand.u32 %v3039, 4294901760
        %3041 = vmatmul.mubr.f32.gmra.mxu0 %v3040
        %v3042 = vpop.f32.mrf.mxu0
        %v3043 = vadd.f32 %v2835, %v3042
        %v3044 = vpop.f32.mrf.mxu0
        %3045 = vmatprep.mubr.f32.mxu0 0.0
        %v3046 = vand.u32 %v926, 4294901760
        %v3047 = vsub.f32 %v926, %v3046
        %v3048 = vand.u32 %v3047, 4294901760
        %3049 = vmatmul.mubr.f32.gmra.mxu0 %v3048
        %v3050 = vpop.f32.mrf.mxu0
        %v3051 = vadd.f32 %v2842, %v3050
        %v3052 = vpop.f32.mrf.mxu0
        %3053 = vmatprep.mubr.f32.mxu0 0.0
        %v3054 = vand.u32 %v928, 4294901760
        %v3055 = vsub.f32 %v928, %v3054
        %v3056 = vand.u32 %v3055, 4294901760
        %3057 = vmatmul.mubr.f32.gmra.mxu0 %v3056
        %v3058 = vpop.f32.mrf.mxu0
        %v3059 = vadd.f32 %v2849, %v3058
        %v3060 = vpop.f32.mrf.mxu0
        %3061 = vdwg.mxu0
        %3062 = vmatprep.subr.mxu0 0.0
        %3063 = vmatpush1.msra.mxu0 0.0
        %3064 = vmatprep.subr.mxu0 0.0
        %3065 = vmatpush1.msra.mxu0 0.0
        %3066 = vmatprep.subr.mxu0 0.0
        %3067 = vmatpush1.msra.mxu0 0.0
        %3068 = vmatprep.subr.mxu0 0.0
        %3069 = vmatpush1.msra.mxu0 0.0
        %3070 = vmatprep.subr.mxu0 0.0
        %3071 = vmatpush1.msra.mxu0 0.0
        %3072 = vmatprep.subr.mxu0 0.0
        %3073 = vmatpush1.msra.mxu0 0.0
        %3074 = vmatprep.subr.mxu0 0.0
        %3075 = vmatpush1.msra.mxu0 0.0
        %3076 = vmatprep.subr.mxu0 0.0
        %3077 = vmatpush1.msra.mxu0 0.0
        %3078 = vmatprep.subr.mxu0 0.0
        %3079 = vmatpush1.msra.mxu0 0.0
        %3080 = vmatprep.subr.mxu0 0.0
        %3081 = vmatpush1.msra.mxu0 0.0
        %3082 = vmatprep.subr.mxu0 0.0
        %3083 = vmatpush1.msra.mxu0 0.0
        %3084 = vmatprep.subr.mxu0 0.0
        %3085 = vmatpush1.msra.mxu0 0.0
        %3086 = vmatprep.subr.mxu0 0.0
        %3087 = vmatpush1.msra.mxu0 0.0
        %3088 = vmatprep.subr.mxu0 0.0
        %3089 = vmatpush1.msra.mxu0 0.0
        %3090 = vmatprep.subr.mxu0 0.0
        %3091 = vmatpush1.msra.mxu0 0.0
        %3092 = vmatprep.subr.mxu0 0.0
        %v3093 = vand.u32 %v935, 4294901760
        %v3094 = vsub.f32 %v935, %v3093
        %v3095 = vand.u32 %v3094, 4294901760
        %3096 = vmatpush1.msra.mxu0 %v3095
        %3097 = vmatprep.subr.mxu0 0.0
        %3098 = vmatpush2.msra.mxu0 0.0
        %3099 = vmatprep.subr.mxu0 0.0
        %3100 = vmatpush2.msra.mxu0 0.0
        %3101 = vmatprep.subr.mxu0 0.0
        %3102 = vmatpush2.msra.mxu0 0.0
        %3103 = vmatprep.subr.mxu0 0.0
        %3104 = vmatpush2.msra.mxu0 0.0
        %3105 = vmatprep.subr.mxu0 0.0
        %3106 = vmatpush2.msra.mxu0 0.0
        %3107 = vmatprep.subr.mxu0 0.0
        %3108 = vmatpush2.msra.mxu0 0.0
        %3109 = vmatprep.subr.mxu0 0.0
        %3110 = vmatpush2.msra.mxu0 0.0
        %3111 = vmatprep.subr.mxu0 0.0
        %3112 = vmatpush2.msra.mxu0 0.0
        %3113 = vmatprep.subr.mxu0 0.0
        %3114 = vmatpush2.msra.mxu0 0.0
        %3115 = vmatprep.subr.mxu0 0.0
        %3116 = vmatpush2.msra.mxu0 0.0
        %3117 = vmatprep.subr.mxu0 0.0
        %3118 = vmatpush2.msra.mxu0 0.0
        %3119 = vmatprep.subr.mxu0 0.0
        %3120 = vmatpush2.msra.mxu0 0.0
        %3121 = vmatprep.subr.mxu0 0.0
        %3122 = vmatpush2.msra.mxu0 0.0
        %3123 = vmatprep.subr.mxu0 0.0
        %3124 = vmatpush2.msra.mxu0 0.0
        %3125 = vmatprep.subr.mxu0 0.0
        %3126 = vmatpush2.msra.mxu0 0.0
        %3127 = vmatprep.subr.mxu0 0.0
        %3128 = vmatpush2.msra.mxu0 0.0
        %3129 = vmatprep.mubr.f32.mxu0 0.0
        %v3130 = vand.u32 %v894, 4294901760
        %3131 = vmatmul.mubr.f32.gmra.mxu0 %v3130
        %v3132 = vpop.f32.mrf.mxu0
        %v3133 = vadd.f32 %v2923, %v3132
        %v3134 = vpop.f32.mrf.mxu0
        %3135 = vmatprep.mubr.f32.mxu0 0.0
        %v3136 = vand.u32 %v896, 4294901760
        %3137 = vmatmul.mubr.f32.gmra.mxu0 %v3136
        %v3138 = vpop.f32.mrf.mxu0
        %v3139 = vadd.f32 %v2931, %v3138
        %v3140 = vpop.f32.mrf.mxu0
        %3141 = vmatprep.mubr.f32.mxu0 0.0
        %v3142 = vand.u32 %v898, 4294901760
        %3143 = vmatmul.mubr.f32.gmra.mxu0 %v3142
        %v3144 = vpop.f32.mrf.mxu0
        %v3145 = vadd.f32 %v2939, %v3144
        %v3146 = vpop.f32.mrf.mxu0
        %3147 = vmatprep.mubr.f32.mxu0 0.0
        %v3148 = vand.u32 %v900, 4294901760
        %3149 = vmatmul.mubr.f32.gmra.mxu0 %v3148
        %v3150 = vpop.f32.mrf.mxu0
        %v3151 = vadd.f32 %v2947, %v3150
        %v3152 = vpop.f32.mrf.mxu0
        %3153 = vmatprep.mubr.f32.mxu0 0.0
        %v3154 = vand.u32 %v902, 4294901760
        %3155 = vmatmul.mubr.f32.gmra.mxu0 %v3154
        %v3156 = vpop.f32.mrf.mxu0
        %v3157 = vadd.f32 %v2955, %v3156
        %v3158 = vpop.f32.mrf.mxu0
        %3159 = vmatprep.mubr.f32.mxu0 0.0
        %v3160 = vand.u32 %v904, 4294901760
        %3161 = vmatmul.mubr.f32.gmra.mxu0 %v3160
        %v3162 = vpop.f32.mrf.mxu0
        %v3163 = vadd.f32 %v2963, %v3162
        %v3164 = vpop.f32.mrf.mxu0
        %3165 = vmatprep.mubr.f32.mxu0 0.0
        %v3166 = vand.u32 %v906, 4294901760
        %3167 = vmatmul.mubr.f32.gmra.mxu0 %v3166
        %v3168 = vpop.f32.mrf.mxu0
        %v3169 = vadd.f32 %v2971, %v3168
        %v3170 = vpop.f32.mrf.mxu0
        %3171 = vmatprep.mubr.f32.mxu0 0.0
        %v3172 = vand.u32 %v908, 4294901760
        %3173 = vmatmul.mubr.f32.gmra.mxu0 %v3172
        %v3174 = vpop.f32.mrf.mxu0
        %v3175 = vadd.f32 %v2979, %v3174
        %v3176 = vpop.f32.mrf.mxu0
        %3177 = vmatprep.mubr.f32.mxu0 0.0
        %v3178 = vand.u32 %v910, 4294901760
        %3179 = vmatmul.mubr.f32.gmra.mxu0 %v3178
        %v3180 = vpop.f32.mrf.mxu0
        %v3181 = vadd.f32 %v2987, %v3180
        %v3182 = vpop.f32.mrf.mxu0
        %3183 = vmatprep.mubr.f32.mxu0 0.0
        %v3184 = vand.u32 %v912, 4294901760
        %3185 = vmatmul.mubr.f32.gmra.mxu0 %v3184
        %v3186 = vpop.f32.mrf.mxu0
        %v3187 = vadd.f32 %v2995, %v3186
        %v3188 = vpop.f32.mrf.mxu0
        %3189 = vmatprep.mubr.f32.mxu0 0.0
        %v3190 = vand.u32 %v914, 4294901760
        %3191 = vmatmul.mubr.f32.gmra.mxu0 %v3190
        %v3192 = vpop.f32.mrf.mxu0
        %v3193 = vadd.f32 %v3003, %v3192
        %v3194 = vpop.f32.mrf.mxu0
        %3195 = vmatprep.mubr.f32.mxu0 0.0
        %v3196 = vand.u32 %v916, 4294901760
        %3197 = vmatmul.mubr.f32.gmra.mxu0 %v3196
        %v3198 = vpop.f32.mrf.mxu0
        %v3199 = vadd.f32 %v3011, %v3198
        %v3200 = vpop.f32.mrf.mxu0
        %3201 = vmatprep.mubr.f32.mxu0 0.0
        %v3202 = vand.u32 %v918, 4294901760
        %3203 = vmatmul.mubr.f32.gmra.mxu0 %v3202
        %v3204 = vpop.f32.mrf.mxu0
        %v3205 = vadd.f32 %v3019, %v3204
        %v3206 = vpop.f32.mrf.mxu0
        %3207 = vmatprep.mubr.f32.mxu0 0.0
        %v3208 = vand.u32 %v920, 4294901760
        %3209 = vmatmul.mubr.f32.gmra.mxu0 %v3208
        %v3210 = vpop.f32.mrf.mxu0
        %v3211 = vadd.f32 %v3027, %v3210
        %v3212 = vpop.f32.mrf.mxu0
        %3213 = vmatprep.mubr.f32.mxu0 0.0
        %v3214 = vand.u32 %v922, 4294901760
        %3215 = vmatmul.mubr.f32.gmra.mxu0 %v3214
        %v3216 = vpop.f32.mrf.mxu0
        %v3217 = vadd.f32 %v3035, %v3216
        %v3218 = vpop.f32.mrf.mxu0
        %3219 = vmatprep.mubr.f32.mxu0 0.0
        %v3220 = vand.u32 %v924, 4294901760
        %3221 = vmatmul.mubr.f32.gmra.mxu0 %v3220
        %v3222 = vpop.f32.mrf.mxu0
        %v3223 = vadd.f32 %v3043, %v3222
        %v3224 = vpop.f32.mrf.mxu0
        %3225 = vmatprep.mubr.f32.mxu0 0.0
        %v3226 = vand.u32 %v926, 4294901760
        %3227 = vmatmul.mubr.f32.gmra.mxu0 %v3226
        %v3228 = vpop.f32.mrf.mxu0
        %v3229 = vadd.f32 %v3051, %v3228
        %v3230 = vpop.f32.mrf.mxu0
        %3231 = vmatprep.mubr.f32.mxu0 0.0
        %v3232 = vand.u32 %v928, 4294901760
        %3233 = vmatmul.mubr.f32.gmra.mxu0 %v3232
        %v3234 = vpop.f32.mrf.mxu0
        %v3235 = vadd.f32 %v3059, %v3234
        %v3236 = vpop.f32.mrf.mxu0
        %3237 = vdwg.mxu0
        %3238 = vmatprep.subr.mxu0 0.0
        %3239 = vmatpush1.msra.mxu0 0.0
        %3240 = vmatprep.subr.mxu0 0.0
        %3241 = vmatpush1.msra.mxu0 0.0
        %3242 = vmatprep.subr.mxu0 0.0
        %3243 = vmatpush1.msra.mxu0 0.0
        %3244 = vmatprep.subr.mxu0 0.0
        %3245 = vmatpush1.msra.mxu0 0.0
        %3246 = vmatprep.subr.mxu0 0.0
        %3247 = vmatpush1.msra.mxu0 0.0
        %3248 = vmatprep.subr.mxu0 0.0
        %3249 = vmatpush1.msra.mxu0 0.0
        %3250 = vmatprep.subr.mxu0 0.0
        %3251 = vmatpush1.msra.mxu0 0.0
        %3252 = vmatprep.subr.mxu0 0.0
        %3253 = vmatpush1.msra.mxu0 0.0
        %3254 = vmatprep.subr.mxu0 0.0
        %3255 = vmatpush1.msra.mxu0 0.0
        %3256 = vmatprep.subr.mxu0 0.0
        %3257 = vmatpush1.msra.mxu0 0.0
        %3258 = vmatprep.subr.mxu0 0.0
        %3259 = vmatpush1.msra.mxu0 0.0
        %3260 = vmatprep.subr.mxu0 0.0
        %3261 = vmatpush1.msra.mxu0 0.0
        %3262 = vmatprep.subr.mxu0 0.0
        %3263 = vmatpush1.msra.mxu0 0.0
        %3264 = vmatprep.subr.mxu0 0.0
        %3265 = vmatpush1.msra.mxu0 0.0
        %3266 = vmatprep.subr.mxu0 0.0
        %3267 = vmatpush1.msra.mxu0 0.0
        %3268 = vmatprep.subr.mxu0 0.0
        %v3269 = vand.u32 %v935, 4294901760
        %3270 = vmatpush1.msra.mxu0 %v3269
        %3271 = vmatprep.subr.mxu0 0.0
        %3272 = vmatpush2.msra.mxu0 0.0
        %3273 = vmatprep.subr.mxu0 0.0
        %3274 = vmatpush2.msra.mxu0 0.0
        %3275 = vmatprep.subr.mxu0 0.0
        %3276 = vmatpush2.msra.mxu0 0.0
        %3277 = vmatprep.subr.mxu0 0.0
        %3278 = vmatpush2.msra.mxu0 0.0
        %3279 = vmatprep.subr.mxu0 0.0
        %3280 = vmatpush2.msra.mxu0 0.0
        %3281 = vmatprep.subr.mxu0 0.0
        %3282 = vmatpush2.msra.mxu0 0.0
        %3283 = vmatprep.subr.mxu0 0.0
        %3284 = vmatpush2.msra.mxu0 0.0
        %3285 = vmatprep.subr.mxu0 0.0
        %3286 = vmatpush2.msra.mxu0 0.0
        %3287 = vmatprep.subr.mxu0 0.0
        %3288 = vmatpush2.msra.mxu0 0.0
        %3289 = vmatprep.subr.mxu0 0.0
        %3290 = vmatpush2.msra.mxu0 0.0
        %3291 = vmatprep.subr.mxu0 0.0
        %3292 = vmatpush2.msra.mxu0 0.0
        %3293 = vmatprep.subr.mxu0 0.0
        %3294 = vmatpush2.msra.mxu0 0.0
        %3295 = vmatprep.subr.mxu0 0.0
        %3296 = vmatpush2.msra.mxu0 0.0
        %3297 = vmatprep.subr.mxu0 0.0
        %3298 = vmatpush2.msra.mxu0 0.0
        %3299 = vmatprep.subr.mxu0 0.0
        %3300 = vmatpush2.msra.mxu0 0.0
        %3301 = vmatprep.subr.mxu0 0.0
        %3302 = vmatpush2.msra.mxu0 0.0
        %3303 = vmatprep.mubr.f32.mxu0 0.0
        %v3304 = vand.u32 %v894, 4294901760
        %3305 = vmatmul.mubr.f32.gmra.mxu0 %v3304
        %v3306 = vpop.f32.mrf.mxu0
        %v3307 = vadd.f32 %v3133, %v3306
        %v3308 = vpop.f32.mrf.mxu0
        %3309 = vmatprep.mubr.f32.mxu0 0.0
        %v3310 = vand.u32 %v896, 4294901760
        %3311 = vmatmul.mubr.f32.gmra.mxu0 %v3310
        %v3312 = vpop.f32.mrf.mxu0
        %v3313 = vadd.f32 %v3139, %v3312
        %v3314 = vpop.f32.mrf.mxu0
        %3315 = vmatprep.mubr.f32.mxu0 0.0
        %v3316 = vand.u32 %v898, 4294901760
        %3317 = vmatmul.mubr.f32.gmra.mxu0 %v3316
        %v3318 = vpop.f32.mrf.mxu0
        %v3319 = vadd.f32 %v3145, %v3318
        %v3320 = vpop.f32.mrf.mxu0
        %3321 = vmatprep.mubr.f32.mxu0 0.0
        %v3322 = vand.u32 %v900, 4294901760
        %3323 = vmatmul.mubr.f32.gmra.mxu0 %v3322
        %v3324 = vpop.f32.mrf.mxu0
        %v3325 = vadd.f32 %v3151, %v3324
        %v3326 = vpop.f32.mrf.mxu0
        %3327 = vmatprep.mubr.f32.mxu0 0.0
        %v3328 = vand.u32 %v902, 4294901760
        %3329 = vmatmul.mubr.f32.gmra.mxu0 %v3328
        %v3330 = vpop.f32.mrf.mxu0
        %v3331 = vadd.f32 %v3157, %v3330
        %v3332 = vpop.f32.mrf.mxu0
        %3333 = vmatprep.mubr.f32.mxu0 0.0
        %v3334 = vand.u32 %v904, 4294901760
        %3335 = vmatmul.mubr.f32.gmra.mxu0 %v3334
        %v3336 = vpop.f32.mrf.mxu0
        %v3337 = vadd.f32 %v3163, %v3336
        %v3338 = vpop.f32.mrf.mxu0
        %3339 = vmatprep.mubr.f32.mxu0 0.0
        %v3340 = vand.u32 %v906, 4294901760
        %3341 = vmatmul.mubr.f32.gmra.mxu0 %v3340
        %v3342 = vpop.f32.mrf.mxu0
        %v3343 = vadd.f32 %v3169, %v3342
        %v3344 = vpop.f32.mrf.mxu0
        %3345 = vmatprep.mubr.f32.mxu0 0.0
        %v3346 = vand.u32 %v908, 4294901760
        %3347 = vmatmul.mubr.f32.gmra.mxu0 %v3346
        %v3348 = vpop.f32.mrf.mxu0
        %v3349 = vadd.f32 %v3175, %v3348
        %v3350 = vpop.f32.mrf.mxu0
        %3351 = vmatprep.mubr.f32.mxu0 0.0
        %v3352 = vand.u32 %v910, 4294901760
        %3353 = vmatmul.mubr.f32.gmra.mxu0 %v3352
        %v3354 = vpop.f32.mrf.mxu0
        %v3355 = vadd.f32 %v3181, %v3354
        %v3356 = vpop.f32.mrf.mxu0
        %3357 = vmatprep.mubr.f32.mxu0 0.0
        %v3358 = vand.u32 %v912, 4294901760
        %3359 = vmatmul.mubr.f32.gmra.mxu0 %v3358
        %v3360 = vpop.f32.mrf.mxu0
        %v3361 = vadd.f32 %v3187, %v3360
        %v3362 = vpop.f32.mrf.mxu0
        %3363 = vmatprep.mubr.f32.mxu0 0.0
        %v3364 = vand.u32 %v914, 4294901760
        %3365 = vmatmul.mubr.f32.gmra.mxu0 %v3364
        %v3366 = vpop.f32.mrf.mxu0
        %v3367 = vadd.f32 %v3193, %v3366
        %v3368 = vpop.f32.mrf.mxu0
        %3369 = vmatprep.mubr.f32.mxu0 0.0
        %v3370 = vand.u32 %v916, 4294901760
        %3371 = vmatmul.mubr.f32.gmra.mxu0 %v3370
        %v3372 = vpop.f32.mrf.mxu0
        %v3373 = vadd.f32 %v3199, %v3372
        %v3374 = vpop.f32.mrf.mxu0
        %3375 = vmatprep.mubr.f32.mxu0 0.0
        %v3376 = vand.u32 %v918, 4294901760
        %3377 = vmatmul.mubr.f32.gmra.mxu0 %v3376
        %v3378 = vpop.f32.mrf.mxu0
        %v3379 = vadd.f32 %v3205, %v3378
        %v3380 = vpop.f32.mrf.mxu0
        %3381 = vmatprep.mubr.f32.mxu0 0.0
        %v3382 = vand.u32 %v920, 4294901760
        %3383 = vmatmul.mubr.f32.gmra.mxu0 %v3382
        %v3384 = vpop.f32.mrf.mxu0
        %v3385 = vadd.f32 %v3211, %v3384
        %v3386 = vpop.f32.mrf.mxu0
        %3387 = vmatprep.mubr.f32.mxu0 0.0
        %v3388 = vand.u32 %v922, 4294901760
        %3389 = vmatmul.mubr.f32.gmra.mxu0 %v3388
        %v3390 = vpop.f32.mrf.mxu0
        %v3391 = vadd.f32 %v3217, %v3390
        %v3392 = vpop.f32.mrf.mxu0
        %3393 = vmatprep.mubr.f32.mxu0 0.0
        %v3394 = vand.u32 %v924, 4294901760
        %3395 = vmatmul.mubr.f32.gmra.mxu0 %v3394
        %v3396 = vpop.f32.mrf.mxu0
        %v3397 = vadd.f32 %v3223, %v3396
        %v3398 = vpop.f32.mrf.mxu0
        %3399 = vmatprep.mubr.f32.mxu0 0.0
        %v3400 = vand.u32 %v926, 4294901760
        %3401 = vmatmul.mubr.f32.gmra.mxu0 %v3400
        %v3402 = vpop.f32.mrf.mxu0
        %v3403 = vadd.f32 %v3229, %v3402
        %v3404 = vpop.f32.mrf.mxu0
        %3405 = vmatprep.mubr.f32.mxu0 0.0
        %v3406 = vand.u32 %v928, 4294901760
        %3407 = vmatmul.mubr.f32.gmra.mxu0 %v3406
        %v3408 = vpop.f32.mrf.mxu0
        %v3409 = vadd.f32 %v3235, %v3408
        %v3410 = vpop.f32.mrf.mxu0
        %3411 = vdwg.mxu0
        %3412 = vst [vmem:[#allocation2] sm:$0xff] %v2112
        %3413 = vst [vmem:[#allocation2 + $0x8] sm:$0xff] %v2114
        %3414 = vst [vmem:[#allocation2 + $0x10] sm:$0xff] %v3307
        %3415 = vst [vmem:[#allocation2 + $0x18] sm:$0xff] %v2119
        %3416 = vst [vmem:[#allocation2 + $0x20] sm:$0xff] %v2121
        %3417 = vst [vmem:[#allocation2 + $0x28] sm:$0xff] %v3313
        %3418 = vst [vmem:[#allocation2 + $0x30] sm:$0xff] %v2126
        %3419 = vst [vmem:[#allocation2 + $0x38] sm:$0xff] %v2128
        %3420 = vst [vmem:[#allocation2 + $0x40] sm:$0xff] %v3319
        %3421 = vst [vmem:[#allocation2 + $0x48] sm:$0xff] %v2133
        %3422 = vst [vmem:[#allocation2 + $0x50] sm:$0xff] %v2135
        %3423 = vst [vmem:[#allocation2 + $0x58] sm:$0xff] %v3325
        %3424 = vst [vmem:[#allocation2 + $0x60] sm:$0xff] %v2140
        %3425 = vst [vmem:[#allocation2 + $0x68] sm:$0xff] %v2142
        %3426 = vst [vmem:[#allocation2 + $0x70] sm:$0xff] %v3331
        %3427 = vst [vmem:[#allocation2 + $0x78] sm:$0xff] %v2147
        %3428 = vst [vmem:[#allocation2 + $0x80] sm:$0xff] %v2149
        %3429 = vst [vmem:[#allocation2 + $0x88] sm:$0xff] %v3337
        %3430 = vst [vmem:[#allocation2 + $0x90] sm:$0xff] %v2154
        %3431 = vst [vmem:[#allocation2 + $0x98] sm:$0xff] %v2156
        %3432 = vst [vmem:[#allocation2 + $0xa0] sm:$0xff] %v3343
        %3433 = vst [vmem:[#allocation2 + $0xa8] sm:$0xff] %v2161
        %3434 = vst [vmem:[#allocation2 + $0xb0] sm:$0xff] %v2163
        %3435 = vst [vmem:[#allocation2 + $0xb8] sm:$0xff] %v3349
        %3436 = vst [vmem:[#allocation2 + $0xc0] sm:$0xff] %v2168
        %3437 = vst [vmem:[#allocation2 + $0xc8] sm:$0xff] %v2170
        %3438 = vst [vmem:[#allocation2 + $0xd0] sm:$0xff] %v3355
        %3439 = vst [vmem:[#allocation2 + $0xd8] sm:$0xff] %v2175
        %3440 = vst [vmem:[#allocation2 + $0xe0] sm:$0xff] %v2177
        %3441 = vst [vmem:[#allocation2 + $0xe8] sm:$0xff] %v3361
        %3442 = vst [vmem:[#allocation2 + $0xf0] sm:$0xff] %v2182
        %3443 = vst [vmem:[#allocation2 + $0xf8] sm:$0xff] %v2184
        %3444 = vst [vmem:[#allocation2 + $0x100] sm:$0xff] %v3367
        %3445 = vst [vmem:[#allocation2 + $0x108] sm:$0xff] %v2189
        %3446 = vst [vmem:[#allocation2 + $0x110] sm:$0xff] %v2191
        %3447 = vst [vmem:[#allocation2 + $0x118] sm:$0xff] %v3373
        %3448 = vst [vmem:[#allocation2 + $0x120] sm:$0xff] %v2196
        %3449 = vst [vmem:[#allocation2 + $0x128] sm:$0xff] %v2198
        %3450 = vst [vmem:[#allocation2 + $0x130] sm:$0xff] %v3379
        %3451 = vst [vmem:[#allocation2 + $0x138] sm:$0xff] %v2203
        %3452 = vst [vmem:[#allocation2 + $0x140] sm:$0xff] %v2205
        %3453 = vst [vmem:[#allocation2 + $0x148] sm:$0xff] %v3385
        %3454 = vst [vmem:[#allocation2 + $0x150] sm:$0xff] %v2210
        %3455 = vst [vmem:[#allocation2 + $0x158] sm:$0xff] %v2212
        %3456 = vst [vmem:[#allocation2 + $0x160] sm:$0xff] %v3391
        %3457 = vst [vmem:[#allocation2 + $0x168] sm:$0xff] %v2217
        %3458 = vst [vmem:[#allocation2 + $0x170] sm:$0xff] %v2219
        %3459 = vst [vmem:[#allocation2 + $0x178] sm:$0xff] %v3397
        %3460 = vst [vmem:[#allocation2 + $0x180] sm:$0xff] %v2224
        %3461 = vst [vmem:[#allocation2 + $0x188] sm:$0xff] %v2226
        %3462 = vst [vmem:[#allocation2 + $0x190] sm:$0xff] %v3403
        %3463 = vst [vmem:[#allocation2 + $0x198] sm:$0xff] %v2231
        %3464 = vst [vmem:[#allocation2 + $0x1a0] sm:$0xff] %v2233
        %3465 = vst [vmem:[#allocation2 + $0x1a8] sm:$0xff] %v3409
        %v3469 = vcombine.high %v224, %v224
        %v3471 = vunpack.c.l.s4 1983009808
        %v3472 = vunpack.c.0.s8 %v3471
        %v3473 = vlaneseq
        %v3474 = vshrl.u32 %v3473, 7
        %v3475 = vsub.s32 %v3472, %v3474
        %v3476 = vrot.slane %v224, %v3475
        %v3478 = vunpack.c.l.s4 1983009808
        %v3479 = vunpack.c.0.s8 %v3478
        %v3480 = vlaneseq
        %v3481 = vshrl.u32 %v3480, 7
        %v3482 = vsub.s32 %v3479, %v3481
        %v3483 = vrot.slane %v3469, %v3482
        %v3484 = vcombine.high %v3476, %v3476
        %v3485 = vcombine.high %v3483, %v3483
        %v3486 = vcombine.high %v225, %v225
        %v3488 = vunpack.c.l.s4 1983009808
        %v3489 = vunpack.c.0.s8 %v3488
        %v3490 = vlaneseq
        %v3491 = vshrl.u32 %v3490, 7
        %v3492 = vsub.s32 %v3489, %v3491
        %v3493 = vrot.slane %v225, %v3492
        %v3495 = vunpack.c.l.s4 1983009808
        %v3496 = vunpack.c.0.s8 %v3495
        %v3497 = vlaneseq
        %v3498 = vshrl.u32 %v3497, 7
        %v3499 = vsub.s32 %v3496, %v3498
        %v3500 = vrot.slane %v3486, %v3499
        %v3501 = vcombine.high %v3493, %v3493
        %v3502 = vcombine.high %v3500, %v3500
        %v3504 = vunpack.c.l.s4 1983009808
        %v3505 = vunpack.c.0.s8 %v3504
        %v3506 = vlaneseq
        %v3507 = vshrl.u32 %v3506, 7
        %v3508 = vsub.s32 %v3505, %v3507
        %v3509 = vrot.slane %v226, %v3508
        %s3510 = scalar_lea.vmem %s1, 12
        %v3511 = vld [vmem:[%s3510] sm:$0xff]
        %v3512 = vld [vmem:[%s3510 + $0x8] sm:$0xf]
        %v3513 = vcombine.low %v302, %v310
        %v3514 = vcombine.low %v309, %v311
        %v3516 = vunpack.c.l.s4 1983009808
        %v3517 = vunpack.c.0.s8 %v3516
        %v3518 = vlaneseq
        %v3519 = vshrl.u32 %v3518, 7
        %v3520 = vsub.s32 %v3517, %v3519
        %v3521 = vrot.slane %v3513, %v3520
        %v3523 = vunpack.c.l.s4 1983009808
        %v3524 = vunpack.c.0.s8 %v3523
        %v3525 = vlaneseq
        %v3526 = vshrl.u32 %v3525, 7
        %v3527 = vsub.s32 %v3524, %v3526
        %v3528 = vrot.slane %v3514, %v3527
        %v3529 = vcombine.low %v3521, %v3528
        %v3530 = vcombine.low %v319, %v327
        %v3531 = vcombine.low %v326, %v328
        %v3533 = vunpack.c.l.s4 1983009808
        %v3534 = vunpack.c.0.s8 %v3533
        %v3535 = vlaneseq
        %v3536 = vshrl.u32 %v3535, 7
        %v3537 = vsub.s32 %v3534, %v3536
        %v3538 = vrot.slane %v3530, %v3537
        %v3540 = vunpack.c.l.s4 1983009808
        %v3541 = vunpack.c.0.s8 %v3540
        %v3542 = vlaneseq
        %v3543 = vshrl.u32 %v3542, 7
        %v3544 = vsub.s32 %v3541, %v3543
        %v3545 = vrot.slane %v3531, %v3544
        %v3546 = vcombine.low %v3538, %v3545
        %v3547 = vcombine.low %v335, %v343
        %v3548 = vcombine.low %v351, %v350
        %v3550 = vunpack.c.l.s4 1983009808
        %v3551 = vunpack.c.0.s8 %v3550
        %v3552 = vlaneseq
        %v3553 = vshrl.u32 %v3552, 7
        %v3554 = vsub.s32 %v3551, %v3553
        %v3555 = vrot.slane %v3547, %v3554
        %v3557 = vunpack.c.l.s4 1983009808
        %v3558 = vunpack.c.0.s8 %v3557
        %v3559 = vlaneseq
        %v3560 = vshrl.u32 %v3559, 7
        %v3561 = vsub.s32 %v3558, %v3560
        %v3562 = vrot.slane %v3548, %v3561
        %v3563 = vcombine.low %v3555, %v3562
        %v3564 = vcombine.low %v352, %v360
        %v3565 = vcombine.low %v368, %v367
        %v3567 = vunpack.c.l.s4 1983009808
        %v3568 = vunpack.c.0.s8 %v3567
        %v3569 = vlaneseq
        %v3570 = vshrl.u32 %v3569, 7
        %v3571 = vsub.s32 %v3568, %v3570
        %v3572 = vrot.slane %v3564, %v3571
        %v3574 = vunpack.c.l.s4 1983009808
        %v3575 = vunpack.c.0.s8 %v3574
        %v3576 = vlaneseq
        %v3577 = vshrl.u32 %v3576, 7
        %v3578 = vsub.s32 %v3575, %v3577
        %v3579 = vrot.slane %v3565, %v3578
        %v3580 = vcombine.low %v3572, %v3579
        %v3581 = vcombine.low %v369, %v376
        %v3582 = vcombine.low %v384, %v392
        %v3584 = vunpack.c.l.s4 1983009808
        %v3585 = vunpack.c.0.s8 %v3584
        %v3586 = vlaneseq
        %v3587 = vshrl.u32 %v3586, 7
        %v3588 = vsub.s32 %v3585, %v3587
        %v3589 = vrot.slane %v3581, %v3588
        %v3591 = vunpack.c.l.s4 1983009808
        %v3592 = vunpack.c.0.s8 %v3591
        %v3593 = vlaneseq
        %v3594 = vshrl.u32 %v3593, 7
        %v3595 = vsub.s32 %v3592, %v3594
        %v3596 = vrot.slane %v3582, %v3595
        %v3597 = vcombine.low %v3589, %v3596
        %v3598 = vcombine.low %v391, %v393
        %v3599 = vcombine.low %v401, %v409
        %v3601 = vunpack.c.l.s4 1983009808
        %v3602 = vunpack.c.0.s8 %v3601
        %v3603 = vlaneseq
        %v3604 = vshrl.u32 %v3603, 7
        %v3605 = vsub.s32 %v3602, %v3604
        %v3606 = vrot.slane %v3598, %v3605
        %v3608 = vunpack.c.l.s4 1983009808
        %v3609 = vunpack.c.0.s8 %v3608
        %v3610 = vlaneseq
        %v3611 = vshrl.u32 %v3610, 7
        %v3612 = vsub.s32 %v3609, %v3611
        %v3613 = vrot.slane %v3599, %v3612
        %v3614 = vcombine.low %v3606, %v3613
        %v3615 = vcombine.low %v408, %v410
        %v3616 = vcombine.low %v417, %v425
        %v3618 = vunpack.c.l.s4 1983009808
        %v3619 = vunpack.c.0.s8 %v3618
        %v3620 = vlaneseq
        %v3621 = vshrl.u32 %v3620, 7
        %v3622 = vsub.s32 %v3619, %v3621
        %v3623 = vrot.slane %v3615, %v3622
        %v3625 = vunpack.c.l.s4 1983009808
        %v3626 = vunpack.c.0.s8 %v3625
        %v3627 = vlaneseq
        %v3628 = vshrl.u32 %v3627, 7
        %v3629 = vsub.s32 %v3626, %v3628
        %v3630 = vrot.slane %v3616, %v3629
        %v3631 = vcombine.low %v3623, %v3630
        %v3632 = vcombine.low %v433, %v432
        %v3633 = vcombine.low %v434, %v442
        %v3635 = vunpack.c.l.s4 1983009808
        %v3636 = vunpack.c.0.s8 %v3635
        %v3637 = vlaneseq
        %v3638 = vshrl.u32 %v3637, 7
        %v3639 = vsub.s32 %v3636, %v3638
        %v3640 = vrot.slane %v3632, %v3639
        %v3642 = vunpack.c.l.s4 1983009808
        %v3643 = vunpack.c.0.s8 %v3642
        %v3644 = vlaneseq
        %v3645 = vshrl.u32 %v3644, 7
        %v3646 = vsub.s32 %v3643, %v3645
        %v3647 = vrot.slane %v3633, %v3646
        %v3648 = vcombine.low %v3640, %v3647
        %v3649 = vcombine.low %v450, %v449
        %v3650 = vcombine.low %v451, %v458
        %v3652 = vunpack.c.l.s4 1983009808
        %v3653 = vunpack.c.0.s8 %v3652
        %v3654 = vlaneseq
        %v3655 = vshrl.u32 %v3654, 7
        %v3656 = vsub.s32 %v3653, %v3655
        %v3657 = vrot.slane %v3649, %v3656
        %v3659 = vunpack.c.l.s4 1983009808
        %v3660 = vunpack.c.0.s8 %v3659
        %v3661 = vlaneseq
        %v3662 = vshrl.u32 %v3661, 7
        %v3663 = vsub.s32 %v3660, %v3662
        %v3664 = vrot.slane %v3650, %v3663
        %v3665 = vcombine.low %v3657, %v3664
        %v3666 = vcombine.low %v466, %v474
        %v3667 = vcombine.low %v473, %v475
        %v3669 = vunpack.c.l.s4 1983009808
        %v3670 = vunpack.c.0.s8 %v3669
        %v3671 = vlaneseq
        %v3672 = vshrl.u32 %v3671, 7
        %v3673 = vsub.s32 %v3670, %v3672
        %v3674 = vrot.slane %v3666, %v3673
        %v3676 = vunpack.c.l.s4 1983009808
        %v3677 = vunpack.c.0.s8 %v3676
        %v3678 = vlaneseq
        %v3679 = vshrl.u32 %v3678, 7
        %v3680 = vsub.s32 %v3677, %v3679
        %v3681 = vrot.slane %v3667, %v3680
        %v3682 = vcombine.low %v3674, %v3681
        %v3683 = vcombine.low %v483, %v491
        %v3684 = vcombine.low %v490, %v492
        %v3686 = vunpack.c.l.s4 1983009808
        %v3687 = vunpack.c.0.s8 %v3686
        %v3688 = vlaneseq
        %v3689 = vshrl.u32 %v3688, 7
        %v3690 = vsub.s32 %v3687, %v3689
        %v3691 = vrot.slane %v3683, %v3690
        %v3693 = vunpack.c.l.s4 1983009808
        %v3694 = vunpack.c.0.s8 %v3693
        %v3695 = vlaneseq
        %v3696 = vshrl.u32 %v3695, 7
        %v3697 = vsub.s32 %v3694, %v3696
        %v3698 = vrot.slane %v3684, %v3697
        %v3699 = vcombine.low %v3691, %v3698
        %v3700 = vcombine.low %v499, %v507
        %v3701 = vcombine.low %v515, %v514
        %v3703 = vunpack.c.l.s4 1983009808
        %v3704 = vunpack.c.0.s8 %v3703
        %v3705 = vlaneseq
        %v3706 = vshrl.u32 %v3705, 7
        %v3707 = vsub.s32 %v3704, %v3706
        %v3708 = vrot.slane %v3700, %v3707
        %v3710 = vunpack.c.l.s4 1983009808
        %v3711 = vunpack.c.0.s8 %v3710
        %v3712 = vlaneseq
        %v3713 = vshrl.u32 %v3712, 7
        %v3714 = vsub.s32 %v3711, %v3713
        %v3715 = vrot.slane %v3701, %v3714
        %v3716 = vcombine.low %v3708, %v3715
        %v3717 = vcombine.low %v516, %v524
        %v3718 = vcombine.low %v532, %v531
        %v3720 = vunpack.c.l.s4 1983009808
        %v3721 = vunpack.c.0.s8 %v3720
        %v3722 = vlaneseq
        %v3723 = vshrl.u32 %v3722, 7
        %v3724 = vsub.s32 %v3721, %v3723
        %v3725 = vrot.slane %v3717, %v3724
        %v3727 = vunpack.c.l.s4 1983009808
        %v3728 = vunpack.c.0.s8 %v3727
        %v3729 = vlaneseq
        %v3730 = vshrl.u32 %v3729, 7
        %v3731 = vsub.s32 %v3728, %v3730
        %v3732 = vrot.slane %v3718, %v3731
        %v3733 = vcombine.low %v3725, %v3732
        %v3734 = vcombine.low %v533, %v540
        %v3735 = vcombine.low %v548, %v556
        %v3737 = vunpack.c.l.s4 1983009808
        %v3738 = vunpack.c.0.s8 %v3737
        %v3739 = vlaneseq
        %v3740 = vshrl.u32 %v3739, 7
        %v3741 = vsub.s32 %v3738, %v3740
        %v3742 = vrot.slane %v3734, %v3741
        %v3744 = vunpack.c.l.s4 1983009808
        %v3745 = vunpack.c.0.s8 %v3744
        %v3746 = vlaneseq
        %v3747 = vshrl.u32 %v3746, 7
        %v3748 = vsub.s32 %v3745, %v3747
        %v3749 = vrot.slane %v3735, %v3748
        %v3750 = vcombine.low %v3742, %v3749
        %v3751 = vcombine.low %v555, %v557
        %v3752 = vcombine.low %v565, %v573
        %v3754 = vunpack.c.l.s4 1983009808
        %v3755 = vunpack.c.0.s8 %v3754
        %v3756 = vlaneseq
        %v3757 = vshrl.u32 %v3756, 7
        %v3758 = vsub.s32 %v3755, %v3757
        %v3759 = vrot.slane %v3751, %v3758
        %v3761 = vunpack.c.l.s4 1983009808
        %v3762 = vunpack.c.0.s8 %v3761
        %v3763 = vlaneseq
        %v3764 = vshrl.u32 %v3763, 7
        %v3765 = vsub.s32 %v3762, %v3764
        %v3766 = vrot.slane %v3752, %v3765
        %v3767 = vcombine.low %v3759, %v3766
        %v3768 = vcombine.low %v572, %v574
        %v3769 = vcombine.low %v581, %v3476
        %v3771 = vunpack.c.l.s4 1983009808
        %v3772 = vunpack.c.0.s8 %v3771
        %v3773 = vlaneseq
        %v3774 = vshrl.u32 %v3773, 7
        %v3775 = vsub.s32 %v3772, %v3774
        %v3776 = vrot.slane %v3768, %v3775
        %v3778 = vunpack.c.l.s4 1983009808
        %v3779 = vunpack.c.0.s8 %v3778
        %v3780 = vlaneseq
        %v3781 = vshrl.u32 %v3780, 7
        %v3782 = vsub.s32 %v3779, %v3781
        %v3783 = vrot.slane %v3769, %v3782
        %v3784 = vcombine.low %v3776, %v3783
        %v3785 = vcombine.low %v3484, %v3483
        %v3786 = vcombine.low %v3485, %v3493
        %v3788 = vunpack.c.l.s4 1983009808
        %v3789 = vunpack.c.0.s8 %v3788
        %v3790 = vlaneseq
        %v3791 = vshrl.u32 %v3790, 7
        %v3792 = vsub.s32 %v3789, %v3791
        %v3793 = vrot.slane %v3785, %v3792
        %v3795 = vunpack.c.l.s4 1983009808
        %v3796 = vunpack.c.0.s8 %v3795
        %v3797 = vlaneseq
        %v3798 = vshrl.u32 %v3797, 7
        %v3799 = vsub.s32 %v3796, %v3798
        %v3800 = vrot.slane %v3786, %v3799
        %v3801 = vcombine.low %v3793, %v3800
        %v3802 = vcombine.low %v3501, %v3500
        %v3803 = vcombine.low %v3502, %v3509
        %v3805 = vunpack.c.l.s4 1983009808
        %v3806 = vunpack.c.0.s8 %v3805
        %v3807 = vlaneseq
        %v3808 = vshrl.u32 %v3807, 7
        %v3809 = vsub.s32 %v3806, %v3808
        %v3810 = vrot.slane %v3802, %v3809
        %v3812 = vunpack.c.l.s4 1983009808
        %v3813 = vunpack.c.0.s8 %v3812
        %v3814 = vlaneseq
        %v3815 = vshrl.u32 %v3814, 7
        %v3816 = vsub.s32 %v3813, %v3815
        %v3817 = vrot.slane %v3803, %v3816
        %v3818 = vcombine.low %v3810, %v3817
        %v3821 = vcombine.high %v3511, %v3511
        %v3822 = vsel %vm893, %v3529, 0
        %v3824 = vsel %vm893, %v3546, 0
        %v3826 = vsel %vm893, %v3563, 0
        %v3828 = vsel %vm893, %v3580, 0
        %v3830 = vsel %vm893, %v3597, 0
        %v3832 = vsel %vm893, %v3614, 0
        %v3834 = vsel %vm893, %v3631, 0
        %v3836 = vsel %vm893, %v3648, 0
        %v3838 = vsel %vm893, %v3665, 0
        %v3840 = vsel %vm893, %v3682, 0
        %v3842 = vsel %vm893, %v3699, 0
        %v3844 = vsel %vm893, %v3716, 0
        %v3846 = vsel %vm893, %v3733, 0
        %v3848 = vsel %vm893, %v3750, 0
        %v3850 = vsel %vm893, %v3767, 0
        %v3852 = vsel %vm893, %v3784, 0
        %v3854 = vsel %vm893, %v3801, 0
        %v3856 = vsel %vm893, %v3818, 0
        %v3858 = vsel %vm930, %v3511, 0
        %v3860 = vsel %vm930, %v3821, 0
        %v3862 = vsel %vm930, %v3512, 0
        %3864 = vmatprep.subr.mxu0 0.0
        %3865 = vmatpush1.msra.mxu0 0.0
        %3866 = vmatprep.subr.mxu0 0.0
        %3867 = vmatpush1.msra.mxu0 0.0
        %3868 = vmatprep.subr.mxu0 0.0
        %3869 = vmatpush1.msra.mxu0 0.0
        %3870 = vmatprep.subr.mxu0 0.0
        %3871 = vmatpush1.msra.mxu0 0.0
        %3872 = vmatprep.subr.mxu0 0.0
        %3873 = vmatpush1.msra.mxu0 0.0
        %3874 = vmatprep.subr.mxu0 0.0
        %3875 = vmatpush1.msra.mxu0 0.0
        %3876 = vmatprep.subr.mxu0 0.0
        %3877 = vmatpush1.msra.mxu0 0.0
        %3878 = vmatprep.subr.mxu0 0.0
        %3879 = vmatpush1.msra.mxu0 0.0
        %3880 = vmatprep.subr.mxu0 0.0
        %3881 = vmatpush1.msra.mxu0 0.0
        %3882 = vmatprep.subr.mxu0 0.0
        %3883 = vmatpush1.msra.mxu0 0.0
        %3884 = vmatprep.subr.mxu0 0.0
        %3885 = vmatpush1.msra.mxu0 0.0
        %3886 = vmatprep.subr.mxu0 0.0
        %3887 = vmatpush1.msra.mxu0 0.0
        %3888 = vmatprep.subr.mxu0 0.0
        %3889 = vmatpush1.msra.mxu0 0.0
        %3890 = vmatprep.subr.mxu0 0.0
        %3891 = vmatpush1.msra.mxu0 0.0
        %3892 = vmatprep.subr.mxu0 0.0
        %3893 = vmatpush1.msra.mxu0 0.0
        %v3894 = vand.u32 %v3860, 4294901760
        %3895 = vmatprep.subr.mxu0 %v3894
        %v3896 = vand.u32 %v3858, 4294901760
        %3897 = vmatpush1.msra.mxu0 %v3896
        %3898 = vmatprep.subr.mxu0 0.0
        %3899 = vmatpush2.msra.mxu0 0.0
        %3900 = vmatprep.subr.mxu0 0.0
        %3901 = vmatpush2.msra.mxu0 0.0
        %3902 = vmatprep.subr.mxu0 0.0
        %3903 = vmatpush2.msra.mxu0 0.0
        %3904 = vmatprep.subr.mxu0 0.0
        %3905 = vmatpush2.msra.mxu0 0.0
        %3906 = vmatprep.subr.mxu0 0.0
        %3907 = vmatpush2.msra.mxu0 0.0
        %3908 = vmatprep.subr.mxu0 0.0
        %3909 = vmatpush2.msra.mxu0 0.0
        %3910 = vmatprep.subr.mxu0 0.0
        %3911 = vmatpush2.msra.mxu0 0.0
        %3912 = vmatprep.subr.mxu0 0.0
        %3913 = vmatpush2.msra.mxu0 0.0
        %3914 = vmatprep.subr.mxu0 0.0
        %3915 = vmatpush2.msra.mxu0 0.0
        %3916 = vmatprep.subr.mxu0 0.0
        %3917 = vmatpush2.msra.mxu0 0.0
        %3918 = vmatprep.subr.mxu0 0.0
        %3919 = vmatpush2.msra.mxu0 0.0
        %3920 = vmatprep.subr.mxu0 0.0
        %3921 = vmatpush2.msra.mxu0 0.0
        %3922 = vmatprep.subr.mxu0 0.0
        %3923 = vmatpush2.msra.mxu0 0.0
        %3924 = vmatprep.subr.mxu0 0.0
        %3925 = vmatpush2.msra.mxu0 0.0
        %3926 = vmatprep.subr.mxu0 0.0
        %3927 = vmatpush2.msra.mxu0 0.0
        %3928 = vmatprep.subr.mxu0 0.0
        %3929 = vmatpush2.msra.mxu0 0.0
        %3930 = vmatprep.mubr.f32.mxu0 0.0
        %v3931 = vand.u32 %v3822, 4294901760
        %v3932 = vsub.f32 %v3822, %v3931
        %v3933 = vand.u32 %v3932, 4294901760
        %v3934 = vsub.f32 %v3932, %v3933
        %v3935 = vand.u32 %v3934, 4294901760
        %3936 = vmatmul.mubr.f32.gmra.mxu0 %v3935
        %v3937 = vpop.f32.mrf.mxu0
        %v3938 = vadd.f32 0.0, %v3937
        %v3939 = vpop.f32.mrf.mxu0
        %v3940 = vadd.f32 0.0, %v3939
        %3941 = vmatprep.mubr.f32.mxu0 0.0
        %v3942 = vand.u32 %v3824, 4294901760
        %v3943 = vsub.f32 %v3824, %v3942
        %v3944 = vand.u32 %v3943, 4294901760
        %v3945 = vsub.f32 %v3943, %v3944
        %v3946 = vand.u32 %v3945, 4294901760
        %3947 = vmatmul.mubr.f32.gmra.mxu0 %v3946
        %v3948 = vpop.f32.mrf.mxu0
        %v3949 = vadd.f32 0.0, %v3948
        %v3950 = vpop.f32.mrf.mxu0
        %v3951 = vadd.f32 0.0, %v3950
        %3952 = vmatprep.mubr.f32.mxu0 0.0
        %v3953 = vand.u32 %v3826, 4294901760
        %v3954 = vsub.f32 %v3826, %v3953
        %v3955 = vand.u32 %v3954, 4294901760
        %v3956 = vsub.f32 %v3954, %v3955
        %v3957 = vand.u32 %v3956, 4294901760
        %3958 = vmatmul.mubr.f32.gmra.mxu0 %v3957
        %v3959 = vpop.f32.mrf.mxu0
        %v3960 = vadd.f32 0.0, %v3959
        %v3961 = vpop.f32.mrf.mxu0
        %v3962 = vadd.f32 0.0, %v3961
        %3963 = vmatprep.mubr.f32.mxu0 0.0
        %v3964 = vand.u32 %v3828, 4294901760
        %v3965 = vsub.f32 %v3828, %v3964
        %v3966 = vand.u32 %v3965, 4294901760
        %v3967 = vsub.f32 %v3965, %v3966
        %v3968 = vand.u32 %v3967, 4294901760
        %3969 = vmatmul.mubr.f32.gmra.mxu0 %v3968
        %v3970 = vpop.f32.mrf.mxu0
        %v3971 = vadd.f32 0.0, %v3970
        %v3972 = vpop.f32.mrf.mxu0
        %v3973 = vadd.f32 0.0, %v3972
        %3974 = vmatprep.mubr.f32.mxu0 0.0
        %v3975 = vand.u32 %v3830, 4294901760
        %v3976 = vsub.f32 %v3830, %v3975
        %v3977 = vand.u32 %v3976, 4294901760
        %v3978 = vsub.f32 %v3976, %v3977
        %v3979 = vand.u32 %v3978, 4294901760
        %3980 = vmatmul.mubr.f32.gmra.mxu0 %v3979
        %v3981 = vpop.f32.mrf.mxu0
        %v3982 = vadd.f32 0.0, %v3981
        %v3983 = vpop.f32.mrf.mxu0
        %v3984 = vadd.f32 0.0, %v3983
        %3985 = vmatprep.mubr.f32.mxu0 0.0
        %v3986 = vand.u32 %v3832, 4294901760
        %v3987 = vsub.f32 %v3832, %v3986
        %v3988 = vand.u32 %v3987, 4294901760
        %v3989 = vsub.f32 %v3987, %v3988
        %v3990 = vand.u32 %v3989, 4294901760
        %3991 = vmatmul.mubr.f32.gmra.mxu0 %v3990
        %v3992 = vpop.f32.mrf.mxu0
        %v3993 = vadd.f32 0.0, %v3992
        %v3994 = vpop.f32.mrf.mxu0
        %v3995 = vadd.f32 0.0, %v3994
        %3996 = vmatprep.mubr.f32.mxu0 0.0
        %v3997 = vand.u32 %v3834, 4294901760
        %v3998 = vsub.f32 %v3834, %v3997
        %v3999 = vand.u32 %v3998, 4294901760
        %v4000 = vsub.f32 %v3998, %v3999
        %v4001 = vand.u32 %v4000, 4294901760
        %4002 = vmatmul.mubr.f32.gmra.mxu0 %v4001
        %v4003 = vpop.f32.mrf.mxu0
        %v4004 = vadd.f32 0.0, %v4003
        %v4005 = vpop.f32.mrf.mxu0
        %v4006 = vadd.f32 0.0, %v4005
        %4007 = vmatprep.mubr.f32.mxu0 0.0
        %v4008 = vand.u32 %v3836, 4294901760
        %v4009 = vsub.f32 %v3836, %v4008
        %v4010 = vand.u32 %v4009, 4294901760
        %v4011 = vsub.f32 %v4009, %v4010
        %v4012 = vand.u32 %v4011, 4294901760
        %4013 = vmatmul.mubr.f32.gmra.mxu0 %v4012
        %v4014 = vpop.f32.mrf.mxu0
        %v4015 = vadd.f32 0.0, %v4014
        %v4016 = vpop.f32.mrf.mxu0
        %v4017 = vadd.f32 0.0, %v4016
        %4018 = vmatprep.mubr.f32.mxu0 0.0
        %v4019 = vand.u32 %v3838, 4294901760
        %v4020 = vsub.f32 %v3838, %v4019
        %v4021 = vand.u32 %v4020, 4294901760
        %v4022 = vsub.f32 %v4020, %v4021
        %v4023 = vand.u32 %v4022, 4294901760
        %4024 = vmatmul.mubr.f32.gmra.mxu0 %v4023
        %v4025 = vpop.f32.mrf.mxu0
        %v4026 = vadd.f32 0.0, %v4025
        %v4027 = vpop.f32.mrf.mxu0
        %v4028 = vadd.f32 0.0, %v4027
        %4029 = vmatprep.mubr.f32.mxu0 0.0
        %v4030 = vand.u32 %v3840, 4294901760
        %v4031 = vsub.f32 %v3840, %v4030
        %v4032 = vand.u32 %v4031, 4294901760
        %v4033 = vsub.f32 %v4031, %v4032
        %v4034 = vand.u32 %v4033, 4294901760
        %4035 = vmatmul.mubr.f32.gmra.mxu0 %v4034
        %v4036 = vpop.f32.mrf.mxu0
        %v4037 = vadd.f32 0.0, %v4036
        %v4038 = vpop.f32.mrf.mxu0
        %v4039 = vadd.f32 0.0, %v4038
        %4040 = vmatprep.mubr.f32.mxu0 0.0
        %v4041 = vand.u32 %v3842, 4294901760
        %v4042 = vsub.f32 %v3842, %v4041
        %v4043 = vand.u32 %v4042, 4294901760
        %v4044 = vsub.f32 %v4042, %v4043
        %v4045 = vand.u32 %v4044, 4294901760
        %4046 = vmatmul.mubr.f32.gmra.mxu0 %v4045
        %v4047 = vpop.f32.mrf.mxu0
        %v4048 = vadd.f32 0.0, %v4047
        %v4049 = vpop.f32.mrf.mxu0
        %v4050 = vadd.f32 0.0, %v4049
        %4051 = vmatprep.mubr.f32.mxu0 0.0
        %v4052 = vand.u32 %v3844, 4294901760
        %v4053 = vsub.f32 %v3844, %v4052
        %v4054 = vand.u32 %v4053, 4294901760
        %v4055 = vsub.f32 %v4053, %v4054
        %v4056 = vand.u32 %v4055, 4294901760
        %4057 = vmatmul.mubr.f32.gmra.mxu0 %v4056
        %v4058 = vpop.f32.mrf.mxu0
        %v4059 = vadd.f32 0.0, %v4058
        %v4060 = vpop.f32.mrf.mxu0
        %v4061 = vadd.f32 0.0, %v4060
        %4062 = vmatprep.mubr.f32.mxu0 0.0
        %v4063 = vand.u32 %v3846, 4294901760
        %v4064 = vsub.f32 %v3846, %v4063
        %v4065 = vand.u32 %v4064, 4294901760
        %v4066 = vsub.f32 %v4064, %v4065
        %v4067 = vand.u32 %v4066, 4294901760
        %4068 = vmatmul.mubr.f32.gmra.mxu0 %v4067
        %v4069 = vpop.f32.mrf.mxu0
        %v4070 = vadd.f32 0.0, %v4069
        %v4071 = vpop.f32.mrf.mxu0
        %v4072 = vadd.f32 0.0, %v4071
        %4073 = vmatprep.mubr.f32.mxu0 0.0
        %v4074 = vand.u32 %v3848, 4294901760
        %v4075 = vsub.f32 %v3848, %v4074
        %v4076 = vand.u32 %v4075, 4294901760
        %v4077 = vsub.f32 %v4075, %v4076
        %v4078 = vand.u32 %v4077, 4294901760
        %4079 = vmatmul.mubr.f32.gmra.mxu0 %v4078
        %v4080 = vpop.f32.mrf.mxu0
        %v4081 = vadd.f32 0.0, %v4080
        %v4082 = vpop.f32.mrf.mxu0
        %v4083 = vadd.f32 0.0, %v4082
        %4084 = vmatprep.mubr.f32.mxu0 0.0
        %v4085 = vand.u32 %v3850, 4294901760
        %v4086 = vsub.f32 %v3850, %v4085
        %v4087 = vand.u32 %v4086, 4294901760
        %v4088 = vsub.f32 %v4086, %v4087
        %v4089 = vand.u32 %v4088, 4294901760
        %4090 = vmatmul.mubr.f32.gmra.mxu0 %v4089
        %v4091 = vpop.f32.mrf.mxu0
        %v4092 = vadd.f32 0.0, %v4091
        %v4093 = vpop.f32.mrf.mxu0
        %v4094 = vadd.f32 0.0, %v4093
        %4095 = vmatprep.mubr.f32.mxu0 0.0
        %v4096 = vand.u32 %v3852, 4294901760
        %v4097 = vsub.f32 %v3852, %v4096
        %v4098 = vand.u32 %v4097, 4294901760
        %v4099 = vsub.f32 %v4097, %v4098
        %v4100 = vand.u32 %v4099, 4294901760
        %4101 = vmatmul.mubr.f32.gmra.mxu0 %v4100
        %v4102 = vpop.f32.mrf.mxu0
        %v4103 = vadd.f32 0.0, %v4102
        %v4104 = vpop.f32.mrf.mxu0
        %v4105 = vadd.f32 0.0, %v4104
        %4106 = vmatprep.mubr.f32.mxu0 0.0
        %v4107 = vand.u32 %v3854, 4294901760
        %v4108 = vsub.f32 %v3854, %v4107
        %v4109 = vand.u32 %v4108, 4294901760
        %v4110 = vsub.f32 %v4108, %v4109
        %v4111 = vand.u32 %v4110, 4294901760
        %4112 = vmatmul.mubr.f32.gmra.mxu0 %v4111
        %v4113 = vpop.f32.mrf.mxu0
        %v4114 = vadd.f32 0.0, %v4113
        %v4115 = vpop.f32.mrf.mxu0
        %v4116 = vadd.f32 0.0, %v4115
        %4117 = vmatprep.mubr.f32.mxu0 0.0
        %v4118 = vand.u32 %v3856, 4294901760
        %v4119 = vsub.f32 %v3856, %v4118
        %v4120 = vand.u32 %v4119, 4294901760
        %v4121 = vsub.f32 %v4119, %v4120
        %v4122 = vand.u32 %v4121, 4294901760
        %4123 = vmatmul.mubr.f32.gmra.mxu0 %v4122
        %v4124 = vpop.f32.mrf.mxu0
        %v4125 = vadd.f32 0.0, %v4124
        %v4126 = vpop.f32.mrf.mxu0
        %v4127 = vadd.f32 0.0, %v4126
        %4128 = vdwg.mxu0
        %4129 = vmatprep.subr.mxu0 0.0
        %4130 = vmatpush1.msra.mxu0 0.0
        %4131 = vmatprep.subr.mxu0 0.0
        %4132 = vmatpush1.msra.mxu0 0.0
        %4133 = vmatprep.subr.mxu0 0.0
        %4134 = vmatpush1.msra.mxu0 0.0
        %4135 = vmatprep.subr.mxu0 0.0
        %4136 = vmatpush1.msra.mxu0 0.0
        %4137 = vmatprep.subr.mxu0 0.0
        %4138 = vmatpush1.msra.mxu0 0.0
        %4139 = vmatprep.subr.mxu0 0.0
        %4140 = vmatpush1.msra.mxu0 0.0
        %4141 = vmatprep.subr.mxu0 0.0
        %4142 = vmatpush1.msra.mxu0 0.0
        %4143 = vmatprep.subr.mxu0 0.0
        %4144 = vmatpush1.msra.mxu0 0.0
        %4145 = vmatprep.subr.mxu0 0.0
        %4146 = vmatpush1.msra.mxu0 0.0
        %4147 = vmatprep.subr.mxu0 0.0
        %4148 = vmatpush1.msra.mxu0 0.0
        %4149 = vmatprep.subr.mxu0 0.0
        %4150 = vmatpush1.msra.mxu0 0.0
        %4151 = vmatprep.subr.mxu0 0.0
        %4152 = vmatpush1.msra.mxu0 0.0
        %4153 = vmatprep.subr.mxu0 0.0
        %4154 = vmatpush1.msra.mxu0 0.0
        %4155 = vmatprep.subr.mxu0 0.0
        %4156 = vmatpush1.msra.mxu0 0.0
        %4157 = vmatprep.subr.mxu0 0.0
        %4158 = vmatpush1.msra.mxu0 0.0
        %v4159 = vand.u32 %v3860, 4294901760
        %v4160 = vsub.f32 %v3860, %v4159
        %v4161 = vand.u32 %v4160, 4294901760
        %v4162 = vsub.f32 %v4160, %v4161
        %v4163 = vand.u32 %v4162, 4294901760
        %4164 = vmatprep.subr.mxu0 %v4163
        %v4165 = vand.u32 %v3858, 4294901760
        %v4166 = vsub.f32 %v3858, %v4165
        %v4167 = vand.u32 %v4166, 4294901760
        %v4168 = vsub.f32 %v4166, %v4167
        %v4169 = vand.u32 %v4168, 4294901760
        %4170 = vmatpush1.msra.mxu0 %v4169
        %4171 = vmatprep.subr.mxu0 0.0
        %4172 = vmatpush2.msra.mxu0 0.0
        %4173 = vmatprep.subr.mxu0 0.0
        %4174 = vmatpush2.msra.mxu0 0.0
        %4175 = vmatprep.subr.mxu0 0.0
        %4176 = vmatpush2.msra.mxu0 0.0
        %4177 = vmatprep.subr.mxu0 0.0
        %4178 = vmatpush2.msra.mxu0 0.0
        %4179 = vmatprep.subr.mxu0 0.0
        %4180 = vmatpush2.msra.mxu0 0.0
        %4181 = vmatprep.subr.mxu0 0.0
        %4182 = vmatpush2.msra.mxu0 0.0
        %4183 = vmatprep.subr.mxu0 0.0
        %4184 = vmatpush2.msra.mxu0 0.0
        %4185 = vmatprep.subr.mxu0 0.0
        %4186 = vmatpush2.msra.mxu0 0.0
        %4187 = vmatprep.subr.mxu0 0.0
        %4188 = vmatpush2.msra.mxu0 0.0
        %4189 = vmatprep.subr.mxu0 0.0
        %4190 = vmatpush2.msra.mxu0 0.0
        %4191 = vmatprep.subr.mxu0 0.0
        %4192 = vmatpush2.msra.mxu0 0.0
        %4193 = vmatprep.subr.mxu0 0.0
        %4194 = vmatpush2.msra.mxu0 0.0
        %4195 = vmatprep.subr.mxu0 0.0
        %4196 = vmatpush2.msra.mxu0 0.0
        %4197 = vmatprep.subr.mxu0 0.0
        %4198 = vmatpush2.msra.mxu0 0.0
        %4199 = vmatprep.subr.mxu0 0.0
        %4200 = vmatpush2.msra.mxu0 0.0
        %4201 = vmatprep.subr.mxu0 0.0
        %4202 = vmatpush2.msra.mxu0 0.0
        %4203 = vmatprep.mubr.f32.mxu0 0.0
        %v4204 = vand.u32 %v3822, 4294901760
        %4205 = vmatmul.mubr.f32.gmra.mxu0 %v4204
        %v4206 = vpop.f32.mrf.mxu0
        %v4207 = vadd.f32 %v3938, %v4206
        %v4208 = vpop.f32.mrf.mxu0
        %v4209 = vadd.f32 %v3940, %v4208
        %4210 = vmatprep.mubr.f32.mxu0 0.0
        %v4211 = vand.u32 %v3824, 4294901760
        %4212 = vmatmul.mubr.f32.gmra.mxu0 %v4211
        %v4213 = vpop.f32.mrf.mxu0
        %v4214 = vadd.f32 %v3949, %v4213
        %v4215 = vpop.f32.mrf.mxu0
        %v4216 = vadd.f32 %v3951, %v4215
        %4217 = vmatprep.mubr.f32.mxu0 0.0
        %v4218 = vand.u32 %v3826, 4294901760
        %4219 = vmatmul.mubr.f32.gmra.mxu0 %v4218
        %v4220 = vpop.f32.mrf.mxu0
        %v4221 = vadd.f32 %v3960, %v4220
        %v4222 = vpop.f32.mrf.mxu0
        %v4223 = vadd.f32 %v3962, %v4222
        %4224 = vmatprep.mubr.f32.mxu0 0.0
        %v4225 = vand.u32 %v3828, 4294901760
        %4226 = vmatmul.mubr.f32.gmra.mxu0 %v4225
        %v4227 = vpop.f32.mrf.mxu0
        %v4228 = vadd.f32 %v3971, %v4227
        %v4229 = vpop.f32.mrf.mxu0
        %v4230 = vadd.f32 %v3973, %v4229
        %4231 = vmatprep.mubr.f32.mxu0 0.0
        %v4232 = vand.u32 %v3830, 4294901760
        %4233 = vmatmul.mubr.f32.gmra.mxu0 %v4232
        %v4234 = vpop.f32.mrf.mxu0
        %v4235 = vadd.f32 %v3982, %v4234
        %v4236 = vpop.f32.mrf.mxu0
        %v4237 = vadd.f32 %v3984, %v4236
        %4238 = vmatprep.mubr.f32.mxu0 0.0
        %v4239 = vand.u32 %v3832, 4294901760
        %4240 = vmatmul.mubr.f32.gmra.mxu0 %v4239
        %v4241 = vpop.f32.mrf.mxu0
        %v4242 = vadd.f32 %v3993, %v4241
        %v4243 = vpop.f32.mrf.mxu0
        %v4244 = vadd.f32 %v3995, %v4243
        %4245 = vmatprep.mubr.f32.mxu0 0.0
        %v4246 = vand.u32 %v3834, 4294901760
        %4247 = vmatmul.mubr.f32.gmra.mxu0 %v4246
        %v4248 = vpop.f32.mrf.mxu0
        %v4249 = vadd.f32 %v4004, %v4248
        %v4250 = vpop.f32.mrf.mxu0
        %v4251 = vadd.f32 %v4006, %v4250
        %4252 = vmatprep.mubr.f32.mxu0 0.0
        %v4253 = vand.u32 %v3836, 4294901760
        %4254 = vmatmul.mubr.f32.gmra.mxu0 %v4253
        %v4255 = vpop.f32.mrf.mxu0
        %v4256 = vadd.f32 %v4015, %v4255
        %v4257 = vpop.f32.mrf.mxu0
        %v4258 = vadd.f32 %v4017, %v4257
        %4259 = vmatprep.mubr.f32.mxu0 0.0
        %v4260 = vand.u32 %v3838, 4294901760
        %4261 = vmatmul.mubr.f32.gmra.mxu0 %v4260
        %v4262 = vpop.f32.mrf.mxu0
        %v4263 = vadd.f32 %v4026, %v4262
        %v4264 = vpop.f32.mrf.mxu0
        %v4265 = vadd.f32 %v4028, %v4264
        %4266 = vmatprep.mubr.f32.mxu0 0.0
        %v4267 = vand.u32 %v3840, 4294901760
        %4268 = vmatmul.mubr.f32.gmra.mxu0 %v4267
        %v4269 = vpop.f32.mrf.mxu0
        %v4270 = vadd.f32 %v4037, %v4269
        %v4271 = vpop.f32.mrf.mxu0
        %v4272 = vadd.f32 %v4039, %v4271
        %4273 = vmatprep.mubr.f32.mxu0 0.0
        %v4274 = vand.u32 %v3842, 4294901760
        %4275 = vmatmul.mubr.f32.gmra.mxu0 %v4274
        %v4276 = vpop.f32.mrf.mxu0
        %v4277 = vadd.f32 %v4048, %v4276
        %v4278 = vpop.f32.mrf.mxu0
        %v4279 = vadd.f32 %v4050, %v4278
        %4280 = vmatprep.mubr.f32.mxu0 0.0
        %v4281 = vand.u32 %v3844, 4294901760
        %4282 = vmatmul.mubr.f32.gmra.mxu0 %v4281
        %v4283 = vpop.f32.mrf.mxu0
        %v4284 = vadd.f32 %v4059, %v4283
        %v4285 = vpop.f32.mrf.mxu0
        %v4286 = vadd.f32 %v4061, %v4285
        %4287 = vmatprep.mubr.f32.mxu0 0.0
        %v4288 = vand.u32 %v3846, 4294901760
        %4289 = vmatmul.mubr.f32.gmra.mxu0 %v4288
        %v4290 = vpop.f32.mrf.mxu0
        %v4291 = vadd.f32 %v4070, %v4290
        %v4292 = vpop.f32.mrf.mxu0
        %v4293 = vadd.f32 %v4072, %v4292
        %4294 = vmatprep.mubr.f32.mxu0 0.0
        %v4295 = vand.u32 %v3848, 4294901760
        %4296 = vmatmul.mubr.f32.gmra.mxu0 %v4295
        %v4297 = vpop.f32.mrf.mxu0
        %v4298 = vadd.f32 %v4081, %v4297
        %v4299 = vpop.f32.mrf.mxu0
        %v4300 = vadd.f32 %v4083, %v4299
        %4301 = vmatprep.mubr.f32.mxu0 0.0
        %v4302 = vand.u32 %v3850, 4294901760
        %4303 = vmatmul.mubr.f32.gmra.mxu0 %v4302
        %v4304 = vpop.f32.mrf.mxu0
        %v4305 = vadd.f32 %v4092, %v4304
        %v4306 = vpop.f32.mrf.mxu0
        %v4307 = vadd.f32 %v4094, %v4306
        %4308 = vmatprep.mubr.f32.mxu0 0.0
        %v4309 = vand.u32 %v3852, 4294901760
        %4310 = vmatmul.mubr.f32.gmra.mxu0 %v4309
        %v4311 = vpop.f32.mrf.mxu0
        %v4312 = vadd.f32 %v4103, %v4311
        %v4313 = vpop.f32.mrf.mxu0
        %v4314 = vadd.f32 %v4105, %v4313
        %4315 = vmatprep.mubr.f32.mxu0 0.0
        %v4316 = vand.u32 %v3854, 4294901760
        %4317 = vmatmul.mubr.f32.gmra.mxu0 %v4316
        %v4318 = vpop.f32.mrf.mxu0
        %v4319 = vadd.f32 %v4114, %v4318
        %v4320 = vpop.f32.mrf.mxu0
        %v4321 = vadd.f32 %v4116, %v4320
        %4322 = vmatprep.mubr.f32.mxu0 0.0
        %v4323 = vand.u32 %v3856, 4294901760
        %4324 = vmatmul.mubr.f32.gmra.mxu0 %v4323
        %v4325 = vpop.f32.mrf.mxu0
        %v4326 = vadd.f32 %v4125, %v4325
        %v4327 = vpop.f32.mrf.mxu0
        %v4328 = vadd.f32 %v4127, %v4327
        %4329 = vdwg.mxu0
        %4330 = vmatprep.subr.mxu0 0.0
        %4331 = vmatpush1.msra.mxu0 0.0
        %4332 = vmatprep.subr.mxu0 0.0
        %4333 = vmatpush1.msra.mxu0 0.0
        %4334 = vmatprep.subr.mxu0 0.0
        %4335 = vmatpush1.msra.mxu0 0.0
        %4336 = vmatprep.subr.mxu0 0.0
        %4337 = vmatpush1.msra.mxu0 0.0
        %4338 = vmatprep.subr.mxu0 0.0
        %4339 = vmatpush1.msra.mxu0 0.0
        %4340 = vmatprep.subr.mxu0 0.0
        %4341 = vmatpush1.msra.mxu0 0.0
        %4342 = vmatprep.subr.mxu0 0.0
        %4343 = vmatpush1.msra.mxu0 0.0
        %4344 = vmatprep.subr.mxu0 0.0
        %4345 = vmatpush1.msra.mxu0 0.0
        %4346 = vmatprep.subr.mxu0 0.0
        %4347 = vmatpush1.msra.mxu0 0.0
        %4348 = vmatprep.subr.mxu0 0.0
        %4349 = vmatpush1.msra.mxu0 0.0
        %4350 = vmatprep.subr.mxu0 0.0
        %4351 = vmatpush1.msra.mxu0 0.0
        %4352 = vmatprep.subr.mxu0 0.0
        %4353 = vmatpush1.msra.mxu0 0.0
        %4354 = vmatprep.subr.mxu0 0.0
        %4355 = vmatpush1.msra.mxu0 0.0
        %4356 = vmatprep.subr.mxu0 0.0
        %4357 = vmatpush1.msra.mxu0 0.0
        %4358 = vmatprep.subr.mxu0 0.0
        %4359 = vmatpush1.msra.mxu0 0.0
        %v4360 = vand.u32 %v3860, 4294901760
        %v4361 = vsub.f32 %v3860, %v4360
        %4362 = vmatprep.subr.mxu0 %v4361
        %v4363 = vand.u32 %v3858, 4294901760
        %v4364 = vsub.f32 %v3858, %v4363
        %4365 = vmatpush1.msra.mxu0 %v4364
        %4366 = vmatprep.subr.mxu0 0.0
        %4367 = vmatpush2.msra.mxu0 0.0
        %4368 = vmatprep.subr.mxu0 0.0
        %4369 = vmatpush2.msra.mxu0 0.0
        %4370 = vmatprep.subr.mxu0 0.0
        %4371 = vmatpush2.msra.mxu0 0.0
        %4372 = vmatprep.subr.mxu0 0.0
        %4373 = vmatpush2.msra.mxu0 0.0
        %4374 = vmatprep.subr.mxu0 0.0
        %4375 = vmatpush2.msra.mxu0 0.0
        %4376 = vmatprep.subr.mxu0 0.0
        %4377 = vmatpush2.msra.mxu0 0.0
        %4378 = vmatprep.subr.mxu0 0.0
        %4379 = vmatpush2.msra.mxu0 0.0
        %4380 = vmatprep.subr.mxu0 0.0
        %4381 = vmatpush2.msra.mxu0 0.0
        %4382 = vmatprep.subr.mxu0 0.0
        %4383 = vmatpush2.msra.mxu0 0.0
        %4384 = vmatprep.subr.mxu0 0.0
        %4385 = vmatpush2.msra.mxu0 0.0
        %4386 = vmatprep.subr.mxu0 0.0
        %4387 = vmatpush2.msra.mxu0 0.0
        %4388 = vmatprep.subr.mxu0 0.0
        %4389 = vmatpush2.msra.mxu0 0.0
        %4390 = vmatprep.subr.mxu0 0.0
        %4391 = vmatpush2.msra.mxu0 0.0
        %4392 = vmatprep.subr.mxu0 0.0
        %4393 = vmatpush2.msra.mxu0 0.0
        %4394 = vmatprep.subr.mxu0 0.0
        %4395 = vmatpush2.msra.mxu0 0.0
        %4396 = vmatprep.subr.mxu0 0.0
        %4397 = vmatpush2.msra.mxu0 0.0
        %4398 = vmatprep.mubr.f32.mxu0 0.0
        %v4399 = vand.u32 %v3822, 4294901760
        %v4400 = vsub.f32 %v3822, %v4399
        %4401 = vmatmul.mubr.f32.gmra.mxu0 %v4400
        %v4402 = vpop.f32.mrf.mxu0
        %v4403 = vadd.f32 %v4207, %v4402
        %v4404 = vpop.f32.mrf.mxu0
        %v4405 = vadd.f32 %v4209, %v4404
        %4406 = vmatprep.mubr.f32.mxu0 0.0
        %v4407 = vand.u32 %v3824, 4294901760
        %v4408 = vsub.f32 %v3824, %v4407
        %4409 = vmatmul.mubr.f32.gmra.mxu0 %v4408
        %v4410 = vpop.f32.mrf.mxu0
        %v4411 = vadd.f32 %v4214, %v4410
        %v4412 = vpop.f32.mrf.mxu0
        %v4413 = vadd.f32 %v4216, %v4412
        %4414 = vmatprep.mubr.f32.mxu0 0.0
        %v4415 = vand.u32 %v3826, 4294901760
        %v4416 = vsub.f32 %v3826, %v4415
        %4417 = vmatmul.mubr.f32.gmra.mxu0 %v4416
        %v4418 = vpop.f32.mrf.mxu0
        %v4419 = vadd.f32 %v4221, %v4418
        %v4420 = vpop.f32.mrf.mxu0
        %v4421 = vadd.f32 %v4223, %v4420
        %4422 = vmatprep.mubr.f32.mxu0 0.0
        %v4423 = vand.u32 %v3828, 4294901760
        %v4424 = vsub.f32 %v3828, %v4423
        %4425 = vmatmul.mubr.f32.gmra.mxu0 %v4424
        %v4426 = vpop.f32.mrf.mxu0
        %v4427 = vadd.f32 %v4228, %v4426
        %v4428 = vpop.f32.mrf.mxu0
        %v4429 = vadd.f32 %v4230, %v4428
        %4430 = vmatprep.mubr.f32.mxu0 0.0
        %v4431 = vand.u32 %v3830, 4294901760
        %v4432 = vsub.f32 %v3830, %v4431
        %4433 = vmatmul.mubr.f32.gmra.mxu0 %v4432
        %v4434 = vpop.f32.mrf.mxu0
        %v4435 = vadd.f32 %v4235, %v4434
        %v4436 = vpop.f32.mrf.mxu0
        %v4437 = vadd.f32 %v4237, %v4436
        %4438 = vmatprep.mubr.f32.mxu0 0.0
        %v4439 = vand.u32 %v3832, 4294901760
        %v4440 = vsub.f32 %v3832, %v4439
        %4441 = vmatmul.mubr.f32.gmra.mxu0 %v4440
        %v4442 = vpop.f32.mrf.mxu0
        %v4443 = vadd.f32 %v4242, %v4442
        %v4444 = vpop.f32.mrf.mxu0
        %v4445 = vadd.f32 %v4244, %v4444
        %4446 = vmatprep.mubr.f32.mxu0 0.0
        %v4447 = vand.u32 %v3834, 4294901760
        %v4448 = vsub.f32 %v3834, %v4447
        %4449 = vmatmul.mubr.f32.gmra.mxu0 %v4448
        %v4450 = vpop.f32.mrf.mxu0
        %v4451 = vadd.f32 %v4249, %v4450
        %v4452 = vpop.f32.mrf.mxu0
        %v4453 = vadd.f32 %v4251, %v4452
        %4454 = vmatprep.mubr.f32.mxu0 0.0
        %v4455 = vand.u32 %v3836, 4294901760
        %v4456 = vsub.f32 %v3836, %v4455
        %4457 = vmatmul.mubr.f32.gmra.mxu0 %v4456
        %v4458 = vpop.f32.mrf.mxu0
        %v4459 = vadd.f32 %v4256, %v4458
        %v4460 = vpop.f32.mrf.mxu0
        %v4461 = vadd.f32 %v4258, %v4460
        %4462 = vmatprep.mubr.f32.mxu0 0.0
        %v4463 = vand.u32 %v3838, 4294901760
        %v4464 = vsub.f32 %v3838, %v4463
        %4465 = vmatmul.mubr.f32.gmra.mxu0 %v4464
        %v4466 = vpop.f32.mrf.mxu0
        %v4467 = vadd.f32 %v4263, %v4466
        %v4468 = vpop.f32.mrf.mxu0
        %v4469 = vadd.f32 %v4265, %v4468
        %4470 = vmatprep.mubr.f32.mxu0 0.0
        %v4471 = vand.u32 %v3840, 4294901760
        %v4472 = vsub.f32 %v3840, %v4471
        %4473 = vmatmul.mubr.f32.gmra.mxu0 %v4472
        %v4474 = vpop.f32.mrf.mxu0
        %v4475 = vadd.f32 %v4270, %v4474
        %v4476 = vpop.f32.mrf.mxu0
        %v4477 = vadd.f32 %v4272, %v4476
        %4478 = vmatprep.mubr.f32.mxu0 0.0
        %v4479 = vand.u32 %v3842, 4294901760
        %v4480 = vsub.f32 %v3842, %v4479
        %4481 = vmatmul.mubr.f32.gmra.mxu0 %v4480
        %v4482 = vpop.f32.mrf.mxu0
        %v4483 = vadd.f32 %v4277, %v4482
        %v4484 = vpop.f32.mrf.mxu0
        %v4485 = vadd.f32 %v4279, %v4484
        %4486 = vmatprep.mubr.f32.mxu0 0.0
        %v4487 = vand.u32 %v3844, 4294901760
        %v4488 = vsub.f32 %v3844, %v4487
        %4489 = vmatmul.mubr.f32.gmra.mxu0 %v4488
        %v4490 = vpop.f32.mrf.mxu0
        %v4491 = vadd.f32 %v4284, %v4490
        %v4492 = vpop.f32.mrf.mxu0
        %v4493 = vadd.f32 %v4286, %v4492
        %4494 = vmatprep.mubr.f32.mxu0 0.0
        %v4495 = vand.u32 %v3846, 4294901760
        %v4496 = vsub.f32 %v3846, %v4495
        %4497 = vmatmul.mubr.f32.gmra.mxu0 %v4496
        %v4498 = vpop.f32.mrf.mxu0
        %v4499 = vadd.f32 %v4291, %v4498
        %v4500 = vpop.f32.mrf.mxu0
        %v4501 = vadd.f32 %v4293, %v4500
        %4502 = vmatprep.mubr.f32.mxu0 0.0
        %v4503 = vand.u32 %v3848, 4294901760
        %v4504 = vsub.f32 %v3848, %v4503
        %4505 = vmatmul.mubr.f32.gmra.mxu0 %v4504
        %v4506 = vpop.f32.mrf.mxu0
        %v4507 = vadd.f32 %v4298, %v4506
        %v4508 = vpop.f32.mrf.mxu0
        %v4509 = vadd.f32 %v4300, %v4508
        %4510 = vmatprep.mubr.f32.mxu0 0.0
        %v4511 = vand.u32 %v3850, 4294901760
        %v4512 = vsub.f32 %v3850, %v4511
        %4513 = vmatmul.mubr.f32.gmra.mxu0 %v4512
        %v4514 = vpop.f32.mrf.mxu0
        %v4515 = vadd.f32 %v4305, %v4514
        %v4516 = vpop.f32.mrf.mxu0
        %v4517 = vadd.f32 %v4307, %v4516
        %4518 = vmatprep.mubr.f32.mxu0 0.0
        %v4519 = vand.u32 %v3852, 4294901760
        %v4520 = vsub.f32 %v3852, %v4519
        %4521 = vmatmul.mubr.f32.gmra.mxu0 %v4520
        %v4522 = vpop.f32.mrf.mxu0
        %v4523 = vadd.f32 %v4312, %v4522
        %v4524 = vpop.f32.mrf.mxu0
        %v4525 = vadd.f32 %v4314, %v4524
        %4526 = vmatprep.mubr.f32.mxu0 0.0
        %v4527 = vand.u32 %v3854, 4294901760
        %v4528 = vsub.f32 %v3854, %v4527
        %4529 = vmatmul.mubr.f32.gmra.mxu0 %v4528
        %v4530 = vpop.f32.mrf.mxu0
        %v4531 = vadd.f32 %v4319, %v4530
        %v4532 = vpop.f32.mrf.mxu0
        %v4533 = vadd.f32 %v4321, %v4532
        %4534 = vmatprep.mubr.f32.mxu0 0.0
        %v4535 = vand.u32 %v3856, 4294901760
        %v4536 = vsub.f32 %v3856, %v4535
        %4537 = vmatmul.mubr.f32.gmra.mxu0 %v4536
        %v4538 = vpop.f32.mrf.mxu0
        %v4539 = vadd.f32 %v4326, %v4538
        %v4540 = vpop.f32.mrf.mxu0
        %v4541 = vadd.f32 %v4328, %v4540
        %4542 = vdwg.mxu0
        %4543 = vmatprep.subr.mxu0 0.0
        %4544 = vmatpush1.msra.mxu0 0.0
        %4545 = vmatprep.subr.mxu0 0.0
        %4546 = vmatpush1.msra.mxu0 0.0
        %4547 = vmatprep.subr.mxu0 0.0
        %4548 = vmatpush1.msra.mxu0 0.0
        %4549 = vmatprep.subr.mxu0 0.0
        %4550 = vmatpush1.msra.mxu0 0.0
        %4551 = vmatprep.subr.mxu0 0.0
        %4552 = vmatpush1.msra.mxu0 0.0
        %4553 = vmatprep.subr.mxu0 0.0
        %4554 = vmatpush1.msra.mxu0 0.0
        %4555 = vmatprep.subr.mxu0 0.0
        %4556 = vmatpush1.msra.mxu0 0.0
        %4557 = vmatprep.subr.mxu0 0.0
        %4558 = vmatpush1.msra.mxu0 0.0
        %4559 = vmatprep.subr.mxu0 0.0
        %4560 = vmatpush1.msra.mxu0 0.0
        %4561 = vmatprep.subr.mxu0 0.0
        %4562 = vmatpush1.msra.mxu0 0.0
        %4563 = vmatprep.subr.mxu0 0.0
        %4564 = vmatpush1.msra.mxu0 0.0
        %4565 = vmatprep.subr.mxu0 0.0
        %4566 = vmatpush1.msra.mxu0 0.0
        %4567 = vmatprep.subr.mxu0 0.0
        %4568 = vmatpush1.msra.mxu0 0.0
        %4569 = vmatprep.subr.mxu0 0.0
        %4570 = vmatpush1.msra.mxu0 0.0
        %4571 = vmatprep.subr.mxu0 0.0
        %4572 = vmatpush1.msra.mxu0 0.0
        %v4573 = vand.u32 %v3860, 4294901760
        %4574 = vmatprep.subr.mxu0 %v4573
        %v4575 = vand.u32 %v3858, 4294901760
        %4576 = vmatpush1.msra.mxu0 %v4575
        %4577 = vmatprep.subr.mxu0 0.0
        %4578 = vmatpush2.msra.mxu0 0.0
        %4579 = vmatprep.subr.mxu0 0.0
        %4580 = vmatpush2.msra.mxu0 0.0
        %4581 = vmatprep.subr.mxu0 0.0
        %4582 = vmatpush2.msra.mxu0 0.0
        %4583 = vmatprep.subr.mxu0 0.0
        %4584 = vmatpush2.msra.mxu0 0.0
        %4585 = vmatprep.subr.mxu0 0.0
        %4586 = vmatpush2.msra.mxu0 0.0
        %4587 = vmatprep.subr.mxu0 0.0
        %4588 = vmatpush2.msra.mxu0 0.0
        %4589 = vmatprep.subr.mxu0 0.0
        %4590 = vmatpush2.msra.mxu0 0.0
        %4591 = vmatprep.subr.mxu0 0.0
        %4592 = vmatpush2.msra.mxu0 0.0
        %4593 = vmatprep.subr.mxu0 0.0
        %4594 = vmatpush2.msra.mxu0 0.0
        %4595 = vmatprep.subr.mxu0 0.0
        %4596 = vmatpush2.msra.mxu0 0.0
        %4597 = vmatprep.subr.mxu0 0.0
        %4598 = vmatpush2.msra.mxu0 0.0
        %4599 = vmatprep.subr.mxu0 0.0
        %4600 = vmatpush2.msra.mxu0 0.0
        %4601 = vmatprep.subr.mxu0 0.0
        %4602 = vmatpush2.msra.mxu0 0.0
        %4603 = vmatprep.subr.mxu0 0.0
        %4604 = vmatpush2.msra.mxu0 0.0
        %4605 = vmatprep.subr.mxu0 0.0
        %4606 = vmatpush2.msra.mxu0 0.0
        %4607 = vmatprep.subr.mxu0 0.0
        %4608 = vmatpush2.msra.mxu0 0.0
        %4609 = vmatprep.mubr.f32.mxu0 0.0
        %v4610 = vand.u32 %v3822, 4294901760
        %v4611 = vsub.f32 %v3822, %v4610
        %v4612 = vand.u32 %v4611, 4294901760
        %4613 = vmatmul.mubr.f32.gmra.mxu0 %v4612
        %v4614 = vpop.f32.mrf.mxu0
        %v4615 = vadd.f32 %v4403, %v4614
        %v4616 = vpop.f32.mrf.mxu0
        %v4617 = vadd.f32 %v4405, %v4616
        %4618 = vmatprep.mubr.f32.mxu0 0.0
        %v4619 = vand.u32 %v3824, 4294901760
        %v4620 = vsub.f32 %v3824, %v4619
        %v4621 = vand.u32 %v4620, 4294901760
        %4622 = vmatmul.mubr.f32.gmra.mxu0 %v4621
        %v4623 = vpop.f32.mrf.mxu0
        %v4624 = vadd.f32 %v4411, %v4623
        %v4625 = vpop.f32.mrf.mxu0
        %v4626 = vadd.f32 %v4413, %v4625
        %4627 = vmatprep.mubr.f32.mxu0 0.0
        %v4628 = vand.u32 %v3826, 4294901760
        %v4629 = vsub.f32 %v3826, %v4628
        %v4630 = vand.u32 %v4629, 4294901760
        %4631 = vmatmul.mubr.f32.gmra.mxu0 %v4630
        %v4632 = vpop.f32.mrf.mxu0
        %v4633 = vadd.f32 %v4419, %v4632
        %v4634 = vpop.f32.mrf.mxu0
        %v4635 = vadd.f32 %v4421, %v4634
        %4636 = vmatprep.mubr.f32.mxu0 0.0
        %v4637 = vand.u32 %v3828, 4294901760
        %v4638 = vsub.f32 %v3828, %v4637
        %v4639 = vand.u32 %v4638, 4294901760
        %4640 = vmatmul.mubr.f32.gmra.mxu0 %v4639
        %v4641 = vpop.f32.mrf.mxu0
        %v4642 = vadd.f32 %v4427, %v4641
        %v4643 = vpop.f32.mrf.mxu0
        %v4644 = vadd.f32 %v4429, %v4643
        %4645 = vmatprep.mubr.f32.mxu0 0.0
        %v4646 = vand.u32 %v3830, 4294901760
        %v4647 = vsub.f32 %v3830, %v4646
        %v4648 = vand.u32 %v4647, 4294901760
        %4649 = vmatmul.mubr.f32.gmra.mxu0 %v4648
        %v4650 = vpop.f32.mrf.mxu0
        %v4651 = vadd.f32 %v4435, %v4650
        %v4652 = vpop.f32.mrf.mxu0
        %v4653 = vadd.f32 %v4437, %v4652
        %4654 = vmatprep.mubr.f32.mxu0 0.0
        %v4655 = vand.u32 %v3832, 4294901760
        %v4656 = vsub.f32 %v3832, %v4655
        %v4657 = vand.u32 %v4656, 4294901760
        %4658 = vmatmul.mubr.f32.gmra.mxu0 %v4657
        %v4659 = vpop.f32.mrf.mxu0
        %v4660 = vadd.f32 %v4443, %v4659
        %v4661 = vpop.f32.mrf.mxu0
        %v4662 = vadd.f32 %v4445, %v4661
        %4663 = vmatprep.mubr.f32.mxu0 0.0
        %v4664 = vand.u32 %v3834, 4294901760
        %v4665 = vsub.f32 %v3834, %v4664
        %v4666 = vand.u32 %v4665, 4294901760
        %4667 = vmatmul.mubr.f32.gmra.mxu0 %v4666
        %v4668 = vpop.f32.mrf.mxu0
        %v4669 = vadd.f32 %v4451, %v4668
        %v4670 = vpop.f32.mrf.mxu0
        %v4671 = vadd.f32 %v4453, %v4670
        %4672 = vmatprep.mubr.f32.mxu0 0.0
        %v4673 = vand.u32 %v3836, 4294901760
        %v4674 = vsub.f32 %v3836, %v4673
        %v4675 = vand.u32 %v4674, 4294901760
        %4676 = vmatmul.mubr.f32.gmra.mxu0 %v4675
        %v4677 = vpop.f32.mrf.mxu0
        %v4678 = vadd.f32 %v4459, %v4677
        %v4679 = vpop.f32.mrf.mxu0
        %v4680 = vadd.f32 %v4461, %v4679
        %4681 = vmatprep.mubr.f32.mxu0 0.0
        %v4682 = vand.u32 %v3838, 4294901760
        %v4683 = vsub.f32 %v3838, %v4682
        %v4684 = vand.u32 %v4683, 4294901760
        %4685 = vmatmul.mubr.f32.gmra.mxu0 %v4684
        %v4686 = vpop.f32.mrf.mxu0
        %v4687 = vadd.f32 %v4467, %v4686
        %v4688 = vpop.f32.mrf.mxu0
        %v4689 = vadd.f32 %v4469, %v4688
        %4690 = vmatprep.mubr.f32.mxu0 0.0
        %v4691 = vand.u32 %v3840, 4294901760
        %v4692 = vsub.f32 %v3840, %v4691
        %v4693 = vand.u32 %v4692, 4294901760
        %4694 = vmatmul.mubr.f32.gmra.mxu0 %v4693
        %v4695 = vpop.f32.mrf.mxu0
        %v4696 = vadd.f32 %v4475, %v4695
        %v4697 = vpop.f32.mrf.mxu0
        %v4698 = vadd.f32 %v4477, %v4697
        %4699 = vmatprep.mubr.f32.mxu0 0.0
        %v4700 = vand.u32 %v3842, 4294901760
        %v4701 = vsub.f32 %v3842, %v4700
        %v4702 = vand.u32 %v4701, 4294901760
        %4703 = vmatmul.mubr.f32.gmra.mxu0 %v4702
        %v4704 = vpop.f32.mrf.mxu0
        %v4705 = vadd.f32 %v4483, %v4704
        %v4706 = vpop.f32.mrf.mxu0
        %v4707 = vadd.f32 %v4485, %v4706
        %4708 = vmatprep.mubr.f32.mxu0 0.0
        %v4709 = vand.u32 %v3844, 4294901760
        %v4710 = vsub.f32 %v3844, %v4709
        %v4711 = vand.u32 %v4710, 4294901760
        %4712 = vmatmul.mubr.f32.gmra.mxu0 %v4711
        %v4713 = vpop.f32.mrf.mxu0
        %v4714 = vadd.f32 %v4491, %v4713
        %v4715 = vpop.f32.mrf.mxu0
        %v4716 = vadd.f32 %v4493, %v4715
        %4717 = vmatprep.mubr.f32.mxu0 0.0
        %v4718 = vand.u32 %v3846, 4294901760
        %v4719 = vsub.f32 %v3846, %v4718
        %v4720 = vand.u32 %v4719, 4294901760
        %4721 = vmatmul.mubr.f32.gmra.mxu0 %v4720
        %v4722 = vpop.f32.mrf.mxu0
        %v4723 = vadd.f32 %v4499, %v4722
        %v4724 = vpop.f32.mrf.mxu0
        %v4725 = vadd.f32 %v4501, %v4724
        %4726 = vmatprep.mubr.f32.mxu0 0.0
        %v4727 = vand.u32 %v3848, 4294901760
        %v4728 = vsub.f32 %v3848, %v4727
        %v4729 = vand.u32 %v4728, 4294901760
        %4730 = vmatmul.mubr.f32.gmra.mxu0 %v4729
        %v4731 = vpop.f32.mrf.mxu0
        %v4732 = vadd.f32 %v4507, %v4731
        %v4733 = vpop.f32.mrf.mxu0
        %v4734 = vadd.f32 %v4509, %v4733
        %4735 = vmatprep.mubr.f32.mxu0 0.0
        %v4736 = vand.u32 %v3850, 4294901760
        %v4737 = vsub.f32 %v3850, %v4736
        %v4738 = vand.u32 %v4737, 4294901760
        %4739 = vmatmul.mubr.f32.gmra.mxu0 %v4738
        %v4740 = vpop.f32.mrf.mxu0
        %v4741 = vadd.f32 %v4515, %v4740
        %v4742 = vpop.f32.mrf.mxu0
        %v4743 = vadd.f32 %v4517, %v4742
        %4744 = vmatprep.mubr.f32.mxu0 0.0
        %v4745 = vand.u32 %v3852, 4294901760
        %v4746 = vsub.f32 %v3852, %v4745
        %v4747 = vand.u32 %v4746, 4294901760
        %4748 = vmatmul.mubr.f32.gmra.mxu0 %v4747
        %v4749 = vpop.f32.mrf.mxu0
        %v4750 = vadd.f32 %v4523, %v4749
        %v4751 = vpop.f32.mrf.mxu0
        %v4752 = vadd.f32 %v4525, %v4751
        %4753 = vmatprep.mubr.f32.mxu0 0.0
        %v4754 = vand.u32 %v3854, 4294901760
        %v4755 = vsub.f32 %v3854, %v4754
        %v4756 = vand.u32 %v4755, 4294901760
        %4757 = vmatmul.mubr.f32.gmra.mxu0 %v4756
        %v4758 = vpop.f32.mrf.mxu0
        %v4759 = vadd.f32 %v4531, %v4758
        %v4760 = vpop.f32.mrf.mxu0
        %v4761 = vadd.f32 %v4533, %v4760
        %4762 = vmatprep.mubr.f32.mxu0 0.0
        %v4763 = vand.u32 %v3856, 4294901760
        %v4764 = vsub.f32 %v3856, %v4763
        %v4765 = vand.u32 %v4764, 4294901760
        %4766 = vmatmul.mubr.f32.gmra.mxu0 %v4765
        %v4767 = vpop.f32.mrf.mxu0
        %v4768 = vadd.f32 %v4539, %v4767
        %v4769 = vpop.f32.mrf.mxu0
        %v4770 = vadd.f32 %v4541, %v4769
        %4771 = vdwg.mxu0
        %4772 = vmatprep.subr.mxu0 0.0
        %4773 = vmatpush1.msra.mxu0 0.0
        %4774 = vmatprep.subr.mxu0 0.0
        %4775 = vmatpush1.msra.mxu0 0.0
        %4776 = vmatprep.subr.mxu0 0.0
        %4777 = vmatpush1.msra.mxu0 0.0
        %4778 = vmatprep.subr.mxu0 0.0
        %4779 = vmatpush1.msra.mxu0 0.0
        %4780 = vmatprep.subr.mxu0 0.0
        %4781 = vmatpush1.msra.mxu0 0.0
        %4782 = vmatprep.subr.mxu0 0.0
        %4783 = vmatpush1.msra.mxu0 0.0
        %4784 = vmatprep.subr.mxu0 0.0
        %4785 = vmatpush1.msra.mxu0 0.0
        %4786 = vmatprep.subr.mxu0 0.0
        %4787 = vmatpush1.msra.mxu0 0.0
        %4788 = vmatprep.subr.mxu0 0.0
        %4789 = vmatpush1.msra.mxu0 0.0
        %4790 = vmatprep.subr.mxu0 0.0
        %4791 = vmatpush1.msra.mxu0 0.0
        %4792 = vmatprep.subr.mxu0 0.0
        %4793 = vmatpush1.msra.mxu0 0.0
        %4794 = vmatprep.subr.mxu0 0.0
        %4795 = vmatpush1.msra.mxu0 0.0
        %4796 = vmatprep.subr.mxu0 0.0
        %4797 = vmatpush1.msra.mxu0 0.0
        %4798 = vmatprep.subr.mxu0 0.0
        %4799 = vmatpush1.msra.mxu0 0.0
        %4800 = vmatprep.subr.mxu0 0.0
        %4801 = vmatpush1.msra.mxu0 0.0
        %v4802 = vand.u32 %v3860, 4294901760
        %v4803 = vsub.f32 %v3860, %v4802
        %v4804 = vand.u32 %v4803, 4294901760
        %4805 = vmatprep.subr.mxu0 %v4804
        %v4806 = vand.u32 %v3858, 4294901760
        %v4807 = vsub.f32 %v3858, %v4806
        %v4808 = vand.u32 %v4807, 4294901760
        %4809 = vmatpush1.msra.mxu0 %v4808
        %4810 = vmatprep.subr.mxu0 0.0
        %4811 = vmatpush2.msra.mxu0 0.0
        %4812 = vmatprep.subr.mxu0 0.0
        %4813 = vmatpush2.msra.mxu0 0.0
        %4814 = vmatprep.subr.mxu0 0.0
        %4815 = vmatpush2.msra.mxu0 0.0
        %4816 = vmatprep.subr.mxu0 0.0
        %4817 = vmatpush2.msra.mxu0 0.0
        %4818 = vmatprep.subr.mxu0 0.0
        %4819 = vmatpush2.msra.mxu0 0.0
        %4820 = vmatprep.subr.mxu0 0.0
        %4821 = vmatpush2.msra.mxu0 0.0
        %4822 = vmatprep.subr.mxu0 0.0
        %4823 = vmatpush2.msra.mxu0 0.0
        %4824 = vmatprep.subr.mxu0 0.0
        %4825 = vmatpush2.msra.mxu0 0.0
        %4826 = vmatprep.subr.mxu0 0.0
        %4827 = vmatpush2.msra.mxu0 0.0
        %4828 = vmatprep.subr.mxu0 0.0
        %4829 = vmatpush2.msra.mxu0 0.0
        %4830 = vmatprep.subr.mxu0 0.0
        %4831 = vmatpush2.msra.mxu0 0.0
        %4832 = vmatprep.subr.mxu0 0.0
        %4833 = vmatpush2.msra.mxu0 0.0
        %4834 = vmatprep.subr.mxu0 0.0
        %4835 = vmatpush2.msra.mxu0 0.0
        %4836 = vmatprep.subr.mxu0 0.0
        %4837 = vmatpush2.msra.mxu0 0.0
        %4838 = vmatprep.subr.mxu0 0.0
        %4839 = vmatpush2.msra.mxu0 0.0
        %4840 = vmatprep.subr.mxu0 0.0
        %4841 = vmatpush2.msra.mxu0 0.0
        %4842 = vmatprep.mubr.f32.mxu0 0.0
        %v4843 = vand.u32 %v3822, 4294901760
        %4844 = vmatmul.mubr.f32.gmra.mxu0 %v4843
        %v4845 = vpop.f32.mrf.mxu0
        %v4846 = vadd.f32 %v4615, %v4845
        %v4847 = vpop.f32.mrf.mxu0
        %v4848 = vadd.f32 %v4617, %v4847
        %4849 = vmatprep.mubr.f32.mxu0 0.0
        %v4850 = vand.u32 %v3824, 4294901760
        %4851 = vmatmul.mubr.f32.gmra.mxu0 %v4850
        %v4852 = vpop.f32.mrf.mxu0
        %v4853 = vadd.f32 %v4624, %v4852
        %v4854 = vpop.f32.mrf.mxu0
        %v4855 = vadd.f32 %v4626, %v4854
        %4856 = vmatprep.mubr.f32.mxu0 0.0
        %v4857 = vand.u32 %v3826, 4294901760
        %4858 = vmatmul.mubr.f32.gmra.mxu0 %v4857
        %v4859 = vpop.f32.mrf.mxu0
        %v4860 = vadd.f32 %v4633, %v4859
        %v4861 = vpop.f32.mrf.mxu0
        %v4862 = vadd.f32 %v4635, %v4861
        %4863 = vmatprep.mubr.f32.mxu0 0.0
        %v4864 = vand.u32 %v3828, 4294901760
        %4865 = vmatmul.mubr.f32.gmra.mxu0 %v4864
        %v4866 = vpop.f32.mrf.mxu0
        %v4867 = vadd.f32 %v4642, %v4866
        %v4868 = vpop.f32.mrf.mxu0
        %v4869 = vadd.f32 %v4644, %v4868
        %4870 = vmatprep.mubr.f32.mxu0 0.0
        %v4871 = vand.u32 %v3830, 4294901760
        %4872 = vmatmul.mubr.f32.gmra.mxu0 %v4871
        %v4873 = vpop.f32.mrf.mxu0
        %v4874 = vadd.f32 %v4651, %v4873
        %v4875 = vpop.f32.mrf.mxu0
        %v4876 = vadd.f32 %v4653, %v4875
        %4877 = vmatprep.mubr.f32.mxu0 0.0
        %v4878 = vand.u32 %v3832, 4294901760
        %4879 = vmatmul.mubr.f32.gmra.mxu0 %v4878
        %v4880 = vpop.f32.mrf.mxu0
        %v4881 = vadd.f32 %v4660, %v4880
        %v4882 = vpop.f32.mrf.mxu0
        %v4883 = vadd.f32 %v4662, %v4882
        %4884 = vmatprep.mubr.f32.mxu0 0.0
        %v4885 = vand.u32 %v3834, 4294901760
        %4886 = vmatmul.mubr.f32.gmra.mxu0 %v4885
        %v4887 = vpop.f32.mrf.mxu0
        %v4888 = vadd.f32 %v4669, %v4887
        %v4889 = vpop.f32.mrf.mxu0
        %v4890 = vadd.f32 %v4671, %v4889
        %4891 = vmatprep.mubr.f32.mxu0 0.0
        %v4892 = vand.u32 %v3836, 4294901760
        %4893 = vmatmul.mubr.f32.gmra.mxu0 %v4892
        %v4894 = vpop.f32.mrf.mxu0
        %v4895 = vadd.f32 %v4678, %v4894
        %v4896 = vpop.f32.mrf.mxu0
        %v4897 = vadd.f32 %v4680, %v4896
        %4898 = vmatprep.mubr.f32.mxu0 0.0
        %v4899 = vand.u32 %v3838, 4294901760
        %4900 = vmatmul.mubr.f32.gmra.mxu0 %v4899
        %v4901 = vpop.f32.mrf.mxu0
        %v4902 = vadd.f32 %v4687, %v4901
        %v4903 = vpop.f32.mrf.mxu0
        %v4904 = vadd.f32 %v4689, %v4903
        %4905 = vmatprep.mubr.f32.mxu0 0.0
        %v4906 = vand.u32 %v3840, 4294901760
        %4907 = vmatmul.mubr.f32.gmra.mxu0 %v4906
        %v4908 = vpop.f32.mrf.mxu0
        %v4909 = vadd.f32 %v4696, %v4908
        %v4910 = vpop.f32.mrf.mxu0
        %v4911 = vadd.f32 %v4698, %v4910
        %4912 = vmatprep.mubr.f32.mxu0 0.0
        %v4913 = vand.u32 %v3842, 4294901760
        %4914 = vmatmul.mubr.f32.gmra.mxu0 %v4913
        %v4915 = vpop.f32.mrf.mxu0
        %v4916 = vadd.f32 %v4705, %v4915
        %v4917 = vpop.f32.mrf.mxu0
        %v4918 = vadd.f32 %v4707, %v4917
        %4919 = vmatprep.mubr.f32.mxu0 0.0
        %v4920 = vand.u32 %v3844, 4294901760
        %4921 = vmatmul.mubr.f32.gmra.mxu0 %v4920
        %v4922 = vpop.f32.mrf.mxu0
        %v4923 = vadd.f32 %v4714, %v4922
        %v4924 = vpop.f32.mrf.mxu0
        %v4925 = vadd.f32 %v4716, %v4924
        %4926 = vmatprep.mubr.f32.mxu0 0.0
        %v4927 = vand.u32 %v3846, 4294901760
        %4928 = vmatmul.mubr.f32.gmra.mxu0 %v4927
        %v4929 = vpop.f32.mrf.mxu0
        %v4930 = vadd.f32 %v4723, %v4929
        %v4931 = vpop.f32.mrf.mxu0
        %v4932 = vadd.f32 %v4725, %v4931
        %4933 = vmatprep.mubr.f32.mxu0 0.0
        %v4934 = vand.u32 %v3848, 4294901760
        %4935 = vmatmul.mubr.f32.gmra.mxu0 %v4934
        %v4936 = vpop.f32.mrf.mxu0
        %v4937 = vadd.f32 %v4732, %v4936
        %v4938 = vpop.f32.mrf.mxu0
        %v4939 = vadd.f32 %v4734, %v4938
        %4940 = vmatprep.mubr.f32.mxu0 0.0
        %v4941 = vand.u32 %v3850, 4294901760
        %4942 = vmatmul.mubr.f32.gmra.mxu0 %v4941
        %v4943 = vpop.f32.mrf.mxu0
        %v4944 = vadd.f32 %v4741, %v4943
        %v4945 = vpop.f32.mrf.mxu0
        %v4946 = vadd.f32 %v4743, %v4945
        %4947 = vmatprep.mubr.f32.mxu0 0.0
        %v4948 = vand.u32 %v3852, 4294901760
        %4949 = vmatmul.mubr.f32.gmra.mxu0 %v4948
        %v4950 = vpop.f32.mrf.mxu0
        %v4951 = vadd.f32 %v4750, %v4950
        %v4952 = vpop.f32.mrf.mxu0
        %v4953 = vadd.f32 %v4752, %v4952
        %4954 = vmatprep.mubr.f32.mxu0 0.0
        %v4955 = vand.u32 %v3854, 4294901760
        %4956 = vmatmul.mubr.f32.gmra.mxu0 %v4955
        %v4957 = vpop.f32.mrf.mxu0
        %v4958 = vadd.f32 %v4759, %v4957
        %v4959 = vpop.f32.mrf.mxu0
        %v4960 = vadd.f32 %v4761, %v4959
        %4961 = vmatprep.mubr.f32.mxu0 0.0
        %v4962 = vand.u32 %v3856, 4294901760
        %4963 = vmatmul.mubr.f32.gmra.mxu0 %v4962
        %v4964 = vpop.f32.mrf.mxu0
        %v4965 = vadd.f32 %v4768, %v4964
        %v4966 = vpop.f32.mrf.mxu0
        %v4967 = vadd.f32 %v4770, %v4966
        %4968 = vdwg.mxu0
        %4969 = vmatprep.subr.mxu0 0.0
        %4970 = vmatpush1.msra.mxu0 0.0
        %4971 = vmatprep.subr.mxu0 0.0
        %4972 = vmatpush1.msra.mxu0 0.0
        %4973 = vmatprep.subr.mxu0 0.0
        %4974 = vmatpush1.msra.mxu0 0.0
        %4975 = vmatprep.subr.mxu0 0.0
        %4976 = vmatpush1.msra.mxu0 0.0
        %4977 = vmatprep.subr.mxu0 0.0
        %4978 = vmatpush1.msra.mxu0 0.0
        %4979 = vmatprep.subr.mxu0 0.0
        %4980 = vmatpush1.msra.mxu0 0.0
        %4981 = vmatprep.subr.mxu0 0.0
        %4982 = vmatpush1.msra.mxu0 0.0
        %4983 = vmatprep.subr.mxu0 0.0
        %4984 = vmatpush1.msra.mxu0 0.0
        %4985 = vmatprep.subr.mxu0 0.0
        %4986 = vmatpush1.msra.mxu0 0.0
        %4987 = vmatprep.subr.mxu0 0.0
        %4988 = vmatpush1.msra.mxu0 0.0
        %4989 = vmatprep.subr.mxu0 0.0
        %4990 = vmatpush1.msra.mxu0 0.0
        %4991 = vmatprep.subr.mxu0 0.0
        %4992 = vmatpush1.msra.mxu0 0.0
        %4993 = vmatprep.subr.mxu0 0.0
        %4994 = vmatpush1.msra.mxu0 0.0
        %4995 = vmatprep.subr.mxu0 0.0
        %4996 = vmatpush1.msra.mxu0 0.0
        %4997 = vmatprep.subr.mxu0 0.0
        %4998 = vmatpush1.msra.mxu0 0.0
        %v4999 = vand.u32 %v3860, 4294901760
        %5000 = vmatprep.subr.mxu0 %v4999
        %v5001 = vand.u32 %v3858, 4294901760
        %5002 = vmatpush1.msra.mxu0 %v5001
        %5003 = vmatprep.subr.mxu0 0.0
        %5004 = vmatpush2.msra.mxu0 0.0
        %5005 = vmatprep.subr.mxu0 0.0
        %5006 = vmatpush2.msra.mxu0 0.0
        %5007 = vmatprep.subr.mxu0 0.0
        %5008 = vmatpush2.msra.mxu0 0.0
        %5009 = vmatprep.subr.mxu0 0.0
        %5010 = vmatpush2.msra.mxu0 0.0
        %5011 = vmatprep.subr.mxu0 0.0
        %5012 = vmatpush2.msra.mxu0 0.0
        %5013 = vmatprep.subr.mxu0 0.0
        %5014 = vmatpush2.msra.mxu0 0.0
        %5015 = vmatprep.subr.mxu0 0.0
        %5016 = vmatpush2.msra.mxu0 0.0
        %5017 = vmatprep.subr.mxu0 0.0
        %5018 = vmatpush2.msra.mxu0 0.0
        %5019 = vmatprep.subr.mxu0 0.0
        %5020 = vmatpush2.msra.mxu0 0.0
        %5021 = vmatprep.subr.mxu0 0.0
        %5022 = vmatpush2.msra.mxu0 0.0
        %5023 = vmatprep.subr.mxu0 0.0
        %5024 = vmatpush2.msra.mxu0 0.0
        %5025 = vmatprep.subr.mxu0 0.0
        %5026 = vmatpush2.msra.mxu0 0.0
        %5027 = vmatprep.subr.mxu0 0.0
        %5028 = vmatpush2.msra.mxu0 0.0
        %5029 = vmatprep.subr.mxu0 0.0
        %5030 = vmatpush2.msra.mxu0 0.0
        %5031 = vmatprep.subr.mxu0 0.0
        %5032 = vmatpush2.msra.mxu0 0.0
        %5033 = vmatprep.subr.mxu0 0.0
        %5034 = vmatpush2.msra.mxu0 0.0
        %5035 = vmatprep.mubr.f32.mxu0 0.0
        %v5036 = vand.u32 %v3822, 4294901760
        %5037 = vmatmul.mubr.f32.gmra.mxu0 %v5036
        %v5038 = vpop.f32.mrf.mxu0
        %v5039 = vadd.f32 %v4846, %v5038
        %v5040 = vpop.f32.mrf.mxu0
        %v5041 = vadd.f32 %v4848, %v5040
        %5042 = vmatprep.mubr.f32.mxu0 0.0
        %v5043 = vand.u32 %v3824, 4294901760
        %5044 = vmatmul.mubr.f32.gmra.mxu0 %v5043
        %v5045 = vpop.f32.mrf.mxu0
        %v5046 = vadd.f32 %v4853, %v5045
        %v5047 = vpop.f32.mrf.mxu0
        %v5048 = vadd.f32 %v4855, %v5047
        %5049 = vmatprep.mubr.f32.mxu0 0.0
        %v5050 = vand.u32 %v3826, 4294901760
        %5051 = vmatmul.mubr.f32.gmra.mxu0 %v5050
        %v5052 = vpop.f32.mrf.mxu0
        %v5053 = vadd.f32 %v4860, %v5052
        %v5054 = vpop.f32.mrf.mxu0
        %v5055 = vadd.f32 %v4862, %v5054
        %5056 = vmatprep.mubr.f32.mxu0 0.0
        %v5057 = vand.u32 %v3828, 4294901760
        %5058 = vmatmul.mubr.f32.gmra.mxu0 %v5057
        %v5059 = vpop.f32.mrf.mxu0
        %v5060 = vadd.f32 %v4867, %v5059
        %v5061 = vpop.f32.mrf.mxu0
        %v5062 = vadd.f32 %v4869, %v5061
        %5063 = vmatprep.mubr.f32.mxu0 0.0
        %v5064 = vand.u32 %v3830, 4294901760
        %5065 = vmatmul.mubr.f32.gmra.mxu0 %v5064
        %v5066 = vpop.f32.mrf.mxu0
        %v5067 = vadd.f32 %v4874, %v5066
        %v5068 = vpop.f32.mrf.mxu0
        %v5069 = vadd.f32 %v4876, %v5068
        %5070 = vmatprep.mubr.f32.mxu0 0.0
        %v5071 = vand.u32 %v3832, 4294901760
        %5072 = vmatmul.mubr.f32.gmra.mxu0 %v5071
        %v5073 = vpop.f32.mrf.mxu0
        %v5074 = vadd.f32 %v4881, %v5073
        %v5075 = vpop.f32.mrf.mxu0
        %v5076 = vadd.f32 %v4883, %v5075
        %5077 = vmatprep.mubr.f32.mxu0 0.0
        %v5078 = vand.u32 %v3834, 4294901760
        %5079 = vmatmul.mubr.f32.gmra.mxu0 %v5078
        %v5080 = vpop.f32.mrf.mxu0
        %v5081 = vadd.f32 %v4888, %v5080
        %v5082 = vpop.f32.mrf.mxu0
        %v5083 = vadd.f32 %v4890, %v5082
        %5084 = vmatprep.mubr.f32.mxu0 0.0
        %v5085 = vand.u32 %v3836, 4294901760
        %5086 = vmatmul.mubr.f32.gmra.mxu0 %v5085
        %v5087 = vpop.f32.mrf.mxu0
        %v5088 = vadd.f32 %v4895, %v5087
        %v5089 = vpop.f32.mrf.mxu0
        %v5090 = vadd.f32 %v4897, %v5089
        %5091 = vmatprep.mubr.f32.mxu0 0.0
        %v5092 = vand.u32 %v3838, 4294901760
        %5093 = vmatmul.mubr.f32.gmra.mxu0 %v5092
        %v5094 = vpop.f32.mrf.mxu0
        %v5095 = vadd.f32 %v4902, %v5094
        %v5096 = vpop.f32.mrf.mxu0
        %v5097 = vadd.f32 %v4904, %v5096
        %5098 = vmatprep.mubr.f32.mxu0 0.0
        %v5099 = vand.u32 %v3840, 4294901760
        %5100 = vmatmul.mubr.f32.gmra.mxu0 %v5099
        %v5101 = vpop.f32.mrf.mxu0
        %v5102 = vadd.f32 %v4909, %v5101
        %v5103 = vpop.f32.mrf.mxu0
        %v5104 = vadd.f32 %v4911, %v5103
        %5105 = vmatprep.mubr.f32.mxu0 0.0
        %v5106 = vand.u32 %v3842, 4294901760
        %5107 = vmatmul.mubr.f32.gmra.mxu0 %v5106
        %v5108 = vpop.f32.mrf.mxu0
        %v5109 = vadd.f32 %v4916, %v5108
        %v5110 = vpop.f32.mrf.mxu0
        %v5111 = vadd.f32 %v4918, %v5110
        %5112 = vmatprep.mubr.f32.mxu0 0.0
        %v5113 = vand.u32 %v3844, 4294901760
        %5114 = vmatmul.mubr.f32.gmra.mxu0 %v5113
        %v5115 = vpop.f32.mrf.mxu0
        %v5116 = vadd.f32 %v4923, %v5115
        %v5117 = vpop.f32.mrf.mxu0
        %v5118 = vadd.f32 %v4925, %v5117
        %5119 = vmatprep.mubr.f32.mxu0 0.0
        %v5120 = vand.u32 %v3846, 4294901760
        %5121 = vmatmul.mubr.f32.gmra.mxu0 %v5120
        %v5122 = vpop.f32.mrf.mxu0
        %v5123 = vadd.f32 %v4930, %v5122
        %v5124 = vpop.f32.mrf.mxu0
        %v5125 = vadd.f32 %v4932, %v5124
        %5126 = vmatprep.mubr.f32.mxu0 0.0
        %v5127 = vand.u32 %v3848, 4294901760
        %5128 = vmatmul.mubr.f32.gmra.mxu0 %v5127
        %v5129 = vpop.f32.mrf.mxu0
        %v5130 = vadd.f32 %v4937, %v5129
        %v5131 = vpop.f32.mrf.mxu0
        %v5132 = vadd.f32 %v4939, %v5131
        %5133 = vmatprep.mubr.f32.mxu0 0.0
        %v5134 = vand.u32 %v3850, 4294901760
        %5135 = vmatmul.mubr.f32.gmra.mxu0 %v5134
        %v5136 = vpop.f32.mrf.mxu0
        %v5137 = vadd.f32 %v4944, %v5136
        %v5138 = vpop.f32.mrf.mxu0
        %v5139 = vadd.f32 %v4946, %v5138
        %5140 = vmatprep.mubr.f32.mxu0 0.0
        %v5141 = vand.u32 %v3852, 4294901760
        %5142 = vmatmul.mubr.f32.gmra.mxu0 %v5141
        %v5143 = vpop.f32.mrf.mxu0
        %v5144 = vadd.f32 %v4951, %v5143
        %v5145 = vpop.f32.mrf.mxu0
        %v5146 = vadd.f32 %v4953, %v5145
        %5147 = vmatprep.mubr.f32.mxu0 0.0
        %v5148 = vand.u32 %v3854, 4294901760
        %5149 = vmatmul.mubr.f32.gmra.mxu0 %v5148
        %v5150 = vpop.f32.mrf.mxu0
        %v5151 = vadd.f32 %v4958, %v5150
        %v5152 = vpop.f32.mrf.mxu0
        %v5153 = vadd.f32 %v4960, %v5152
        %5154 = vmatprep.mubr.f32.mxu0 0.0
        %v5155 = vand.u32 %v3856, 4294901760
        %5156 = vmatmul.mubr.f32.gmra.mxu0 %v5155
        %v5157 = vpop.f32.mrf.mxu0
        %v5158 = vadd.f32 %v4965, %v5157
        %v5159 = vpop.f32.mrf.mxu0
        %v5160 = vadd.f32 %v4967, %v5159
        %5161 = vdwg.mxu0
        %5162 = vmatprep.subr.mxu0 0.0
        %5163 = vmatpush1.msra.mxu0 0.0
        %5164 = vmatprep.subr.mxu0 0.0
        %5165 = vmatpush1.msra.mxu0 0.0
        %5166 = vmatprep.subr.mxu0 0.0
        %5167 = vmatpush1.msra.mxu0 0.0
        %5168 = vmatprep.subr.mxu0 0.0
        %5169 = vmatpush1.msra.mxu0 0.0
        %5170 = vmatprep.subr.mxu0 0.0
        %5171 = vmatpush1.msra.mxu0 0.0
        %5172 = vmatprep.subr.mxu0 0.0
        %5173 = vmatpush1.msra.mxu0 0.0
        %5174 = vmatprep.subr.mxu0 0.0
        %5175 = vmatpush1.msra.mxu0 0.0
        %5176 = vmatprep.subr.mxu0 0.0
        %5177 = vmatpush1.msra.mxu0 0.0
        %5178 = vmatprep.subr.mxu0 0.0
        %5179 = vmatpush1.msra.mxu0 0.0
        %5180 = vmatprep.subr.mxu0 0.0
        %5181 = vmatpush1.msra.mxu0 0.0
        %5182 = vmatprep.subr.mxu0 0.0
        %5183 = vmatpush1.msra.mxu0 0.0
        %5184 = vmatprep.subr.mxu0 0.0
        %5185 = vmatpush1.msra.mxu0 0.0
        %5186 = vmatprep.subr.mxu0 0.0
        %5187 = vmatpush1.msra.mxu0 0.0
        %5188 = vmatprep.subr.mxu0 0.0
        %5189 = vmatpush1.msra.mxu0 0.0
        %5190 = vmatprep.subr.mxu0 0.0
        %5191 = vmatpush1.msra.mxu0 0.0
        %5192 = vmatprep.subr.mxu0 0.0
        %v5193 = vand.u32 %v3862, 4294901760
        %5194 = vmatpush1.msra.mxu0 %v5193
        %5195 = vmatprep.subr.mxu0 0.0
        %5196 = vmatpush2.msra.mxu0 0.0
        %5197 = vmatprep.subr.mxu0 0.0
        %5198 = vmatpush2.msra.mxu0 0.0
        %5199 = vmatprep.subr.mxu0 0.0
        %5200 = vmatpush2.msra.mxu0 0.0
        %5201 = vmatprep.subr.mxu0 0.0
        %5202 = vmatpush2.msra.mxu0 0.0
        %5203 = vmatprep.subr.mxu0 0.0
        %5204 = vmatpush2.msra.mxu0 0.0
        %5205 = vmatprep.subr.mxu0 0.0
        %5206 = vmatpush2.msra.mxu0 0.0
        %5207 = vmatprep.subr.mxu0 0.0
        %5208 = vmatpush2.msra.mxu0 0.0
        %5209 = vmatprep.subr.mxu0 0.0
        %5210 = vmatpush2.msra.mxu0 0.0
        %5211 = vmatprep.subr.mxu0 0.0
        %5212 = vmatpush2.msra.mxu0 0.0
        %5213 = vmatprep.subr.mxu0 0.0
        %5214 = vmatpush2.msra.mxu0 0.0
        %5215 = vmatprep.subr.mxu0 0.0
        %5216 = vmatpush2.msra.mxu0 0.0
        %5217 = vmatprep.subr.mxu0 0.0
        %5218 = vmatpush2.msra.mxu0 0.0
        %5219 = vmatprep.subr.mxu0 0.0
        %5220 = vmatpush2.msra.mxu0 0.0
        %5221 = vmatprep.subr.mxu0 0.0
        %5222 = vmatpush2.msra.mxu0 0.0
        %5223 = vmatprep.subr.mxu0 0.0
        %5224 = vmatpush2.msra.mxu0 0.0
        %5225 = vmatprep.subr.mxu0 0.0
        %5226 = vmatpush2.msra.mxu0 0.0
        %5227 = vmatprep.mubr.f32.mxu0 0.0
        %v5228 = vand.u32 %v3822, 4294901760
        %v5229 = vsub.f32 %v3822, %v5228
        %v5230 = vand.u32 %v5229, 4294901760
        %v5231 = vsub.f32 %v5229, %v5230
        %v5232 = vand.u32 %v5231, 4294901760
        %5233 = vmatmul.mubr.f32.gmra.mxu0 %v5232
        %v5234 = vpop.f32.mrf.mxu0
        %v5235 = vadd.f32 0.0, %v5234
        %v5236 = vpop.f32.mrf.mxu0
        %5237 = vmatprep.mubr.f32.mxu0 0.0
        %v5238 = vand.u32 %v3824, 4294901760
        %v5239 = vsub.f32 %v3824, %v5238
        %v5240 = vand.u32 %v5239, 4294901760
        %v5241 = vsub.f32 %v5239, %v5240
        %v5242 = vand.u32 %v5241, 4294901760
        %5243 = vmatmul.mubr.f32.gmra.mxu0 %v5242
        %v5244 = vpop.f32.mrf.mxu0
        %v5245 = vadd.f32 0.0, %v5244
        %v5246 = vpop.f32.mrf.mxu0
        %5247 = vmatprep.mubr.f32.mxu0 0.0
        %v5248 = vand.u32 %v3826, 4294901760
        %v5249 = vsub.f32 %v3826, %v5248
        %v5250 = vand.u32 %v5249, 4294901760
        %v5251 = vsub.f32 %v5249, %v5250
        %v5252 = vand.u32 %v5251, 4294901760
        %5253 = vmatmul.mubr.f32.gmra.mxu0 %v5252
        %v5254 = vpop.f32.mrf.mxu0
        %v5255 = vadd.f32 0.0, %v5254
        %v5256 = vpop.f32.mrf.mxu0
        %5257 = vmatprep.mubr.f32.mxu0 0.0
        %v5258 = vand.u32 %v3828, 4294901760
        %v5259 = vsub.f32 %v3828, %v5258
        %v5260 = vand.u32 %v5259, 4294901760
        %v5261 = vsub.f32 %v5259, %v5260
        %v5262 = vand.u32 %v5261, 4294901760
        %5263 = vmatmul.mubr.f32.gmra.mxu0 %v5262
        %v5264 = vpop.f32.mrf.mxu0
        %v5265 = vadd.f32 0.0, %v5264
        %v5266 = vpop.f32.mrf.mxu0
        %5267 = vmatprep.mubr.f32.mxu0 0.0
        %v5268 = vand.u32 %v3830, 4294901760
        %v5269 = vsub.f32 %v3830, %v5268
        %v5270 = vand.u32 %v5269, 4294901760
        %v5271 = vsub.f32 %v5269, %v5270
        %v5272 = vand.u32 %v5271, 4294901760
        %5273 = vmatmul.mubr.f32.gmra.mxu0 %v5272
        %v5274 = vpop.f32.mrf.mxu0
        %v5275 = vadd.f32 0.0, %v5274
        %v5276 = vpop.f32.mrf.mxu0
        %5277 = vmatprep.mubr.f32.mxu0 0.0
        %v5278 = vand.u32 %v3832, 4294901760
        %v5279 = vsub.f32 %v3832, %v5278
        %v5280 = vand.u32 %v5279, 4294901760
        %v5281 = vsub.f32 %v5279, %v5280
        %v5282 = vand.u32 %v5281, 4294901760
        %5283 = vmatmul.mubr.f32.gmra.mxu0 %v5282
        %v5284 = vpop.f32.mrf.mxu0
        %v5285 = vadd.f32 0.0, %v5284
        %v5286 = vpop.f32.mrf.mxu0
        %5287 = vmatprep.mubr.f32.mxu0 0.0
        %v5288 = vand.u32 %v3834, 4294901760
        %v5289 = vsub.f32 %v3834, %v5288
        %v5290 = vand.u32 %v5289, 4294901760
        %v5291 = vsub.f32 %v5289, %v5290
        %v5292 = vand.u32 %v5291, 4294901760
        %5293 = vmatmul.mubr.f32.gmra.mxu0 %v5292
        %v5294 = vpop.f32.mrf.mxu0
        %v5295 = vadd.f32 0.0, %v5294
        %v5296 = vpop.f32.mrf.mxu0
        %5297 = vmatprep.mubr.f32.mxu0 0.0
        %v5298 = vand.u32 %v3836, 4294901760
        %v5299 = vsub.f32 %v3836, %v5298
        %v5300 = vand.u32 %v5299, 4294901760
        %v5301 = vsub.f32 %v5299, %v5300
        %v5302 = vand.u32 %v5301, 4294901760
        %5303 = vmatmul.mubr.f32.gmra.mxu0 %v5302
        %v5304 = vpop.f32.mrf.mxu0
        %v5305 = vadd.f32 0.0, %v5304
        %v5306 = vpop.f32.mrf.mxu0
        %5307 = vmatprep.mubr.f32.mxu0 0.0
        %v5308 = vand.u32 %v3838, 4294901760
        %v5309 = vsub.f32 %v3838, %v5308
        %v5310 = vand.u32 %v5309, 4294901760
        %v5311 = vsub.f32 %v5309, %v5310
        %v5312 = vand.u32 %v5311, 4294901760
        %5313 = vmatmul.mubr.f32.gmra.mxu0 %v5312
        %v5314 = vpop.f32.mrf.mxu0
        %v5315 = vadd.f32 0.0, %v5314
        %v5316 = vpop.f32.mrf.mxu0
        %5317 = vmatprep.mubr.f32.mxu0 0.0
        %v5318 = vand.u32 %v3840, 4294901760
        %v5319 = vsub.f32 %v3840, %v5318
        %v5320 = vand.u32 %v5319, 4294901760
        %v5321 = vsub.f32 %v5319, %v5320
        %v5322 = vand.u32 %v5321, 4294901760
        %5323 = vmatmul.mubr.f32.gmra.mxu0 %v5322
        %v5324 = vpop.f32.mrf.mxu0
        %v5325 = vadd.f32 0.0, %v5324
        %v5326 = vpop.f32.mrf.mxu0
        %5327 = vmatprep.mubr.f32.mxu0 0.0
        %v5328 = vand.u32 %v3842, 4294901760
        %v5329 = vsub.f32 %v3842, %v5328
        %v5330 = vand.u32 %v5329, 4294901760
        %v5331 = vsub.f32 %v5329, %v5330
        %v5332 = vand.u32 %v5331, 4294901760
        %5333 = vmatmul.mubr.f32.gmra.mxu0 %v5332
        %v5334 = vpop.f32.mrf.mxu0
        %v5335 = vadd.f32 0.0, %v5334
        %v5336 = vpop.f32.mrf.mxu0
        %5337 = vmatprep.mubr.f32.mxu0 0.0
        %v5338 = vand.u32 %v3844, 4294901760
        %v5339 = vsub.f32 %v3844, %v5338
        %v5340 = vand.u32 %v5339, 4294901760
        %v5341 = vsub.f32 %v5339, %v5340
        %v5342 = vand.u32 %v5341, 4294901760
        %5343 = vmatmul.mubr.f32.gmra.mxu0 %v5342
        %v5344 = vpop.f32.mrf.mxu0
        %v5345 = vadd.f32 0.0, %v5344
        %v5346 = vpop.f32.mrf.mxu0
        %5347 = vmatprep.mubr.f32.mxu0 0.0
        %v5348 = vand.u32 %v3846, 4294901760
        %v5349 = vsub.f32 %v3846, %v5348
        %v5350 = vand.u32 %v5349, 4294901760
        %v5351 = vsub.f32 %v5349, %v5350
        %v5352 = vand.u32 %v5351, 4294901760
        %5353 = vmatmul.mubr.f32.gmra.mxu0 %v5352
        %v5354 = vpop.f32.mrf.mxu0
        %v5355 = vadd.f32 0.0, %v5354
        %v5356 = vpop.f32.mrf.mxu0
        %5357 = vmatprep.mubr.f32.mxu0 0.0
        %v5358 = vand.u32 %v3848, 4294901760
        %v5359 = vsub.f32 %v3848, %v5358
        %v5360 = vand.u32 %v5359, 4294901760
        %v5361 = vsub.f32 %v5359, %v5360
        %v5362 = vand.u32 %v5361, 4294901760
        %5363 = vmatmul.mubr.f32.gmra.mxu0 %v5362
        %v5364 = vpop.f32.mrf.mxu0
        %v5365 = vadd.f32 0.0, %v5364
        %v5366 = vpop.f32.mrf.mxu0
        %5367 = vmatprep.mubr.f32.mxu0 0.0
        %v5368 = vand.u32 %v3850, 4294901760
        %v5369 = vsub.f32 %v3850, %v5368
        %v5370 = vand.u32 %v5369, 4294901760
        %v5371 = vsub.f32 %v5369, %v5370
        %v5372 = vand.u32 %v5371, 4294901760
        %5373 = vmatmul.mubr.f32.gmra.mxu0 %v5372
        %v5374 = vpop.f32.mrf.mxu0
        %v5375 = vadd.f32 0.0, %v5374
        %v5376 = vpop.f32.mrf.mxu0
        %5377 = vmatprep.mubr.f32.mxu0 0.0
        %v5378 = vand.u32 %v3852, 4294901760
        %v5379 = vsub.f32 %v3852, %v5378
        %v5380 = vand.u32 %v5379, 4294901760
        %v5381 = vsub.f32 %v5379, %v5380
        %v5382 = vand.u32 %v5381, 4294901760
        %5383 = vmatmul.mubr.f32.gmra.mxu0 %v5382
        %v5384 = vpop.f32.mrf.mxu0
        %v5385 = vadd.f32 0.0, %v5384
        %v5386 = vpop.f32.mrf.mxu0
        %5387 = vmatprep.mubr.f32.mxu0 0.0
        %v5388 = vand.u32 %v3854, 4294901760
        %v5389 = vsub.f32 %v3854, %v5388
        %v5390 = vand.u32 %v5389, 4294901760
        %v5391 = vsub.f32 %v5389, %v5390
        %v5392 = vand.u32 %v5391, 4294901760
        %5393 = vmatmul.mubr.f32.gmra.mxu0 %v5392
        %v5394 = vpop.f32.mrf.mxu0
        %v5395 = vadd.f32 0.0, %v5394
        %v5396 = vpop.f32.mrf.mxu0
        %5397 = vmatprep.mubr.f32.mxu0 0.0
        %v5398 = vand.u32 %v3856, 4294901760
        %v5399 = vsub.f32 %v3856, %v5398
        %v5400 = vand.u32 %v5399, 4294901760
        %v5401 = vsub.f32 %v5399, %v5400
        %v5402 = vand.u32 %v5401, 4294901760
        %5403 = vmatmul.mubr.f32.gmra.mxu0 %v5402
        %v5404 = vpop.f32.mrf.mxu0
        %v5405 = vadd.f32 0.0, %v5404
        %v5406 = vpop.f32.mrf.mxu0
        %5407 = vdwg.mxu0
        %5408 = vmatprep.subr.mxu0 0.0
        %5409 = vmatpush1.msra.mxu0 0.0
        %5410 = vmatprep.subr.mxu0 0.0
        %5411 = vmatpush1.msra.mxu0 0.0
        %5412 = vmatprep.subr.mxu0 0.0
        %5413 = vmatpush1.msra.mxu0 0.0
        %5414 = vmatprep.subr.mxu0 0.0
        %5415 = vmatpush1.msra.mxu0 0.0
        %5416 = vmatprep.subr.mxu0 0.0
        %5417 = vmatpush1.msra.mxu0 0.0
        %5418 = vmatprep.subr.mxu0 0.0
        %5419 = vmatpush1.msra.mxu0 0.0
        %5420 = vmatprep.subr.mxu0 0.0
        %5421 = vmatpush1.msra.mxu0 0.0
        %5422 = vmatprep.subr.mxu0 0.0
        %5423 = vmatpush1.msra.mxu0 0.0
        %5424 = vmatprep.subr.mxu0 0.0
        %5425 = vmatpush1.msra.mxu0 0.0
        %5426 = vmatprep.subr.mxu0 0.0
        %5427 = vmatpush1.msra.mxu0 0.0
        %5428 = vmatprep.subr.mxu0 0.0
        %5429 = vmatpush1.msra.mxu0 0.0
        %5430 = vmatprep.subr.mxu0 0.0
        %5431 = vmatpush1.msra.mxu0 0.0
        %5432 = vmatprep.subr.mxu0 0.0
        %5433 = vmatpush1.msra.mxu0 0.0
        %5434 = vmatprep.subr.mxu0 0.0
        %5435 = vmatpush1.msra.mxu0 0.0
        %5436 = vmatprep.subr.mxu0 0.0
        %5437 = vmatpush1.msra.mxu0 0.0
        %5438 = vmatprep.subr.mxu0 0.0
        %v5439 = vand.u32 %v3862, 4294901760
        %v5440 = vsub.f32 %v3862, %v5439
        %v5441 = vand.u32 %v5440, 4294901760
        %v5442 = vsub.f32 %v5440, %v5441
        %v5443 = vand.u32 %v5442, 4294901760
        %5444 = vmatpush1.msra.mxu0 %v5443
        %5445 = vmatprep.subr.mxu0 0.0
        %5446 = vmatpush2.msra.mxu0 0.0
        %5447 = vmatprep.subr.mxu0 0.0
        %5448 = vmatpush2.msra.mxu0 0.0
        %5449 = vmatprep.subr.mxu0 0.0
        %5450 = vmatpush2.msra.mxu0 0.0
        %5451 = vmatprep.subr.mxu0 0.0
        %5452 = vmatpush2.msra.mxu0 0.0
        %5453 = vmatprep.subr.mxu0 0.0
        %5454 = vmatpush2.msra.mxu0 0.0
        %5455 = vmatprep.subr.mxu0 0.0
        %5456 = vmatpush2.msra.mxu0 0.0
        %5457 = vmatprep.subr.mxu0 0.0
        %5458 = vmatpush2.msra.mxu0 0.0
        %5459 = vmatprep.subr.mxu0 0.0
        %5460 = vmatpush2.msra.mxu0 0.0
        %5461 = vmatprep.subr.mxu0 0.0
        %5462 = vmatpush2.msra.mxu0 0.0
        %5463 = vmatprep.subr.mxu0 0.0
        %5464 = vmatpush2.msra.mxu0 0.0
        %5465 = vmatprep.subr.mxu0 0.0
        %5466 = vmatpush2.msra.mxu0 0.0
        %5467 = vmatprep.subr.mxu0 0.0
        %5468 = vmatpush2.msra.mxu0 0.0
        %5469 = vmatprep.subr.mxu0 0.0
        %5470 = vmatpush2.msra.mxu0 0.0
        %5471 = vmatprep.subr.mxu0 0.0
        %5472 = vmatpush2.msra.mxu0 0.0
        %5473 = vmatprep.subr.mxu0 0.0
        %5474 = vmatpush2.msra.mxu0 0.0
        %5475 = vmatprep.subr.mxu0 0.0
        %5476 = vmatpush2.msra.mxu0 0.0
        %5477 = vmatprep.mubr.f32.mxu0 0.0
        %v5478 = vand.u32 %v3822, 4294901760
        %5479 = vmatmul.mubr.f32.gmra.mxu0 %v5478
        %v5480 = vpop.f32.mrf.mxu0
        %v5481 = vadd.f32 %v5235, %v5480
        %v5482 = vpop.f32.mrf.mxu0
        %5483 = vmatprep.mubr.f32.mxu0 0.0
        %v5484 = vand.u32 %v3824, 4294901760
        %5485 = vmatmul.mubr.f32.gmra.mxu0 %v5484
        %v5486 = vpop.f32.mrf.mxu0
        %v5487 = vadd.f32 %v5245, %v5486
        %v5488 = vpop.f32.mrf.mxu0
        %5489 = vmatprep.mubr.f32.mxu0 0.0
        %v5490 = vand.u32 %v3826, 4294901760
        %5491 = vmatmul.mubr.f32.gmra.mxu0 %v5490
        %v5492 = vpop.f32.mrf.mxu0
        %v5493 = vadd.f32 %v5255, %v5492
        %v5494 = vpop.f32.mrf.mxu0
        %5495 = vmatprep.mubr.f32.mxu0 0.0
        %v5496 = vand.u32 %v3828, 4294901760
        %5497 = vmatmul.mubr.f32.gmra.mxu0 %v5496
        %v5498 = vpop.f32.mrf.mxu0
        %v5499 = vadd.f32 %v5265, %v5498
        %v5500 = vpop.f32.mrf.mxu0
        %5501 = vmatprep.mubr.f32.mxu0 0.0
        %v5502 = vand.u32 %v3830, 4294901760
        %5503 = vmatmul.mubr.f32.gmra.mxu0 %v5502
        %v5504 = vpop.f32.mrf.mxu0
        %v5505 = vadd.f32 %v5275, %v5504
        %v5506 = vpop.f32.mrf.mxu0
        %5507 = vmatprep.mubr.f32.mxu0 0.0
        %v5508 = vand.u32 %v3832, 4294901760
        %5509 = vmatmul.mubr.f32.gmra.mxu0 %v5508
        %v5510 = vpop.f32.mrf.mxu0
        %v5511 = vadd.f32 %v5285, %v5510
        %v5512 = vpop.f32.mrf.mxu0
        %5513 = vmatprep.mubr.f32.mxu0 0.0
        %v5514 = vand.u32 %v3834, 4294901760
        %5515 = vmatmul.mubr.f32.gmra.mxu0 %v5514
        %v5516 = vpop.f32.mrf.mxu0
        %v5517 = vadd.f32 %v5295, %v5516
        %v5518 = vpop.f32.mrf.mxu0
        %5519 = vmatprep.mubr.f32.mxu0 0.0
        %v5520 = vand.u32 %v3836, 4294901760
        %5521 = vmatmul.mubr.f32.gmra.mxu0 %v5520
        %v5522 = vpop.f32.mrf.mxu0
        %v5523 = vadd.f32 %v5305, %v5522
        %v5524 = vpop.f32.mrf.mxu0
        %5525 = vmatprep.mubr.f32.mxu0 0.0
        %v5526 = vand.u32 %v3838, 4294901760
        %5527 = vmatmul.mubr.f32.gmra.mxu0 %v5526
        %v5528 = vpop.f32.mrf.mxu0
        %v5529 = vadd.f32 %v5315, %v5528
        %v5530 = vpop.f32.mrf.mxu0
        %5531 = vmatprep.mubr.f32.mxu0 0.0
        %v5532 = vand.u32 %v3840, 4294901760
        %5533 = vmatmul.mubr.f32.gmra.mxu0 %v5532
        %v5534 = vpop.f32.mrf.mxu0
        %v5535 = vadd.f32 %v5325, %v5534
        %v5536 = vpop.f32.mrf.mxu0
        %5537 = vmatprep.mubr.f32.mxu0 0.0
        %v5538 = vand.u32 %v3842, 4294901760
        %5539 = vmatmul.mubr.f32.gmra.mxu0 %v5538
        %v5540 = vpop.f32.mrf.mxu0
        %v5541 = vadd.f32 %v5335, %v5540
        %v5542 = vpop.f32.mrf.mxu0
        %5543 = vmatprep.mubr.f32.mxu0 0.0
        %v5544 = vand.u32 %v3844, 4294901760
        %5545 = vmatmul.mubr.f32.gmra.mxu0 %v5544
        %v5546 = vpop.f32.mrf.mxu0
        %v5547 = vadd.f32 %v5345, %v5546
        %v5548 = vpop.f32.mrf.mxu0
        %5549 = vmatprep.mubr.f32.mxu0 0.0
        %v5550 = vand.u32 %v3846, 4294901760
        %5551 = vmatmul.mubr.f32.gmra.mxu0 %v5550
        %v5552 = vpop.f32.mrf.mxu0
        %v5553 = vadd.f32 %v5355, %v5552
        %v5554 = vpop.f32.mrf.mxu0
        %5555 = vmatprep.mubr.f32.mxu0 0.0
        %v5556 = vand.u32 %v3848, 4294901760
        %5557 = vmatmul.mubr.f32.gmra.mxu0 %v5556
        %v5558 = vpop.f32.mrf.mxu0
        %v5559 = vadd.f32 %v5365, %v5558
        %v5560 = vpop.f32.mrf.mxu0
        %5561 = vmatprep.mubr.f32.mxu0 0.0
        %v5562 = vand.u32 %v3850, 4294901760
        %5563 = vmatmul.mubr.f32.gmra.mxu0 %v5562
        %v5564 = vpop.f32.mrf.mxu0
        %v5565 = vadd.f32 %v5375, %v5564
        %v5566 = vpop.f32.mrf.mxu0
        %5567 = vmatprep.mubr.f32.mxu0 0.0
        %v5568 = vand.u32 %v3852, 4294901760
        %5569 = vmatmul.mubr.f32.gmra.mxu0 %v5568
        %v5570 = vpop.f32.mrf.mxu0
        %v5571 = vadd.f32 %v5385, %v5570
        %v5572 = vpop.f32.mrf.mxu0
        %5573 = vmatprep.mubr.f32.mxu0 0.0
        %v5574 = vand.u32 %v3854, 4294901760
        %5575 = vmatmul.mubr.f32.gmra.mxu0 %v5574
        %v5576 = vpop.f32.mrf.mxu0
        %v5577 = vadd.f32 %v5395, %v5576
        %v5578 = vpop.f32.mrf.mxu0
        %5579 = vmatprep.mubr.f32.mxu0 0.0
        %v5580 = vand.u32 %v3856, 4294901760
        %5581 = vmatmul.mubr.f32.gmra.mxu0 %v5580
        %v5582 = vpop.f32.mrf.mxu0
        %v5583 = vadd.f32 %v5405, %v5582
        %v5584 = vpop.f32.mrf.mxu0
        %5585 = vdwg.mxu0
        %5586 = vmatprep.subr.mxu0 0.0
        %5587 = vmatpush1.msra.mxu0 0.0
        %5588 = vmatprep.subr.mxu0 0.0
        %5589 = vmatpush1.msra.mxu0 0.0
        %5590 = vmatprep.subr.mxu0 0.0
        %5591 = vmatpush1.msra.mxu0 0.0
        %5592 = vmatprep.subr.mxu0 0.0
        %5593 = vmatpush1.msra.mxu0 0.0
        %5594 = vmatprep.subr.mxu0 0.0
        %5595 = vmatpush1.msra.mxu0 0.0
        %5596 = vmatprep.subr.mxu0 0.0
        %5597 = vmatpush1.msra.mxu0 0.0
        %5598 = vmatprep.subr.mxu0 0.0
        %5599 = vmatpush1.msra.mxu0 0.0
        %5600 = vmatprep.subr.mxu0 0.0
        %5601 = vmatpush1.msra.mxu0 0.0
        %5602 = vmatprep.subr.mxu0 0.0
        %5603 = vmatpush1.msra.mxu0 0.0
        %5604 = vmatprep.subr.mxu0 0.0
        %5605 = vmatpush1.msra.mxu0 0.0
        %5606 = vmatprep.subr.mxu0 0.0
        %5607 = vmatpush1.msra.mxu0 0.0
        %5608 = vmatprep.subr.mxu0 0.0
        %5609 = vmatpush1.msra.mxu0 0.0
        %5610 = vmatprep.subr.mxu0 0.0
        %5611 = vmatpush1.msra.mxu0 0.0
        %5612 = vmatprep.subr.mxu0 0.0
        %5613 = vmatpush1.msra.mxu0 0.0
        %5614 = vmatprep.subr.mxu0 0.0
        %5615 = vmatpush1.msra.mxu0 0.0
        %5616 = vmatprep.subr.mxu0 0.0
        %v5617 = vand.u32 %v3862, 4294901760
        %v5618 = vsub.f32 %v3862, %v5617
        %5619 = vmatpush1.msra.mxu0 %v5618
        %5620 = vmatprep.subr.mxu0 0.0
        %5621 = vmatpush2.msra.mxu0 0.0
        %5622 = vmatprep.subr.mxu0 0.0
        %5623 = vmatpush2.msra.mxu0 0.0
        %5624 = vmatprep.subr.mxu0 0.0
        %5625 = vmatpush2.msra.mxu0 0.0
        %5626 = vmatprep.subr.mxu0 0.0
        %5627 = vmatpush2.msra.mxu0 0.0
        %5628 = vmatprep.subr.mxu0 0.0
        %5629 = vmatpush2.msra.mxu0 0.0
        %5630 = vmatprep.subr.mxu0 0.0
        %5631 = vmatpush2.msra.mxu0 0.0
        %5632 = vmatprep.subr.mxu0 0.0
        %5633 = vmatpush2.msra.mxu0 0.0
        %5634 = vmatprep.subr.mxu0 0.0
        %5635 = vmatpush2.msra.mxu0 0.0
        %5636 = vmatprep.subr.mxu0 0.0
        %5637 = vmatpush2.msra.mxu0 0.0
        %5638 = vmatprep.subr.mxu0 0.0
        %5639 = vmatpush2.msra.mxu0 0.0
        %5640 = vmatprep.subr.mxu0 0.0
        %5641 = vmatpush2.msra.mxu0 0.0
        %5642 = vmatprep.subr.mxu0 0.0
        %5643 = vmatpush2.msra.mxu0 0.0
        %5644 = vmatprep.subr.mxu0 0.0
        %5645 = vmatpush2.msra.mxu0 0.0
        %5646 = vmatprep.subr.mxu0 0.0
        %5647 = vmatpush2.msra.mxu0 0.0
        %5648 = vmatprep.subr.mxu0 0.0
        %5649 = vmatpush2.msra.mxu0 0.0
        %5650 = vmatprep.subr.mxu0 0.0
        %5651 = vmatpush2.msra.mxu0 0.0
        %5652 = vmatprep.mubr.f32.mxu0 0.0
        %v5653 = vand.u32 %v3822, 4294901760
        %v5654 = vsub.f32 %v3822, %v5653
        %5655 = vmatmul.mubr.f32.gmra.mxu0 %v5654
        %v5656 = vpop.f32.mrf.mxu0
        %v5657 = vadd.f32 %v5481, %v5656
        %v5658 = vpop.f32.mrf.mxu0
        %5659 = vmatprep.mubr.f32.mxu0 0.0
        %v5660 = vand.u32 %v3824, 4294901760
        %v5661 = vsub.f32 %v3824, %v5660
        %5662 = vmatmul.mubr.f32.gmra.mxu0 %v5661
        %v5663 = vpop.f32.mrf.mxu0
        %v5664 = vadd.f32 %v5487, %v5663
        %v5665 = vpop.f32.mrf.mxu0
        %5666 = vmatprep.mubr.f32.mxu0 0.0
        %v5667 = vand.u32 %v3826, 4294901760
        %v5668 = vsub.f32 %v3826, %v5667
        %5669 = vmatmul.mubr.f32.gmra.mxu0 %v5668
        %v5670 = vpop.f32.mrf.mxu0
        %v5671 = vadd.f32 %v5493, %v5670
        %v5672 = vpop.f32.mrf.mxu0
        %5673 = vmatprep.mubr.f32.mxu0 0.0
        %v5674 = vand.u32 %v3828, 4294901760
        %v5675 = vsub.f32 %v3828, %v5674
        %5676 = vmatmul.mubr.f32.gmra.mxu0 %v5675
        %v5677 = vpop.f32.mrf.mxu0
        %v5678 = vadd.f32 %v5499, %v5677
        %v5679 = vpop.f32.mrf.mxu0
        %5680 = vmatprep.mubr.f32.mxu0 0.0
        %v5681 = vand.u32 %v3830, 4294901760
        %v5682 = vsub.f32 %v3830, %v5681
        %5683 = vmatmul.mubr.f32.gmra.mxu0 %v5682
        %v5684 = vpop.f32.mrf.mxu0
        %v5685 = vadd.f32 %v5505, %v5684
        %v5686 = vpop.f32.mrf.mxu0
        %5687 = vmatprep.mubr.f32.mxu0 0.0
        %v5688 = vand.u32 %v3832, 4294901760
        %v5689 = vsub.f32 %v3832, %v5688
        %5690 = vmatmul.mubr.f32.gmra.mxu0 %v5689
        %v5691 = vpop.f32.mrf.mxu0
        %v5692 = vadd.f32 %v5511, %v5691
        %v5693 = vpop.f32.mrf.mxu0
        %5694 = vmatprep.mubr.f32.mxu0 0.0
        %v5695 = vand.u32 %v3834, 4294901760
        %v5696 = vsub.f32 %v3834, %v5695
        %5697 = vmatmul.mubr.f32.gmra.mxu0 %v5696
        %v5698 = vpop.f32.mrf.mxu0
        %v5699 = vadd.f32 %v5517, %v5698
        %v5700 = vpop.f32.mrf.mxu0
        %5701 = vmatprep.mubr.f32.mxu0 0.0
        %v5702 = vand.u32 %v3836, 4294901760
        %v5703 = vsub.f32 %v3836, %v5702
        %5704 = vmatmul.mubr.f32.gmra.mxu0 %v5703
        %v5705 = vpop.f32.mrf.mxu0
        %v5706 = vadd.f32 %v5523, %v5705
        %v5707 = vpop.f32.mrf.mxu0
        %5708 = vmatprep.mubr.f32.mxu0 0.0
        %v5709 = vand.u32 %v3838, 4294901760
        %v5710 = vsub.f32 %v3838, %v5709
        %5711 = vmatmul.mubr.f32.gmra.mxu0 %v5710
        %v5712 = vpop.f32.mrf.mxu0
        %v5713 = vadd.f32 %v5529, %v5712
        %v5714 = vpop.f32.mrf.mxu0
        %5715 = vmatprep.mubr.f32.mxu0 0.0
        %v5716 = vand.u32 %v3840, 4294901760
        %v5717 = vsub.f32 %v3840, %v5716
        %5718 = vmatmul.mubr.f32.gmra.mxu0 %v5717
        %v5719 = vpop.f32.mrf.mxu0
        %v5720 = vadd.f32 %v5535, %v5719
        %v5721 = vpop.f32.mrf.mxu0
        %5722 = vmatprep.mubr.f32.mxu0 0.0
        %v5723 = vand.u32 %v3842, 4294901760
        %v5724 = vsub.f32 %v3842, %v5723
        %5725 = vmatmul.mubr.f32.gmra.mxu0 %v5724
        %v5726 = vpop.f32.mrf.mxu0
        %v5727 = vadd.f32 %v5541, %v5726
        %v5728 = vpop.f32.mrf.mxu0
        %5729 = vmatprep.mubr.f32.mxu0 0.0
        %v5730 = vand.u32 %v3844, 4294901760
        %v5731 = vsub.f32 %v3844, %v5730
        %5732 = vmatmul.mubr.f32.gmra.mxu0 %v5731
        %v5733 = vpop.f32.mrf.mxu0
        %v5734 = vadd.f32 %v5547, %v5733
        %v5735 = vpop.f32.mrf.mxu0
        %5736 = vmatprep.mubr.f32.mxu0 0.0
        %v5737 = vand.u32 %v3846, 4294901760
        %v5738 = vsub.f32 %v3846, %v5737
        %5739 = vmatmul.mubr.f32.gmra.mxu0 %v5738
        %v5740 = vpop.f32.mrf.mxu0
        %v5741 = vadd.f32 %v5553, %v5740
        %v5742 = vpop.f32.mrf.mxu0
        %5743 = vmatprep.mubr.f32.mxu0 0.0
        %v5744 = vand.u32 %v3848, 4294901760
        %v5745 = vsub.f32 %v3848, %v5744
        %5746 = vmatmul.mubr.f32.gmra.mxu0 %v5745
        %v5747 = vpop.f32.mrf.mxu0
        %v5748 = vadd.f32 %v5559, %v5747
        %v5749 = vpop.f32.mrf.mxu0
        %5750 = vmatprep.mubr.f32.mxu0 0.0
        %v5751 = vand.u32 %v3850, 4294901760
        %v5752 = vsub.f32 %v3850, %v5751
        %5753 = vmatmul.mubr.f32.gmra.mxu0 %v5752
        %v5754 = vpop.f32.mrf.mxu0
        %v5755 = vadd.f32 %v5565, %v5754
        %v5756 = vpop.f32.mrf.mxu0
        %5757 = vmatprep.mubr.f32.mxu0 0.0
        %v5758 = vand.u32 %v3852, 4294901760
        %v5759 = vsub.f32 %v3852, %v5758
        %5760 = vmatmul.mubr.f32.gmra.mxu0 %v5759
        %v5761 = vpop.f32.mrf.mxu0
        %v5762 = vadd.f32 %v5571, %v5761
        %v5763 = vpop.f32.mrf.mxu0
        %5764 = vmatprep.mubr.f32.mxu0 0.0
        %v5765 = vand.u32 %v3854, 4294901760
        %v5766 = vsub.f32 %v3854, %v5765
        %5767 = vmatmul.mubr.f32.gmra.mxu0 %v5766
        %v5768 = vpop.f32.mrf.mxu0
        %v5769 = vadd.f32 %v5577, %v5768
        %v5770 = vpop.f32.mrf.mxu0
        %5771 = vmatprep.mubr.f32.mxu0 0.0
        %v5772 = vand.u32 %v3856, 4294901760
        %v5773 = vsub.f32 %v3856, %v5772
        %5774 = vmatmul.mubr.f32.gmra.mxu0 %v5773
        %v5775 = vpop.f32.mrf.mxu0
        %v5776 = vadd.f32 %v5583, %v5775
        %v5777 = vpop.f32.mrf.mxu0
        %5778 = vdwg.mxu0
        %5779 = vmatprep.subr.mxu0 0.0
        %5780 = vmatpush1.msra.mxu0 0.0
        %5781 = vmatprep.subr.mxu0 0.0
        %5782 = vmatpush1.msra.mxu0 0.0
        %5783 = vmatprep.subr.mxu0 0.0
        %5784 = vmatpush1.msra.mxu0 0.0
        %5785 = vmatprep.subr.mxu0 0.0
        %5786 = vmatpush1.msra.mxu0 0.0
        %5787 = vmatprep.subr.mxu0 0.0
        %5788 = vmatpush1.msra.mxu0 0.0
        %5789 = vmatprep.subr.mxu0 0.0
        %5790 = vmatpush1.msra.mxu0 0.0
        %5791 = vmatprep.subr.mxu0 0.0
        %5792 = vmatpush1.msra.mxu0 0.0
        %5793 = vmatprep.subr.mxu0 0.0
        %5794 = vmatpush1.msra.mxu0 0.0
        %5795 = vmatprep.subr.mxu0 0.0
        %5796 = vmatpush1.msra.mxu0 0.0
        %5797 = vmatprep.subr.mxu0 0.0
        %5798 = vmatpush1.msra.mxu0 0.0
        %5799 = vmatprep.subr.mxu0 0.0
        %5800 = vmatpush1.msra.mxu0 0.0
        %5801 = vmatprep.subr.mxu0 0.0
        %5802 = vmatpush1.msra.mxu0 0.0
        %5803 = vmatprep.subr.mxu0 0.0
        %5804 = vmatpush1.msra.mxu0 0.0
        %5805 = vmatprep.subr.mxu0 0.0
        %5806 = vmatpush1.msra.mxu0 0.0
        %5807 = vmatprep.subr.mxu0 0.0
        %5808 = vmatpush1.msra.mxu0 0.0
        %5809 = vmatprep.subr.mxu0 0.0
        %v5810 = vand.u32 %v3862, 4294901760
        %5811 = vmatpush1.msra.mxu0 %v5810
        %5812 = vmatprep.subr.mxu0 0.0
        %5813 = vmatpush2.msra.mxu0 0.0
        %5814 = vmatprep.subr.mxu0 0.0
        %5815 = vmatpush2.msra.mxu0 0.0
        %5816 = vmatprep.subr.mxu0 0.0
        %5817 = vmatpush2.msra.mxu0 0.0
        %5818 = vmatprep.subr.mxu0 0.0
        %5819 = vmatpush2.msra.mxu0 0.0
        %5820 = vmatprep.subr.mxu0 0.0
        %5821 = vmatpush2.msra.mxu0 0.0
        %5822 = vmatprep.subr.mxu0 0.0
        %5823 = vmatpush2.msra.mxu0 0.0
        %5824 = vmatprep.subr.mxu0 0.0
        %5825 = vmatpush2.msra.mxu0 0.0
        %5826 = vmatprep.subr.mxu0 0.0
        %5827 = vmatpush2.msra.mxu0 0.0
        %5828 = vmatprep.subr.mxu0 0.0
        %5829 = vmatpush2.msra.mxu0 0.0
        %5830 = vmatprep.subr.mxu0 0.0
        %5831 = vmatpush2.msra.mxu0 0.0
        %5832 = vmatprep.subr.mxu0 0.0
        %5833 = vmatpush2.msra.mxu0 0.0
        %5834 = vmatprep.subr.mxu0 0.0
        %5835 = vmatpush2.msra.mxu0 0.0
        %5836 = vmatprep.subr.mxu0 0.0
        %5837 = vmatpush2.msra.mxu0 0.0
        %5838 = vmatprep.subr.mxu0 0.0
        %5839 = vmatpush2.msra.mxu0 0.0
        %5840 = vmatprep.subr.mxu0 0.0
        %5841 = vmatpush2.msra.mxu0 0.0
        %5842 = vmatprep.subr.mxu0 0.0
        %5843 = vmatpush2.msra.mxu0 0.0
        %5844 = vmatprep.mubr.f32.mxu0 0.0
        %v5845 = vand.u32 %v3822, 4294901760
        %v5846 = vsub.f32 %v3822, %v5845
        %v5847 = vand.u32 %v5846, 4294901760
        %5848 = vmatmul.mubr.f32.gmra.mxu0 %v5847
        %v5849 = vpop.f32.mrf.mxu0
        %v5850 = vadd.f32 %v5657, %v5849
        %v5851 = vpop.f32.mrf.mxu0
        %5852 = vmatprep.mubr.f32.mxu0 0.0
        %v5853 = vand.u32 %v3824, 4294901760
        %v5854 = vsub.f32 %v3824, %v5853
        %v5855 = vand.u32 %v5854, 4294901760
        %5856 = vmatmul.mubr.f32.gmra.mxu0 %v5855
        %v5857 = vpop.f32.mrf.mxu0
        %v5858 = vadd.f32 %v5664, %v5857
        %v5859 = vpop.f32.mrf.mxu0
        %5860 = vmatprep.mubr.f32.mxu0 0.0
        %v5861 = vand.u32 %v3826, 4294901760
        %v5862 = vsub.f32 %v3826, %v5861
        %v5863 = vand.u32 %v5862, 4294901760
        %5864 = vmatmul.mubr.f32.gmra.mxu0 %v5863
        %v5865 = vpop.f32.mrf.mxu0
        %v5866 = vadd.f32 %v5671, %v5865
        %v5867 = vpop.f32.mrf.mxu0
        %5868 = vmatprep.mubr.f32.mxu0 0.0
        %v5869 = vand.u32 %v3828, 4294901760
        %v5870 = vsub.f32 %v3828, %v5869
        %v5871 = vand.u32 %v5870, 4294901760
        %5872 = vmatmul.mubr.f32.gmra.mxu0 %v5871
        %v5873 = vpop.f32.mrf.mxu0
        %v5874 = vadd.f32 %v5678, %v5873
        %v5875 = vpop.f32.mrf.mxu0
        %5876 = vmatprep.mubr.f32.mxu0 0.0
        %v5877 = vand.u32 %v3830, 4294901760
        %v5878 = vsub.f32 %v3830, %v5877
        %v5879 = vand.u32 %v5878, 4294901760
        %5880 = vmatmul.mubr.f32.gmra.mxu0 %v5879
        %v5881 = vpop.f32.mrf.mxu0
        %v5882 = vadd.f32 %v5685, %v5881
        %v5883 = vpop.f32.mrf.mxu0
        %5884 = vmatprep.mubr.f32.mxu0 0.0
        %v5885 = vand.u32 %v3832, 4294901760
        %v5886 = vsub.f32 %v3832, %v5885
        %v5887 = vand.u32 %v5886, 4294901760
        %5888 = vmatmul.mubr.f32.gmra.mxu0 %v5887
        %v5889 = vpop.f32.mrf.mxu0
        %v5890 = vadd.f32 %v5692, %v5889
        %v5891 = vpop.f32.mrf.mxu0
        %5892 = vmatprep.mubr.f32.mxu0 0.0
        %v5893 = vand.u32 %v3834, 4294901760
        %v5894 = vsub.f32 %v3834, %v5893
        %v5895 = vand.u32 %v5894, 4294901760
        %5896 = vmatmul.mubr.f32.gmra.mxu0 %v5895
        %v5897 = vpop.f32.mrf.mxu0
        %v5898 = vadd.f32 %v5699, %v5897
        %v5899 = vpop.f32.mrf.mxu0
        %5900 = vmatprep.mubr.f32.mxu0 0.0
        %v5901 = vand.u32 %v3836, 4294901760
        %v5902 = vsub.f32 %v3836, %v5901
        %v5903 = vand.u32 %v5902, 4294901760
        %5904 = vmatmul.mubr.f32.gmra.mxu0 %v5903
        %v5905 = vpop.f32.mrf.mxu0
        %v5906 = vadd.f32 %v5706, %v5905
        %v5907 = vpop.f32.mrf.mxu0
        %5908 = vmatprep.mubr.f32.mxu0 0.0
        %v5909 = vand.u32 %v3838, 4294901760
        %v5910 = vsub.f32 %v3838, %v5909
        %v5911 = vand.u32 %v5910, 4294901760
        %5912 = vmatmul.mubr.f32.gmra.mxu0 %v5911
        %v5913 = vpop.f32.mrf.mxu0
        %v5914 = vadd.f32 %v5713, %v5913
        %v5915 = vpop.f32.mrf.mxu0
        %5916 = vmatprep.mubr.f32.mxu0 0.0
        %v5917 = vand.u32 %v3840, 4294901760
        %v5918 = vsub.f32 %v3840, %v5917
        %v5919 = vand.u32 %v5918, 4294901760
        %5920 = vmatmul.mubr.f32.gmra.mxu0 %v5919
        %v5921 = vpop.f32.mrf.mxu0
        %v5922 = vadd.f32 %v5720, %v5921
        %v5923 = vpop.f32.mrf.mxu0
        %5924 = vmatprep.mubr.f32.mxu0 0.0
        %v5925 = vand.u32 %v3842, 4294901760
        %v5926 = vsub.f32 %v3842, %v5925
        %v5927 = vand.u32 %v5926, 4294901760
        %5928 = vmatmul.mubr.f32.gmra.mxu0 %v5927
        %v5929 = vpop.f32.mrf.mxu0
        %v5930 = vadd.f32 %v5727, %v5929
        %v5931 = vpop.f32.mrf.mxu0
        %5932 = vmatprep.mubr.f32.mxu0 0.0
        %v5933 = vand.u32 %v3844, 4294901760
        %v5934 = vsub.f32 %v3844, %v5933
        %v5935 = vand.u32 %v5934, 4294901760
        %5936 = vmatmul.mubr.f32.gmra.mxu0 %v5935
        %v5937 = vpop.f32.mrf.mxu0
        %v5938 = vadd.f32 %v5734, %v5937
        %v5939 = vpop.f32.mrf.mxu0
        %5940 = vmatprep.mubr.f32.mxu0 0.0
        %v5941 = vand.u32 %v3846, 4294901760
        %v5942 = vsub.f32 %v3846, %v5941
        %v5943 = vand.u32 %v5942, 4294901760
        %5944 = vmatmul.mubr.f32.gmra.mxu0 %v5943
        %v5945 = vpop.f32.mrf.mxu0
        %v5946 = vadd.f32 %v5741, %v5945
        %v5947 = vpop.f32.mrf.mxu0
        %5948 = vmatprep.mubr.f32.mxu0 0.0
        %v5949 = vand.u32 %v3848, 4294901760
        %v5950 = vsub.f32 %v3848, %v5949
        %v5951 = vand.u32 %v5950, 4294901760
        %5952 = vmatmul.mubr.f32.gmra.mxu0 %v5951
        %v5953 = vpop.f32.mrf.mxu0
        %v5954 = vadd.f32 %v5748, %v5953
        %v5955 = vpop.f32.mrf.mxu0
        %5956 = vmatprep.mubr.f32.mxu0 0.0
        %v5957 = vand.u32 %v3850, 4294901760
        %v5958 = vsub.f32 %v3850, %v5957
        %v5959 = vand.u32 %v5958, 4294901760
        %5960 = vmatmul.mubr.f32.gmra.mxu0 %v5959
        %v5961 = vpop.f32.mrf.mxu0
        %v5962 = vadd.f32 %v5755, %v5961
        %v5963 = vpop.f32.mrf.mxu0
        %5964 = vmatprep.mubr.f32.mxu0 0.0
        %v5965 = vand.u32 %v3852, 4294901760
        %v5966 = vsub.f32 %v3852, %v5965
        %v5967 = vand.u32 %v5966, 4294901760
        %5968 = vmatmul.mubr.f32.gmra.mxu0 %v5967
        %v5969 = vpop.f32.mrf.mxu0
        %v5970 = vadd.f32 %v5762, %v5969
        %v5971 = vpop.f32.mrf.mxu0
        %5972 = vmatprep.mubr.f32.mxu0 0.0
        %v5973 = vand.u32 %v3854, 4294901760
        %v5974 = vsub.f32 %v3854, %v5973
        %v5975 = vand.u32 %v5974, 4294901760
        %5976 = vmatmul.mubr.f32.gmra.mxu0 %v5975
        %v5977 = vpop.f32.mrf.mxu0
        %v5978 = vadd.f32 %v5769, %v5977
        %v5979 = vpop.f32.mrf.mxu0
        %5980 = vmatprep.mubr.f32.mxu0 0.0
        %v5981 = vand.u32 %v3856, 4294901760
        %v5982 = vsub.f32 %v3856, %v5981
        %v5983 = vand.u32 %v5982, 4294901760
        %5984 = vmatmul.mubr.f32.gmra.mxu0 %v5983
        %v5985 = vpop.f32.mrf.mxu0
        %v5986 = vadd.f32 %v5776, %v5985
        %v5987 = vpop.f32.mrf.mxu0
        %5988 = vdwg.mxu0
        %5989 = vmatprep.subr.mxu0 0.0
        %5990 = vmatpush1.msra.mxu0 0.0
        %5991 = vmatprep.subr.mxu0 0.0
        %5992 = vmatpush1.msra.mxu0 0.0
        %5993 = vmatprep.subr.mxu0 0.0
        %5994 = vmatpush1.msra.mxu0 0.0
        %5995 = vmatprep.subr.mxu0 0.0
        %5996 = vmatpush1.msra.mxu0 0.0
        %5997 = vmatprep.subr.mxu0 0.0
        %5998 = vmatpush1.msra.mxu0 0.0
        %5999 = vmatprep.subr.mxu0 0.0
        %6000 = vmatpush1.msra.mxu0 0.0
        %6001 = vmatprep.subr.mxu0 0.0
        %6002 = vmatpush1.msra.mxu0 0.0
        %6003 = vmatprep.subr.mxu0 0.0
        %6004 = vmatpush1.msra.mxu0 0.0
        %6005 = vmatprep.subr.mxu0 0.0
        %6006 = vmatpush1.msra.mxu0 0.0
        %6007 = vmatprep.subr.mxu0 0.0
        %6008 = vmatpush1.msra.mxu0 0.0
        %6009 = vmatprep.subr.mxu0 0.0
        %6010 = vmatpush1.msra.mxu0 0.0
        %6011 = vmatprep.subr.mxu0 0.0
        %6012 = vmatpush1.msra.mxu0 0.0
        %6013 = vmatprep.subr.mxu0 0.0
        %6014 = vmatpush1.msra.mxu0 0.0
        %6015 = vmatprep.subr.mxu0 0.0
        %6016 = vmatpush1.msra.mxu0 0.0
        %6017 = vmatprep.subr.mxu0 0.0
        %6018 = vmatpush1.msra.mxu0 0.0
        %6019 = vmatprep.subr.mxu0 0.0
        %v6020 = vand.u32 %v3862, 4294901760
        %v6021 = vsub.f32 %v3862, %v6020
        %v6022 = vand.u32 %v6021, 4294901760
        %6023 = vmatpush1.msra.mxu0 %v6022
        %6024 = vmatprep.subr.mxu0 0.0
        %6025 = vmatpush2.msra.mxu0 0.0
        %6026 = vmatprep.subr.mxu0 0.0
        %6027 = vmatpush2.msra.mxu0 0.0
        %6028 = vmatprep.subr.mxu0 0.0
        %6029 = vmatpush2.msra.mxu0 0.0
        %6030 = vmatprep.subr.mxu0 0.0
        %6031 = vmatpush2.msra.mxu0 0.0
        %6032 = vmatprep.subr.mxu0 0.0
        %6033 = vmatpush2.msra.mxu0 0.0
        %6034 = vmatprep.subr.mxu0 0.0
        %6035 = vmatpush2.msra.mxu0 0.0
        %6036 = vmatprep.subr.mxu0 0.0
        %6037 = vmatpush2.msra.mxu0 0.0
        %6038 = vmatprep.subr.mxu0 0.0
        %6039 = vmatpush2.msra.mxu0 0.0
        %6040 = vmatprep.subr.mxu0 0.0
        %6041 = vmatpush2.msra.mxu0 0.0
        %6042 = vmatprep.subr.mxu0 0.0
        %6043 = vmatpush2.msra.mxu0 0.0
        %6044 = vmatprep.subr.mxu0 0.0
        %6045 = vmatpush2.msra.mxu0 0.0
        %6046 = vmatprep.subr.mxu0 0.0
        %6047 = vmatpush2.msra.mxu0 0.0
        %6048 = vmatprep.subr.mxu0 0.0
        %6049 = vmatpush2.msra.mxu0 0.0
        %6050 = vmatprep.subr.mxu0 0.0
        %6051 = vmatpush2.msra.mxu0 0.0
        %6052 = vmatprep.subr.mxu0 0.0
        %6053 = vmatpush2.msra.mxu0 0.0
        %6054 = vmatprep.subr.mxu0 0.0
        %6055 = vmatpush2.msra.mxu0 0.0
        %6056 = vmatprep.mubr.f32.mxu0 0.0
        %v6057 = vand.u32 %v3822, 4294901760
        %6058 = vmatmul.mubr.f32.gmra.mxu0 %v6057
        %v6059 = vpop.f32.mrf.mxu0
        %v6060 = vadd.f32 %v5850, %v6059
        %v6061 = vpop.f32.mrf.mxu0
        %6062 = vmatprep.mubr.f32.mxu0 0.0
        %v6063 = vand.u32 %v3824, 4294901760
        %6064 = vmatmul.mubr.f32.gmra.mxu0 %v6063
        %v6065 = vpop.f32.mrf.mxu0
        %v6066 = vadd.f32 %v5858, %v6065
        %v6067 = vpop.f32.mrf.mxu0
        %6068 = vmatprep.mubr.f32.mxu0 0.0
        %v6069 = vand.u32 %v3826, 4294901760
        %6070 = vmatmul.mubr.f32.gmra.mxu0 %v6069
        %v6071 = vpop.f32.mrf.mxu0
        %v6072 = vadd.f32 %v5866, %v6071
        %v6073 = vpop.f32.mrf.mxu0
        %6074 = vmatprep.mubr.f32.mxu0 0.0
        %v6075 = vand.u32 %v3828, 4294901760
        %6076 = vmatmul.mubr.f32.gmra.mxu0 %v6075
        %v6077 = vpop.f32.mrf.mxu0
        %v6078 = vadd.f32 %v5874, %v6077
        %v6079 = vpop.f32.mrf.mxu0
        %6080 = vmatprep.mubr.f32.mxu0 0.0
        %v6081 = vand.u32 %v3830, 4294901760
        %6082 = vmatmul.mubr.f32.gmra.mxu0 %v6081
        %v6083 = vpop.f32.mrf.mxu0
        %v6084 = vadd.f32 %v5882, %v6083
        %v6085 = vpop.f32.mrf.mxu0
        %6086 = vmatprep.mubr.f32.mxu0 0.0
        %v6087 = vand.u32 %v3832, 4294901760
        %6088 = vmatmul.mubr.f32.gmra.mxu0 %v6087
        %v6089 = vpop.f32.mrf.mxu0
        %v6090 = vadd.f32 %v5890, %v6089
        %v6091 = vpop.f32.mrf.mxu0
        %6092 = vmatprep.mubr.f32.mxu0 0.0
        %v6093 = vand.u32 %v3834, 4294901760
        %6094 = vmatmul.mubr.f32.gmra.mxu0 %v6093
        %v6095 = vpop.f32.mrf.mxu0
        %v6096 = vadd.f32 %v5898, %v6095
        %v6097 = vpop.f32.mrf.mxu0
        %6098 = vmatprep.mubr.f32.mxu0 0.0
        %v6099 = vand.u32 %v3836, 4294901760
        %6100 = vmatmul.mubr.f32.gmra.mxu0 %v6099
        %v6101 = vpop.f32.mrf.mxu0
        %v6102 = vadd.f32 %v5906, %v6101
        %v6103 = vpop.f32.mrf.mxu0
        %6104 = vmatprep.mubr.f32.mxu0 0.0
        %v6105 = vand.u32 %v3838, 4294901760
        %6106 = vmatmul.mubr.f32.gmra.mxu0 %v6105
        %v6107 = vpop.f32.mrf.mxu0
        %v6108 = vadd.f32 %v5914, %v6107
        %v6109 = vpop.f32.mrf.mxu0
        %6110 = vmatprep.mubr.f32.mxu0 0.0
        %v6111 = vand.u32 %v3840, 4294901760
        %6112 = vmatmul.mubr.f32.gmra.mxu0 %v6111
        %v6113 = vpop.f32.mrf.mxu0
        %v6114 = vadd.f32 %v5922, %v6113
        %v6115 = vpop.f32.mrf.mxu0
        %6116 = vmatprep.mubr.f32.mxu0 0.0
        %v6117 = vand.u32 %v3842, 4294901760
        %6118 = vmatmul.mubr.f32.gmra.mxu0 %v6117
        %v6119 = vpop.f32.mrf.mxu0
        %v6120 = vadd.f32 %v5930, %v6119
        %v6121 = vpop.f32.mrf.mxu0
        %6122 = vmatprep.mubr.f32.mxu0 0.0
        %v6123 = vand.u32 %v3844, 4294901760
        %6124 = vmatmul.mubr.f32.gmra.mxu0 %v6123
        %v6125 = vpop.f32.mrf.mxu0
        %v6126 = vadd.f32 %v5938, %v6125
        %v6127 = vpop.f32.mrf.mxu0
        %6128 = vmatprep.mubr.f32.mxu0 0.0
        %v6129 = vand.u32 %v3846, 4294901760
        %6130 = vmatmul.mubr.f32.gmra.mxu0 %v6129
        %v6131 = vpop.f32.mrf.mxu0
        %v6132 = vadd.f32 %v5946, %v6131
        %v6133 = vpop.f32.mrf.mxu0
        %6134 = vmatprep.mubr.f32.mxu0 0.0
        %v6135 = vand.u32 %v3848, 4294901760
        %6136 = vmatmul.mubr.f32.gmra.mxu0 %v6135
        %v6137 = vpop.f32.mrf.mxu0
        %v6138 = vadd.f32 %v5954, %v6137
        %v6139 = vpop.f32.mrf.mxu0
        %6140 = vmatprep.mubr.f32.mxu0 0.0
        %v6141 = vand.u32 %v3850, 4294901760
        %6142 = vmatmul.mubr.f32.gmra.mxu0 %v6141
        %v6143 = vpop.f32.mrf.mxu0
        %v6144 = vadd.f32 %v5962, %v6143
        %v6145 = vpop.f32.mrf.mxu0
        %6146 = vmatprep.mubr.f32.mxu0 0.0
        %v6147 = vand.u32 %v3852, 4294901760
        %6148 = vmatmul.mubr.f32.gmra.mxu0 %v6147
        %v6149 = vpop.f32.mrf.mxu0
        %v6150 = vadd.f32 %v5970, %v6149
        %v6151 = vpop.f32.mrf.mxu0
        %6152 = vmatprep.mubr.f32.mxu0 0.0
        %v6153 = vand.u32 %v3854, 4294901760
        %6154 = vmatmul.mubr.f32.gmra.mxu0 %v6153
        %v6155 = vpop.f32.mrf.mxu0
        %v6156 = vadd.f32 %v5978, %v6155
        %v6157 = vpop.f32.mrf.mxu0
        %6158 = vmatprep.mubr.f32.mxu0 0.0
        %v6159 = vand.u32 %v3856, 4294901760
        %6160 = vmatmul.mubr.f32.gmra.mxu0 %v6159
        %v6161 = vpop.f32.mrf.mxu0
        %v6162 = vadd.f32 %v5986, %v6161
        %v6163 = vpop.f32.mrf.mxu0
        %6164 = vdwg.mxu0
        %6165 = vmatprep.subr.mxu0 0.0
        %6166 = vmatpush1.msra.mxu0 0.0
        %6167 = vmatprep.subr.mxu0 0.0
        %6168 = vmatpush1.msra.mxu0 0.0
        %6169 = vmatprep.subr.mxu0 0.0
        %6170 = vmatpush1.msra.mxu0 0.0
        %6171 = vmatprep.subr.mxu0 0.0
        %6172 = vmatpush1.msra.mxu0 0.0
        %6173 = vmatprep.subr.mxu0 0.0
        %6174 = vmatpush1.msra.mxu0 0.0
        %6175 = vmatprep.subr.mxu0 0.0
        %6176 = vmatpush1.msra.mxu0 0.0
        %6177 = vmatprep.subr.mxu0 0.0
        %6178 = vmatpush1.msra.mxu0 0.0
        %6179 = vmatprep.subr.mxu0 0.0
        %6180 = vmatpush1.msra.mxu0 0.0
        %6181 = vmatprep.subr.mxu0 0.0
        %6182 = vmatpush1.msra.mxu0 0.0
        %6183 = vmatprep.subr.mxu0 0.0
        %6184 = vmatpush1.msra.mxu0 0.0
        %6185 = vmatprep.subr.mxu0 0.0
        %6186 = vmatpush1.msra.mxu0 0.0
        %6187 = vmatprep.subr.mxu0 0.0
        %6188 = vmatpush1.msra.mxu0 0.0
        %6189 = vmatprep.subr.mxu0 0.0
        %6190 = vmatpush1.msra.mxu0 0.0
        %6191 = vmatprep.subr.mxu0 0.0
        %6192 = vmatpush1.msra.mxu0 0.0
        %6193 = vmatprep.subr.mxu0 0.0
        %6194 = vmatpush1.msra.mxu0 0.0
        %6195 = vmatprep.subr.mxu0 0.0
        %v6196 = vand.u32 %v3862, 4294901760
        %6197 = vmatpush1.msra.mxu0 %v6196
        %6198 = vmatprep.subr.mxu0 0.0
        %6199 = vmatpush2.msra.mxu0 0.0
        %6200 = vmatprep.subr.mxu0 0.0
        %6201 = vmatpush2.msra.mxu0 0.0
        %6202 = vmatprep.subr.mxu0 0.0
        %6203 = vmatpush2.msra.mxu0 0.0
        %6204 = vmatprep.subr.mxu0 0.0
        %6205 = vmatpush2.msra.mxu0 0.0
        %6206 = vmatprep.subr.mxu0 0.0
        %6207 = vmatpush2.msra.mxu0 0.0
        %6208 = vmatprep.subr.mxu0 0.0
        %6209 = vmatpush2.msra.mxu0 0.0
        %6210 = vmatprep.subr.mxu0 0.0
        %6211 = vmatpush2.msra.mxu0 0.0
        %6212 = vmatprep.subr.mxu0 0.0
        %6213 = vmatpush2.msra.mxu0 0.0
        %6214 = vmatprep.subr.mxu0 0.0
        %6215 = vmatpush2.msra.mxu0 0.0
        %6216 = vmatprep.subr.mxu0 0.0
        %6217 = vmatpush2.msra.mxu0 0.0
        %6218 = vmatprep.subr.mxu0 0.0
        %6219 = vmatpush2.msra.mxu0 0.0
        %6220 = vmatprep.subr.mxu0 0.0
        %6221 = vmatpush2.msra.mxu0 0.0
        %6222 = vmatprep.subr.mxu0 0.0
        %6223 = vmatpush2.msra.mxu0 0.0
        %6224 = vmatprep.subr.mxu0 0.0
        %6225 = vmatpush2.msra.mxu0 0.0
        %6226 = vmatprep.subr.mxu0 0.0
        %6227 = vmatpush2.msra.mxu0 0.0
        %6228 = vmatprep.subr.mxu0 0.0
        %6229 = vmatpush2.msra.mxu0 0.0
        %6230 = vmatprep.mubr.f32.mxu0 0.0
        %v6231 = vand.u32 %v3822, 4294901760
        %6232 = vmatmul.mubr.f32.gmra.mxu0 %v6231
        %v6233 = vpop.f32.mrf.mxu0
        %v6234 = vadd.f32 %v6060, %v6233
        %v6235 = vpop.f32.mrf.mxu0
        %6236 = vmatprep.mubr.f32.mxu0 0.0
        %v6237 = vand.u32 %v3824, 4294901760
        %6238 = vmatmul.mubr.f32.gmra.mxu0 %v6237
        %v6239 = vpop.f32.mrf.mxu0
        %v6240 = vadd.f32 %v6066, %v6239
        %v6241 = vpop.f32.mrf.mxu0
        %6242 = vmatprep.mubr.f32.mxu0 0.0
        %v6243 = vand.u32 %v3826, 4294901760
        %6244 = vmatmul.mubr.f32.gmra.mxu0 %v6243
        %v6245 = vpop.f32.mrf.mxu0
        %v6246 = vadd.f32 %v6072, %v6245
        %v6247 = vpop.f32.mrf.mxu0
        %6248 = vmatprep.mubr.f32.mxu0 0.0
        %v6249 = vand.u32 %v3828, 4294901760
        %6250 = vmatmul.mubr.f32.gmra.mxu0 %v6249
        %v6251 = vpop.f32.mrf.mxu0
        %v6252 = vadd.f32 %v6078, %v6251
        %v6253 = vpop.f32.mrf.mxu0
        %6254 = vmatprep.mubr.f32.mxu0 0.0
        %v6255 = vand.u32 %v3830, 4294901760
        %6256 = vmatmul.mubr.f32.gmra.mxu0 %v6255
        %v6257 = vpop.f32.mrf.mxu0
        %v6258 = vadd.f32 %v6084, %v6257
        %v6259 = vpop.f32.mrf.mxu0
        %6260 = vmatprep.mubr.f32.mxu0 0.0
        %v6261 = vand.u32 %v3832, 4294901760
        %6262 = vmatmul.mubr.f32.gmra.mxu0 %v6261
        %v6263 = vpop.f32.mrf.mxu0
        %v6264 = vadd.f32 %v6090, %v6263
        %v6265 = vpop.f32.mrf.mxu0
        %6266 = vmatprep.mubr.f32.mxu0 0.0
        %v6267 = vand.u32 %v3834, 4294901760
        %6268 = vmatmul.mubr.f32.gmra.mxu0 %v6267
        %v6269 = vpop.f32.mrf.mxu0
        %v6270 = vadd.f32 %v6096, %v6269
        %v6271 = vpop.f32.mrf.mxu0
        %6272 = vmatprep.mubr.f32.mxu0 0.0
        %v6273 = vand.u32 %v3836, 4294901760
        %6274 = vmatmul.mubr.f32.gmra.mxu0 %v6273
        %v6275 = vpop.f32.mrf.mxu0
        %v6276 = vadd.f32 %v6102, %v6275
        %v6277 = vpop.f32.mrf.mxu0
        %6278 = vmatprep.mubr.f32.mxu0 0.0
        %v6279 = vand.u32 %v3838, 4294901760
        %6280 = vmatmul.mubr.f32.gmra.mxu0 %v6279
        %v6281 = vpop.f32.mrf.mxu0
        %v6282 = vadd.f32 %v6108, %v6281
        %v6283 = vpop.f32.mrf.mxu0
        %6284 = vmatprep.mubr.f32.mxu0 0.0
        %v6285 = vand.u32 %v3840, 4294901760
        %6286 = vmatmul.mubr.f32.gmra.mxu0 %v6285
        %v6287 = vpop.f32.mrf.mxu0
        %v6288 = vadd.f32 %v6114, %v6287
        %v6289 = vpop.f32.mrf.mxu0
        %6290 = vmatprep.mubr.f32.mxu0 0.0
        %v6291 = vand.u32 %v3842, 4294901760
        %6292 = vmatmul.mubr.f32.gmra.mxu0 %v6291
        %v6293 = vpop.f32.mrf.mxu0
        %v6294 = vadd.f32 %v6120, %v6293
        %v6295 = vpop.f32.mrf.mxu0
        %6296 = vmatprep.mubr.f32.mxu0 0.0
        %v6297 = vand.u32 %v3844, 4294901760
        %6298 = vmatmul.mubr.f32.gmra.mxu0 %v6297
        %v6299 = vpop.f32.mrf.mxu0
        %v6300 = vadd.f32 %v6126, %v6299
        %v6301 = vpop.f32.mrf.mxu0
        %6302 = vmatprep.mubr.f32.mxu0 0.0
        %v6303 = vand.u32 %v3846, 4294901760
        %6304 = vmatmul.mubr.f32.gmra.mxu0 %v6303
        %v6305 = vpop.f32.mrf.mxu0
        %v6306 = vadd.f32 %v6132, %v6305
        %v6307 = vpop.f32.mrf.mxu0
        %6308 = vmatprep.mubr.f32.mxu0 0.0
        %v6309 = vand.u32 %v3848, 4294901760
        %6310 = vmatmul.mubr.f32.gmra.mxu0 %v6309
        %v6311 = vpop.f32.mrf.mxu0
        %v6312 = vadd.f32 %v6138, %v6311
        %v6313 = vpop.f32.mrf.mxu0
        %6314 = vmatprep.mubr.f32.mxu0 0.0
        %v6315 = vand.u32 %v3850, 4294901760
        %6316 = vmatmul.mubr.f32.gmra.mxu0 %v6315
        %v6317 = vpop.f32.mrf.mxu0
        %v6318 = vadd.f32 %v6144, %v6317
        %v6319 = vpop.f32.mrf.mxu0
        %6320 = vmatprep.mubr.f32.mxu0 0.0
        %v6321 = vand.u32 %v3852, 4294901760
        %6322 = vmatmul.mubr.f32.gmra.mxu0 %v6321
        %v6323 = vpop.f32.mrf.mxu0
        %v6324 = vadd.f32 %v6150, %v6323
        %v6325 = vpop.f32.mrf.mxu0
        %6326 = vmatprep.mubr.f32.mxu0 0.0
        %v6327 = vand.u32 %v3854, 4294901760
        %6328 = vmatmul.mubr.f32.gmra.mxu0 %v6327
        %v6329 = vpop.f32.mrf.mxu0
        %v6330 = vadd.f32 %v6156, %v6329
        %v6331 = vpop.f32.mrf.mxu0
        %6332 = vmatprep.mubr.f32.mxu0 0.0
        %v6333 = vand.u32 %v3856, 4294901760
        %6334 = vmatmul.mubr.f32.gmra.mxu0 %v6333
        %v6335 = vpop.f32.mrf.mxu0
        %v6336 = vadd.f32 %v6162, %v6335
        %v6337 = vpop.f32.mrf.mxu0
        %6338 = vdwg.mxu0
        %v6339 = vld [vmem:[#allocation2] sm:$0xff]
        %v6340 = vld [vmem:[#allocation2 + $0x8] sm:$0xff]
        %v6341 = vld [vmem:[#allocation2 + $0x10] sm:$0xff]
        %v6342 = vld [vmem:[#allocation2 + $0x18] sm:$0xff]
        %v6343 = vld [vmem:[#allocation2 + $0x20] sm:$0xff]
        %v6344 = vld [vmem:[#allocation2 + $0x28] sm:$0xff]
        %v6345 = vld [vmem:[#allocation2 + $0x30] sm:$0xff]
        %v6346 = vld [vmem:[#allocation2 + $0x38] sm:$0xff]
        %v6347 = vld [vmem:[#allocation2 + $0x40] sm:$0xff]
        %v6348 = vld [vmem:[#allocation2 + $0x48] sm:$0xff]
        %v6349 = vld [vmem:[#allocation2 + $0x50] sm:$0xff]
        %v6350 = vld [vmem:[#allocation2 + $0x58] sm:$0xff]
        %v6351 = vld [vmem:[#allocation2 + $0x60] sm:$0xff]
        %v6352 = vld [vmem:[#allocation2 + $0x68] sm:$0xff]
        %v6353 = vld [vmem:[#allocation2 + $0x70] sm:$0xff]
        %v6354 = vld [vmem:[#allocation2 + $0x78] sm:$0xff]
        %v6355 = vld [vmem:[#allocation2 + $0x80] sm:$0xff]
        %v6356 = vld [vmem:[#allocation2 + $0x88] sm:$0xff]
        %v6357 = vld [vmem:[#allocation2 + $0x90] sm:$0xff]
        %v6358 = vld [vmem:[#allocation2 + $0x98] sm:$0xff]
        %v6359 = vld [vmem:[#allocation2 + $0xa0] sm:$0xff]
        %v6360 = vld [vmem:[#allocation2 + $0xa8] sm:$0xff]
        %v6361 = vld [vmem:[#allocation2 + $0xb0] sm:$0xff]
        %v6362 = vld [vmem:[#allocation2 + $0xb8] sm:$0xff]
        %v6363 = vld [vmem:[#allocation2 + $0xc0] sm:$0xff]
        %v6364 = vld [vmem:[#allocation2 + $0xc8] sm:$0xff]
        %v6365 = vld [vmem:[#allocation2 + $0xd0] sm:$0xff]
        %v6366 = vld [vmem:[#allocation2 + $0xd8] sm:$0xff]
        %v6367 = vld [vmem:[#allocation2 + $0xe0] sm:$0xff]
        %v6368 = vld [vmem:[#allocation2 + $0xe8] sm:$0xff]
        %v6369 = vld [vmem:[#allocation2 + $0xf0] sm:$0xff]
        %v6370 = vld [vmem:[#allocation2 + $0xf8] sm:$0xff]
        %v6371 = vld [vmem:[#allocation2 + $0x100] sm:$0xff]
        %v6372 = vld [vmem:[#allocation2 + $0x108] sm:$0xff]
        %v6373 = vld [vmem:[#allocation2 + $0x110] sm:$0xff]
        %v6374 = vld [vmem:[#allocation2 + $0x118] sm:$0xff]
        %v6375 = vld [vmem:[#allocation2 + $0x120] sm:$0xff]
        %v6376 = vld [vmem:[#allocation2 + $0x128] sm:$0xff]
        %v6377 = vld [vmem:[#allocation2 + $0x130] sm:$0xff]
        %v6378 = vld [vmem:[#allocation2 + $0x138] sm:$0xff]
        %v6379 = vld [vmem:[#allocation2 + $0x140] sm:$0xff]
        %v6380 = vld [vmem:[#allocation2 + $0x148] sm:$0xff]
        %v6381 = vld [vmem:[#allocation2 + $0x150] sm:$0xff]
        %v6382 = vld [vmem:[#allocation2 + $0x158] sm:$0xff]
        %v6383 = vld [vmem:[#allocation2 + $0x160] sm:$0xff]
        %v6384 = vld [vmem:[#allocation2 + $0x168] sm:$0xff]
        %v6385 = vld [vmem:[#allocation2 + $0x170] sm:$0xff]
        %v6386 = vld [vmem:[#allocation2 + $0x178] sm:$0xff]
        %v6387 = vld [vmem:[#allocation2 + $0x180] sm:$0xff]
        %v6388 = vld [vmem:[#allocation2 + $0x188] sm:$0xff]
        %v6389 = vld [vmem:[#allocation2 + $0x190] sm:$0xff]
        %v6390 = vld [vmem:[#allocation2 + $0x198] sm:$0xff]
        %v6391 = vld [vmem:[#allocation2 + $0x1a0] sm:$0xff]
        %v6392 = vld [vmem:[#allocation2 + $0x1a8] sm:$0xff]
        %v6393 = vadd.f32 %v6339, %v5039
        %v6394 = vadd.f32 %v6340, %v5041
        %v6395 = vadd.f32 %v6341, %v6234
        %v6396 = vadd.f32 %v6342, %v5046
        %v6397 = vadd.f32 %v6343, %v5048
        %v6398 = vadd.f32 %v6344, %v6240
        %v6399 = vadd.f32 %v6345, %v5053
        %v6400 = vadd.f32 %v6346, %v5055
        %v6401 = vadd.f32 %v6347, %v6246
        %v6402 = vadd.f32 %v6348, %v5060
        %v6403 = vadd.f32 %v6349, %v5062
        %v6404 = vadd.f32 %v6350, %v6252
        %v6405 = vadd.f32 %v6351, %v5067
        %v6406 = vadd.f32 %v6352, %v5069
        %v6407 = vadd.f32 %v6353, %v6258
        %v6408 = vadd.f32 %v6354, %v5074
        %v6409 = vadd.f32 %v6355, %v5076
        %v6410 = vadd.f32 %v6356, %v6264
        %v6411 = vadd.f32 %v6357, %v5081
        %v6412 = vadd.f32 %v6358, %v5083
        %v6413 = vadd.f32 %v6359, %v6270
        %v6414 = vadd.f32 %v6360, %v5088
        %v6415 = vadd.f32 %v6361, %v5090
        %v6416 = vadd.f32 %v6362, %v6276
        %v6417 = vadd.f32 %v6363, %v5095
        %v6418 = vadd.f32 %v6364, %v5097
        %v6419 = vadd.f32 %v6365, %v6282
        %v6420 = vadd.f32 %v6366, %v5102
        %v6421 = vadd.f32 %v6367, %v5104
        %v6422 = vadd.f32 %v6368, %v6288
        %v6423 = vadd.f32 %v6369, %v5109
        %v6424 = vadd.f32 %v6370, %v5111
        %v6425 = vadd.f32 %v6371, %v6294
        %v6426 = vadd.f32 %v6372, %v5116
        %v6427 = vadd.f32 %v6373, %v5118
        %v6428 = vadd.f32 %v6374, %v6300
        %v6429 = vadd.f32 %v6375, %v5123
        %v6430 = vadd.f32 %v6376, %v5125
        %v6431 = vadd.f32 %v6377, %v6306
        %v6432 = vadd.f32 %v6378, %v5130
        %v6433 = vadd.f32 %v6379, %v5132
        %v6434 = vadd.f32 %v6380, %v6312
        %v6435 = vadd.f32 %v6381, %v5137
        %v6436 = vadd.f32 %v6382, %v5139
        %v6437 = vadd.f32 %v6383, %v6318
        %v6438 = vadd.f32 %v6384, %v5144
        %v6439 = vadd.f32 %v6385, %v5146
        %v6440 = vadd.f32 %v6386, %v6324
        %v6441 = vadd.f32 %v6387, %v5151
        %v6442 = vadd.f32 %v6388, %v5153
        %v6443 = vadd.f32 %v6389, %v6330
        %v6444 = vadd.f32 %v6390, %v5158
        %v6445 = vadd.f32 %v6391, %v5160
        %v6446 = vadd.f32 %v6392, %v6336
        %6447 = vst [vmem:[#allocation2] sm:$0xff] %v6393
        %6448 = vst [vmem:[#allocation2 + $0x8] sm:$0xff] %v6394
        %6449 = vst [vmem:[#allocation2 + $0x10] sm:$0xff] %v6395
        %6450 = vst [vmem:[#allocation2 + $0x18] sm:$0xff] %v6396
        %6451 = vst [vmem:[#allocation2 + $0x20] sm:$0xff] %v6397
        %6452 = vst [vmem:[#allocation2 + $0x28] sm:$0xff] %v6398
        %6453 = vst [vmem:[#allocation2 + $0x30] sm:$0xff] %v6399
        %6454 = vst [vmem:[#allocation2 + $0x38] sm:$0xff] %v6400
        %6455 = vst [vmem:[#allocation2 + $0x40] sm:$0xff] %v6401
        %6456 = vst [vmem:[#allocation2 + $0x48] sm:$0xff] %v6402
        %6457 = vst [vmem:[#allocation2 + $0x50] sm:$0xff] %v6403
        %6458 = vst [vmem:[#allocation2 + $0x58] sm:$0xff] %v6404
        %6459 = vst [vmem:[#allocation2 + $0x60] sm:$0xff] %v6405
        %6460 = vst [vmem:[#allocation2 + $0x68] sm:$0xff] %v6406
        %6461 = vst [vmem:[#allocation2 + $0x70] sm:$0xff] %v6407
        %6462 = vst [vmem:[#allocation2 + $0x78] sm:$0xff] %v6408
        %6463 = vst [vmem:[#allocation2 + $0x80] sm:$0xff] %v6409
        %6464 = vst [vmem:[#allocation2 + $0x88] sm:$0xff] %v6410
        %6465 = vst [vmem:[#allocation2 + $0x90] sm:$0xff] %v6411
        %6466 = vst [vmem:[#allocation2 + $0x98] sm:$0xff] %v6412
        %6467 = vst [vmem:[#allocation2 + $0xa0] sm:$0xff] %v6413
        %6468 = vst [vmem:[#allocation2 + $0xa8] sm:$0xff] %v6414
        %6469 = vst [vmem:[#allocation2 + $0xb0] sm:$0xff] %v6415
        %6470 = vst [vmem:[#allocation2 + $0xb8] sm:$0xff] %v6416
        %6471 = vst [vmem:[#allocation2 + $0xc0] sm:$0xff] %v6417
        %6472 = vst [vmem:[#allocation2 + $0xc8] sm:$0xff] %v6418
        %6473 = vst [vmem:[#allocation2 + $0xd0] sm:$0xff] %v6419
        %6474 = vst [vmem:[#allocation2 + $0xd8] sm:$0xff] %v6420
        %6475 = vst [vmem:[#allocation2 + $0xe0] sm:$0xff] %v6421
        %6476 = vst [vmem:[#allocation2 + $0xe8] sm:$0xff] %v6422
        %6477 = vst [vmem:[#allocation2 + $0xf0] sm:$0xff] %v6423
        %6478 = vst [vmem:[#allocation2 + $0xf8] sm:$0xff] %v6424
        %6479 = vst [vmem:[#allocation2 + $0x100] sm:$0xff] %v6425
        %6480 = vst [vmem:[#allocation2 + $0x108] sm:$0xff] %v6426
        %6481 = vst [vmem:[#allocation2 + $0x110] sm:$0xff] %v6427
        %6482 = vst [vmem:[#allocation2 + $0x118] sm:$0xff] %v6428
        %6483 = vst [vmem:[#allocation2 + $0x120] sm:$0xff] %v6429
        %6484 = vst [vmem:[#allocation2 + $0x128] sm:$0xff] %v6430
        %6485 = vst [vmem:[#allocation2 + $0x130] sm:$0xff] %v6431
        %6486 = vst [vmem:[#allocation2 + $0x138] sm:$0xff] %v6432
        %6487 = vst [vmem:[#allocation2 + $0x140] sm:$0xff] %v6433
        %6488 = vst [vmem:[#allocation2 + $0x148] sm:$0xff] %v6434
        %6489 = vst [vmem:[#allocation2 + $0x150] sm:$0xff] %v6435
        %6490 = vst [vmem:[#allocation2 + $0x158] sm:$0xff] %v6436
        %6491 = vst [vmem:[#allocation2 + $0x160] sm:$0xff] %v6437
        %6492 = vst [vmem:[#allocation2 + $0x168] sm:$0xff] %v6438
        %6493 = vst [vmem:[#allocation2 + $0x170] sm:$0xff] %v6439
        %6494 = vst [vmem:[#allocation2 + $0x178] sm:$0xff] %v6440
        %6495 = vst [vmem:[#allocation2 + $0x180] sm:$0xff] %v6441
        %6496 = vst [vmem:[#allocation2 + $0x188] sm:$0xff] %v6442
        %6497 = vst [vmem:[#allocation2 + $0x190] sm:$0xff] %v6443
        %6498 = vst [vmem:[#allocation2 + $0x198] sm:$0xff] %v6444
        %6499 = vst [vmem:[#allocation2 + $0x1a0] sm:$0xff] %v6445
        %6500 = vst [vmem:[#allocation2 + $0x1a8] sm:$0xff] %v6446
        %v6504 = vcombine.high %v227, %v227
        %v6506 = vunpack.c.l.s4 1983009808
        %v6507 = vunpack.c.0.s8 %v6506
        %v6508 = vlaneseq
        %v6509 = vshrl.u32 %v6508, 7
        %v6510 = vsub.s32 %v6507, %v6509
        %v6511 = vrot.slane %v227, %v6510
        %v6513 = vunpack.c.l.s4 1983009808
        %v6514 = vunpack.c.0.s8 %v6513
        %v6515 = vlaneseq
        %v6516 = vshrl.u32 %v6515, 7
        %v6517 = vsub.s32 %v6514, %v6516
        %v6518 = vrot.slane %v6504, %v6517
        %v6519 = vcombine.high %v6511, %v6511
        %v6520 = vcombine.high %v6518, %v6518
        %v6521 = vcombine.high %v228, %v228
        %v6523 = vunpack.c.l.s4 1983009808
        %v6524 = vunpack.c.0.s8 %v6523
        %v6525 = vlaneseq
        %v6526 = vshrl.u32 %v6525, 7
        %v6527 = vsub.s32 %v6524, %v6526
        %v6528 = vrot.slane %v228, %v6527
        %v6530 = vunpack.c.l.s4 1983009808
        %v6531 = vunpack.c.0.s8 %v6530
        %v6532 = vlaneseq
        %v6533 = vshrl.u32 %v6532, 7
        %v6534 = vsub.s32 %v6531, %v6533
        %v6535 = vrot.slane %v6521, %v6534
        %v6536 = vcombine.high %v6528, %v6528
        %v6537 = vcombine.high %v6535, %v6535
        %v6539 = vunpack.c.l.s4 1983009808
        %v6540 = vunpack.c.0.s8 %v6539
        %v6541 = vlaneseq
        %v6542 = vshrl.u32 %v6541, 7
        %v6543 = vsub.s32 %v6540, %v6542
        %v6544 = vrot.slane %v229, %v6543
        %s6545 = scalar_lea.vmem %s1, 24
        %v6546 = vld [vmem:[%s6545] sm:$0xff]
        %v6547 = vld [vmem:[%s6545 + $0x8] sm:$0xf]
        %v6548 = vcombine.low %v667, %v677
        %v6549 = vcombine.low %v684, %v694
        %v6550 = vcombine.low %v701, %v711
        %v6551 = vcombine.low %v718, %v728
        %v6552 = vcombine.low %v735, %v745
        %v6553 = vcombine.low %v752, %v762
        %v6554 = vcombine.low %v769, %v779
        %v6555 = vcombine.low %v786, %v796
        %v6556 = vcombine.low %v803, %v813
        %v6557 = vcombine.low %v820, %v830
        %v6558 = vcombine.low %v837, %v847
        %v6559 = vcombine.low %v854, %v864
        %v6560 = vcombine.low %v871, %v881
        %v6561 = vcombine.low %v3476, %v3484
        %v6563 = vunpack.c.l.s4 1983009808
        %v6564 = vunpack.c.0.s8 %v6563
        %v6565 = vlaneseq
        %v6566 = vshrl.u32 %v6565, 7
        %v6567 = vsub.s32 %v6564, %v6566
        %v6568 = vrot.slane %v6561, %v6567
        %v6569 = vcombine.low %v888, %v6568
        %v6570 = vcombine.low %v3483, %v3485
        %v6571 = vcombine.low %v3493, %v3501
        %v6573 = vunpack.c.l.s4 1983009808
        %v6574 = vunpack.c.0.s8 %v6573
        %v6575 = vlaneseq
        %v6576 = vshrl.u32 %v6575, 7
        %v6577 = vsub.s32 %v6574, %v6576
        %v6578 = vrot.slane %v6570, %v6577
        %v6580 = vunpack.c.l.s4 1983009808
        %v6581 = vunpack.c.0.s8 %v6580
        %v6582 = vlaneseq
        %v6583 = vshrl.u32 %v6582, 7
        %v6584 = vsub.s32 %v6581, %v6583
        %v6585 = vrot.slane %v6571, %v6584
        %v6586 = vcombine.low %v6578, %v6585
        %v6587 = vcombine.low %v3500, %v3502
        %v6588 = vcombine.low %v3509, %v6511
        %v6590 = vunpack.c.l.s4 1983009808
        %v6591 = vunpack.c.0.s8 %v6590
        %v6592 = vlaneseq
        %v6593 = vshrl.u32 %v6592, 7
        %v6594 = vsub.s32 %v6591, %v6593
        %v6595 = vrot.slane %v6587, %v6594
        %v6597 = vunpack.c.l.s4 1983009808
        %v6598 = vunpack.c.0.s8 %v6597
        %v6599 = vlaneseq
        %v6600 = vshrl.u32 %v6599, 7
        %v6601 = vsub.s32 %v6598, %v6600
        %v6602 = vrot.slane %v6588, %v6601
        %v6603 = vcombine.low %v6595, %v6602
        %v6604 = vcombine.low %v6519, %v6518
        %v6605 = vcombine.low %v6520, %v6528
        %v6607 = vunpack.c.l.s4 1983009808
        %v6608 = vunpack.c.0.s8 %v6607
        %v6609 = vlaneseq
        %v6610 = vshrl.u32 %v6609, 7
        %v6611 = vsub.s32 %v6608, %v6610
        %v6612 = vrot.slane %v6604, %v6611
        %v6614 = vunpack.c.l.s4 1983009808
        %v6615 = vunpack.c.0.s8 %v6614
        %v6616 = vlaneseq
        %v6617 = vshrl.u32 %v6616, 7
        %v6618 = vsub.s32 %v6615, %v6617
        %v6619 = vrot.slane %v6605, %v6618
        %v6620 = vcombine.low %v6612, %v6619
        %v6621 = vcombine.low %v6536, %v6535
        %v6622 = vcombine.low %v6537, %v6544
        %v6624 = vunpack.c.l.s4 1983009808
        %v6625 = vunpack.c.0.s8 %v6624
        %v6626 = vlaneseq
        %v6627 = vshrl.u32 %v6626, 7
        %v6628 = vsub.s32 %v6625, %v6627
        %v6629 = vrot.slane %v6621, %v6628
        %v6631 = vunpack.c.l.s4 1983009808
        %v6632 = vunpack.c.0.s8 %v6631
        %v6633 = vlaneseq
        %v6634 = vshrl.u32 %v6633, 7
        %v6635 = vsub.s32 %v6632, %v6634
        %v6636 = vrot.slane %v6622, %v6635
        %v6637 = vcombine.low %v6629, %v6636
        %v6640 = vcombine.high %v6546, %v6546
        %v6641 = vsel %vm893, %v6548, 0
        %v6643 = vsel %vm893, %v6549, 0
        %v6645 = vsel %vm893, %v6550, 0
        %v6647 = vsel %vm893, %v6551, 0
        %v6649 = vsel %vm893, %v6552, 0
        %v6651 = vsel %vm893, %v6553, 0
        %v6653 = vsel %vm893, %v6554, 0
        %v6655 = vsel %vm893, %v6555, 0
        %v6657 = vsel %vm893, %v6556, 0
        %v6659 = vsel %vm893, %v6557, 0
        %v6661 = vsel %vm893, %v6558, 0
        %v6663 = vsel %vm893, %v6559, 0
        %v6665 = vsel %vm893, %v6560, 0
        %v6667 = vsel %vm893, %v6569, 0
        %v6669 = vsel %vm893, %v6586, 0
        %v6671 = vsel %vm893, %v6603, 0
        %v6673 = vsel %vm893, %v6620, 0
        %v6675 = vsel %vm893, %v6637, 0
        %v6677 = vsel %vm930, %v6546, 0
        %v6679 = vsel %vm930, %v6640, 0
        %v6681 = vsel %vm930, %v6547, 0
        %6683 = vmatprep.subr.mxu0 0.0
        %6684 = vmatpush1.msra.mxu0 0.0
        %6685 = vmatprep.subr.mxu0 0.0
        %6686 = vmatpush1.msra.mxu0 0.0
        %6687 = vmatprep.subr.mxu0 0.0
        %6688 = vmatpush1.msra.mxu0 0.0
        %6689 = vmatprep.subr.mxu0 0.0
        %6690 = vmatpush1.msra.mxu0 0.0
        %6691 = vmatprep.subr.mxu0 0.0
        %6692 = vmatpush1.msra.mxu0 0.0
        %6693 = vmatprep.subr.mxu0 0.0
        %6694 = vmatpush1.msra.mxu0 0.0
        %6695 = vmatprep.subr.mxu0 0.0
        %6696 = vmatpush1.msra.mxu0 0.0
        %6697 = vmatprep.subr.mxu0 0.0
        %6698 = vmatpush1.msra.mxu0 0.0
        %6699 = vmatprep.subr.mxu0 0.0
        %6700 = vmatpush1.msra.mxu0 0.0
        %6701 = vmatprep.subr.mxu0 0.0
        %6702 = vmatpush1.msra.mxu0 0.0
        %6703 = vmatprep.subr.mxu0 0.0
        %6704 = vmatpush1.msra.mxu0 0.0
        %6705 = vmatprep.subr.mxu0 0.0
        %6706 = vmatpush1.msra.mxu0 0.0
        %6707 = vmatprep.subr.mxu0 0.0
        %6708 = vmatpush1.msra.mxu0 0.0
        %6709 = vmatprep.subr.mxu0 0.0
        %6710 = vmatpush1.msra.mxu0 0.0
        %6711 = vmatprep.subr.mxu0 0.0
        %6712 = vmatpush1.msra.mxu0 0.0
        %v6713 = vand.u32 %v6679, 4294901760
        %6714 = vmatprep.subr.mxu0 %v6713
        %v6715 = vand.u32 %v6677, 4294901760
        %6716 = vmatpush1.msra.mxu0 %v6715
        %6717 = vmatprep.subr.mxu0 0.0
        %6718 = vmatpush2.msra.mxu0 0.0
        %6719 = vmatprep.subr.mxu0 0.0
        %6720 = vmatpush2.msra.mxu0 0.0
        %6721 = vmatprep.subr.mxu0 0.0
        %6722 = vmatpush2.msra.mxu0 0.0
        %6723 = vmatprep.subr.mxu0 0.0
        %6724 = vmatpush2.msra.mxu0 0.0
        %6725 = vmatprep.subr.mxu0 0.0
        %6726 = vmatpush2.msra.mxu0 0.0
        %6727 = vmatprep.subr.mxu0 0.0
        %6728 = vmatpush2.msra.mxu0 0.0
        %6729 = vmatprep.subr.mxu0 0.0
        %6730 = vmatpush2.msra.mxu0 0.0
        %6731 = vmatprep.subr.mxu0 0.0
        %6732 = vmatpush2.msra.mxu0 0.0
        %6733 = vmatprep.subr.mxu0 0.0
        %6734 = vmatpush2.msra.mxu0 0.0
        %6735 = vmatprep.subr.mxu0 0.0
        %6736 = vmatpush2.msra.mxu0 0.0
        %6737 = vmatprep.subr.mxu0 0.0
        %6738 = vmatpush2.msra.mxu0 0.0
        %6739 = vmatprep.subr.mxu0 0.0
        %6740 = vmatpush2.msra.mxu0 0.0
        %6741 = vmatprep.subr.mxu0 0.0
        %6742 = vmatpush2.msra.mxu0 0.0
        %6743 = vmatprep.subr.mxu0 0.0
        %6744 = vmatpush2.msra.mxu0 0.0
        %6745 = vmatprep.subr.mxu0 0.0
        %6746 = vmatpush2.msra.mxu0 0.0
        %6747 = vmatprep.subr.mxu0 0.0
        %6748 = vmatpush2.msra.mxu0 0.0
        %6749 = vmatprep.mubr.f32.mxu0 0.0
        %v6750 = vand.u32 %v6641, 4294901760
        %v6751 = vsub.f32 %v6641, %v6750
        %v6752 = vand.u32 %v6751, 4294901760
        %v6753 = vsub.f32 %v6751, %v6752
        %v6754 = vand.u32 %v6753, 4294901760
        %6755 = vmatmul.mubr.f32.gmra.mxu0 %v6754
        %v6756 = vpop.f32.mrf.mxu0
        %v6757 = vadd.f32 0.0, %v6756
        %v6758 = vpop.f32.mrf.mxu0
        %v6759 = vadd.f32 0.0, %v6758
        %6760 = vmatprep.mubr.f32.mxu0 0.0
        %v6761 = vand.u32 %v6643, 4294901760
        %v6762 = vsub.f32 %v6643, %v6761
        %v6763 = vand.u32 %v6762, 4294901760
        %v6764 = vsub.f32 %v6762, %v6763
        %v6765 = vand.u32 %v6764, 4294901760
        %6766 = vmatmul.mubr.f32.gmra.mxu0 %v6765
        %v6767 = vpop.f32.mrf.mxu0
        %v6768 = vadd.f32 0.0, %v6767
        %v6769 = vpop.f32.mrf.mxu0
        %v6770 = vadd.f32 0.0, %v6769
        %6771 = vmatprep.mubr.f32.mxu0 0.0
        %v6772 = vand.u32 %v6645, 4294901760
        %v6773 = vsub.f32 %v6645, %v6772
        %v6774 = vand.u32 %v6773, 4294901760
        %v6775 = vsub.f32 %v6773, %v6774
        %v6776 = vand.u32 %v6775, 4294901760
        %6777 = vmatmul.mubr.f32.gmra.mxu0 %v6776
        %v6778 = vpop.f32.mrf.mxu0
        %v6779 = vadd.f32 0.0, %v6778
        %v6780 = vpop.f32.mrf.mxu0
        %v6781 = vadd.f32 0.0, %v6780
        %6782 = vmatprep.mubr.f32.mxu0 0.0
        %v6783 = vand.u32 %v6647, 4294901760
        %v6784 = vsub.f32 %v6647, %v6783
        %v6785 = vand.u32 %v6784, 4294901760
        %v6786 = vsub.f32 %v6784, %v6785
        %v6787 = vand.u32 %v6786, 4294901760
        %6788 = vmatmul.mubr.f32.gmra.mxu0 %v6787
        %v6789 = vpop.f32.mrf.mxu0
        %v6790 = vadd.f32 0.0, %v6789
        %v6791 = vpop.f32.mrf.mxu0
        %v6792 = vadd.f32 0.0, %v6791
        %6793 = vmatprep.mubr.f32.mxu0 0.0
        %v6794 = vand.u32 %v6649, 4294901760
        %v6795 = vsub.f32 %v6649, %v6794
        %v6796 = vand.u32 %v6795, 4294901760
        %v6797 = vsub.f32 %v6795, %v6796
        %v6798 = vand.u32 %v6797, 4294901760
        %6799 = vmatmul.mubr.f32.gmra.mxu0 %v6798
        %v6800 = vpop.f32.mrf.mxu0
        %v6801 = vadd.f32 0.0, %v6800
        %v6802 = vpop.f32.mrf.mxu0
        %v6803 = vadd.f32 0.0, %v6802
        %6804 = vmatprep.mubr.f32.mxu0 0.0
        %v6805 = vand.u32 %v6651, 4294901760
        %v6806 = vsub.f32 %v6651, %v6805
        %v6807 = vand.u32 %v6806, 4294901760
        %v6808 = vsub.f32 %v6806, %v6807
        %v6809 = vand.u32 %v6808, 4294901760
        %6810 = vmatmul.mubr.f32.gmra.mxu0 %v6809
        %v6811 = vpop.f32.mrf.mxu0
        %v6812 = vadd.f32 0.0, %v6811
        %v6813 = vpop.f32.mrf.mxu0
        %v6814 = vadd.f32 0.0, %v6813
        %6815 = vmatprep.mubr.f32.mxu0 0.0
        %v6816 = vand.u32 %v6653, 4294901760
        %v6817 = vsub.f32 %v6653, %v6816
        %v6818 = vand.u32 %v6817, 4294901760
        %v6819 = vsub.f32 %v6817, %v6818
        %v6820 = vand.u32 %v6819, 4294901760
        %6821 = vmatmul.mubr.f32.gmra.mxu0 %v6820
        %v6822 = vpop.f32.mrf.mxu0
        %v6823 = vadd.f32 0.0, %v6822
        %v6824 = vpop.f32.mrf.mxu0
        %v6825 = vadd.f32 0.0, %v6824
        %6826 = vmatprep.mubr.f32.mxu0 0.0
        %v6827 = vand.u32 %v6655, 4294901760
        %v6828 = vsub.f32 %v6655, %v6827
        %v6829 = vand.u32 %v6828, 4294901760
        %v6830 = vsub.f32 %v6828, %v6829
        %v6831 = vand.u32 %v6830, 4294901760
        %6832 = vmatmul.mubr.f32.gmra.mxu0 %v6831
        %v6833 = vpop.f32.mrf.mxu0
        %v6834 = vadd.f32 0.0, %v6833
        %v6835 = vpop.f32.mrf.mxu0
        %v6836 = vadd.f32 0.0, %v6835
        %6837 = vmatprep.mubr.f32.mxu0 0.0
        %v6838 = vand.u32 %v6657, 4294901760
        %v6839 = vsub.f32 %v6657, %v6838
        %v6840 = vand.u32 %v6839, 4294901760
        %v6841 = vsub.f32 %v6839, %v6840
        %v6842 = vand.u32 %v6841, 4294901760
        %6843 = vmatmul.mubr.f32.gmra.mxu0 %v6842
        %v6844 = vpop.f32.mrf.mxu0
        %v6845 = vadd.f32 0.0, %v6844
        %v6846 = vpop.f32.mrf.mxu0
        %v6847 = vadd.f32 0.0, %v6846
        %6848 = vmatprep.mubr.f32.mxu0 0.0
        %v6849 = vand.u32 %v6659, 4294901760
        %v6850 = vsub.f32 %v6659, %v6849
        %v6851 = vand.u32 %v6850, 4294901760
        %v6852 = vsub.f32 %v6850, %v6851
        %v6853 = vand.u32 %v6852, 4294901760
        %6854 = vmatmul.mubr.f32.gmra.mxu0 %v6853
        %v6855 = vpop.f32.mrf.mxu0
        %v6856 = vadd.f32 0.0, %v6855
        %v6857 = vpop.f32.mrf.mxu0
        %v6858 = vadd.f32 0.0, %v6857
        %6859 = vmatprep.mubr.f32.mxu0 0.0
        %v6860 = vand.u32 %v6661, 4294901760
        %v6861 = vsub.f32 %v6661, %v6860
        %v6862 = vand.u32 %v6861, 4294901760
        %v6863 = vsub.f32 %v6861, %v6862
        %v6864 = vand.u32 %v6863, 4294901760
        %6865 = vmatmul.mubr.f32.gmra.mxu0 %v6864
        %v6866 = vpop.f32.mrf.mxu0
        %v6867 = vadd.f32 0.0, %v6866
        %v6868 = vpop.f32.mrf.mxu0
        %v6869 = vadd.f32 0.0, %v6868
        %6870 = vmatprep.mubr.f32.mxu0 0.0
        %v6871 = vand.u32 %v6663, 4294901760
        %v6872 = vsub.f32 %v6663, %v6871
        %v6873 = vand.u32 %v6872, 4294901760
        %v6874 = vsub.f32 %v6872, %v6873
        %v6875 = vand.u32 %v6874, 4294901760
        %6876 = vmatmul.mubr.f32.gmra.mxu0 %v6875
        %v6877 = vpop.f32.mrf.mxu0
        %v6878 = vadd.f32 0.0, %v6877
        %v6879 = vpop.f32.mrf.mxu0
        %v6880 = vadd.f32 0.0, %v6879
        %6881 = vmatprep.mubr.f32.mxu0 0.0
        %v6882 = vand.u32 %v6665, 4294901760
        %v6883 = vsub.f32 %v6665, %v6882
        %v6884 = vand.u32 %v6883, 4294901760
        %v6885 = vsub.f32 %v6883, %v6884
        %v6886 = vand.u32 %v6885, 4294901760
        %6887 = vmatmul.mubr.f32.gmra.mxu0 %v6886
        %v6888 = vpop.f32.mrf.mxu0
        %v6889 = vadd.f32 0.0, %v6888
        %v6890 = vpop.f32.mrf.mxu0
        %v6891 = vadd.f32 0.0, %v6890
        %6892 = vmatprep.mubr.f32.mxu0 0.0
        %v6893 = vand.u32 %v6667, 4294901760
        %v6894 = vsub.f32 %v6667, %v6893
        %v6895 = vand.u32 %v6894, 4294901760
        %v6896 = vsub.f32 %v6894, %v6895
        %v6897 = vand.u32 %v6896, 4294901760
        %6898 = vmatmul.mubr.f32.gmra.mxu0 %v6897
        %v6899 = vpop.f32.mrf.mxu0
        %v6900 = vadd.f32 0.0, %v6899
        %v6901 = vpop.f32.mrf.mxu0
        %v6902 = vadd.f32 0.0, %v6901
        %6903 = vmatprep.mubr.f32.mxu0 0.0
        %v6904 = vand.u32 %v6669, 4294901760
        %v6905 = vsub.f32 %v6669, %v6904
        %v6906 = vand.u32 %v6905, 4294901760
        %v6907 = vsub.f32 %v6905, %v6906
        %v6908 = vand.u32 %v6907, 4294901760
        %6909 = vmatmul.mubr.f32.gmra.mxu0 %v6908
        %v6910 = vpop.f32.mrf.mxu0
        %v6911 = vadd.f32 0.0, %v6910
        %v6912 = vpop.f32.mrf.mxu0
        %v6913 = vadd.f32 0.0, %v6912
        %6914 = vmatprep.mubr.f32.mxu0 0.0
        %v6915 = vand.u32 %v6671, 4294901760
        %v6916 = vsub.f32 %v6671, %v6915
        %v6917 = vand.u32 %v6916, 4294901760
        %v6918 = vsub.f32 %v6916, %v6917
        %v6919 = vand.u32 %v6918, 4294901760
        %6920 = vmatmul.mubr.f32.gmra.mxu0 %v6919
        %v6921 = vpop.f32.mrf.mxu0
        %v6922 = vadd.f32 0.0, %v6921
        %v6923 = vpop.f32.mrf.mxu0
        %v6924 = vadd.f32 0.0, %v6923
        %6925 = vmatprep.mubr.f32.mxu0 0.0
        %v6926 = vand.u32 %v6673, 4294901760
        %v6927 = vsub.f32 %v6673, %v6926
        %v6928 = vand.u32 %v6927, 4294901760
        %v6929 = vsub.f32 %v6927, %v6928
        %v6930 = vand.u32 %v6929, 4294901760
        %6931 = vmatmul.mubr.f32.gmra.mxu0 %v6930
        %v6932 = vpop.f32.mrf.mxu0
        %v6933 = vadd.f32 0.0, %v6932
        %v6934 = vpop.f32.mrf.mxu0
        %v6935 = vadd.f32 0.0, %v6934
        %6936 = vmatprep.mubr.f32.mxu0 0.0
        %v6937 = vand.u32 %v6675, 4294901760
        %v6938 = vsub.f32 %v6675, %v6937
        %v6939 = vand.u32 %v6938, 4294901760
        %v6940 = vsub.f32 %v6938, %v6939
        %v6941 = vand.u32 %v6940, 4294901760
        %6942 = vmatmul.mubr.f32.gmra.mxu0 %v6941
        %v6943 = vpop.f32.mrf.mxu0
        %v6944 = vadd.f32 0.0, %v6943
        %v6945 = vpop.f32.mrf.mxu0
        %v6946 = vadd.f32 0.0, %v6945
        %6947 = vdwg.mxu0
        %6948 = vmatprep.subr.mxu0 0.0
        %6949 = vmatpush1.msra.mxu0 0.0
        %6950 = vmatprep.subr.mxu0 0.0
        %6951 = vmatpush1.msra.mxu0 0.0
        %6952 = vmatprep.subr.mxu0 0.0
        %6953 = vmatpush1.msra.mxu0 0.0
        %6954 = vmatprep.subr.mxu0 0.0
        %6955 = vmatpush1.msra.mxu0 0.0
        %6956 = vmatprep.subr.mxu0 0.0
        %6957 = vmatpush1.msra.mxu0 0.0
        %6958 = vmatprep.subr.mxu0 0.0
        %6959 = vmatpush1.msra.mxu0 0.0
        %6960 = vmatprep.subr.mxu0 0.0
        %6961 = vmatpush1.msra.mxu0 0.0
        %6962 = vmatprep.subr.mxu0 0.0
        %6963 = vmatpush1.msra.mxu0 0.0
        %6964 = vmatprep.subr.mxu0 0.0
        %6965 = vmatpush1.msra.mxu0 0.0
        %6966 = vmatprep.subr.mxu0 0.0
        %6967 = vmatpush1.msra.mxu0 0.0
        %6968 = vmatprep.subr.mxu0 0.0
        %6969 = vmatpush1.msra.mxu0 0.0
        %6970 = vmatprep.subr.mxu0 0.0
        %6971 = vmatpush1.msra.mxu0 0.0
        %6972 = vmatprep.subr.mxu0 0.0
        %6973 = vmatpush1.msra.mxu0 0.0
        %6974 = vmatprep.subr.mxu0 0.0
        %6975 = vmatpush1.msra.mxu0 0.0
        %6976 = vmatprep.subr.mxu0 0.0
        %6977 = vmatpush1.msra.mxu0 0.0
        %v6978 = vand.u32 %v6679, 4294901760
        %v6979 = vsub.f32 %v6679, %v6978
        %v6980 = vand.u32 %v6979, 4294901760
        %v6981 = vsub.f32 %v6979, %v6980
        %v6982 = vand.u32 %v6981, 4294901760
        %6983 = vmatprep.subr.mxu0 %v6982
        %v6984 = vand.u32 %v6677, 4294901760
        %v6985 = vsub.f32 %v6677, %v6984
        %v6986 = vand.u32 %v6985, 4294901760
        %v6987 = vsub.f32 %v6985, %v6986
        %v6988 = vand.u32 %v6987, 4294901760
        %6989 = vmatpush1.msra.mxu0 %v6988
        %6990 = vmatprep.subr.mxu0 0.0
        %6991 = vmatpush2.msra.mxu0 0.0
        %6992 = vmatprep.subr.mxu0 0.0
        %6993 = vmatpush2.msra.mxu0 0.0
        %6994 = vmatprep.subr.mxu0 0.0
        %6995 = vmatpush2.msra.mxu0 0.0
        %6996 = vmatprep.subr.mxu0 0.0
        %6997 = vmatpush2.msra.mxu0 0.0
        %6998 = vmatprep.subr.mxu0 0.0
        %6999 = vmatpush2.msra.mxu0 0.0
        %7000 = vmatprep.subr.mxu0 0.0
        %7001 = vmatpush2.msra.mxu0 0.0
        %7002 = vmatprep.subr.mxu0 0.0
        %7003 = vmatpush2.msra.mxu0 0.0
        %7004 = vmatprep.subr.mxu0 0.0
        %7005 = vmatpush2.msra.mxu0 0.0
        %7006 = vmatprep.subr.mxu0 0.0
        %7007 = vmatpush2.msra.mxu0 0.0
        %7008 = vmatprep.subr.mxu0 0.0
        %7009 = vmatpush2.msra.mxu0 0.0
        %7010 = vmatprep.subr.mxu0 0.0
        %7011 = vmatpush2.msra.mxu0 0.0
        %7012 = vmatprep.subr.mxu0 0.0
        %7013 = vmatpush2.msra.mxu0 0.0
        %7014 = vmatprep.subr.mxu0 0.0
        %7015 = vmatpush2.msra.mxu0 0.0
        %7016 = vmatprep.subr.mxu0 0.0
        %7017 = vmatpush2.msra.mxu0 0.0
        %7018 = vmatprep.subr.mxu0 0.0
        %7019 = vmatpush2.msra.mxu0 0.0
        %7020 = vmatprep.subr.mxu0 0.0
        %7021 = vmatpush2.msra.mxu0 0.0
        %7022 = vmatprep.mubr.f32.mxu0 0.0
        %v7023 = vand.u32 %v6641, 4294901760
        %7024 = vmatmul.mubr.f32.gmra.mxu0 %v7023
        %v7025 = vpop.f32.mrf.mxu0
        %v7026 = vadd.f32 %v6757, %v7025
        %v7027 = vpop.f32.mrf.mxu0
        %v7028 = vadd.f32 %v6759, %v7027
        %7029 = vmatprep.mubr.f32.mxu0 0.0
        %v7030 = vand.u32 %v6643, 4294901760
        %7031 = vmatmul.mubr.f32.gmra.mxu0 %v7030
        %v7032 = vpop.f32.mrf.mxu0
        %v7033 = vadd.f32 %v6768, %v7032
        %v7034 = vpop.f32.mrf.mxu0
        %v7035 = vadd.f32 %v6770, %v7034
        %7036 = vmatprep.mubr.f32.mxu0 0.0
        %v7037 = vand.u32 %v6645, 4294901760
        %7038 = vmatmul.mubr.f32.gmra.mxu0 %v7037
        %v7039 = vpop.f32.mrf.mxu0
        %v7040 = vadd.f32 %v6779, %v7039
        %v7041 = vpop.f32.mrf.mxu0
        %v7042 = vadd.f32 %v6781, %v7041
        %7043 = vmatprep.mubr.f32.mxu0 0.0
        %v7044 = vand.u32 %v6647, 4294901760
        %7045 = vmatmul.mubr.f32.gmra.mxu0 %v7044
        %v7046 = vpop.f32.mrf.mxu0
        %v7047 = vadd.f32 %v6790, %v7046
        %v7048 = vpop.f32.mrf.mxu0
        %v7049 = vadd.f32 %v6792, %v7048
        %7050 = vmatprep.mubr.f32.mxu0 0.0
        %v7051 = vand.u32 %v6649, 4294901760
        %7052 = vmatmul.mubr.f32.gmra.mxu0 %v7051
        %v7053 = vpop.f32.mrf.mxu0
        %v7054 = vadd.f32 %v6801, %v7053
        %v7055 = vpop.f32.mrf.mxu0
        %v7056 = vadd.f32 %v6803, %v7055
        %7057 = vmatprep.mubr.f32.mxu0 0.0
        %v7058 = vand.u32 %v6651, 4294901760
        %7059 = vmatmul.mubr.f32.gmra.mxu0 %v7058
        %v7060 = vpop.f32.mrf.mxu0
        %v7061 = vadd.f32 %v6812, %v7060
        %v7062 = vpop.f32.mrf.mxu0
        %v7063 = vadd.f32 %v6814, %v7062
        %7064 = vmatprep.mubr.f32.mxu0 0.0
        %v7065 = vand.u32 %v6653, 4294901760
        %7066 = vmatmul.mubr.f32.gmra.mxu0 %v7065
        %v7067 = vpop.f32.mrf.mxu0
        %v7068 = vadd.f32 %v6823, %v7067
        %v7069 = vpop.f32.mrf.mxu0
        %v7070 = vadd.f32 %v6825, %v7069
        %7071 = vmatprep.mubr.f32.mxu0 0.0
        %v7072 = vand.u32 %v6655, 4294901760
        %7073 = vmatmul.mubr.f32.gmra.mxu0 %v7072
        %v7074 = vpop.f32.mrf.mxu0
        %v7075 = vadd.f32 %v6834, %v7074
        %v7076 = vpop.f32.mrf.mxu0
        %v7077 = vadd.f32 %v6836, %v7076
        %7078 = vmatprep.mubr.f32.mxu0 0.0
        %v7079 = vand.u32 %v6657, 4294901760
        %7080 = vmatmul.mubr.f32.gmra.mxu0 %v7079
        %v7081 = vpop.f32.mrf.mxu0
        %v7082 = vadd.f32 %v6845, %v7081
        %v7083 = vpop.f32.mrf.mxu0
        %v7084 = vadd.f32 %v6847, %v7083
        %7085 = vmatprep.mubr.f32.mxu0 0.0
        %v7086 = vand.u32 %v6659, 4294901760
        %7087 = vmatmul.mubr.f32.gmra.mxu0 %v7086
        %v7088 = vpop.f32.mrf.mxu0
        %v7089 = vadd.f32 %v6856, %v7088
        %v7090 = vpop.f32.mrf.mxu0
        %v7091 = vadd.f32 %v6858, %v7090
        %7092 = vmatprep.mubr.f32.mxu0 0.0
        %v7093 = vand.u32 %v6661, 4294901760
        %7094 = vmatmul.mubr.f32.gmra.mxu0 %v7093
        %v7095 = vpop.f32.mrf.mxu0
        %v7096 = vadd.f32 %v6867, %v7095
        %v7097 = vpop.f32.mrf.mxu0
        %v7098 = vadd.f32 %v6869, %v7097
        %7099 = vmatprep.mubr.f32.mxu0 0.0
        %v7100 = vand.u32 %v6663, 4294901760
        %7101 = vmatmul.mubr.f32.gmra.mxu0 %v7100
        %v7102 = vpop.f32.mrf.mxu0
        %v7103 = vadd.f32 %v6878, %v7102
        %v7104 = vpop.f32.mrf.mxu0
        %v7105 = vadd.f32 %v6880, %v7104
        %7106 = vmatprep.mubr.f32.mxu0 0.0
        %v7107 = vand.u32 %v6665, 4294901760
        %7108 = vmatmul.mubr.f32.gmra.mxu0 %v7107
        %v7109 = vpop.f32.mrf.mxu0
        %v7110 = vadd.f32 %v6889, %v7109
        %v7111 = vpop.f32.mrf.mxu0
        %v7112 = vadd.f32 %v6891, %v7111
        %7113 = vmatprep.mubr.f32.mxu0 0.0
        %v7114 = vand.u32 %v6667, 4294901760
        %7115 = vmatmul.mubr.f32.gmra.mxu0 %v7114
        %v7116 = vpop.f32.mrf.mxu0
        %v7117 = vadd.f32 %v6900, %v7116
        %v7118 = vpop.f32.mrf.mxu0
        %v7119 = vadd.f32 %v6902, %v7118
        %7120 = vmatprep.mubr.f32.mxu0 0.0
        %v7121 = vand.u32 %v6669, 4294901760
        %7122 = vmatmul.mubr.f32.gmra.mxu0 %v7121
        %v7123 = vpop.f32.mrf.mxu0
        %v7124 = vadd.f32 %v6911, %v7123
        %v7125 = vpop.f32.mrf.mxu0
        %v7126 = vadd.f32 %v6913, %v7125
        %7127 = vmatprep.mubr.f32.mxu0 0.0
        %v7128 = vand.u32 %v6671, 4294901760
        %7129 = vmatmul.mubr.f32.gmra.mxu0 %v7128
        %v7130 = vpop.f32.mrf.mxu0
        %v7131 = vadd.f32 %v6922, %v7130
        %v7132 = vpop.f32.mrf.mxu0
        %v7133 = vadd.f32 %v6924, %v7132
        %7134 = vmatprep.mubr.f32.mxu0 0.0
        %v7135 = vand.u32 %v6673, 4294901760
        %7136 = vmatmul.mubr.f32.gmra.mxu0 %v7135
        %v7137 = vpop.f32.mrf.mxu0
        %v7138 = vadd.f32 %v6933, %v7137
        %v7139 = vpop.f32.mrf.mxu0
        %v7140 = vadd.f32 %v6935, %v7139
        %7141 = vmatprep.mubr.f32.mxu0 0.0
        %v7142 = vand.u32 %v6675, 4294901760
        %7143 = vmatmul.mubr.f32.gmra.mxu0 %v7142
        %v7144 = vpop.f32.mrf.mxu0
        %v7145 = vadd.f32 %v6944, %v7144
        %v7146 = vpop.f32.mrf.mxu0
        %v7147 = vadd.f32 %v6946, %v7146
        %7148 = vdwg.mxu0
        %7149 = vmatprep.subr.mxu0 0.0
        %7150 = vmatpush1.msra.mxu0 0.0
        %7151 = vmatprep.subr.mxu0 0.0
        %7152 = vmatpush1.msra.mxu0 0.0
        %7153 = vmatprep.subr.mxu0 0.0
        %7154 = vmatpush1.msra.mxu0 0.0
        %7155 = vmatprep.subr.mxu0 0.0
        %7156 = vmatpush1.msra.mxu0 0.0
        %7157 = vmatprep.subr.mxu0 0.0
        %7158 = vmatpush1.msra.mxu0 0.0
        %7159 = vmatprep.subr.mxu0 0.0
        %7160 = vmatpush1.msra.mxu0 0.0
        %7161 = vmatprep.subr.mxu0 0.0
        %7162 = vmatpush1.msra.mxu0 0.0
        %7163 = vmatprep.subr.mxu0 0.0
        %7164 = vmatpush1.msra.mxu0 0.0
        %7165 = vmatprep.subr.mxu0 0.0
        %7166 = vmatpush1.msra.mxu0 0.0
        %7167 = vmatprep.subr.mxu0 0.0
        %7168 = vmatpush1.msra.mxu0 0.0
        %7169 = vmatprep.subr.mxu0 0.0
        %7170 = vmatpush1.msra.mxu0 0.0
        %7171 = vmatprep.subr.mxu0 0.0
        %7172 = vmatpush1.msra.mxu0 0.0
        %7173 = vmatprep.subr.mxu0 0.0
        %7174 = vmatpush1.msra.mxu0 0.0
        %7175 = vmatprep.subr.mxu0 0.0
        %7176 = vmatpush1.msra.mxu0 0.0
        %7177 = vmatprep.subr.mxu0 0.0
        %7178 = vmatpush1.msra.mxu0 0.0
        %v7179 = vand.u32 %v6679, 4294901760
        %v7180 = vsub.f32 %v6679, %v7179
        %7181 = vmatprep.subr.mxu0 %v7180
        %v7182 = vand.u32 %v6677, 4294901760
        %v7183 = vsub.f32 %v6677, %v7182
        %7184 = vmatpush1.msra.mxu0 %v7183
        %7185 = vmatprep.subr.mxu0 0.0
        %7186 = vmatpush2.msra.mxu0 0.0
        %7187 = vmatprep.subr.mxu0 0.0
        %7188 = vmatpush2.msra.mxu0 0.0
        %7189 = vmatprep.subr.mxu0 0.0
        %7190 = vmatpush2.msra.mxu0 0.0
        %7191 = vmatprep.subr.mxu0 0.0
        %7192 = vmatpush2.msra.mxu0 0.0
        %7193 = vmatprep.subr.mxu0 0.0
        %7194 = vmatpush2.msra.mxu0 0.0
        %7195 = vmatprep.subr.mxu0 0.0
        %7196 = vmatpush2.msra.mxu0 0.0
        %7197 = vmatprep.subr.mxu0 0.0
        %7198 = vmatpush2.msra.mxu0 0.0
        %7199 = vmatprep.subr.mxu0 0.0
        %7200 = vmatpush2.msra.mxu0 0.0
        %7201 = vmatprep.subr.mxu0 0.0
        %7202 = vmatpush2.msra.mxu0 0.0
        %7203 = vmatprep.subr.mxu0 0.0
        %7204 = vmatpush2.msra.mxu0 0.0
        %7205 = vmatprep.subr.mxu0 0.0
        %7206 = vmatpush2.msra.mxu0 0.0
        %7207 = vmatprep.subr.mxu0 0.0
        %7208 = vmatpush2.msra.mxu0 0.0
        %7209 = vmatprep.subr.mxu0 0.0
        %7210 = vmatpush2.msra.mxu0 0.0
        %7211 = vmatprep.subr.mxu0 0.0
        %7212 = vmatpush2.msra.mxu0 0.0
        %7213 = vmatprep.subr.mxu0 0.0
        %7214 = vmatpush2.msra.mxu0 0.0
        %7215 = vmatprep.subr.mxu0 0.0
        %7216 = vmatpush2.msra.mxu0 0.0
        %7217 = vmatprep.mubr.f32.mxu0 0.0
        %v7218 = vand.u32 %v6641, 4294901760
        %v7219 = vsub.f32 %v6641, %v7218
        %7220 = vmatmul.mubr.f32.gmra.mxu0 %v7219
        %v7221 = vpop.f32.mrf.mxu0
        %v7222 = vadd.f32 %v7026, %v7221
        %v7223 = vpop.f32.mrf.mxu0
        %v7224 = vadd.f32 %v7028, %v7223
        %7225 = vmatprep.mubr.f32.mxu0 0.0
        %v7226 = vand.u32 %v6643, 4294901760
        %v7227 = vsub.f32 %v6643, %v7226
        %7228 = vmatmul.mubr.f32.gmra.mxu0 %v7227
        %v7229 = vpop.f32.mrf.mxu0
        %v7230 = vadd.f32 %v7033, %v7229
        %v7231 = vpop.f32.mrf.mxu0
        %v7232 = vadd.f32 %v7035, %v7231
        %7233 = vmatprep.mubr.f32.mxu0 0.0
        %v7234 = vand.u32 %v6645, 4294901760
        %v7235 = vsub.f32 %v6645, %v7234
        %7236 = vmatmul.mubr.f32.gmra.mxu0 %v7235
        %v7237 = vpop.f32.mrf.mxu0
        %v7238 = vadd.f32 %v7040, %v7237
        %v7239 = vpop.f32.mrf.mxu0
        %v7240 = vadd.f32 %v7042, %v7239
        %7241 = vmatprep.mubr.f32.mxu0 0.0
        %v7242 = vand.u32 %v6647, 4294901760
        %v7243 = vsub.f32 %v6647, %v7242
        %7244 = vmatmul.mubr.f32.gmra.mxu0 %v7243
        %v7245 = vpop.f32.mrf.mxu0
        %v7246 = vadd.f32 %v7047, %v7245
        %v7247 = vpop.f32.mrf.mxu0
        %v7248 = vadd.f32 %v7049, %v7247
        %7249 = vmatprep.mubr.f32.mxu0 0.0
        %v7250 = vand.u32 %v6649, 4294901760
        %v7251 = vsub.f32 %v6649, %v7250
        %7252 = vmatmul.mubr.f32.gmra.mxu0 %v7251
        %v7253 = vpop.f32.mrf.mxu0
        %v7254 = vadd.f32 %v7054, %v7253
        %v7255 = vpop.f32.mrf.mxu0
        %v7256 = vadd.f32 %v7056, %v7255
        %7257 = vmatprep.mubr.f32.mxu0 0.0
        %v7258 = vand.u32 %v6651, 4294901760
        %v7259 = vsub.f32 %v6651, %v7258
        %7260 = vmatmul.mubr.f32.gmra.mxu0 %v7259
        %v7261 = vpop.f32.mrf.mxu0
        %v7262 = vadd.f32 %v7061, %v7261
        %v7263 = vpop.f32.mrf.mxu0
        %v7264 = vadd.f32 %v7063, %v7263
        %7265 = vmatprep.mubr.f32.mxu0 0.0
        %v7266 = vand.u32 %v6653, 4294901760
        %v7267 = vsub.f32 %v6653, %v7266
        %7268 = vmatmul.mubr.f32.gmra.mxu0 %v7267
        %v7269 = vpop.f32.mrf.mxu0
        %v7270 = vadd.f32 %v7068, %v7269
        %v7271 = vpop.f32.mrf.mxu0
        %v7272 = vadd.f32 %v7070, %v7271
        %7273 = vmatprep.mubr.f32.mxu0 0.0
        %v7274 = vand.u32 %v6655, 4294901760
        %v7275 = vsub.f32 %v6655, %v7274
        %7276 = vmatmul.mubr.f32.gmra.mxu0 %v7275
        %v7277 = vpop.f32.mrf.mxu0
        %v7278 = vadd.f32 %v7075, %v7277
        %v7279 = vpop.f32.mrf.mxu0
        %v7280 = vadd.f32 %v7077, %v7279
        %7281 = vmatprep.mubr.f32.mxu0 0.0
        %v7282 = vand.u32 %v6657, 4294901760
        %v7283 = vsub.f32 %v6657, %v7282
        %7284 = vmatmul.mubr.f32.gmra.mxu0 %v7283
        %v7285 = vpop.f32.mrf.mxu0
        %v7286 = vadd.f32 %v7082, %v7285
        %v7287 = vpop.f32.mrf.mxu0
        %v7288 = vadd.f32 %v7084, %v7287
        %7289 = vmatprep.mubr.f32.mxu0 0.0
        %v7290 = vand.u32 %v6659, 4294901760
        %v7291 = vsub.f32 %v6659, %v7290
        %7292 = vmatmul.mubr.f32.gmra.mxu0 %v7291
        %v7293 = vpop.f32.mrf.mxu0
        %v7294 = vadd.f32 %v7089, %v7293
        %v7295 = vpop.f32.mrf.mxu0
        %v7296 = vadd.f32 %v7091, %v7295
        %7297 = vmatprep.mubr.f32.mxu0 0.0
        %v7298 = vand.u32 %v6661, 4294901760
        %v7299 = vsub.f32 %v6661, %v7298
        %7300 = vmatmul.mubr.f32.gmra.mxu0 %v7299
        %v7301 = vpop.f32.mrf.mxu0
        %v7302 = vadd.f32 %v7096, %v7301
        %v7303 = vpop.f32.mrf.mxu0
        %v7304 = vadd.f32 %v7098, %v7303
        %7305 = vmatprep.mubr.f32.mxu0 0.0
        %v7306 = vand.u32 %v6663, 4294901760
        %v7307 = vsub.f32 %v6663, %v7306
        %7308 = vmatmul.mubr.f32.gmra.mxu0 %v7307
        %v7309 = vpop.f32.mrf.mxu0
        %v7310 = vadd.f32 %v7103, %v7309
        %v7311 = vpop.f32.mrf.mxu0
        %v7312 = vadd.f32 %v7105, %v7311
        %7313 = vmatprep.mubr.f32.mxu0 0.0
        %v7314 = vand.u32 %v6665, 4294901760
        %v7315 = vsub.f32 %v6665, %v7314
        %7316 = vmatmul.mubr.f32.gmra.mxu0 %v7315
        %v7317 = vpop.f32.mrf.mxu0
        %v7318 = vadd.f32 %v7110, %v7317
        %v7319 = vpop.f32.mrf.mxu0
        %v7320 = vadd.f32 %v7112, %v7319
        %7321 = vmatprep.mubr.f32.mxu0 0.0
        %v7322 = vand.u32 %v6667, 4294901760
        %v7323 = vsub.f32 %v6667, %v7322
        %7324 = vmatmul.mubr.f32.gmra.mxu0 %v7323
        %v7325 = vpop.f32.mrf.mxu0
        %v7326 = vadd.f32 %v7117, %v7325
        %v7327 = vpop.f32.mrf.mxu0
        %v7328 = vadd.f32 %v7119, %v7327
        %7329 = vmatprep.mubr.f32.mxu0 0.0
        %v7330 = vand.u32 %v6669, 4294901760
        %v7331 = vsub.f32 %v6669, %v7330
        %7332 = vmatmul.mubr.f32.gmra.mxu0 %v7331
        %v7333 = vpop.f32.mrf.mxu0
        %v7334 = vadd.f32 %v7124, %v7333
        %v7335 = vpop.f32.mrf.mxu0
        %v7336 = vadd.f32 %v7126, %v7335
        %7337 = vmatprep.mubr.f32.mxu0 0.0
        %v7338 = vand.u32 %v6671, 4294901760
        %v7339 = vsub.f32 %v6671, %v7338
        %7340 = vmatmul.mubr.f32.gmra.mxu0 %v7339
        %v7341 = vpop.f32.mrf.mxu0
        %v7342 = vadd.f32 %v7131, %v7341
        %v7343 = vpop.f32.mrf.mxu0
        %v7344 = vadd.f32 %v7133, %v7343
        %7345 = vmatprep.mubr.f32.mxu0 0.0
        %v7346 = vand.u32 %v6673, 4294901760
        %v7347 = vsub.f32 %v6673, %v7346
        %7348 = vmatmul.mubr.f32.gmra.mxu0 %v7347
        %v7349 = vpop.f32.mrf.mxu0
        %v7350 = vadd.f32 %v7138, %v7349
        %v7351 = vpop.f32.mrf.mxu0
        %v7352 = vadd.f32 %v7140, %v7351
        %7353 = vmatprep.mubr.f32.mxu0 0.0
        %v7354 = vand.u32 %v6675, 4294901760
        %v7355 = vsub.f32 %v6675, %v7354
        %7356 = vmatmul.mubr.f32.gmra.mxu0 %v7355
        %v7357 = vpop.f32.mrf.mxu0
        %v7358 = vadd.f32 %v7145, %v7357
        %v7359 = vpop.f32.mrf.mxu0
        %v7360 = vadd.f32 %v7147, %v7359
        %7361 = vdwg.mxu0
        %7362 = vmatprep.subr.mxu0 0.0
        %7363 = vmatpush1.msra.mxu0 0.0
        %7364 = vmatprep.subr.mxu0 0.0
        %7365 = vmatpush1.msra.mxu0 0.0
        %7366 = vmatprep.subr.mxu0 0.0
        %7367 = vmatpush1.msra.mxu0 0.0
        %7368 = vmatprep.subr.mxu0 0.0
        %7369 = vmatpush1.msra.mxu0 0.0
        %7370 = vmatprep.subr.mxu0 0.0
        %7371 = vmatpush1.msra.mxu0 0.0
        %7372 = vmatprep.subr.mxu0 0.0
        %7373 = vmatpush1.msra.mxu0 0.0
        %7374 = vmatprep.subr.mxu0 0.0
        %7375 = vmatpush1.msra.mxu0 0.0
        %7376 = vmatprep.subr.mxu0 0.0
        %7377 = vmatpush1.msra.mxu0 0.0
        %7378 = vmatprep.subr.mxu0 0.0
        %7379 = vmatpush1.msra.mxu0 0.0
        %7380 = vmatprep.subr.mxu0 0.0
        %7381 = vmatpush1.msra.mxu0 0.0
        %7382 = vmatprep.subr.mxu0 0.0
        %7383 = vmatpush1.msra.mxu0 0.0
        %7384 = vmatprep.subr.mxu0 0.0
        %7385 = vmatpush1.msra.mxu0 0.0
        %7386 = vmatprep.subr.mxu0 0.0
        %7387 = vmatpush1.msra.mxu0 0.0
        %7388 = vmatprep.subr.mxu0 0.0
        %7389 = vmatpush1.msra.mxu0 0.0
        %7390 = vmatprep.subr.mxu0 0.0
        %7391 = vmatpush1.msra.mxu0 0.0
        %v7392 = vand.u32 %v6679, 4294901760
        %7393 = vmatprep.subr.mxu0 %v7392
        %v7394 = vand.u32 %v6677, 4294901760
        %7395 = vmatpush1.msra.mxu0 %v7394
        %7396 = vmatprep.subr.mxu0 0.0
        %7397 = vmatpush2.msra.mxu0 0.0
        %7398 = vmatprep.subr.mxu0 0.0
        %7399 = vmatpush2.msra.mxu0 0.0
        %7400 = vmatprep.subr.mxu0 0.0
        %7401 = vmatpush2.msra.mxu0 0.0
        %7402 = vmatprep.subr.mxu0 0.0
        %7403 = vmatpush2.msra.mxu0 0.0
        %7404 = vmatprep.subr.mxu0 0.0
        %7405 = vmatpush2.msra.mxu0 0.0
        %7406 = vmatprep.subr.mxu0 0.0
        %7407 = vmatpush2.msra.mxu0 0.0
        %7408 = vmatprep.subr.mxu0 0.0
        %7409 = vmatpush2.msra.mxu0 0.0
        %7410 = vmatprep.subr.mxu0 0.0
        %7411 = vmatpush2.msra.mxu0 0.0
        %7412 = vmatprep.subr.mxu0 0.0
        %7413 = vmatpush2.msra.mxu0 0.0
        %7414 = vmatprep.subr.mxu0 0.0
        %7415 = vmatpush2.msra.mxu0 0.0
        %7416 = vmatprep.subr.mxu0 0.0
        %7417 = vmatpush2.msra.mxu0 0.0
        %7418 = vmatprep.subr.mxu0 0.0
        %7419 = vmatpush2.msra.mxu0 0.0
        %7420 = vmatprep.subr.mxu0 0.0
        %7421 = vmatpush2.msra.mxu0 0.0
        %7422 = vmatprep.subr.mxu0 0.0
        %7423 = vmatpush2.msra.mxu0 0.0
        %7424 = vmatprep.subr.mxu0 0.0
        %7425 = vmatpush2.msra.mxu0 0.0
        %7426 = vmatprep.subr.mxu0 0.0
        %7427 = vmatpush2.msra.mxu0 0.0
        %7428 = vmatprep.mubr.f32.mxu0 0.0
        %v7429 = vand.u32 %v6641, 4294901760
        %v7430 = vsub.f32 %v6641, %v7429
        %v7431 = vand.u32 %v7430, 4294901760
        %7432 = vmatmul.mubr.f32.gmra.mxu0 %v7431
        %v7433 = vpop.f32.mrf.mxu0
        %v7434 = vadd.f32 %v7222, %v7433
        %v7435 = vpop.f32.mrf.mxu0
        %v7436 = vadd.f32 %v7224, %v7435
        %7437 = vmatprep.mubr.f32.mxu0 0.0
        %v7438 = vand.u32 %v6643, 4294901760
        %v7439 = vsub.f32 %v6643, %v7438
        %v7440 = vand.u32 %v7439, 4294901760
        %7441 = vmatmul.mubr.f32.gmra.mxu0 %v7440
        %v7442 = vpop.f32.mrf.mxu0
        %v7443 = vadd.f32 %v7230, %v7442
        %v7444 = vpop.f32.mrf.mxu0
        %v7445 = vadd.f32 %v7232, %v7444
        %7446 = vmatprep.mubr.f32.mxu0 0.0
        %v7447 = vand.u32 %v6645, 4294901760
        %v7448 = vsub.f32 %v6645, %v7447
        %v7449 = vand.u32 %v7448, 4294901760
        %7450 = vmatmul.mubr.f32.gmra.mxu0 %v7449
        %v7451 = vpop.f32.mrf.mxu0
        %v7452 = vadd.f32 %v7238, %v7451
        %v7453 = vpop.f32.mrf.mxu0
        %v7454 = vadd.f32 %v7240, %v7453
        %7455 = vmatprep.mubr.f32.mxu0 0.0
        %v7456 = vand.u32 %v6647, 4294901760
        %v7457 = vsub.f32 %v6647, %v7456
        %v7458 = vand.u32 %v7457, 4294901760
        %7459 = vmatmul.mubr.f32.gmra.mxu0 %v7458
        %v7460 = vpop.f32.mrf.mxu0
        %v7461 = vadd.f32 %v7246, %v7460
        %v7462 = vpop.f32.mrf.mxu0
        %v7463 = vadd.f32 %v7248, %v7462
        %7464 = vmatprep.mubr.f32.mxu0 0.0
        %v7465 = vand.u32 %v6649, 4294901760
        %v7466 = vsub.f32 %v6649, %v7465
        %v7467 = vand.u32 %v7466, 4294901760
        %7468 = vmatmul.mubr.f32.gmra.mxu0 %v7467
        %v7469 = vpop.f32.mrf.mxu0
        %v7470 = vadd.f32 %v7254, %v7469
        %v7471 = vpop.f32.mrf.mxu0
        %v7472 = vadd.f32 %v7256, %v7471
        %7473 = vmatprep.mubr.f32.mxu0 0.0
        %v7474 = vand.u32 %v6651, 4294901760
        %v7475 = vsub.f32 %v6651, %v7474
        %v7476 = vand.u32 %v7475, 4294901760
        %7477 = vmatmul.mubr.f32.gmra.mxu0 %v7476
        %v7478 = vpop.f32.mrf.mxu0
        %v7479 = vadd.f32 %v7262, %v7478
        %v7480 = vpop.f32.mrf.mxu0
        %v7481 = vadd.f32 %v7264, %v7480
        %7482 = vmatprep.mubr.f32.mxu0 0.0
        %v7483 = vand.u32 %v6653, 4294901760
        %v7484 = vsub.f32 %v6653, %v7483
        %v7485 = vand.u32 %v7484, 4294901760
        %7486 = vmatmul.mubr.f32.gmra.mxu0 %v7485
        %v7487 = vpop.f32.mrf.mxu0
        %v7488 = vadd.f32 %v7270, %v7487
        %v7489 = vpop.f32.mrf.mxu0
        %v7490 = vadd.f32 %v7272, %v7489
        %7491 = vmatprep.mubr.f32.mxu0 0.0
        %v7492 = vand.u32 %v6655, 4294901760
        %v7493 = vsub.f32 %v6655, %v7492
        %v7494 = vand.u32 %v7493, 4294901760
        %7495 = vmatmul.mubr.f32.gmra.mxu0 %v7494
        %v7496 = vpop.f32.mrf.mxu0
        %v7497 = vadd.f32 %v7278, %v7496
        %v7498 = vpop.f32.mrf.mxu0
        %v7499 = vadd.f32 %v7280, %v7498
        %7500 = vmatprep.mubr.f32.mxu0 0.0
        %v7501 = vand.u32 %v6657, 4294901760
        %v7502 = vsub.f32 %v6657, %v7501
        %v7503 = vand.u32 %v7502, 4294901760
        %7504 = vmatmul.mubr.f32.gmra.mxu0 %v7503
        %v7505 = vpop.f32.mrf.mxu0
        %v7506 = vadd.f32 %v7286, %v7505
        %v7507 = vpop.f32.mrf.mxu0
        %v7508 = vadd.f32 %v7288, %v7507
        %7509 = vmatprep.mubr.f32.mxu0 0.0
        %v7510 = vand.u32 %v6659, 4294901760
        %v7511 = vsub.f32 %v6659, %v7510
        %v7512 = vand.u32 %v7511, 4294901760
        %7513 = vmatmul.mubr.f32.gmra.mxu0 %v7512
        %v7514 = vpop.f32.mrf.mxu0
        %v7515 = vadd.f32 %v7294, %v7514
        %v7516 = vpop.f32.mrf.mxu0
        %v7517 = vadd.f32 %v7296, %v7516
        %7518 = vmatprep.mubr.f32.mxu0 0.0
        %v7519 = vand.u32 %v6661, 4294901760
        %v7520 = vsub.f32 %v6661, %v7519
        %v7521 = vand.u32 %v7520, 4294901760
        %7522 = vmatmul.mubr.f32.gmra.mxu0 %v7521
        %v7523 = vpop.f32.mrf.mxu0
        %v7524 = vadd.f32 %v7302, %v7523
        %v7525 = vpop.f32.mrf.mxu0
        %v7526 = vadd.f32 %v7304, %v7525
        %7527 = vmatprep.mubr.f32.mxu0 0.0
        %v7528 = vand.u32 %v6663, 4294901760
        %v7529 = vsub.f32 %v6663, %v7528
        %v7530 = vand.u32 %v7529, 4294901760
        %7531 = vmatmul.mubr.f32.gmra.mxu0 %v7530
        %v7532 = vpop.f32.mrf.mxu0
        %v7533 = vadd.f32 %v7310, %v7532
        %v7534 = vpop.f32.mrf.mxu0
        %v7535 = vadd.f32 %v7312, %v7534
        %7536 = vmatprep.mubr.f32.mxu0 0.0
        %v7537 = vand.u32 %v6665, 4294901760
        %v7538 = vsub.f32 %v6665, %v7537
        %v7539 = vand.u32 %v7538, 4294901760
        %7540 = vmatmul.mubr.f32.gmra.mxu0 %v7539
        %v7541 = vpop.f32.mrf.mxu0
        %v7542 = vadd.f32 %v7318, %v7541
        %v7543 = vpop.f32.mrf.mxu0
        %v7544 = vadd.f32 %v7320, %v7543
        %7545 = vmatprep.mubr.f32.mxu0 0.0
        %v7546 = vand.u32 %v6667, 4294901760
        %v7547 = vsub.f32 %v6667, %v7546
        %v7548 = vand.u32 %v7547, 4294901760
        %7549 = vmatmul.mubr.f32.gmra.mxu0 %v7548
        %v7550 = vpop.f32.mrf.mxu0
        %v7551 = vadd.f32 %v7326, %v7550
        %v7552 = vpop.f32.mrf.mxu0
        %v7553 = vadd.f32 %v7328, %v7552
        %7554 = vmatprep.mubr.f32.mxu0 0.0
        %v7555 = vand.u32 %v6669, 4294901760
        %v7556 = vsub.f32 %v6669, %v7555
        %v7557 = vand.u32 %v7556, 4294901760
        %7558 = vmatmul.mubr.f32.gmra.mxu0 %v7557
        %v7559 = vpop.f32.mrf.mxu0
        %v7560 = vadd.f32 %v7334, %v7559
        %v7561 = vpop.f32.mrf.mxu0
        %v7562 = vadd.f32 %v7336, %v7561
        %7563 = vmatprep.mubr.f32.mxu0 0.0
        %v7564 = vand.u32 %v6671, 4294901760
        %v7565 = vsub.f32 %v6671, %v7564
        %v7566 = vand.u32 %v7565, 4294901760
        %7567 = vmatmul.mubr.f32.gmra.mxu0 %v7566
        %v7568 = vpop.f32.mrf.mxu0
        %v7569 = vadd.f32 %v7342, %v7568
        %v7570 = vpop.f32.mrf.mxu0
        %v7571 = vadd.f32 %v7344, %v7570
        %7572 = vmatprep.mubr.f32.mxu0 0.0
        %v7573 = vand.u32 %v6673, 4294901760
        %v7574 = vsub.f32 %v6673, %v7573
        %v7575 = vand.u32 %v7574, 4294901760
        %7576 = vmatmul.mubr.f32.gmra.mxu0 %v7575
        %v7577 = vpop.f32.mrf.mxu0
        %v7578 = vadd.f32 %v7350, %v7577
        %v7579 = vpop.f32.mrf.mxu0
        %v7580 = vadd.f32 %v7352, %v7579
        %7581 = vmatprep.mubr.f32.mxu0 0.0
        %v7582 = vand.u32 %v6675, 4294901760
        %v7583 = vsub.f32 %v6675, %v7582
        %v7584 = vand.u32 %v7583, 4294901760
        %7585 = vmatmul.mubr.f32.gmra.mxu0 %v7584
        %v7586 = vpop.f32.mrf.mxu0
        %v7587 = vadd.f32 %v7358, %v7586
        %v7588 = vpop.f32.mrf.mxu0
        %v7589 = vadd.f32 %v7360, %v7588
        %7590 = vdwg.mxu0
        %7591 = vmatprep.subr.mxu0 0.0
        %7592 = vmatpush1.msra.mxu0 0.0
        %7593 = vmatprep.subr.mxu0 0.0
        %7594 = vmatpush1.msra.mxu0 0.0
        %7595 = vmatprep.subr.mxu0 0.0
        %7596 = vmatpush1.msra.mxu0 0.0
        %7597 = vmatprep.subr.mxu0 0.0
        %7598 = vmatpush1.msra.mxu0 0.0
        %7599 = vmatprep.subr.mxu0 0.0
        %7600 = vmatpush1.msra.mxu0 0.0
        %7601 = vmatprep.subr.mxu0 0.0
        %7602 = vmatpush1.msra.mxu0 0.0
        %7603 = vmatprep.subr.mxu0 0.0
        %7604 = vmatpush1.msra.mxu0 0.0
        %7605 = vmatprep.subr.mxu0 0.0
        %7606 = vmatpush1.msra.mxu0 0.0
        %7607 = vmatprep.subr.mxu0 0.0
        %7608 = vmatpush1.msra.mxu0 0.0
        %7609 = vmatprep.subr.mxu0 0.0
        %7610 = vmatpush1.msra.mxu0 0.0
        %7611 = vmatprep.subr.mxu0 0.0
        %7612 = vmatpush1.msra.mxu0 0.0
        %7613 = vmatprep.subr.mxu0 0.0
        %7614 = vmatpush1.msra.mxu0 0.0
        %7615 = vmatprep.subr.mxu0 0.0
        %7616 = vmatpush1.msra.mxu0 0.0
        %7617 = vmatprep.subr.mxu0 0.0
        %7618 = vmatpush1.msra.mxu0 0.0
        %7619 = vmatprep.subr.mxu0 0.0
        %7620 = vmatpush1.msra.mxu0 0.0
        %v7621 = vand.u32 %v6679, 4294901760
        %v7622 = vsub.f32 %v6679, %v7621
        %v7623 = vand.u32 %v7622, 4294901760
        %7624 = vmatprep.subr.mxu0 %v7623
        %v7625 = vand.u32 %v6677, 4294901760
        %v7626 = vsub.f32 %v6677, %v7625
        %v7627 = vand.u32 %v7626, 4294901760
        %7628 = vmatpush1.msra.mxu0 %v7627
        %7629 = vmatprep.subr.mxu0 0.0
        %7630 = vmatpush2.msra.mxu0 0.0
        %7631 = vmatprep.subr.mxu0 0.0
        %7632 = vmatpush2.msra.mxu0 0.0
        %7633 = vmatprep.subr.mxu0 0.0
        %7634 = vmatpush2.msra.mxu0 0.0
        %7635 = vmatprep.subr.mxu0 0.0
        %7636 = vmatpush2.msra.mxu0 0.0
        %7637 = vmatprep.subr.mxu0 0.0
        %7638 = vmatpush2.msra.mxu0 0.0
        %7639 = vmatprep.subr.mxu0 0.0
        %7640 = vmatpush2.msra.mxu0 0.0
        %7641 = vmatprep.subr.mxu0 0.0
        %7642 = vmatpush2.msra.mxu0 0.0
        %7643 = vmatprep.subr.mxu0 0.0
        %7644 = vmatpush2.msra.mxu0 0.0
        %7645 = vmatprep.subr.mxu0 0.0
        %7646 = vmatpush2.msra.mxu0 0.0
        %7647 = vmatprep.subr.mxu0 0.0
        %7648 = vmatpush2.msra.mxu0 0.0
        %7649 = vmatprep.subr.mxu0 0.0
        %7650 = vmatpush2.msra.mxu0 0.0
        %7651 = vmatprep.subr.mxu0 0.0
        %7652 = vmatpush2.msra.mxu0 0.0
        %7653 = vmatprep.subr.mxu0 0.0
        %7654 = vmatpush2.msra.mxu0 0.0
        %7655 = vmatprep.subr.mxu0 0.0
        %7656 = vmatpush2.msra.mxu0 0.0
        %7657 = vmatprep.subr.mxu0 0.0
        %7658 = vmatpush2.msra.mxu0 0.0
        %7659 = vmatprep.subr.mxu0 0.0
        %7660 = vmatpush2.msra.mxu0 0.0
        %7661 = vmatprep.mubr.f32.mxu0 0.0
        %v7662 = vand.u32 %v6641, 4294901760
        %7663 = vmatmul.mubr.f32.gmra.mxu0 %v7662
        %v7664 = vpop.f32.mrf.mxu0
        %v7665 = vadd.f32 %v7434, %v7664
        %v7666 = vpop.f32.mrf.mxu0
        %v7667 = vadd.f32 %v7436, %v7666
        %7668 = vmatprep.mubr.f32.mxu0 0.0
        %v7669 = vand.u32 %v6643, 4294901760
        %7670 = vmatmul.mubr.f32.gmra.mxu0 %v7669
        %v7671 = vpop.f32.mrf.mxu0
        %v7672 = vadd.f32 %v7443, %v7671
        %v7673 = vpop.f32.mrf.mxu0
        %v7674 = vadd.f32 %v7445, %v7673
        %7675 = vmatprep.mubr.f32.mxu0 0.0
        %v7676 = vand.u32 %v6645, 4294901760
        %7677 = vmatmul.mubr.f32.gmra.mxu0 %v7676
        %v7678 = vpop.f32.mrf.mxu0
        %v7679 = vadd.f32 %v7452, %v7678
        %v7680 = vpop.f32.mrf.mxu0
        %v7681 = vadd.f32 %v7454, %v7680
        %7682 = vmatprep.mubr.f32.mxu0 0.0
        %v7683 = vand.u32 %v6647, 4294901760
        %7684 = vmatmul.mubr.f32.gmra.mxu0 %v7683
        %v7685 = vpop.f32.mrf.mxu0
        %v7686 = vadd.f32 %v7461, %v7685
        %v7687 = vpop.f32.mrf.mxu0
        %v7688 = vadd.f32 %v7463, %v7687
        %7689 = vmatprep.mubr.f32.mxu0 0.0
        %v7690 = vand.u32 %v6649, 4294901760
        %7691 = vmatmul.mubr.f32.gmra.mxu0 %v7690
        %v7692 = vpop.f32.mrf.mxu0
        %v7693 = vadd.f32 %v7470, %v7692
        %v7694 = vpop.f32.mrf.mxu0
        %v7695 = vadd.f32 %v7472, %v7694
        %7696 = vmatprep.mubr.f32.mxu0 0.0
        %v7697 = vand.u32 %v6651, 4294901760
        %7698 = vmatmul.mubr.f32.gmra.mxu0 %v7697
        %v7699 = vpop.f32.mrf.mxu0
        %v7700 = vadd.f32 %v7479, %v7699
        %v7701 = vpop.f32.mrf.mxu0
        %v7702 = vadd.f32 %v7481, %v7701
        %7703 = vmatprep.mubr.f32.mxu0 0.0
        %v7704 = vand.u32 %v6653, 4294901760
        %7705 = vmatmul.mubr.f32.gmra.mxu0 %v7704
        %v7706 = vpop.f32.mrf.mxu0
        %v7707 = vadd.f32 %v7488, %v7706
        %v7708 = vpop.f32.mrf.mxu0
        %v7709 = vadd.f32 %v7490, %v7708
        %7710 = vmatprep.mubr.f32.mxu0 0.0
        %v7711 = vand.u32 %v6655, 4294901760
        %7712 = vmatmul.mubr.f32.gmra.mxu0 %v7711
        %v7713 = vpop.f32.mrf.mxu0
        %v7714 = vadd.f32 %v7497, %v7713
        %v7715 = vpop.f32.mrf.mxu0
        %v7716 = vadd.f32 %v7499, %v7715
        %7717 = vmatprep.mubr.f32.mxu0 0.0
        %v7718 = vand.u32 %v6657, 4294901760
        %7719 = vmatmul.mubr.f32.gmra.mxu0 %v7718
        %v7720 = vpop.f32.mrf.mxu0
        %v7721 = vadd.f32 %v7506, %v7720
        %v7722 = vpop.f32.mrf.mxu0
        %v7723 = vadd.f32 %v7508, %v7722
        %7724 = vmatprep.mubr.f32.mxu0 0.0
        %v7725 = vand.u32 %v6659, 4294901760
        %7726 = vmatmul.mubr.f32.gmra.mxu0 %v7725
        %v7727 = vpop.f32.mrf.mxu0
        %v7728 = vadd.f32 %v7515, %v7727
        %v7729 = vpop.f32.mrf.mxu0
        %v7730 = vadd.f32 %v7517, %v7729
        %7731 = vmatprep.mubr.f32.mxu0 0.0
        %v7732 = vand.u32 %v6661, 4294901760
        %7733 = vmatmul.mubr.f32.gmra.mxu0 %v7732
        %v7734 = vpop.f32.mrf.mxu0
        %v7735 = vadd.f32 %v7524, %v7734
        %v7736 = vpop.f32.mrf.mxu0
        %v7737 = vadd.f32 %v7526, %v7736
        %7738 = vmatprep.mubr.f32.mxu0 0.0
        %v7739 = vand.u32 %v6663, 4294901760
        %7740 = vmatmul.mubr.f32.gmra.mxu0 %v7739
        %v7741 = vpop.f32.mrf.mxu0
        %v7742 = vadd.f32 %v7533, %v7741
        %v7743 = vpop.f32.mrf.mxu0
        %v7744 = vadd.f32 %v7535, %v7743
        %7745 = vmatprep.mubr.f32.mxu0 0.0
        %v7746 = vand.u32 %v6665, 4294901760
        %7747 = vmatmul.mubr.f32.gmra.mxu0 %v7746
        %v7748 = vpop.f32.mrf.mxu0
        %v7749 = vadd.f32 %v7542, %v7748
        %v7750 = vpop.f32.mrf.mxu0
        %v7751 = vadd.f32 %v7544, %v7750
        %7752 = vmatprep.mubr.f32.mxu0 0.0
        %v7753 = vand.u32 %v6667, 4294901760
        %7754 = vmatmul.mubr.f32.gmra.mxu0 %v7753
        %v7755 = vpop.f32.mrf.mxu0
        %v7756 = vadd.f32 %v7551, %v7755
        %v7757 = vpop.f32.mrf.mxu0
        %v7758 = vadd.f32 %v7553, %v7757
        %7759 = vmatprep.mubr.f32.mxu0 0.0
        %v7760 = vand.u32 %v6669, 4294901760
        %7761 = vmatmul.mubr.f32.gmra.mxu0 %v7760
        %v7762 = vpop.f32.mrf.mxu0
        %v7763 = vadd.f32 %v7560, %v7762
        %v7764 = vpop.f32.mrf.mxu0
        %v7765 = vadd.f32 %v7562, %v7764
        %7766 = vmatprep.mubr.f32.mxu0 0.0
        %v7767 = vand.u32 %v6671, 4294901760
        %7768 = vmatmul.mubr.f32.gmra.mxu0 %v7767
        %v7769 = vpop.f32.mrf.mxu0
        %v7770 = vadd.f32 %v7569, %v7769
        %v7771 = vpop.f32.mrf.mxu0
        %v7772 = vadd.f32 %v7571, %v7771
        %7773 = vmatprep.mubr.f32.mxu0 0.0
        %v7774 = vand.u32 %v6673, 4294901760
        %7775 = vmatmul.mubr.f32.gmra.mxu0 %v7774
        %v7776 = vpop.f32.mrf.mxu0
        %v7777 = vadd.f32 %v7578, %v7776
        %v7778 = vpop.f32.mrf.mxu0
        %v7779 = vadd.f32 %v7580, %v7778
        %7780 = vmatprep.mubr.f32.mxu0 0.0
        %v7781 = vand.u32 %v6675, 4294901760
        %7782 = vmatmul.mubr.f32.gmra.mxu0 %v7781
        %v7783 = vpop.f32.mrf.mxu0
        %v7784 = vadd.f32 %v7587, %v7783
        %v7785 = vpop.f32.mrf.mxu0
        %v7786 = vadd.f32 %v7589, %v7785
        %7787 = vdwg.mxu0
        %7788 = vmatprep.subr.mxu0 0.0
        %7789 = vmatpush1.msra.mxu0 0.0
        %7790 = vmatprep.subr.mxu0 0.0
        %7791 = vmatpush1.msra.mxu0 0.0
        %7792 = vmatprep.subr.mxu0 0.0
        %7793 = vmatpush1.msra.mxu0 0.0
        %7794 = vmatprep.subr.mxu0 0.0
        %7795 = vmatpush1.msra.mxu0 0.0
        %7796 = vmatprep.subr.mxu0 0.0
        %7797 = vmatpush1.msra.mxu0 0.0
        %7798 = vmatprep.subr.mxu0 0.0
        %7799 = vmatpush1.msra.mxu0 0.0
        %7800 = vmatprep.subr.mxu0 0.0
        %7801 = vmatpush1.msra.mxu0 0.0
        %7802 = vmatprep.subr.mxu0 0.0
        %7803 = vmatpush1.msra.mxu0 0.0
        %7804 = vmatprep.subr.mxu0 0.0
        %7805 = vmatpush1.msra.mxu0 0.0
        %7806 = vmatprep.subr.mxu0 0.0
        %7807 = vmatpush1.msra.mxu0 0.0
        %7808 = vmatprep.subr.mxu0 0.0
        %7809 = vmatpush1.msra.mxu0 0.0
        %7810 = vmatprep.subr.mxu0 0.0
        %7811 = vmatpush1.msra.mxu0 0.0
        %7812 = vmatprep.subr.mxu0 0.0
        %7813 = vmatpush1.msra.mxu0 0.0
        %7814 = vmatprep.subr.mxu0 0.0
        %7815 = vmatpush1.msra.mxu0 0.0
        %7816 = vmatprep.subr.mxu0 0.0
        %7817 = vmatpush1.msra.mxu0 0.0
        %v7818 = vand.u32 %v6679, 4294901760
        %7819 = vmatprep.subr.mxu0 %v7818
        %v7820 = vand.u32 %v6677, 4294901760
        %7821 = vmatpush1.msra.mxu0 %v7820
        %7822 = vmatprep.subr.mxu0 0.0
        %7823 = vmatpush2.msra.mxu0 0.0
        %7824 = vmatprep.subr.mxu0 0.0
        %7825 = vmatpush2.msra.mxu0 0.0
        %7826 = vmatprep.subr.mxu0 0.0
        %7827 = vmatpush2.msra.mxu0 0.0
        %7828 = vmatprep.subr.mxu0 0.0
        %7829 = vmatpush2.msra.mxu0 0.0
        %7830 = vmatprep.subr.mxu0 0.0
        %7831 = vmatpush2.msra.mxu0 0.0
        %7832 = vmatprep.subr.mxu0 0.0
        %7833 = vmatpush2.msra.mxu0 0.0
        %7834 = vmatprep.subr.mxu0 0.0
        %7835 = vmatpush2.msra.mxu0 0.0
        %7836 = vmatprep.subr.mxu0 0.0
        %7837 = vmatpush2.msra.mxu0 0.0
        %7838 = vmatprep.subr.mxu0 0.0
        %7839 = vmatpush2.msra.mxu0 0.0
        %7840 = vmatprep.subr.mxu0 0.0
        %7841 = vmatpush2.msra.mxu0 0.0
        %7842 = vmatprep.subr.mxu0 0.0
        %7843 = vmatpush2.msra.mxu0 0.0
        %7844 = vmatprep.subr.mxu0 0.0
        %7845 = vmatpush2.msra.mxu0 0.0
        %7846 = vmatprep.subr.mxu0 0.0
        %7847 = vmatpush2.msra.mxu0 0.0
        %7848 = vmatprep.subr.mxu0 0.0
        %7849 = vmatpush2.msra.mxu0 0.0
        %7850 = vmatprep.subr.mxu0 0.0
        %7851 = vmatpush2.msra.mxu0 0.0
        %7852 = vmatprep.subr.mxu0 0.0
        %7853 = vmatpush2.msra.mxu0 0.0
        %7854 = vmatprep.mubr.f32.mxu0 0.0
        %v7855 = vand.u32 %v6641, 4294901760
        %7856 = vmatmul.mubr.f32.gmra.mxu0 %v7855
        %v7857 = vpop.f32.mrf.mxu0
        %v7858 = vadd.f32 %v7665, %v7857
        %v7859 = vpop.f32.mrf.mxu0
        %v7860 = vadd.f32 %v7667, %v7859
        %7861 = vmatprep.mubr.f32.mxu0 0.0
        %v7862 = vand.u32 %v6643, 4294901760
        %7863 = vmatmul.mubr.f32.gmra.mxu0 %v7862
        %v7864 = vpop.f32.mrf.mxu0
        %v7865 = vadd.f32 %v7672, %v7864
        %v7866 = vpop.f32.mrf.mxu0
        %v7867 = vadd.f32 %v7674, %v7866
        %7868 = vmatprep.mubr.f32.mxu0 0.0
        %v7869 = vand.u32 %v6645, 4294901760
        %7870 = vmatmul.mubr.f32.gmra.mxu0 %v7869
        %v7871 = vpop.f32.mrf.mxu0
        %v7872 = vadd.f32 %v7679, %v7871
        %v7873 = vpop.f32.mrf.mxu0
        %v7874 = vadd.f32 %v7681, %v7873
        %7875 = vmatprep.mubr.f32.mxu0 0.0
        %v7876 = vand.u32 %v6647, 4294901760
        %7877 = vmatmul.mubr.f32.gmra.mxu0 %v7876
        %v7878 = vpop.f32.mrf.mxu0
        %v7879 = vadd.f32 %v7686, %v7878
        %v7880 = vpop.f32.mrf.mxu0
        %v7881 = vadd.f32 %v7688, %v7880
        %7882 = vmatprep.mubr.f32.mxu0 0.0
        %v7883 = vand.u32 %v6649, 4294901760
        %7884 = vmatmul.mubr.f32.gmra.mxu0 %v7883
        %v7885 = vpop.f32.mrf.mxu0
        %v7886 = vadd.f32 %v7693, %v7885
        %v7887 = vpop.f32.mrf.mxu0
        %v7888 = vadd.f32 %v7695, %v7887
        %7889 = vmatprep.mubr.f32.mxu0 0.0
        %v7890 = vand.u32 %v6651, 4294901760
        %7891 = vmatmul.mubr.f32.gmra.mxu0 %v7890
        %v7892 = vpop.f32.mrf.mxu0
        %v7893 = vadd.f32 %v7700, %v7892
        %v7894 = vpop.f32.mrf.mxu0
        %v7895 = vadd.f32 %v7702, %v7894
        %7896 = vmatprep.mubr.f32.mxu0 0.0
        %v7897 = vand.u32 %v6653, 4294901760
        %7898 = vmatmul.mubr.f32.gmra.mxu0 %v7897
        %v7899 = vpop.f32.mrf.mxu0
        %v7900 = vadd.f32 %v7707, %v7899
        %v7901 = vpop.f32.mrf.mxu0
        %v7902 = vadd.f32 %v7709, %v7901
        %7903 = vmatprep.mubr.f32.mxu0 0.0
        %v7904 = vand.u32 %v6655, 4294901760
        %7905 = vmatmul.mubr.f32.gmra.mxu0 %v7904
        %v7906 = vpop.f32.mrf.mxu0
        %v7907 = vadd.f32 %v7714, %v7906
        %v7908 = vpop.f32.mrf.mxu0
        %v7909 = vadd.f32 %v7716, %v7908
        %7910 = vmatprep.mubr.f32.mxu0 0.0
        %v7911 = vand.u32 %v6657, 4294901760
        %7912 = vmatmul.mubr.f32.gmra.mxu0 %v7911
        %v7913 = vpop.f32.mrf.mxu0
        %v7914 = vadd.f32 %v7721, %v7913
        %v7915 = vpop.f32.mrf.mxu0
        %v7916 = vadd.f32 %v7723, %v7915
        %7917 = vmatprep.mubr.f32.mxu0 0.0
        %v7918 = vand.u32 %v6659, 4294901760
        %7919 = vmatmul.mubr.f32.gmra.mxu0 %v7918
        %v7920 = vpop.f32.mrf.mxu0
        %v7921 = vadd.f32 %v7728, %v7920
        %v7922 = vpop.f32.mrf.mxu0
        %v7923 = vadd.f32 %v7730, %v7922
        %7924 = vmatprep.mubr.f32.mxu0 0.0
        %v7925 = vand.u32 %v6661, 4294901760
        %7926 = vmatmul.mubr.f32.gmra.mxu0 %v7925
        %v7927 = vpop.f32.mrf.mxu0
        %v7928 = vadd.f32 %v7735, %v7927
        %v7929 = vpop.f32.mrf.mxu0
        %v7930 = vadd.f32 %v7737, %v7929
        %7931 = vmatprep.mubr.f32.mxu0 0.0
        %v7932 = vand.u32 %v6663, 4294901760
        %7933 = vmatmul.mubr.f32.gmra.mxu0 %v7932
        %v7934 = vpop.f32.mrf.mxu0
        %v7935 = vadd.f32 %v7742, %v7934
        %v7936 = vpop.f32.mrf.mxu0
        %v7937 = vadd.f32 %v7744, %v7936
        %7938 = vmatprep.mubr.f32.mxu0 0.0
        %v7939 = vand.u32 %v6665, 4294901760
        %7940 = vmatmul.mubr.f32.gmra.mxu0 %v7939
        %v7941 = vpop.f32.mrf.mxu0
        %v7942 = vadd.f32 %v7749, %v7941
        %v7943 = vpop.f32.mrf.mxu0
        %v7944 = vadd.f32 %v7751, %v7943
        %7945 = vmatprep.mubr.f32.mxu0 0.0
        %v7946 = vand.u32 %v6667, 4294901760
        %7947 = vmatmul.mubr.f32.gmra.mxu0 %v7946
        %v7948 = vpop.f32.mrf.mxu0
        %v7949 = vadd.f32 %v7756, %v7948
        %v7950 = vpop.f32.mrf.mxu0
        %v7951 = vadd.f32 %v7758, %v7950
        %7952 = vmatprep.mubr.f32.mxu0 0.0
        %v7953 = vand.u32 %v6669, 4294901760
        %7954 = vmatmul.mubr.f32.gmra.mxu0 %v7953
        %v7955 = vpop.f32.mrf.mxu0
        %v7956 = vadd.f32 %v7763, %v7955
        %v7957 = vpop.f32.mrf.mxu0
        %v7958 = vadd.f32 %v7765, %v7957
        %7959 = vmatprep.mubr.f32.mxu0 0.0
        %v7960 = vand.u32 %v6671, 4294901760
        %7961 = vmatmul.mubr.f32.gmra.mxu0 %v7960
        %v7962 = vpop.f32.mrf.mxu0
        %v7963 = vadd.f32 %v7770, %v7962
        %v7964 = vpop.f32.mrf.mxu0
        %v7965 = vadd.f32 %v7772, %v7964
        %7966 = vmatprep.mubr.f32.mxu0 0.0
        %v7967 = vand.u32 %v6673, 4294901760
        %7968 = vmatmul.mubr.f32.gmra.mxu0 %v7967
        %v7969 = vpop.f32.mrf.mxu0
        %v7970 = vadd.f32 %v7777, %v7969
        %v7971 = vpop.f32.mrf.mxu0
        %v7972 = vadd.f32 %v7779, %v7971
        %7973 = vmatprep.mubr.f32.mxu0 0.0
        %v7974 = vand.u32 %v6675, 4294901760
        %7975 = vmatmul.mubr.f32.gmra.mxu0 %v7974
        %v7976 = vpop.f32.mrf.mxu0
        %v7977 = vadd.f32 %v7784, %v7976
        %v7978 = vpop.f32.mrf.mxu0
        %v7979 = vadd.f32 %v7786, %v7978
        %7980 = vdwg.mxu0
        %7981 = vmatprep.subr.mxu0 0.0
        %7982 = vmatpush1.msra.mxu0 0.0
        %7983 = vmatprep.subr.mxu0 0.0
        %7984 = vmatpush1.msra.mxu0 0.0
        %7985 = vmatprep.subr.mxu0 0.0
        %7986 = vmatpush1.msra.mxu0 0.0
        %7987 = vmatprep.subr.mxu0 0.0
        %7988 = vmatpush1.msra.mxu0 0.0
        %7989 = vmatprep.subr.mxu0 0.0
        %7990 = vmatpush1.msra.mxu0 0.0
        %7991 = vmatprep.subr.mxu0 0.0
        %7992 = vmatpush1.msra.mxu0 0.0
        %7993 = vmatprep.subr.mxu0 0.0
        %7994 = vmatpush1.msra.mxu0 0.0
        %7995 = vmatprep.subr.mxu0 0.0
        %7996 = vmatpush1.msra.mxu0 0.0
        %7997 = vmatprep.subr.mxu0 0.0
        %7998 = vmatpush1.msra.mxu0 0.0
        %7999 = vmatprep.subr.mxu0 0.0
        %8000 = vmatpush1.msra.mxu0 0.0
        %8001 = vmatprep.subr.mxu0 0.0
        %8002 = vmatpush1.msra.mxu0 0.0
        %8003 = vmatprep.subr.mxu0 0.0
        %8004 = vmatpush1.msra.mxu0 0.0
        %8005 = vmatprep.subr.mxu0 0.0
        %8006 = vmatpush1.msra.mxu0 0.0
        %8007 = vmatprep.subr.mxu0 0.0
        %8008 = vmatpush1.msra.mxu0 0.0
        %8009 = vmatprep.subr.mxu0 0.0
        %8010 = vmatpush1.msra.mxu0 0.0
        %8011 = vmatprep.subr.mxu0 0.0
        %v8012 = vand.u32 %v6681, 4294901760
        %8013 = vmatpush1.msra.mxu0 %v8012
        %8014 = vmatprep.subr.mxu0 0.0
        %8015 = vmatpush2.msra.mxu0 0.0
        %8016 = vmatprep.subr.mxu0 0.0
        %8017 = vmatpush2.msra.mxu0 0.0
        %8018 = vmatprep.subr.mxu0 0.0
        %8019 = vmatpush2.msra.mxu0 0.0
        %8020 = vmatprep.subr.mxu0 0.0
        %8021 = vmatpush2.msra.mxu0 0.0
        %8022 = vmatprep.subr.mxu0 0.0
        %8023 = vmatpush2.msra.mxu0 0.0
        %8024 = vmatprep.subr.mxu0 0.0
        %8025 = vmatpush2.msra.mxu0 0.0
        %8026 = vmatprep.subr.mxu0 0.0
        %8027 = vmatpush2.msra.mxu0 0.0
        %8028 = vmatprep.subr.mxu0 0.0
        %8029 = vmatpush2.msra.mxu0 0.0
        %8030 = vmatprep.subr.mxu0 0.0
        %8031 = vmatpush2.msra.mxu0 0.0
        %8032 = vmatprep.subr.mxu0 0.0
        %8033 = vmatpush2.msra.mxu0 0.0
        %8034 = vmatprep.subr.mxu0 0.0
        %8035 = vmatpush2.msra.mxu0 0.0
        %8036 = vmatprep.subr.mxu0 0.0
        %8037 = vmatpush2.msra.mxu0 0.0
        %8038 = vmatprep.subr.mxu0 0.0
        %8039 = vmatpush2.msra.mxu0 0.0
        %8040 = vmatprep.subr.mxu0 0.0
        %8041 = vmatpush2.msra.mxu0 0.0
        %8042 = vmatprep.subr.mxu0 0.0
        %8043 = vmatpush2.msra.mxu0 0.0
        %8044 = vmatprep.subr.mxu0 0.0
        %8045 = vmatpush2.msra.mxu0 0.0
        %8046 = vmatprep.mubr.f32.mxu0 0.0
        %v8047 = vand.u32 %v6641, 4294901760
        %v8048 = vsub.f32 %v6641, %v8047
        %v8049 = vand.u32 %v8048, 4294901760
        %v8050 = vsub.f32 %v8048, %v8049
        %v8051 = vand.u32 %v8050, 4294901760
        %8052 = vmatmul.mubr.f32.gmra.mxu0 %v8051
        %v8053 = vpop.f32.mrf.mxu0
        %v8054 = vadd.f32 0.0, %v8053
        %v8055 = vpop.f32.mrf.mxu0
        %8056 = vmatprep.mubr.f32.mxu0 0.0
        %v8057 = vand.u32 %v6643, 4294901760
        %v8058 = vsub.f32 %v6643, %v8057
        %v8059 = vand.u32 %v8058, 4294901760
        %v8060 = vsub.f32 %v8058, %v8059
        %v8061 = vand.u32 %v8060, 4294901760
        %8062 = vmatmul.mubr.f32.gmra.mxu0 %v8061
        %v8063 = vpop.f32.mrf.mxu0
        %v8064 = vadd.f32 0.0, %v8063
        %v8065 = vpop.f32.mrf.mxu0
        %8066 = vmatprep.mubr.f32.mxu0 0.0
        %v8067 = vand.u32 %v6645, 4294901760
        %v8068 = vsub.f32 %v6645, %v8067
        %v8069 = vand.u32 %v8068, 4294901760
        %v8070 = vsub.f32 %v8068, %v8069
        %v8071 = vand.u32 %v8070, 4294901760
        %8072 = vmatmul.mubr.f32.gmra.mxu0 %v8071
        %v8073 = vpop.f32.mrf.mxu0
        %v8074 = vadd.f32 0.0, %v8073
        %v8075 = vpop.f32.mrf.mxu0
        %8076 = vmatprep.mubr.f32.mxu0 0.0
        %v8077 = vand.u32 %v6647, 4294901760
        %v8078 = vsub.f32 %v6647, %v8077
        %v8079 = vand.u32 %v8078, 4294901760
        %v8080 = vsub.f32 %v8078, %v8079
        %v8081 = vand.u32 %v8080, 4294901760
        %8082 = vmatmul.mubr.f32.gmra.mxu0 %v8081
        %v8083 = vpop.f32.mrf.mxu0
        %v8084 = vadd.f32 0.0, %v8083
        %v8085 = vpop.f32.mrf.mxu0
        %8086 = vmatprep.mubr.f32.mxu0 0.0
        %v8087 = vand.u32 %v6649, 4294901760
        %v8088 = vsub.f32 %v6649, %v8087
        %v8089 = vand.u32 %v8088, 4294901760
        %v8090 = vsub.f32 %v8088, %v8089
        %v8091 = vand.u32 %v8090, 4294901760
        %8092 = vmatmul.mubr.f32.gmra.mxu0 %v8091
        %v8093 = vpop.f32.mrf.mxu0
        %v8094 = vadd.f32 0.0, %v8093
        %v8095 = vpop.f32.mrf.mxu0
        %8096 = vmatprep.mubr.f32.mxu0 0.0
        %v8097 = vand.u32 %v6651, 4294901760
        %v8098 = vsub.f32 %v6651, %v8097
        %v8099 = vand.u32 %v8098, 4294901760
        %v8100 = vsub.f32 %v8098, %v8099
        %v8101 = vand.u32 %v8100, 4294901760
        %8102 = vmatmul.mubr.f32.gmra.mxu0 %v8101
        %v8103 = vpop.f32.mrf.mxu0
        %v8104 = vadd.f32 0.0, %v8103
        %v8105 = vpop.f32.mrf.mxu0
        %8106 = vmatprep.mubr.f32.mxu0 0.0
        %v8107 = vand.u32 %v6653, 4294901760
        %v8108 = vsub.f32 %v6653, %v8107
        %v8109 = vand.u32 %v8108, 4294901760
        %v8110 = vsub.f32 %v8108, %v8109
        %v8111 = vand.u32 %v8110, 4294901760
        %8112 = vmatmul.mubr.f32.gmra.mxu0 %v8111
        %v8113 = vpop.f32.mrf.mxu0
        %v8114 = vadd.f32 0.0, %v8113
        %v8115 = vpop.f32.mrf.mxu0
        %8116 = vmatprep.mubr.f32.mxu0 0.0
        %v8117 = vand.u32 %v6655, 4294901760
        %v8118 = vsub.f32 %v6655, %v8117
        %v8119 = vand.u32 %v8118, 4294901760
        %v8120 = vsub.f32 %v8118, %v8119
        %v8121 = vand.u32 %v8120, 4294901760
        %8122 = vmatmul.mubr.f32.gmra.mxu0 %v8121
        %v8123 = vpop.f32.mrf.mxu0
        %v8124 = vadd.f32 0.0, %v8123
        %v8125 = vpop.f32.mrf.mxu0
        %8126 = vmatprep.mubr.f32.mxu0 0.0
        %v8127 = vand.u32 %v6657, 4294901760
        %v8128 = vsub.f32 %v6657, %v8127
        %v8129 = vand.u32 %v8128, 4294901760
        %v8130 = vsub.f32 %v8128, %v8129
        %v8131 = vand.u32 %v8130, 4294901760
        %8132 = vmatmul.mubr.f32.gmra.mxu0 %v8131
        %v8133 = vpop.f32.mrf.mxu0
        %v8134 = vadd.f32 0.0, %v8133
        %v8135 = vpop.f32.mrf.mxu0
        %8136 = vmatprep.mubr.f32.mxu0 0.0
        %v8137 = vand.u32 %v6659, 4294901760
        %v8138 = vsub.f32 %v6659, %v8137
        %v8139 = vand.u32 %v8138, 4294901760
        %v8140 = vsub.f32 %v8138, %v8139
        %v8141 = vand.u32 %v8140, 4294901760
        %8142 = vmatmul.mubr.f32.gmra.mxu0 %v8141
        %v8143 = vpop.f32.mrf.mxu0
        %v8144 = vadd.f32 0.0, %v8143
        %v8145 = vpop.f32.mrf.mxu0
        %8146 = vmatprep.mubr.f32.mxu0 0.0
        %v8147 = vand.u32 %v6661, 4294901760
        %v8148 = vsub.f32 %v6661, %v8147
        %v8149 = vand.u32 %v8148, 4294901760
        %v8150 = vsub.f32 %v8148, %v8149
        %v8151 = vand.u32 %v8150, 4294901760
        %8152 = vmatmul.mubr.f32.gmra.mxu0 %v8151
        %v8153 = vpop.f32.mrf.mxu0
        %v8154 = vadd.f32 0.0, %v8153
        %v8155 = vpop.f32.mrf.mxu0
        %8156 = vmatprep.mubr.f32.mxu0 0.0
        %v8157 = vand.u32 %v6663, 4294901760
        %v8158 = vsub.f32 %v6663, %v8157
        %v8159 = vand.u32 %v8158, 4294901760
        %v8160 = vsub.f32 %v8158, %v8159
        %v8161 = vand.u32 %v8160, 4294901760
        %8162 = vmatmul.mubr.f32.gmra.mxu0 %v8161
        %v8163 = vpop.f32.mrf.mxu0
        %v8164 = vadd.f32 0.0, %v8163
        %v8165 = vpop.f32.mrf.mxu0
        %8166 = vmatprep.mubr.f32.mxu0 0.0
        %v8167 = vand.u32 %v6665, 4294901760
        %v8168 = vsub.f32 %v6665, %v8167
        %v8169 = vand.u32 %v8168, 4294901760
        %v8170 = vsub.f32 %v8168, %v8169
        %v8171 = vand.u32 %v8170, 4294901760
        %8172 = vmatmul.mubr.f32.gmra.mxu0 %v8171
        %v8173 = vpop.f32.mrf.mxu0
        %v8174 = vadd.f32 0.0, %v8173
        %v8175 = vpop.f32.mrf.mxu0
        %8176 = vmatprep.mubr.f32.mxu0 0.0
        %v8177 = vand.u32 %v6667, 4294901760
        %v8178 = vsub.f32 %v6667, %v8177
        %v8179 = vand.u32 %v8178, 4294901760
        %v8180 = vsub.f32 %v8178, %v8179
        %v8181 = vand.u32 %v8180, 4294901760
        %8182 = vmatmul.mubr.f32.gmra.mxu0 %v8181
        %v8183 = vpop.f32.mrf.mxu0
        %v8184 = vadd.f32 0.0, %v8183
        %v8185 = vpop.f32.mrf.mxu0
        %8186 = vmatprep.mubr.f32.mxu0 0.0
        %v8187 = vand.u32 %v6669, 4294901760
        %v8188 = vsub.f32 %v6669, %v8187
        %v8189 = vand.u32 %v8188, 4294901760
        %v8190 = vsub.f32 %v8188, %v8189
        %v8191 = vand.u32 %v8190, 4294901760
        %8192 = vmatmul.mubr.f32.gmra.mxu0 %v8191
        %v8193 = vpop.f32.mrf.mxu0
        %v8194 = vadd.f32 0.0, %v8193
        %v8195 = vpop.f32.mrf.mxu0
        %8196 = vmatprep.mubr.f32.mxu0 0.0
        %v8197 = vand.u32 %v6671, 4294901760
        %v8198 = vsub.f32 %v6671, %v8197
        %v8199 = vand.u32 %v8198, 4294901760
        %v8200 = vsub.f32 %v8198, %v8199
        %v8201 = vand.u32 %v8200, 4294901760
        %8202 = vmatmul.mubr.f32.gmra.mxu0 %v8201
        %v8203 = vpop.f32.mrf.mxu0
        %v8204 = vadd.f32 0.0, %v8203
        %v8205 = vpop.f32.mrf.mxu0
        %8206 = vmatprep.mubr.f32.mxu0 0.0
        %v8207 = vand.u32 %v6673, 4294901760
        %v8208 = vsub.f32 %v6673, %v8207
        %v8209 = vand.u32 %v8208, 4294901760
        %v8210 = vsub.f32 %v8208, %v8209
        %v8211 = vand.u32 %v8210, 4294901760
        %8212 = vmatmul.mubr.f32.gmra.mxu0 %v8211
        %v8213 = vpop.f32.mrf.mxu0
        %v8214 = vadd.f32 0.0, %v8213
        %v8215 = vpop.f32.mrf.mxu0
        %8216 = vmatprep.mubr.f32.mxu0 0.0
        %v8217 = vand.u32 %v6675, 4294901760
        %v8218 = vsub.f32 %v6675, %v8217
        %v8219 = vand.u32 %v8218, 4294901760
        %v8220 = vsub.f32 %v8218, %v8219
        %v8221 = vand.u32 %v8220, 4294901760
        %8222 = vmatmul.mubr.f32.gmra.mxu0 %v8221
        %v8223 = vpop.f32.mrf.mxu0
        %v8224 = vadd.f32 0.0, %v8223
        %v8225 = vpop.f32.mrf.mxu0
        %8226 = vdwg.mxu0
        %8227 = vmatprep.subr.mxu0 0.0
        %8228 = vmatpush1.msra.mxu0 0.0
        %8229 = vmatprep.subr.mxu0 0.0
        %8230 = vmatpush1.msra.mxu0 0.0
        %8231 = vmatprep.subr.mxu0 0.0
        %8232 = vmatpush1.msra.mxu0 0.0
        %8233 = vmatprep.subr.mxu0 0.0
        %8234 = vmatpush1.msra.mxu0 0.0
        %8235 = vmatprep.subr.mxu0 0.0
        %8236 = vmatpush1.msra.mxu0 0.0
        %8237 = vmatprep.subr.mxu0 0.0
        %8238 = vmatpush1.msra.mxu0 0.0
        %8239 = vmatprep.subr.mxu0 0.0
        %8240 = vmatpush1.msra.mxu0 0.0
        %8241 = vmatprep.subr.mxu0 0.0
        %8242 = vmatpush1.msra.mxu0 0.0
        %8243 = vmatprep.subr.mxu0 0.0
        %8244 = vmatpush1.msra.mxu0 0.0
        %8245 = vmatprep.subr.mxu0 0.0
        %8246 = vmatpush1.msra.mxu0 0.0
        %8247 = vmatprep.subr.mxu0 0.0
        %8248 = vmatpush1.msra.mxu0 0.0
        %8249 = vmatprep.subr.mxu0 0.0
        %8250 = vmatpush1.msra.mxu0 0.0
        %8251 = vmatprep.subr.mxu0 0.0
        %8252 = vmatpush1.msra.mxu0 0.0
        %8253 = vmatprep.subr.mxu0 0.0
        %8254 = vmatpush1.msra.mxu0 0.0
        %8255 = vmatprep.subr.mxu0 0.0
        %8256 = vmatpush1.msra.mxu0 0.0
        %8257 = vmatprep.subr.mxu0 0.0
        %v8258 = vand.u32 %v6681, 4294901760
        %v8259 = vsub.f32 %v6681, %v8258
        %v8260 = vand.u32 %v8259, 4294901760
        %v8261 = vsub.f32 %v8259, %v8260
        %v8262 = vand.u32 %v8261, 4294901760
        %8263 = vmatpush1.msra.mxu0 %v8262
        %8264 = vmatprep.subr.mxu0 0.0
        %8265 = vmatpush2.msra.mxu0 0.0
        %8266 = vmatprep.subr.mxu0 0.0
        %8267 = vmatpush2.msra.mxu0 0.0
        %8268 = vmatprep.subr.mxu0 0.0
        %8269 = vmatpush2.msra.mxu0 0.0
        %8270 = vmatprep.subr.mxu0 0.0
        %8271 = vmatpush2.msra.mxu0 0.0
        %8272 = vmatprep.subr.mxu0 0.0
        %8273 = vmatpush2.msra.mxu0 0.0
        %8274 = vmatprep.subr.mxu0 0.0
        %8275 = vmatpush2.msra.mxu0 0.0
        %8276 = vmatprep.subr.mxu0 0.0
        %8277 = vmatpush2.msra.mxu0 0.0
        %8278 = vmatprep.subr.mxu0 0.0
        %8279 = vmatpush2.msra.mxu0 0.0
        %8280 = vmatprep.subr.mxu0 0.0
        %8281 = vmatpush2.msra.mxu0 0.0
        %8282 = vmatprep.subr.mxu0 0.0
        %8283 = vmatpush2.msra.mxu0 0.0
        %8284 = vmatprep.subr.mxu0 0.0
        %8285 = vmatpush2.msra.mxu0 0.0
        %8286 = vmatprep.subr.mxu0 0.0
        %8287 = vmatpush2.msra.mxu0 0.0
        %8288 = vmatprep.subr.mxu0 0.0
        %8289 = vmatpush2.msra.mxu0 0.0
        %8290 = vmatprep.subr.mxu0 0.0
        %8291 = vmatpush2.msra.mxu0 0.0
        %8292 = vmatprep.subr.mxu0 0.0
        %8293 = vmatpush2.msra.mxu0 0.0
        %8294 = vmatprep.subr.mxu0 0.0
        %8295 = vmatpush2.msra.mxu0 0.0
        %8296 = vmatprep.mubr.f32.mxu0 0.0
        %v8297 = vand.u32 %v6641, 4294901760
        %8298 = vmatmul.mubr.f32.gmra.mxu0 %v8297
        %v8299 = vpop.f32.mrf.mxu0
        %v8300 = vadd.f32 %v8054, %v8299
        %v8301 = vpop.f32.mrf.mxu0
        %8302 = vmatprep.mubr.f32.mxu0 0.0
        %v8303 = vand.u32 %v6643, 4294901760
        %8304 = vmatmul.mubr.f32.gmra.mxu0 %v8303
        %v8305 = vpop.f32.mrf.mxu0
        %v8306 = vadd.f32 %v8064, %v8305
        %v8307 = vpop.f32.mrf.mxu0
        %8308 = vmatprep.mubr.f32.mxu0 0.0
        %v8309 = vand.u32 %v6645, 4294901760
        %8310 = vmatmul.mubr.f32.gmra.mxu0 %v8309
        %v8311 = vpop.f32.mrf.mxu0
        %v8312 = vadd.f32 %v8074, %v8311
        %v8313 = vpop.f32.mrf.mxu0
        %8314 = vmatprep.mubr.f32.mxu0 0.0
        %v8315 = vand.u32 %v6647, 4294901760
        %8316 = vmatmul.mubr.f32.gmra.mxu0 %v8315
        %v8317 = vpop.f32.mrf.mxu0
        %v8318 = vadd.f32 %v8084, %v8317
        %v8319 = vpop.f32.mrf.mxu0
        %8320 = vmatprep.mubr.f32.mxu0 0.0
        %v8321 = vand.u32 %v6649, 4294901760
        %8322 = vmatmul.mubr.f32.gmra.mxu0 %v8321
        %v8323 = vpop.f32.mrf.mxu0
        %v8324 = vadd.f32 %v8094, %v8323
        %v8325 = vpop.f32.mrf.mxu0
        %8326 = vmatprep.mubr.f32.mxu0 0.0
        %v8327 = vand.u32 %v6651, 4294901760
        %8328 = vmatmul.mubr.f32.gmra.mxu0 %v8327
        %v8329 = vpop.f32.mrf.mxu0
        %v8330 = vadd.f32 %v8104, %v8329
        %v8331 = vpop.f32.mrf.mxu0
        %8332 = vmatprep.mubr.f32.mxu0 0.0
        %v8333 = vand.u32 %v6653, 4294901760
        %8334 = vmatmul.mubr.f32.gmra.mxu0 %v8333
        %v8335 = vpop.f32.mrf.mxu0
        %v8336 = vadd.f32 %v8114, %v8335
        %v8337 = vpop.f32.mrf.mxu0
        %8338 = vmatprep.mubr.f32.mxu0 0.0
        %v8339 = vand.u32 %v6655, 4294901760
        %8340 = vmatmul.mubr.f32.gmra.mxu0 %v8339
        %v8341 = vpop.f32.mrf.mxu0
        %v8342 = vadd.f32 %v8124, %v8341
        %v8343 = vpop.f32.mrf.mxu0
        %8344 = vmatprep.mubr.f32.mxu0 0.0
        %v8345 = vand.u32 %v6657, 4294901760
        %8346 = vmatmul.mubr.f32.gmra.mxu0 %v8345
        %v8347 = vpop.f32.mrf.mxu0
        %v8348 = vadd.f32 %v8134, %v8347
        %v8349 = vpop.f32.mrf.mxu0
        %8350 = vmatprep.mubr.f32.mxu0 0.0
        %v8351 = vand.u32 %v6659, 4294901760
        %8352 = vmatmul.mubr.f32.gmra.mxu0 %v8351
        %v8353 = vpop.f32.mrf.mxu0
        %v8354 = vadd.f32 %v8144, %v8353
        %v8355 = vpop.f32.mrf.mxu0
        %8356 = vmatprep.mubr.f32.mxu0 0.0
        %v8357 = vand.u32 %v6661, 4294901760
        %8358 = vmatmul.mubr.f32.gmra.mxu0 %v8357
        %v8359 = vpop.f32.mrf.mxu0
        %v8360 = vadd.f32 %v8154, %v8359
        %v8361 = vpop.f32.mrf.mxu0
        %8362 = vmatprep.mubr.f32.mxu0 0.0
        %v8363 = vand.u32 %v6663, 4294901760
        %8364 = vmatmul.mubr.f32.gmra.mxu0 %v8363
        %v8365 = vpop.f32.mrf.mxu0
        %v8366 = vadd.f32 %v8164, %v8365
        %v8367 = vpop.f32.mrf.mxu0
        %8368 = vmatprep.mubr.f32.mxu0 0.0
        %v8369 = vand.u32 %v6665, 4294901760
        %8370 = vmatmul.mubr.f32.gmra.mxu0 %v8369
        %v8371 = vpop.f32.mrf.mxu0
        %v8372 = vadd.f32 %v8174, %v8371
        %v8373 = vpop.f32.mrf.mxu0
        %8374 = vmatprep.mubr.f32.mxu0 0.0
        %v8375 = vand.u32 %v6667, 4294901760
        %8376 = vmatmul.mubr.f32.gmra.mxu0 %v8375
        %v8377 = vpop.f32.mrf.mxu0
        %v8378 = vadd.f32 %v8184, %v8377
        %v8379 = vpop.f32.mrf.mxu0
        %8380 = vmatprep.mubr.f32.mxu0 0.0
        %v8381 = vand.u32 %v6669, 4294901760
        %8382 = vmatmul.mubr.f32.gmra.mxu0 %v8381
        %v8383 = vpop.f32.mrf.mxu0
        %v8384 = vadd.f32 %v8194, %v8383
        %v8385 = vpop.f32.mrf.mxu0
        %8386 = vmatprep.mubr.f32.mxu0 0.0
        %v8387 = vand.u32 %v6671, 4294901760
        %8388 = vmatmul.mubr.f32.gmra.mxu0 %v8387
        %v8389 = vpop.f32.mrf.mxu0
        %v8390 = vadd.f32 %v8204, %v8389
        %v8391 = vpop.f32.mrf.mxu0
        %8392 = vmatprep.mubr.f32.mxu0 0.0
        %v8393 = vand.u32 %v6673, 4294901760
        %8394 = vmatmul.mubr.f32.gmra.mxu0 %v8393
        %v8395 = vpop.f32.mrf.mxu0
        %v8396 = vadd.f32 %v8214, %v8395
        %v8397 = vpop.f32.mrf.mxu0
        %8398 = vmatprep.mubr.f32.mxu0 0.0
        %v8399 = vand.u32 %v6675, 4294901760
        %8400 = vmatmul.mubr.f32.gmra.mxu0 %v8399
        %v8401 = vpop.f32.mrf.mxu0
        %v8402 = vadd.f32 %v8224, %v8401
        %v8403 = vpop.f32.mrf.mxu0
        %8404 = vdwg.mxu0
        %8405 = vmatprep.subr.mxu0 0.0
        %8406 = vmatpush1.msra.mxu0 0.0
        %8407 = vmatprep.subr.mxu0 0.0
        %8408 = vmatpush1.msra.mxu0 0.0
        %8409 = vmatprep.subr.mxu0 0.0
        %8410 = vmatpush1.msra.mxu0 0.0
        %8411 = vmatprep.subr.mxu0 0.0
        %8412 = vmatpush1.msra.mxu0 0.0
        %8413 = vmatprep.subr.mxu0 0.0
        %8414 = vmatpush1.msra.mxu0 0.0
        %8415 = vmatprep.subr.mxu0 0.0
        %8416 = vmatpush1.msra.mxu0 0.0
        %8417 = vmatprep.subr.mxu0 0.0
        %8418 = vmatpush1.msra.mxu0 0.0
        %8419 = vmatprep.subr.mxu0 0.0
        %8420 = vmatpush1.msra.mxu0 0.0
        %8421 = vmatprep.subr.mxu0 0.0
        %8422 = vmatpush1.msra.mxu0 0.0
        %8423 = vmatprep.subr.mxu0 0.0
        %8424 = vmatpush1.msra.mxu0 0.0
        %8425 = vmatprep.subr.mxu0 0.0
        %8426 = vmatpush1.msra.mxu0 0.0
        %8427 = vmatprep.subr.mxu0 0.0
        %8428 = vmatpush1.msra.mxu0 0.0
        %8429 = vmatprep.subr.mxu0 0.0
        %8430 = vmatpush1.msra.mxu0 0.0
        %8431 = vmatprep.subr.mxu0 0.0
        %8432 = vmatpush1.msra.mxu0 0.0
        %8433 = vmatprep.subr.mxu0 0.0
        %8434 = vmatpush1.msra.mxu0 0.0
        %8435 = vmatprep.subr.mxu0 0.0
        %v8436 = vand.u32 %v6681, 4294901760
        %v8437 = vsub.f32 %v6681, %v8436
        %8438 = vmatpush1.msra.mxu0 %v8437
        %8439 = vmatprep.subr.mxu0 0.0
        %8440 = vmatpush2.msra.mxu0 0.0
        %8441 = vmatprep.subr.mxu0 0.0
        %8442 = vmatpush2.msra.mxu0 0.0
        %8443 = vmatprep.subr.mxu0 0.0
        %8444 = vmatpush2.msra.mxu0 0.0
        %8445 = vmatprep.subr.mxu0 0.0
        %8446 = vmatpush2.msra.mxu0 0.0
        %8447 = vmatprep.subr.mxu0 0.0
        %8448 = vmatpush2.msra.mxu0 0.0
        %8449 = vmatprep.subr.mxu0 0.0
        %8450 = vmatpush2.msra.mxu0 0.0
        %8451 = vmatprep.subr.mxu0 0.0
        %8452 = vmatpush2.msra.mxu0 0.0
        %8453 = vmatprep.subr.mxu0 0.0
        %8454 = vmatpush2.msra.mxu0 0.0
        %8455 = vmatprep.subr.mxu0 0.0
        %8456 = vmatpush2.msra.mxu0 0.0
        %8457 = vmatprep.subr.mxu0 0.0
        %8458 = vmatpush2.msra.mxu0 0.0
        %8459 = vmatprep.subr.mxu0 0.0
        %8460 = vmatpush2.msra.mxu0 0.0
        %8461 = vmatprep.subr.mxu0 0.0
        %8462 = vmatpush2.msra.mxu0 0.0
        %8463 = vmatprep.subr.mxu0 0.0
        %8464 = vmatpush2.msra.mxu0 0.0
        %8465 = vmatprep.subr.mxu0 0.0
        %8466 = vmatpush2.msra.mxu0 0.0
        %8467 = vmatprep.subr.mxu0 0.0
        %8468 = vmatpush2.msra.mxu0 0.0
        %8469 = vmatprep.subr.mxu0 0.0
        %8470 = vmatpush2.msra.mxu0 0.0
        %8471 = vmatprep.mubr.f32.mxu0 0.0
        %v8472 = vand.u32 %v6641, 4294901760
        %v8473 = vsub.f32 %v6641, %v8472
        %8474 = vmatmul.mubr.f32.gmra.mxu0 %v8473
        %v8475 = vpop.f32.mrf.mxu0
        %v8476 = vadd.f32 %v8300, %v8475
        %v8477 = vpop.f32.mrf.mxu0
        %8478 = vmatprep.mubr.f32.mxu0 0.0
        %v8479 = vand.u32 %v6643, 4294901760
        %v8480 = vsub.f32 %v6643, %v8479
        %8481 = vmatmul.mubr.f32.gmra.mxu0 %v8480
        %v8482 = vpop.f32.mrf.mxu0
        %v8483 = vadd.f32 %v8306, %v8482
        %v8484 = vpop.f32.mrf.mxu0
        %8485 = vmatprep.mubr.f32.mxu0 0.0
        %v8486 = vand.u32 %v6645, 4294901760
        %v8487 = vsub.f32 %v6645, %v8486
        %8488 = vmatmul.mubr.f32.gmra.mxu0 %v8487
        %v8489 = vpop.f32.mrf.mxu0
        %v8490 = vadd.f32 %v8312, %v8489
        %v8491 = vpop.f32.mrf.mxu0
        %8492 = vmatprep.mubr.f32.mxu0 0.0
        %v8493 = vand.u32 %v6647, 4294901760
        %v8494 = vsub.f32 %v6647, %v8493
        %8495 = vmatmul.mubr.f32.gmra.mxu0 %v8494
        %v8496 = vpop.f32.mrf.mxu0
        %v8497 = vadd.f32 %v8318, %v8496
        %v8498 = vpop.f32.mrf.mxu0
        %8499 = vmatprep.mubr.f32.mxu0 0.0
        %v8500 = vand.u32 %v6649, 4294901760
        %v8501 = vsub.f32 %v6649, %v8500
        %8502 = vmatmul.mubr.f32.gmra.mxu0 %v8501
        %v8503 = vpop.f32.mrf.mxu0
        %v8504 = vadd.f32 %v8324, %v8503
        %v8505 = vpop.f32.mrf.mxu0
        %8506 = vmatprep.mubr.f32.mxu0 0.0
        %v8507 = vand.u32 %v6651, 4294901760
        %v8508 = vsub.f32 %v6651, %v8507
        %8509 = vmatmul.mubr.f32.gmra.mxu0 %v8508
        %v8510 = vpop.f32.mrf.mxu0
        %v8511 = vadd.f32 %v8330, %v8510
        %v8512 = vpop.f32.mrf.mxu0
        %8513 = vmatprep.mubr.f32.mxu0 0.0
        %v8514 = vand.u32 %v6653, 4294901760
        %v8515 = vsub.f32 %v6653, %v8514
        %8516 = vmatmul.mubr.f32.gmra.mxu0 %v8515
        %v8517 = vpop.f32.mrf.mxu0
        %v8518 = vadd.f32 %v8336, %v8517
        %v8519 = vpop.f32.mrf.mxu0
        %8520 = vmatprep.mubr.f32.mxu0 0.0
        %v8521 = vand.u32 %v6655, 4294901760
        %v8522 = vsub.f32 %v6655, %v8521
        %8523 = vmatmul.mubr.f32.gmra.mxu0 %v8522
        %v8524 = vpop.f32.mrf.mxu0
        %v8525 = vadd.f32 %v8342, %v8524
        %v8526 = vpop.f32.mrf.mxu0
        %8527 = vmatprep.mubr.f32.mxu0 0.0
        %v8528 = vand.u32 %v6657, 4294901760
        %v8529 = vsub.f32 %v6657, %v8528
        %8530 = vmatmul.mubr.f32.gmra.mxu0 %v8529
        %v8531 = vpop.f32.mrf.mxu0
        %v8532 = vadd.f32 %v8348, %v8531
        %v8533 = vpop.f32.mrf.mxu0
        %8534 = vmatprep.mubr.f32.mxu0 0.0
        %v8535 = vand.u32 %v6659, 4294901760
        %v8536 = vsub.f32 %v6659, %v8535
        %8537 = vmatmul.mubr.f32.gmra.mxu0 %v8536
        %v8538 = vpop.f32.mrf.mxu0
        %v8539 = vadd.f32 %v8354, %v8538
        %v8540 = vpop.f32.mrf.mxu0
        %8541 = vmatprep.mubr.f32.mxu0 0.0
        %v8542 = vand.u32 %v6661, 4294901760
        %v8543 = vsub.f32 %v6661, %v8542
        %8544 = vmatmul.mubr.f32.gmra.mxu0 %v8543
        %v8545 = vpop.f32.mrf.mxu0
        %v8546 = vadd.f32 %v8360, %v8545
        %v8547 = vpop.f32.mrf.mxu0
        %8548 = vmatprep.mubr.f32.mxu0 0.0
        %v8549 = vand.u32 %v6663, 4294901760
        %v8550 = vsub.f32 %v6663, %v8549
        %8551 = vmatmul.mubr.f32.gmra.mxu0 %v8550
        %v8552 = vpop.f32.mrf.mxu0
        %v8553 = vadd.f32 %v8366, %v8552
        %v8554 = vpop.f32.mrf.mxu0
        %8555 = vmatprep.mubr.f32.mxu0 0.0
        %v8556 = vand.u32 %v6665, 4294901760
        %v8557 = vsub.f32 %v6665, %v8556
        %8558 = vmatmul.mubr.f32.gmra.mxu0 %v8557
        %v8559 = vpop.f32.mrf.mxu0
        %v8560 = vadd.f32 %v8372, %v8559
        %v8561 = vpop.f32.mrf.mxu0
        %8562 = vmatprep.mubr.f32.mxu0 0.0
        %v8563 = vand.u32 %v6667, 4294901760
        %v8564 = vsub.f32 %v6667, %v8563
        %8565 = vmatmul.mubr.f32.gmra.mxu0 %v8564
        %v8566 = vpop.f32.mrf.mxu0
        %v8567 = vadd.f32 %v8378, %v8566
        %v8568 = vpop.f32.mrf.mxu0
        %8569 = vmatprep.mubr.f32.mxu0 0.0
        %v8570 = vand.u32 %v6669, 4294901760
        %v8571 = vsub.f32 %v6669, %v8570
        %8572 = vmatmul.mubr.f32.gmra.mxu0 %v8571
        %v8573 = vpop.f32.mrf.mxu0
        %v8574 = vadd.f32 %v8384, %v8573
        %v8575 = vpop.f32.mrf.mxu0
        %8576 = vmatprep.mubr.f32.mxu0 0.0
        %v8577 = vand.u32 %v6671, 4294901760
        %v8578 = vsub.f32 %v6671, %v8577
        %8579 = vmatmul.mubr.f32.gmra.mxu0 %v8578
        %v8580 = vpop.f32.mrf.mxu0
        %v8581 = vadd.f32 %v8390, %v8580
        %v8582 = vpop.f32.mrf.mxu0
        %8583 = vmatprep.mubr.f32.mxu0 0.0
        %v8584 = vand.u32 %v6673, 4294901760
        %v8585 = vsub.f32 %v6673, %v8584
        %8586 = vmatmul.mubr.f32.gmra.mxu0 %v8585
        %v8587 = vpop.f32.mrf.mxu0
        %v8588 = vadd.f32 %v8396, %v8587
        %v8589 = vpop.f32.mrf.mxu0
        %8590 = vmatprep.mubr.f32.mxu0 0.0
        %v8591 = vand.u32 %v6675, 4294901760
        %v8592 = vsub.f32 %v6675, %v8591
        %8593 = vmatmul.mubr.f32.gmra.mxu0 %v8592
        %v8594 = vpop.f32.mrf.mxu0
        %v8595 = vadd.f32 %v8402, %v8594
        %v8596 = vpop.f32.mrf.mxu0
        %8597 = vdwg.mxu0
        %8598 = vmatprep.subr.mxu0 0.0
        %8599 = vmatpush1.msra.mxu0 0.0
        %8600 = vmatprep.subr.mxu0 0.0
        %8601 = vmatpush1.msra.mxu0 0.0
        %8602 = vmatprep.subr.mxu0 0.0
        %8603 = vmatpush1.msra.mxu0 0.0
        %8604 = vmatprep.subr.mxu0 0.0
        %8605 = vmatpush1.msra.mxu0 0.0
        %8606 = vmatprep.subr.mxu0 0.0
        %8607 = vmatpush1.msra.mxu0 0.0
        %8608 = vmatprep.subr.mxu0 0.0
        %8609 = vmatpush1.msra.mxu0 0.0
        %8610 = vmatprep.subr.mxu0 0.0
        %8611 = vmatpush1.msra.mxu0 0.0
        %8612 = vmatprep.subr.mxu0 0.0
        %8613 = vmatpush1.msra.mxu0 0.0
        %8614 = vmatprep.subr.mxu0 0.0
        %8615 = vmatpush1.msra.mxu0 0.0
        %8616 = vmatprep.subr.mxu0 0.0
        %8617 = vmatpush1.msra.mxu0 0.0
        %8618 = vmatprep.subr.mxu0 0.0
        %8619 = vmatpush1.msra.mxu0 0.0
        %8620 = vmatprep.subr.mxu0 0.0
        %8621 = vmatpush1.msra.mxu0 0.0
        %8622 = vmatprep.subr.mxu0 0.0
        %8623 = vmatpush1.msra.mxu0 0.0
        %8624 = vmatprep.subr.mxu0 0.0
        %8625 = vmatpush1.msra.mxu0 0.0
        %8626 = vmatprep.subr.mxu0 0.0
        %8627 = vmatpush1.msra.mxu0 0.0
        %8628 = vmatprep.subr.mxu0 0.0
        %v8629 = vand.u32 %v6681, 4294901760
        %8630 = vmatpush1.msra.mxu0 %v8629
        %8631 = vmatprep.subr.mxu0 0.0
        %8632 = vmatpush2.msra.mxu0 0.0
        %8633 = vmatprep.subr.mxu0 0.0
        %8634 = vmatpush2.msra.mxu0 0.0
        %8635 = vmatprep.subr.mxu0 0.0
        %8636 = vmatpush2.msra.mxu0 0.0
        %8637 = vmatprep.subr.mxu0 0.0
        %8638 = vmatpush2.msra.mxu0 0.0
        %8639 = vmatprep.subr.mxu0 0.0
        %8640 = vmatpush2.msra.mxu0 0.0
        %8641 = vmatprep.subr.mxu0 0.0
        %8642 = vmatpush2.msra.mxu0 0.0
        %8643 = vmatprep.subr.mxu0 0.0
        %8644 = vmatpush2.msra.mxu0 0.0
        %8645 = vmatprep.subr.mxu0 0.0
        %8646 = vmatpush2.msra.mxu0 0.0
        %8647 = vmatprep.subr.mxu0 0.0
        %8648 = vmatpush2.msra.mxu0 0.0
        %8649 = vmatprep.subr.mxu0 0.0
        %8650 = vmatpush2.msra.mxu0 0.0
        %8651 = vmatprep.subr.mxu0 0.0
        %8652 = vmatpush2.msra.mxu0 0.0
        %8653 = vmatprep.subr.mxu0 0.0
        %8654 = vmatpush2.msra.mxu0 0.0
        %8655 = vmatprep.subr.mxu0 0.0
        %8656 = vmatpush2.msra.mxu0 0.0
        %8657 = vmatprep.subr.mxu0 0.0
        %8658 = vmatpush2.msra.mxu0 0.0
        %8659 = vmatprep.subr.mxu0 0.0
        %8660 = vmatpush2.msra.mxu0 0.0
        %8661 = vmatprep.subr.mxu0 0.0
        %8662 = vmatpush2.msra.mxu0 0.0
        %8663 = vmatprep.mubr.f32.mxu0 0.0
        %v8664 = vand.u32 %v6641, 4294901760
        %v8665 = vsub.f32 %v6641, %v8664
        %v8666 = vand.u32 %v8665, 4294901760
        %8667 = vmatmul.mubr.f32.gmra.mxu0 %v8666
        %v8668 = vpop.f32.mrf.mxu0
        %v8669 = vadd.f32 %v8476, %v8668
        %v8670 = vpop.f32.mrf.mxu0
        %8671 = vmatprep.mubr.f32.mxu0 0.0
        %v8672 = vand.u32 %v6643, 4294901760
        %v8673 = vsub.f32 %v6643, %v8672
        %v8674 = vand.u32 %v8673, 4294901760
        %8675 = vmatmul.mubr.f32.gmra.mxu0 %v8674
        %v8676 = vpop.f32.mrf.mxu0
        %v8677 = vadd.f32 %v8483, %v8676
        %v8678 = vpop.f32.mrf.mxu0
        %8679 = vmatprep.mubr.f32.mxu0 0.0
        %v8680 = vand.u32 %v6645, 4294901760
        %v8681 = vsub.f32 %v6645, %v8680
        %v8682 = vand.u32 %v8681, 4294901760
        %8683 = vmatmul.mubr.f32.gmra.mxu0 %v8682
        %v8684 = vpop.f32.mrf.mxu0
        %v8685 = vadd.f32 %v8490, %v8684
        %v8686 = vpop.f32.mrf.mxu0
        %8687 = vmatprep.mubr.f32.mxu0 0.0
        %v8688 = vand.u32 %v6647, 4294901760
        %v8689 = vsub.f32 %v6647, %v8688
        %v8690 = vand.u32 %v8689, 4294901760
        %8691 = vmatmul.mubr.f32.gmra.mxu0 %v8690
        %v8692 = vpop.f32.mrf.mxu0
        %v8693 = vadd.f32 %v8497, %v8692
        %v8694 = vpop.f32.mrf.mxu0
        %8695 = vmatprep.mubr.f32.mxu0 0.0
        %v8696 = vand.u32 %v6649, 4294901760
        %v8697 = vsub.f32 %v6649, %v8696
        %v8698 = vand.u32 %v8697, 4294901760
        %8699 = vmatmul.mubr.f32.gmra.mxu0 %v8698
        %v8700 = vpop.f32.mrf.mxu0
        %v8701 = vadd.f32 %v8504, %v8700
        %v8702 = vpop.f32.mrf.mxu0
        %8703 = vmatprep.mubr.f32.mxu0 0.0
        %v8704 = vand.u32 %v6651, 4294901760
        %v8705 = vsub.f32 %v6651, %v8704
        %v8706 = vand.u32 %v8705, 4294901760
        %8707 = vmatmul.mubr.f32.gmra.mxu0 %v8706
        %v8708 = vpop.f32.mrf.mxu0
        %v8709 = vadd.f32 %v8511, %v8708
        %v8710 = vpop.f32.mrf.mxu0
        %8711 = vmatprep.mubr.f32.mxu0 0.0
        %v8712 = vand.u32 %v6653, 4294901760
        %v8713 = vsub.f32 %v6653, %v8712
        %v8714 = vand.u32 %v8713, 4294901760
        %8715 = vmatmul.mubr.f32.gmra.mxu0 %v8714
        %v8716 = vpop.f32.mrf.mxu0
        %v8717 = vadd.f32 %v8518, %v8716
        %v8718 = vpop.f32.mrf.mxu0
        %8719 = vmatprep.mubr.f32.mxu0 0.0
        %v8720 = vand.u32 %v6655, 4294901760
        %v8721 = vsub.f32 %v6655, %v8720
        %v8722 = vand.u32 %v8721, 4294901760
        %8723 = vmatmul.mubr.f32.gmra.mxu0 %v8722
        %v8724 = vpop.f32.mrf.mxu0
        %v8725 = vadd.f32 %v8525, %v8724
        %v8726 = vpop.f32.mrf.mxu0
        %8727 = vmatprep.mubr.f32.mxu0 0.0
        %v8728 = vand.u32 %v6657, 4294901760
        %v8729 = vsub.f32 %v6657, %v8728
        %v8730 = vand.u32 %v8729, 4294901760
        %8731 = vmatmul.mubr.f32.gmra.mxu0 %v8730
        %v8732 = vpop.f32.mrf.mxu0
        %v8733 = vadd.f32 %v8532, %v8732
        %v8734 = vpop.f32.mrf.mxu0
        %8735 = vmatprep.mubr.f32.mxu0 0.0
        %v8736 = vand.u32 %v6659, 4294901760
        %v8737 = vsub.f32 %v6659, %v8736
        %v8738 = vand.u32 %v8737, 4294901760
        %8739 = vmatmul.mubr.f32.gmra.mxu0 %v8738
        %v8740 = vpop.f32.mrf.mxu0
        %v8741 = vadd.f32 %v8539, %v8740
        %v8742 = vpop.f32.mrf.mxu0
        %8743 = vmatprep.mubr.f32.mxu0 0.0
        %v8744 = vand.u32 %v6661, 4294901760
        %v8745 = vsub.f32 %v6661, %v8744
        %v8746 = vand.u32 %v8745, 4294901760
        %8747 = vmatmul.mubr.f32.gmra.mxu0 %v8746
        %v8748 = vpop.f32.mrf.mxu0
        %v8749 = vadd.f32 %v8546, %v8748
        %v8750 = vpop.f32.mrf.mxu0
        %8751 = vmatprep.mubr.f32.mxu0 0.0
        %v8752 = vand.u32 %v6663, 4294901760
        %v8753 = vsub.f32 %v6663, %v8752
        %v8754 = vand.u32 %v8753, 4294901760
        %8755 = vmatmul.mubr.f32.gmra.mxu0 %v8754
        %v8756 = vpop.f32.mrf.mxu0
        %v8757 = vadd.f32 %v8553, %v8756
        %v8758 = vpop.f32.mrf.mxu0
        %8759 = vmatprep.mubr.f32.mxu0 0.0
        %v8760 = vand.u32 %v6665, 4294901760
        %v8761 = vsub.f32 %v6665, %v8760
        %v8762 = vand.u32 %v8761, 4294901760
        %8763 = vmatmul.mubr.f32.gmra.mxu0 %v8762
        %v8764 = vpop.f32.mrf.mxu0
        %v8765 = vadd.f32 %v8560, %v8764
        %v8766 = vpop.f32.mrf.mxu0
        %8767 = vmatprep.mubr.f32.mxu0 0.0
        %v8768 = vand.u32 %v6667, 4294901760
        %v8769 = vsub.f32 %v6667, %v8768
        %v8770 = vand.u32 %v8769, 4294901760
        %8771 = vmatmul.mubr.f32.gmra.mxu0 %v8770
        %v8772 = vpop.f32.mrf.mxu0
        %v8773 = vadd.f32 %v8567, %v8772
        %v8774 = vpop.f32.mrf.mxu0
        %8775 = vmatprep.mubr.f32.mxu0 0.0
        %v8776 = vand.u32 %v6669, 4294901760
        %v8777 = vsub.f32 %v6669, %v8776
        %v8778 = vand.u32 %v8777, 4294901760
        %8779 = vmatmul.mubr.f32.gmra.mxu0 %v8778
        %v8780 = vpop.f32.mrf.mxu0
        %v8781 = vadd.f32 %v8574, %v8780
        %v8782 = vpop.f32.mrf.mxu0
        %8783 = vmatprep.mubr.f32.mxu0 0.0
        %v8784 = vand.u32 %v6671, 4294901760
        %v8785 = vsub.f32 %v6671, %v8784
        %v8786 = vand.u32 %v8785, 4294901760
        %8787 = vmatmul.mubr.f32.gmra.mxu0 %v8786
        %v8788 = vpop.f32.mrf.mxu0
        %v8789 = vadd.f32 %v8581, %v8788
        %v8790 = vpop.f32.mrf.mxu0
        %8791 = vmatprep.mubr.f32.mxu0 0.0
        %v8792 = vand.u32 %v6673, 4294901760
        %v8793 = vsub.f32 %v6673, %v8792
        %v8794 = vand.u32 %v8793, 4294901760
        %8795 = vmatmul.mubr.f32.gmra.mxu0 %v8794
        %v8796 = vpop.f32.mrf.mxu0
        %v8797 = vadd.f32 %v8588, %v8796
        %v8798 = vpop.f32.mrf.mxu0
        %8799 = vmatprep.mubr.f32.mxu0 0.0
        %v8800 = vand.u32 %v6675, 4294901760
        %v8801 = vsub.f32 %v6675, %v8800
        %v8802 = vand.u32 %v8801, 4294901760
        %8803 = vmatmul.mubr.f32.gmra.mxu0 %v8802
        %v8804 = vpop.f32.mrf.mxu0
        %v8805 = vadd.f32 %v8595, %v8804
        %v8806 = vpop.f32.mrf.mxu0
        %8807 = vdwg.mxu0
        %8808 = vmatprep.subr.mxu0 0.0
        %8809 = vmatpush1.msra.mxu0 0.0
        %8810 = vmatprep.subr.mxu0 0.0
        %8811 = vmatpush1.msra.mxu0 0.0
        %8812 = vmatprep.subr.mxu0 0.0
        %8813 = vmatpush1.msra.mxu0 0.0
        %8814 = vmatprep.subr.mxu0 0.0
        %8815 = vmatpush1.msra.mxu0 0.0
        %8816 = vmatprep.subr.mxu0 0.0
        %8817 = vmatpush1.msra.mxu0 0.0
        %8818 = vmatprep.subr.mxu0 0.0
        %8819 = vmatpush1.msra.mxu0 0.0
        %8820 = vmatprep.subr.mxu0 0.0
        %8821 = vmatpush1.msra.mxu0 0.0
        %8822 = vmatprep.subr.mxu0 0.0
        %8823 = vmatpush1.msra.mxu0 0.0
        %8824 = vmatprep.subr.mxu0 0.0
        %8825 = vmatpush1.msra.mxu0 0.0
        %8826 = vmatprep.subr.mxu0 0.0
        %8827 = vmatpush1.msra.mxu0 0.0
        %8828 = vmatprep.subr.mxu0 0.0
        %8829 = vmatpush1.msra.mxu0 0.0
        %8830 = vmatprep.subr.mxu0 0.0
        %8831 = vmatpush1.msra.mxu0 0.0
        %8832 = vmatprep.subr.mxu0 0.0
        %8833 = vmatpush1.msra.mxu0 0.0
        %8834 = vmatprep.subr.mxu0 0.0
        %8835 = vmatpush1.msra.mxu0 0.0
        %8836 = vmatprep.subr.mxu0 0.0
        %8837 = vmatpush1.msra.mxu0 0.0
        %8838 = vmatprep.subr.mxu0 0.0
        %v8839 = vand.u32 %v6681, 4294901760
        %v8840 = vsub.f32 %v6681, %v8839
        %v8841 = vand.u32 %v8840, 4294901760
        %8842 = vmatpush1.msra.mxu0 %v8841
        %8843 = vmatprep.subr.mxu0 0.0
        %8844 = vmatpush2.msra.mxu0 0.0
        %8845 = vmatprep.subr.mxu0 0.0
        %8846 = vmatpush2.msra.mxu0 0.0
        %8847 = vmatprep.subr.mxu0 0.0
        %8848 = vmatpush2.msra.mxu0 0.0
        %8849 = vmatprep.subr.mxu0 0.0
        %8850 = vmatpush2.msra.mxu0 0.0
        %8851 = vmatprep.subr.mxu0 0.0
        %8852 = vmatpush2.msra.mxu0 0.0
        %8853 = vmatprep.subr.mxu0 0.0
        %8854 = vmatpush2.msra.mxu0 0.0
        %8855 = vmatprep.subr.mxu0 0.0
        %8856 = vmatpush2.msra.mxu0 0.0
        %8857 = vmatprep.subr.mxu0 0.0
        %8858 = vmatpush2.msra.mxu0 0.0
        %8859 = vmatprep.subr.mxu0 0.0
        %8860 = vmatpush2.msra.mxu0 0.0
        %8861 = vmatprep.subr.mxu0 0.0
        %8862 = vmatpush2.msra.mxu0 0.0
        %8863 = vmatprep.subr.mxu0 0.0
        %8864 = vmatpush2.msra.mxu0 0.0
        %8865 = vmatprep.subr.mxu0 0.0
        %8866 = vmatpush2.msra.mxu0 0.0
        %8867 = vmatprep.subr.mxu0 0.0
        %8868 = vmatpush2.msra.mxu0 0.0
        %8869 = vmatprep.subr.mxu0 0.0
        %8870 = vmatpush2.msra.mxu0 0.0
        %8871 = vmatprep.subr.mxu0 0.0
        %8872 = vmatpush2.msra.mxu0 0.0
        %8873 = vmatprep.subr.mxu0 0.0
        %8874 = vmatpush2.msra.mxu0 0.0
        %8875 = vmatprep.mubr.f32.mxu0 0.0
        %v8876 = vand.u32 %v6641, 4294901760
        %8877 = vmatmul.mubr.f32.gmra.mxu0 %v8876
        %v8878 = vpop.f32.mrf.mxu0
        %v8879 = vadd.f32 %v8669, %v8878
        %v8880 = vpop.f32.mrf.mxu0
        %8881 = vmatprep.mubr.f32.mxu0 0.0
        %v8882 = vand.u32 %v6643, 4294901760
        %8883 = vmatmul.mubr.f32.gmra.mxu0 %v8882
        %v8884 = vpop.f32.mrf.mxu0
        %v8885 = vadd.f32 %v8677, %v8884
        %v8886 = vpop.f32.mrf.mxu0
        %8887 = vmatprep.mubr.f32.mxu0 0.0
        %v8888 = vand.u32 %v6645, 4294901760
        %8889 = vmatmul.mubr.f32.gmra.mxu0 %v8888
        %v8890 = vpop.f32.mrf.mxu0
        %v8891 = vadd.f32 %v8685, %v8890
        %v8892 = vpop.f32.mrf.mxu0
        %8893 = vmatprep.mubr.f32.mxu0 0.0
        %v8894 = vand.u32 %v6647, 4294901760
        %8895 = vmatmul.mubr.f32.gmra.mxu0 %v8894
        %v8896 = vpop.f32.mrf.mxu0
        %v8897 = vadd.f32 %v8693, %v8896
        %v8898 = vpop.f32.mrf.mxu0
        %8899 = vmatprep.mubr.f32.mxu0 0.0
        %v8900 = vand.u32 %v6649, 4294901760
        %8901 = vmatmul.mubr.f32.gmra.mxu0 %v8900
        %v8902 = vpop.f32.mrf.mxu0
        %v8903 = vadd.f32 %v8701, %v8902
        %v8904 = vpop.f32.mrf.mxu0
        %8905 = vmatprep.mubr.f32.mxu0 0.0
        %v8906 = vand.u32 %v6651, 4294901760
        %8907 = vmatmul.mubr.f32.gmra.mxu0 %v8906
        %v8908 = vpop.f32.mrf.mxu0
        %v8909 = vadd.f32 %v8709, %v8908
        %v8910 = vpop.f32.mrf.mxu0
        %8911 = vmatprep.mubr.f32.mxu0 0.0
        %v8912 = vand.u32 %v6653, 4294901760
        %8913 = vmatmul.mubr.f32.gmra.mxu0 %v8912
        %v8914 = vpop.f32.mrf.mxu0
        %v8915 = vadd.f32 %v8717, %v8914
        %v8916 = vpop.f32.mrf.mxu0
        %8917 = vmatprep.mubr.f32.mxu0 0.0
        %v8918 = vand.u32 %v6655, 4294901760
        %8919 = vmatmul.mubr.f32.gmra.mxu0 %v8918
        %v8920 = vpop.f32.mrf.mxu0
        %v8921 = vadd.f32 %v8725, %v8920
        %v8922 = vpop.f32.mrf.mxu0
        %8923 = vmatprep.mubr.f32.mxu0 0.0
        %v8924 = vand.u32 %v6657, 4294901760
        %8925 = vmatmul.mubr.f32.gmra.mxu0 %v8924
        %v8926 = vpop.f32.mrf.mxu0
        %v8927 = vadd.f32 %v8733, %v8926
        %v8928 = vpop.f32.mrf.mxu0
        %8929 = vmatprep.mubr.f32.mxu0 0.0
        %v8930 = vand.u32 %v6659, 4294901760
        %8931 = vmatmul.mubr.f32.gmra.mxu0 %v8930
        %v8932 = vpop.f32.mrf.mxu0
        %v8933 = vadd.f32 %v8741, %v8932
        %v8934 = vpop.f32.mrf.mxu0
        %8935 = vmatprep.mubr.f32.mxu0 0.0
        %v8936 = vand.u32 %v6661, 4294901760
        %8937 = vmatmul.mubr.f32.gmra.mxu0 %v8936
        %v8938 = vpop.f32.mrf.mxu0
        %v8939 = vadd.f32 %v8749, %v8938
        %v8940 = vpop.f32.mrf.mxu0
        %8941 = vmatprep.mubr.f32.mxu0 0.0
        %v8942 = vand.u32 %v6663, 4294901760
        %8943 = vmatmul.mubr.f32.gmra.mxu0 %v8942
        %v8944 = vpop.f32.mrf.mxu0
        %v8945 = vadd.f32 %v8757, %v8944
        %v8946 = vpop.f32.mrf.mxu0
        %8947 = vmatprep.mubr.f32.mxu0 0.0
        %v8948 = vand.u32 %v6665, 4294901760
        %8949 = vmatmul.mubr.f32.gmra.mxu0 %v8948
        %v8950 = vpop.f32.mrf.mxu0
        %v8951 = vadd.f32 %v8765, %v8950
        %v8952 = vpop.f32.mrf.mxu0
        %8953 = vmatprep.mubr.f32.mxu0 0.0
        %v8954 = vand.u32 %v6667, 4294901760
        %8955 = vmatmul.mubr.f32.gmra.mxu0 %v8954
        %v8956 = vpop.f32.mrf.mxu0
        %v8957 = vadd.f32 %v8773, %v8956
        %v8958 = vpop.f32.mrf.mxu0
        %8959 = vmatprep.mubr.f32.mxu0 0.0
        %v8960 = vand.u32 %v6669, 4294901760
        %8961 = vmatmul.mubr.f32.gmra.mxu0 %v8960
        %v8962 = vpop.f32.mrf.mxu0
        %v8963 = vadd.f32 %v8781, %v8962
        %v8964 = vpop.f32.mrf.mxu0
        %8965 = vmatprep.mubr.f32.mxu0 0.0
        %v8966 = vand.u32 %v6671, 4294901760
        %8967 = vmatmul.mubr.f32.gmra.mxu0 %v8966
        %v8968 = vpop.f32.mrf.mxu0
        %v8969 = vadd.f32 %v8789, %v8968
        %v8970 = vpop.f32.mrf.mxu0
        %8971 = vmatprep.mubr.f32.mxu0 0.0
        %v8972 = vand.u32 %v6673, 4294901760
        %8973 = vmatmul.mubr.f32.gmra.mxu0 %v8972
        %v8974 = vpop.f32.mrf.mxu0
        %v8975 = vadd.f32 %v8797, %v8974
        %v8976 = vpop.f32.mrf.mxu0
        %8977 = vmatprep.mubr.f32.mxu0 0.0
        %v8978 = vand.u32 %v6675, 4294901760
        %8979 = vmatmul.mubr.f32.gmra.mxu0 %v8978
        %v8980 = vpop.f32.mrf.mxu0
        %v8981 = vadd.f32 %v8805, %v8980
        %v8982 = vpop.f32.mrf.mxu0
        %8983 = vdwg.mxu0
        %8984 = vmatprep.subr.mxu0 0.0
        %8985 = vmatpush1.msra.mxu0 0.0
        %8986 = vmatprep.subr.mxu0 0.0
        %8987 = vmatpush1.msra.mxu0 0.0
        %8988 = vmatprep.subr.mxu0 0.0
        %8989 = vmatpush1.msra.mxu0 0.0
        %8990 = vmatprep.subr.mxu0 0.0
        %8991 = vmatpush1.msra.mxu0 0.0
        %8992 = vmatprep.subr.mxu0 0.0
        %8993 = vmatpush1.msra.mxu0 0.0
        %8994 = vmatprep.subr.mxu0 0.0
        %8995 = vmatpush1.msra.mxu0 0.0
        %8996 = vmatprep.subr.mxu0 0.0
        %8997 = vmatpush1.msra.mxu0 0.0
        %8998 = vmatprep.subr.mxu0 0.0
        %8999 = vmatpush1.msra.mxu0 0.0
        %9000 = vmatprep.subr.mxu0 0.0
        %9001 = vmatpush1.msra.mxu0 0.0
        %9002 = vmatprep.subr.mxu0 0.0
        %9003 = vmatpush1.msra.mxu0 0.0
        %9004 = vmatprep.subr.mxu0 0.0
        %9005 = vmatpush1.msra.mxu0 0.0
        %9006 = vmatprep.subr.mxu0 0.0
        %9007 = vmatpush1.msra.mxu0 0.0
        %9008 = vmatprep.subr.mxu0 0.0
        %9009 = vmatpush1.msra.mxu0 0.0
        %9010 = vmatprep.subr.mxu0 0.0
        %9011 = vmatpush1.msra.mxu0 0.0
        %9012 = vmatprep.subr.mxu0 0.0
        %9013 = vmatpush1.msra.mxu0 0.0
        %9014 = vmatprep.subr.mxu0 0.0
        %v9015 = vand.u32 %v6681, 4294901760
        %9016 = vmatpush1.msra.mxu0 %v9015
        %9017 = vmatprep.subr.mxu0 0.0
        %9018 = vmatpush2.msra.mxu0 0.0
        %9019 = vmatprep.subr.mxu0 0.0
        %9020 = vmatpush2.msra.mxu0 0.0
        %9021 = vmatprep.subr.mxu0 0.0
        %9022 = vmatpush2.msra.mxu0 0.0
        %9023 = vmatprep.subr.mxu0 0.0
        %9024 = vmatpush2.msra.mxu0 0.0
        %9025 = vmatprep.subr.mxu0 0.0
        %9026 = vmatpush2.msra.mxu0 0.0
        %9027 = vmatprep.subr.mxu0 0.0
        %9028 = vmatpush2.msra.mxu0 0.0
        %9029 = vmatprep.subr.mxu0 0.0
        %9030 = vmatpush2.msra.mxu0 0.0
        %9031 = vmatprep.subr.mxu0 0.0
        %9032 = vmatpush2.msra.mxu0 0.0
        %9033 = vmatprep.subr.mxu0 0.0
        %9034 = vmatpush2.msra.mxu0 0.0
        %9035 = vmatprep.subr.mxu0 0.0
        %9036 = vmatpush2.msra.mxu0 0.0
        %9037 = vmatprep.subr.mxu0 0.0
        %9038 = vmatpush2.msra.mxu0 0.0
        %9039 = vmatprep.subr.mxu0 0.0
        %9040 = vmatpush2.msra.mxu0 0.0
        %9041 = vmatprep.subr.mxu0 0.0
        %9042 = vmatpush2.msra.mxu0 0.0
        %9043 = vmatprep.subr.mxu0 0.0
        %9044 = vmatpush2.msra.mxu0 0.0
        %9045 = vmatprep.subr.mxu0 0.0
        %9046 = vmatpush2.msra.mxu0 0.0
        %9047 = vmatprep.subr.mxu0 0.0
        %9048 = vmatpush2.msra.mxu0 0.0
        %9049 = vmatprep.mubr.f32.mxu0 0.0
        %v9050 = vand.u32 %v6641, 4294901760
        %9051 = vmatmul.mubr.f32.gmra.mxu0 %v9050
        %v9052 = vpop.f32.mrf.mxu0
        %v9053 = vadd.f32 %v8879, %v9052
        %v9054 = vpop.f32.mrf.mxu0
        %9055 = vmatprep.mubr.f32.mxu0 0.0
        %v9056 = vand.u32 %v6643, 4294901760
        %9057 = vmatmul.mubr.f32.gmra.mxu0 %v9056
        %v9058 = vpop.f32.mrf.mxu0
        %v9059 = vadd.f32 %v8885, %v9058
        %v9060 = vpop.f32.mrf.mxu0
        %9061 = vmatprep.mubr.f32.mxu0 0.0
        %v9062 = vand.u32 %v6645, 4294901760
        %9063 = vmatmul.mubr.f32.gmra.mxu0 %v9062
        %v9064 = vpop.f32.mrf.mxu0
        %v9065 = vadd.f32 %v8891, %v9064
        %v9066 = vpop.f32.mrf.mxu0
        %9067 = vmatprep.mubr.f32.mxu0 0.0
        %v9068 = vand.u32 %v6647, 4294901760
        %9069 = vmatmul.mubr.f32.gmra.mxu0 %v9068
        %v9070 = vpop.f32.mrf.mxu0
        %v9071 = vadd.f32 %v8897, %v9070
        %v9072 = vpop.f32.mrf.mxu0
        %9073 = vmatprep.mubr.f32.mxu0 0.0
        %v9074 = vand.u32 %v6649, 4294901760
        %9075 = vmatmul.mubr.f32.gmra.mxu0 %v9074
        %v9076 = vpop.f32.mrf.mxu0
        %v9077 = vadd.f32 %v8903, %v9076
        %v9078 = vpop.f32.mrf.mxu0
        %9079 = vmatprep.mubr.f32.mxu0 0.0
        %v9080 = vand.u32 %v6651, 4294901760
        %9081 = vmatmul.mubr.f32.gmra.mxu0 %v9080
        %v9082 = vpop.f32.mrf.mxu0
        %v9083 = vadd.f32 %v8909, %v9082
        %v9084 = vpop.f32.mrf.mxu0
        %9085 = vmatprep.mubr.f32.mxu0 0.0
        %v9086 = vand.u32 %v6653, 4294901760
        %9087 = vmatmul.mubr.f32.gmra.mxu0 %v9086
        %v9088 = vpop.f32.mrf.mxu0
        %v9089 = vadd.f32 %v8915, %v9088
        %v9090 = vpop.f32.mrf.mxu0
        %9091 = vmatprep.mubr.f32.mxu0 0.0
        %v9092 = vand.u32 %v6655, 4294901760
        %9093 = vmatmul.mubr.f32.gmra.mxu0 %v9092
        %v9094 = vpop.f32.mrf.mxu0
        %v9095 = vadd.f32 %v8921, %v9094
        %v9096 = vpop.f32.mrf.mxu0
        %9097 = vmatprep.mubr.f32.mxu0 0.0
        %v9098 = vand.u32 %v6657, 4294901760
        %9099 = vmatmul.mubr.f32.gmra.mxu0 %v9098
        %v9100 = vpop.f32.mrf.mxu0
        %v9101 = vadd.f32 %v8927, %v9100
        %v9102 = vpop.f32.mrf.mxu0
        %9103 = vmatprep.mubr.f32.mxu0 0.0
        %v9104 = vand.u32 %v6659, 4294901760
        %9105 = vmatmul.mubr.f32.gmra.mxu0 %v9104
        %v9106 = vpop.f32.mrf.mxu0
        %v9107 = vadd.f32 %v8933, %v9106
        %v9108 = vpop.f32.mrf.mxu0
        %9109 = vmatprep.mubr.f32.mxu0 0.0
        %v9110 = vand.u32 %v6661, 4294901760
        %9111 = vmatmul.mubr.f32.gmra.mxu0 %v9110
        %v9112 = vpop.f32.mrf.mxu0
        %v9113 = vadd.f32 %v8939, %v9112
        %v9114 = vpop.f32.mrf.mxu0
        %9115 = vmatprep.mubr.f32.mxu0 0.0
        %v9116 = vand.u32 %v6663, 4294901760
        %9117 = vmatmul.mubr.f32.gmra.mxu0 %v9116
        %v9118 = vpop.f32.mrf.mxu0
        %v9119 = vadd.f32 %v8945, %v9118
        %v9120 = vpop.f32.mrf.mxu0
        %9121 = vmatprep.mubr.f32.mxu0 0.0
        %v9122 = vand.u32 %v6665, 4294901760
        %9123 = vmatmul.mubr.f32.gmra.mxu0 %v9122
        %v9124 = vpop.f32.mrf.mxu0
        %v9125 = vadd.f32 %v8951, %v9124
        %v9126 = vpop.f32.mrf.mxu0
        %9127 = vmatprep.mubr.f32.mxu0 0.0
        %v9128 = vand.u32 %v6667, 4294901760
        %9129 = vmatmul.mubr.f32.gmra.mxu0 %v9128
        %v9130 = vpop.f32.mrf.mxu0
        %v9131 = vadd.f32 %v8957, %v9130
        %v9132 = vpop.f32.mrf.mxu0
        %9133 = vmatprep.mubr.f32.mxu0 0.0
        %v9134 = vand.u32 %v6669, 4294901760
        %9135 = vmatmul.mubr.f32.gmra.mxu0 %v9134
        %v9136 = vpop.f32.mrf.mxu0
        %v9137 = vadd.f32 %v8963, %v9136
        %v9138 = vpop.f32.mrf.mxu0
        %9139 = vmatprep.mubr.f32.mxu0 0.0
        %v9140 = vand.u32 %v6671, 4294901760
        %9141 = vmatmul.mubr.f32.gmra.mxu0 %v9140
        %v9142 = vpop.f32.mrf.mxu0
        %v9143 = vadd.f32 %v8969, %v9142
        %v9144 = vpop.f32.mrf.mxu0
        %9145 = vmatprep.mubr.f32.mxu0 0.0
        %v9146 = vand.u32 %v6673, 4294901760
        %9147 = vmatmul.mubr.f32.gmra.mxu0 %v9146
        %v9148 = vpop.f32.mrf.mxu0
        %v9149 = vadd.f32 %v8975, %v9148
        %v9150 = vpop.f32.mrf.mxu0
        %9151 = vmatprep.mubr.f32.mxu0 0.0
        %v9152 = vand.u32 %v6675, 4294901760
        %9153 = vmatmul.mubr.f32.gmra.mxu0 %v9152
        %v9154 = vpop.f32.mrf.mxu0
        %v9155 = vadd.f32 %v8981, %v9154
        %v9156 = vpop.f32.mrf.mxu0
        %9157 = vdwg.mxu0
        %v9158 = vld [vmem:[#allocation2] sm:$0xff]
        %v9159 = vld [vmem:[#allocation2 + $0x8] sm:$0xff]
        %v9160 = vld [vmem:[#allocation2 + $0x10] sm:$0xff]
        %v9161 = vld [vmem:[#allocation2 + $0x18] sm:$0xff]
        %v9162 = vld [vmem:[#allocation2 + $0x20] sm:$0xff]
        %v9163 = vld [vmem:[#allocation2 + $0x28] sm:$0xff]
        %v9164 = vld [vmem:[#allocation2 + $0x30] sm:$0xff]
        %v9165 = vld [vmem:[#allocation2 + $0x38] sm:$0xff]
        %v9166 = vld [vmem:[#allocation2 + $0x40] sm:$0xff]
        %v9167 = vld [vmem:[#allocation2 + $0x48] sm:$0xff]
        %v9168 = vld [vmem:[#allocation2 + $0x50] sm:$0xff]
        %v9169 = vld [vmem:[#allocation2 + $0x58] sm:$0xff]
        %v9170 = vld [vmem:[#allocation2 + $0x60] sm:$0xff]
        %v9171 = vld [vmem:[#allocation2 + $0x68] sm:$0xff]
        %v9172 = vld [vmem:[#allocation2 + $0x70] sm:$0xff]
        %v9173 = vld [vmem:[#allocation2 + $0x78] sm:$0xff]
        %v9174 = vld [vmem:[#allocation2 + $0x80] sm:$0xff]
        %v9175 = vld [vmem:[#allocation2 + $0x88] sm:$0xff]
        %v9176 = vld [vmem:[#allocation2 + $0x90] sm:$0xff]
        %v9177 = vld [vmem:[#allocation2 + $0x98] sm:$0xff]
        %v9178 = vld [vmem:[#allocation2 + $0xa0] sm:$0xff]
        %v9179 = vld [vmem:[#allocation2 + $0xa8] sm:$0xff]
        %v9180 = vld [vmem:[#allocation2 + $0xb0] sm:$0xff]
        %v9181 = vld [vmem:[#allocation2 + $0xb8] sm:$0xff]
        %v9182 = vld [vmem:[#allocation2 + $0xc0] sm:$0xff]
        %v9183 = vld [vmem:[#allocation2 + $0xc8] sm:$0xff]
        %v9184 = vld [vmem:[#allocation2 + $0xd0] sm:$0xff]
        %v9185 = vld [vmem:[#allocation2 + $0xd8] sm:$0xff]
        %v9186 = vld [vmem:[#allocation2 + $0xe0] sm:$0xff]
        %v9187 = vld [vmem:[#allocation2 + $0xe8] sm:$0xff]
        %v9188 = vld [vmem:[#allocation2 + $0xf0] sm:$0xff]
        %v9189 = vld [vmem:[#allocation2 + $0xf8] sm:$0xff]
        %v9190 = vld [vmem:[#allocation2 + $0x100] sm:$0xff]
        %v9191 = vld [vmem:[#allocation2 + $0x108] sm:$0xff]
        %v9192 = vld [vmem:[#allocation2 + $0x110] sm:$0xff]
        %v9193 = vld [vmem:[#allocation2 + $0x118] sm:$0xff]
        %v9194 = vld [vmem:[#allocation2 + $0x120] sm:$0xff]
        %v9195 = vld [vmem:[#allocation2 + $0x128] sm:$0xff]
        %v9196 = vld [vmem:[#allocation2 + $0x130] sm:$0xff]
        %v9197 = vld [vmem:[#allocation2 + $0x138] sm:$0xff]
        %v9198 = vld [vmem:[#allocation2 + $0x140] sm:$0xff]
        %v9199 = vld [vmem:[#allocation2 + $0x148] sm:$0xff]
        %v9200 = vld [vmem:[#allocation2 + $0x150] sm:$0xff]
        %v9201 = vld [vmem:[#allocation2 + $0x158] sm:$0xff]
        %v9202 = vld [vmem:[#allocation2 + $0x160] sm:$0xff]
        %v9203 = vld [vmem:[#allocation2 + $0x168] sm:$0xff]
        %v9204 = vld [vmem:[#allocation2 + $0x170] sm:$0xff]
        %v9205 = vld [vmem:[#allocation2 + $0x178] sm:$0xff]
        %v9206 = vld [vmem:[#allocation2 + $0x180] sm:$0xff]
        %v9207 = vld [vmem:[#allocation2 + $0x188] sm:$0xff]
        %v9208 = vld [vmem:[#allocation2 + $0x190] sm:$0xff]
        %v9209 = vld [vmem:[#allocation2 + $0x198] sm:$0xff]
        %v9210 = vld [vmem:[#allocation2 + $0x1a0] sm:$0xff]
        %v9211 = vld [vmem:[#allocation2 + $0x1a8] sm:$0xff]
        %v9212 = vadd.f32 %v9158, %v7858
        %v9213 = vadd.f32 %v9159, %v7860
        %v9214 = vadd.f32 %v9160, %v9053
        %v9215 = vadd.f32 %v9161, %v7865
        %v9216 = vadd.f32 %v9162, %v7867
        %v9217 = vadd.f32 %v9163, %v9059
        %v9218 = vadd.f32 %v9164, %v7872
        %v9219 = vadd.f32 %v9165, %v7874
        %v9220 = vadd.f32 %v9166, %v9065
        %v9221 = vadd.f32 %v9167, %v7879
        %v9222 = vadd.f32 %v9168, %v7881
        %v9223 = vadd.f32 %v9169, %v9071
        %v9224 = vadd.f32 %v9170, %v7886
        %v9225 = vadd.f32 %v9171, %v7888
        %v9226 = vadd.f32 %v9172, %v9077
        %v9227 = vadd.f32 %v9173, %v7893
        %v9228 = vadd.f32 %v9174, %v7895
        %v9229 = vadd.f32 %v9175, %v9083
        %v9230 = vadd.f32 %v9176, %v7900
        %v9231 = vadd.f32 %v9177, %v7902
        %v9232 = vadd.f32 %v9178, %v9089
        %v9233 = vadd.f32 %v9179, %v7907
        %v9234 = vadd.f32 %v9180, %v7909
        %v9235 = vadd.f32 %v9181, %v9095
        %v9236 = vadd.f32 %v9182, %v7914
        %v9237 = vadd.f32 %v9183, %v7916
        %v9238 = vadd.f32 %v9184, %v9101
        %v9239 = vadd.f32 %v9185, %v7921
        %v9240 = vadd.f32 %v9186, %v7923
        %v9241 = vadd.f32 %v9187, %v9107
        %v9242 = vadd.f32 %v9188, %v7928
        %v9243 = vadd.f32 %v9189, %v7930
        %v9244 = vadd.f32 %v9190, %v9113
        %v9245 = vadd.f32 %v9191, %v7935
        %v9246 = vadd.f32 %v9192, %v7937
        %v9247 = vadd.f32 %v9193, %v9119
        %v9248 = vadd.f32 %v9194, %v7942
        %v9249 = vadd.f32 %v9195, %v7944
        %v9250 = vadd.f32 %v9196, %v9125
        %v9251 = vadd.f32 %v9197, %v7949
        %v9252 = vadd.f32 %v9198, %v7951
        %v9253 = vadd.f32 %v9199, %v9131
        %v9254 = vadd.f32 %v9200, %v7956
        %v9255 = vadd.f32 %v9201, %v7958
        %v9256 = vadd.f32 %v9202, %v9137
        %v9257 = vadd.f32 %v9203, %v7963
        %v9258 = vadd.f32 %v9204, %v7965
        %v9259 = vadd.f32 %v9205, %v9143
        %v9260 = vadd.f32 %v9206, %v7970
        %v9261 = vadd.f32 %v9207, %v7972
        %v9262 = vadd.f32 %v9208, %v9149
        %v9263 = vadd.f32 %v9209, %v7977
        %v9264 = vadd.f32 %v9210, %v7979
        %v9265 = vadd.f32 %v9211, %v9155
        %9266 = vst [vmem:[#allocation2] sm:$0xff] %v9212
        %9267 = vst [vmem:[#allocation2 + $0x8] sm:$0xff] %v9213
        %9268 = vst [vmem:[#allocation2 + $0x10] sm:$0xff] %v9214
        %9269 = vst [vmem:[#allocation2 + $0x18] sm:$0xff] %v9215
        %9270 = vst [vmem:[#allocation2 + $0x20] sm:$0xff] %v9216
        %9271 = vst [vmem:[#allocation2 + $0x28] sm:$0xff] %v9217
        %9272 = vst [vmem:[#allocation2 + $0x30] sm:$0xff] %v9218
        %9273 = vst [vmem:[#allocation2 + $0x38] sm:$0xff] %v9219
        %9274 = vst [vmem:[#allocation2 + $0x40] sm:$0xff] %v9220
        %9275 = vst [vmem:[#allocation2 + $0x48] sm:$0xff] %v9221
        %9276 = vst [vmem:[#allocation2 + $0x50] sm:$0xff] %v9222
        %9277 = vst [vmem:[#allocation2 + $0x58] sm:$0xff] %v9223
        %9278 = vst [vmem:[#allocation2 + $0x60] sm:$0xff] %v9224
        %9279 = vst [vmem:[#allocation2 + $0x68] sm:$0xff] %v9225
        %9280 = vst [vmem:[#allocation2 + $0x70] sm:$0xff] %v9226
        %9281 = vst [vmem:[#allocation2 + $0x78] sm:$0xff] %v9227
        %9282 = vst [vmem:[#allocation2 + $0x80] sm:$0xff] %v9228
        %9283 = vst [vmem:[#allocation2 + $0x88] sm:$0xff] %v9229
        %9284 = vst [vmem:[#allocation2 + $0x90] sm:$0xff] %v9230
        %9285 = vst [vmem:[#allocation2 + $0x98] sm:$0xff] %v9231
        %9286 = vst [vmem:[#allocation2 + $0xa0] sm:$0xff] %v9232
        %9287 = vst [vmem:[#allocation2 + $0xa8] sm:$0xff] %v9233
        %9288 = vst [vmem:[#allocation2 + $0xb0] sm:$0xff] %v9234
        %9289 = vst [vmem:[#allocation2 + $0xb8] sm:$0xff] %v9235
        %9290 = vst [vmem:[#allocation2 + $0xc0] sm:$0xff] %v9236
        %9291 = vst [vmem:[#allocation2 + $0xc8] sm:$0xff] %v9237
        %9292 = vst [vmem:[#allocation2 + $0xd0] sm:$0xff] %v9238
        %9293 = vst [vmem:[#allocation2 + $0xd8] sm:$0xff] %v9239
        %9294 = vst [vmem:[#allocation2 + $0xe0] sm:$0xff] %v9240
        %9295 = vst [vmem:[#allocation2 + $0xe8] sm:$0xff] %v9241
        %9296 = vst [vmem:[#allocation2 + $0xf0] sm:$0xff] %v9242
        %9297 = vst [vmem:[#allocation2 + $0xf8] sm:$0xff] %v9243
        %9298 = vst [vmem:[#allocation2 + $0x100] sm:$0xff] %v9244
        %9299 = vst [vmem:[#allocation2 + $0x108] sm:$0xff] %v9245
        %9300 = vst [vmem:[#allocation2 + $0x110] sm:$0xff] %v9246
        %9301 = vst [vmem:[#allocation2 + $0x118] sm:$0xff] %v9247
        %9302 = vst [vmem:[#allocation2 + $0x120] sm:$0xff] %v9248
        %9303 = vst [vmem:[#allocation2 + $0x128] sm:$0xff] %v9249
        %9304 = vst [vmem:[#allocation2 + $0x130] sm:$0xff] %v9250
        %9305 = vst [vmem:[#allocation2 + $0x138] sm:$0xff] %v9251
        %9306 = vst [vmem:[#allocation2 + $0x140] sm:$0xff] %v9252
        %9307 = vst [vmem:[#allocation2 + $0x148] sm:$0xff] %v9253
        %9308 = vst [vmem:[#allocation2 + $0x150] sm:$0xff] %v9254
        %9309 = vst [vmem:[#allocation2 + $0x158] sm:$0xff] %v9255
        %9310 = vst [vmem:[#allocation2 + $0x160] sm:$0xff] %v9256
        %9311 = vst [vmem:[#allocation2 + $0x168] sm:$0xff] %v9257
        %9312 = vst [vmem:[#allocation2 + $0x170] sm:$0xff] %v9258
        %9313 = vst [vmem:[#allocation2 + $0x178] sm:$0xff] %v9259
        %9314 = vst [vmem:[#allocation2 + $0x180] sm:$0xff] %v9260
        %9315 = vst [vmem:[#allocation2 + $0x188] sm:$0xff] %v9261
        %9316 = vst [vmem:[#allocation2 + $0x190] sm:$0xff] %v9262
        %9317 = vst [vmem:[#allocation2 + $0x198] sm:$0xff] %v9263
        %9318 = vst [vmem:[#allocation2 + $0x1a0] sm:$0xff] %v9264
        %9319 = vst [vmem:[#allocation2 + $0x1a8] sm:$0xff] %v9265
        %v9320 = vld [vmem:[#allocation2] sm:$0xff]
        %v9321 = vld [vmem:[#allocation2 + $0x8] sm:$0xff]
        %v9322 = vld [vmem:[#allocation2 + $0x10] sm:$0xff]
        %v9323 = vld [vmem:[#allocation2 + $0x18] sm:$0xff]
        %v9324 = vld [vmem:[#allocation2 + $0x20] sm:$0xff]
        %v9325 = vld [vmem:[#allocation2 + $0x28] sm:$0xff]
        %v9326 = vld [vmem:[#allocation2 + $0x30] sm:$0xff]
        %v9327 = vld [vmem:[#allocation2 + $0x38] sm:$0xff]
        %v9328 = vld [vmem:[#allocation2 + $0x40] sm:$0xff]
        %v9329 = vld [vmem:[#allocation2 + $0x48] sm:$0xff]
        %v9330 = vld [vmem:[#allocation2 + $0x50] sm:$0xff]
        %v9331 = vld [vmem:[#allocation2 + $0x58] sm:$0xff]
        %v9332 = vld [vmem:[#allocation2 + $0x60] sm:$0xff]
        %v9333 = vld [vmem:[#allocation2 + $0x68] sm:$0xff]
        %v9334 = vld [vmem:[#allocation2 + $0x70] sm:$0xff]
        %v9335 = vld [vmem:[#allocation2 + $0x78] sm:$0xff]
        %v9336 = vld [vmem:[#allocation2 + $0x80] sm:$0xff]
        %v9337 = vld [vmem:[#allocation2 + $0x88] sm:$0xff]
        %v9338 = vld [vmem:[#allocation2 + $0x90] sm:$0xff]
        %v9339 = vld [vmem:[#allocation2 + $0x98] sm:$0xff]
        %v9340 = vld [vmem:[#allocation2 + $0xa0] sm:$0xff]
        %v9341 = vld [vmem:[#allocation2 + $0xa8] sm:$0xff]
        %v9342 = vld [vmem:[#allocation2 + $0xb0] sm:$0xff]
        %v9343 = vld [vmem:[#allocation2 + $0xb8] sm:$0xff]
        %v9344 = vld [vmem:[#allocation2 + $0xc0] sm:$0xff]
        %v9345 = vld [vmem:[#allocation2 + $0xc8] sm:$0xff]
        %v9346 = vld [vmem:[#allocation2 + $0xd0] sm:$0xff]
        %v9347 = vld [vmem:[#allocation2 + $0xd8] sm:$0xff]
        %v9348 = vld [vmem:[#allocation2 + $0xe0] sm:$0xff]
        %v9349 = vld [vmem:[#allocation2 + $0xe8] sm:$0xff]
        %v9350 = vld [vmem:[#allocation2 + $0xf0] sm:$0xff]
        %v9351 = vld [vmem:[#allocation2 + $0xf8] sm:$0xff]
        %v9352 = vld [vmem:[#allocation2 + $0x100] sm:$0xff]
        %v9353 = vld [vmem:[#allocation2 + $0x108] sm:$0xff]
        %v9354 = vld [vmem:[#allocation2 + $0x110] sm:$0xff]
        %v9355 = vld [vmem:[#allocation2 + $0x118] sm:$0xff]
        %v9356 = vld [vmem:[#allocation2 + $0x120] sm:$0xff]
        %v9357 = vld [vmem:[#allocation2 + $0x128] sm:$0xff]
        %v9358 = vld [vmem:[#allocation2 + $0x130] sm:$0xff]
        %v9359 = vld [vmem:[#allocation2 + $0x138] sm:$0xff]
        %v9360 = vld [vmem:[#allocation2 + $0x140] sm:$0xff]
        %v9361 = vld [vmem:[#allocation2 + $0x148] sm:$0xff]
        %v9362 = vld [vmem:[#allocation2 + $0x150] sm:$0xff]
        %v9363 = vld [vmem:[#allocation2 + $0x158] sm:$0xff]
        %v9364 = vld [vmem:[#allocation2 + $0x160] sm:$0xff]
        %v9365 = vld [vmem:[#allocation2 + $0x168] sm:$0xff]
        %v9366 = vld [vmem:[#allocation2 + $0x170] sm:$0xff]
        %v9367 = vld [vmem:[#allocation2 + $0x178] sm:$0xff]
        %v9368 = vld [vmem:[#allocation2 + $0x180] sm:$0xff]
        %v9369 = vld [vmem:[#allocation2 + $0x188] sm:$0xff]
        %v9370 = vld [vmem:[#allocation2 + $0x190] sm:$0xff]
        %v9371 = vld [vmem:[#allocation2 + $0x198] sm:$0xff]
        %v9372 = vld [vmem:[#allocation2 + $0x1a0] sm:$0xff]
        %v9373 = vld [vmem:[#allocation2 + $0x1a8] sm:$0xff]
        %v9374 = vld [vmem:[#allocation2 + $0x1b8] sm:$0xff]
        %v9375 = vld [vmem:[#allocation2 + $0x1c0] sm:$0xff]
        %vm9395 = vcmask 1046528
        %v9396 = vrot.slane %v9321, 1
        %v9397 = vrot.slane %v9324, 1
        %v9398 = vsel %vm9395, %v9396, %v9397
        %v9399 = vrot.slane %v9327, 1
        %v9400 = vsel %vm9395, %v9397, %v9399
        %v9401 = vrot.slane %v9330, 1
        %v9402 = vsel %vm9395, %v9399, %v9401
        %v9403 = vrot.slane %v9333, 1
        %v9404 = vsel %vm9395, %v9401, %v9403
        %v9405 = vrot.slane %v9336, 1
        %v9406 = vsel %vm9395, %v9403, %v9405
        %v9407 = vrot.slane %v9339, 1
        %v9408 = vsel %vm9395, %v9405, %v9407
        %v9409 = vrot.slane %v9342, 1
        %v9410 = vsel %vm9395, %v9407, %v9409
        %v9411 = vrot.slane %v9345, 1
        %v9412 = vsel %vm9395, %v9409, %v9411
        %v9413 = vrot.slane %v9348, 1
        %v9414 = vsel %vm9395, %v9411, %v9413
        %v9415 = vrot.slane %v9351, 1
        %v9416 = vsel %vm9395, %v9413, %v9415
        %v9417 = vrot.slane %v9354, 1
        %v9418 = vsel %vm9395, %v9415, %v9417
        %v9419 = vrot.slane %v9357, 1
        %v9420 = vsel %vm9395, %v9417, %v9419
        %v9421 = vrot.slane %v9360, 1
        %v9422 = vsel %vm9395, %v9419, %v9421
        %v9423 = vrot.slane %v9363, 1
        %v9424 = vsel %vm9395, %v9421, %v9423
        %v9425 = vrot.slane %v9366, 1
        %v9426 = vsel %vm9395, %v9423, %v9425
        %v9427 = vrot.slane %v9369, 1
        %v9428 = vsel %vm9395, %v9425, %v9427
        %v9429 = vrot.slane %v9372, 1
        %v9430 = vsel %vm9395, %v9427, %v9429
        %v9431 = vrot.slane %v9374, 1
        %v9432 = vsel %vm9395, %v9429, %v9431
        %v9451 = vadd.f32 %v9320, %v9398
        %v9452 = vadd.f32 %v9323, %v9400
        %v9453 = vadd.f32 %v9326, %v9402
        %v9454 = vadd.f32 %v9329, %v9404
        %v9455 = vadd.f32 %v9332, %v9406
        %v9456 = vadd.f32 %v9335, %v9408
        %v9457 = vadd.f32 %v9338, %v9410
        %v9458 = vadd.f32 %v9341, %v9412
        %v9459 = vadd.f32 %v9344, %v9414
        %v9460 = vadd.f32 %v9347, %v9416
        %v9461 = vadd.f32 %v9350, %v9418
        %v9462 = vadd.f32 %v9353, %v9420
        %v9463 = vadd.f32 %v9356, %v9422
        %v9464 = vadd.f32 %v9359, %v9424
        %v9465 = vadd.f32 %v9362, %v9426
        %v9466 = vadd.f32 %v9365, %v9428
        %v9467 = vadd.f32 %v9368, %v9430
        %v9468 = vadd.f32 %v9371, %v9432
        %vm9488 = vcmask 1045504
        %v9489 = vrot.slane %v9322, 2
        %v9490 = vrot.slane %v9325, 2
        %v9491 = vsel %vm9488, %v9489, %v9490
        %v9492 = vrot.slane %v9328, 2
        %v9493 = vsel %vm9488, %v9490, %v9492
        %v9494 = vrot.slane %v9331, 2
        %v9495 = vsel %vm9488, %v9492, %v9494
        %v9496 = vrot.slane %v9334, 2
        %v9497 = vsel %vm9488, %v9494, %v9496
        %v9498 = vrot.slane %v9337, 2
        %v9499 = vsel %vm9488, %v9496, %v9498
        %v9500 = vrot.slane %v9340, 2
        %v9501 = vsel %vm9488, %v9498, %v9500
        %v9502 = vrot.slane %v9343, 2
        %v9503 = vsel %vm9488, %v9500, %v9502
        %v9504 = vrot.slane %v9346, 2
        %v9505 = vsel %vm9488, %v9502, %v9504
        %v9506 = vrot.slane %v9349, 2
        %v9507 = vsel %vm9488, %v9504, %v9506
        %v9508 = vrot.slane %v9352, 2
        %v9509 = vsel %vm9488, %v9506, %v9508
        %v9510 = vrot.slane %v9355, 2
        %v9511 = vsel %vm9488, %v9508, %v9510
        %v9512 = vrot.slane %v9358, 2
        %v9513 = vsel %vm9488, %v9510, %v9512
        %v9514 = vrot.slane %v9361, 2
        %v9515 = vsel %vm9488, %v9512, %v9514
        %v9516 = vrot.slane %v9364, 2
        %v9517 = vsel %vm9488, %v9514, %v9516
        %v9518 = vrot.slane %v9367, 2
        %v9519 = vsel %vm9488, %v9516, %v9518
        %v9520 = vrot.slane %v9370, 2
        %v9521 = vsel %vm9488, %v9518, %v9520
        %v9522 = vrot.slane %v9373, 2
        %v9523 = vsel %vm9488, %v9520, %v9522
        %v9524 = vrot.slane %v9375, 2
        %v9525 = vsel %vm9488, %v9522, %v9524
        %v9544 = vadd.f32 %v9451, %v9491
        %v9545 = vadd.f32 %v9452, %v9493
        %v9546 = vadd.f32 %v9453, %v9495
        %v9547 = vadd.f32 %v9454, %v9497
        %v9548 = vadd.f32 %v9455, %v9499
        %v9549 = vadd.f32 %v9456, %v9501
        %v9550 = vadd.f32 %v9457, %v9503
        %v9551 = vadd.f32 %v9458, %v9505
        %v9552 = vadd.f32 %v9459, %v9507
        %v9553 = vadd.f32 %v9460, %v9509
        %v9554 = vadd.f32 %v9461, %v9511
        %v9555 = vadd.f32 %v9462, %v9513
        %v9556 = vadd.f32 %v9463, %v9515
        %v9557 = vadd.f32 %v9464, %v9517
        %v9558 = vadd.f32 %v9465, %v9519
        %v9559 = vadd.f32 %v9466, %v9521
        %v9560 = vadd.f32 %v9467, %v9523
        %v9561 = vadd.f32 %v9468, %v9525
        %v9562 = vld [vmem:[%s2] sm:$0x1]
        %v9564 = vlaneseq
        %v9565 = vshrl.u32 %v9564, 7
        %v9566 = vsub.s32 0, %v9565
        %v9567 = vrot.slane %v9562, %v9566
        %v9569 = vadd.f32 %v9544, %v9567
        %v9570 = vadd.f32 %v9545, %v9567
        %v9571 = vadd.f32 %v9546, %v9567
        %v9572 = vadd.f32 %v9547, %v9567
        %v9573 = vadd.f32 %v9548, %v9567
        %v9574 = vadd.f32 %v9549, %v9567
        %v9575 = vadd.f32 %v9550, %v9567
        %v9576 = vadd.f32 %v9551, %v9567
        %v9577 = vadd.f32 %v9552, %v9567
        %v9578 = vadd.f32 %v9553, %v9567
        %v9579 = vadd.f32 %v9554, %v9567
        %v9580 = vadd.f32 %v9555, %v9567
        %v9581 = vadd.f32 %v9556, %v9567
        %v9582 = vadd.f32 %v9557, %v9567
        %v9583 = vadd.f32 %v9558, %v9567
        %v9584 = vadd.f32 %v9559, %v9567
        %v9585 = vadd.f32 %v9560, %v9567
        %v9586 = vadd.f32 %v9561, %v9567
        %9587 = vst [vmem:[%s187] sm:$0xff] %v9569
        %9588 = vst [vmem:[%s187 + $0x8] sm:$0xff] %v9570
        %9589 = vst [vmem:[%s187 + $0x10] sm:$0xff] %v9571
        %9590 = vst [vmem:[%s187 + $0x18] sm:$0xff] %v9572
        %9591 = vst [vmem:[%s187 + $0x20] sm:$0xff] %v9573
        %9592 = vst [vmem:[%s187 + $0x28] sm:$0xff] %v9574
        %9593 = vst [vmem:[%s187 + $0x30] sm:$0xff] %v9575
        %9594 = vst [vmem:[%s187 + $0x38] sm:$0xff] %v9576
        %9595 = vst [vmem:[%s187 + $0x40] sm:$0xff] %v9577
        %9596 = vst [vmem:[%s187 + $0x48] sm:$0xff] %v9578
        %9597 = vst [vmem:[%s187 + $0x50] sm:$0xff] %v9579
        %9598 = vst [vmem:[%s187 + $0x58] sm:$0xff] %v9580
        %9599 = vst [vmem:[%s187 + $0x60] sm:$0xff] %v9581
        %9600 = vst [vmem:[%s187 + $0x68] sm:$0xff] %v9582
        %9601 = vst [vmem:[%s187 + $0x70] sm:$0xff] %v9583
        %9602 = vst [vmem:[%s187 + $0x78] sm:$0xff] %v9584
        %9603 = vst [vmem:[%s187 + $0x80] sm:$0xff] %v9585
        %9604 = vst [vmem:[%s187 + $0x88] sm:$0xff] %v9586
        %s9605 = sand.u32 %s109, 1
        %s9606 = scalar_lea.sflag [#allocation4], %s9605
        %s9607 = sand.u32 %s109, 1
        %s9608 = smul.addr %s9607, 144
        %s9609 = scalar_lea.vmem [#allocation3], %s9608
        // Predicated region
        $region33: #{tpu_custom_call.1} parent=31 // pred_check
          %p9610 = pneg %p119
        $region34: #{tpu_custom_call.1} parent=31 // pred_check_branch
          %9612 = sbr.rel (%p9610) target = $region36
        $region35: #{tpu_custom_call.1} parent=31 // pred_region
          %s9614 = ssub.s32 2304, 2304
          %9615 = vsyncadd %s9606, %s9614
          %s9616 = smul.addr %s22, 18
          %s9617 = smul.addr %s21, 36
          %s9618 = sadd.s32 %s9616, %s9617
          %s9619 = smul.addr %s9618, 128
          %s9620 = scalar_lea.hbm %s3, %s9619
          %s9621 = sshll.u32 %s9609, 4
          %s9622 = int_to_ptr.vmem [resolvable:$true] %s9621
          %9627 = dma.vmem_to_hbm [thread:$0]  %s9622, 2304, %s9620, %s9606, 128, 128, 8
        $region36: #{tpu_custom_call.1} parent=31 // pred_fallthru
          _
      $region32: #{tpu_custom_call.1} parent=5 // pred_fallthru
        _
      %p9628 = scmp.le.s32.totalorder 2, %s12
      // Predicated region
      $region37: #{tpu_custom_call.1} parent=5 // pred_check
        %p9629 = pneg %p9628
      $region38: #{tpu_custom_call.1} parent=5 // pred_check_branch
        %9631 = sbr.rel (%p9629) target = $region40
      $region39: #{tpu_custom_call.1} parent=5 // pred_region
        %s9632 = ssub.s32 %s12, 2
        // Predicated region
        $region41: #{tpu_custom_call.1} parent=39 // pred_check
          %p9633 = pneg %p125
        $region42: #{tpu_custom_call.1} parent=39 // pred_check_branch
          %9635 = sbr.rel (%p9633) target = $region44
        $region43: #{tpu_custom_call.1} parent=39 // pred_region
          %s9636 = sand.u32 %s110, 1
          %s9637 = scalar_lea.sflag [#allocation4], %s9636
          %s9638 = sand.u32 %s110, 1
          %s9639 = smul.addr %s9638, 144
          %s9640 = scalar_lea.vmem [#allocation3], %s9639
          %9641 = dma.done %s9637, 2304
        $region44: #{tpu_custom_call.1} parent=39 // pred_fallthru
          _
      $region40: #{tpu_custom_call.1} parent=5 // pred_fallthru
        _
    $region6: #{tpu_custom_call.1} parent=1 // loop_footer
      %s16 = sadd.s32 1, %s12
    $region7: #{tpu_custom_call.1} parent=1 // loop_footer_branch
      %11 = sbr.rel target = $region3
    $region8: #{tpu_custom_call.1} parent=1 // loop_exit
      _
    %9642 = vsyncpa [#allocation4], 1
    %s9643 = scalar_lea.sflag [#allocation4], 1
    %9644 = vsyncpa %s9643, 1

</llo_original>
